<compile_context>
chip_gen: v7x
topology: tpu7x:2x2x1
jax: 0.10.0
libtpu: 0.0.40
codegen_flags: <defaults>
</compile_context>

<pallas_src>
import math

import jax
import jax.numpy as jnp
from jax.experimental import pallas as pl
from jax.experimental.pallas import tpu as pltpu


def npe_deepset_kernel(
    inputs_ref, theta_ref,
    fw1, fb1,                # feature-extractor layer 1 (F -> H)
    w_hh, b_hh,              # stacked (5, H, H)/(5, 1, H): [fe2, fe3, reg1, reg2, reg3]
    rw4, rb4,                # regressor output layer (H -> E)
    wc1, bc1,                # NPE context net (E -> NPE_H)
    a_slab, c_slab, b_slab,  # folded flow params: (P, 2TP), (NPE_H, 2TP), (1, 2TP)
    out_ref,
):
    f32 = jnp.float32
    TB, N, F = inputs_ref.shape
    H = fw1.shape[-1]
    P = theta_ref.shape[-1]
    T = a_slab.shape[-1] // (2 * P)

    def mm(a, w):
        # MXU matmul in the weight dtype (bf16 on v6e/v7x), f32 accumulation.
        return jnp.dot(a.astype(w.dtype), w, preferred_element_type=f32)

    # ---- flatten the set axis so the feature extractor runs at M = TB*N
    x = inputs_ref[...].reshape(TB * N, F)
    # mask = inputs[:, :, 0] != 0 (bf16 never rounds a normal nonzero f32 to 0)
    mask = (x[:, 0:1] != 0).astype(f32)                       # (TB*N, 1)

    # ---- feature extractor: Linear / ReLU / Linear / ReLU / Linear
    h = jnp.maximum(mm(x, fw1[...]) + fb1[...], 0.0)
    h = jnp.maximum(mm(h, w_hh[0]) + b_hh[0], 0.0)
    h = mm(h, w_hh[1]) + b_hh[1]                              # (TB*N, H)

    # ---- masked DeepSet sum over the set axis (XLU reduction, overlaps MXU work)
    h = (h * mask).reshape(TB, N, H)
    s = jnp.sum(h, axis=1)                                    # (TB, H)

    # ---- regressor MLP -> embedding
    r = jnp.maximum(mm(s, w_hh[2]) + b_hh[2], 0.0)
    r = jnp.maximum(mm(r, w_hh[3]) + b_hh[3], 0.0)
    r = jnp.maximum(mm(r, w_hh[4]) + b_hh[4], 0.0)
    emb = mm(r, rw4[...]) + rb4[...]                          # (TB, E)

    # ---- NPE head: log p(theta | emb) via a conditional affine MAF (f32 math)
    ctx = jnp.maximum(mm(emb, wc1[...]) + bc1[...], 0.0)      # (TB, NPE_H)
    # Hoisted context projections + biases for all T transforms (mu and log_s parts).
    ctx_all = jnp.dot(ctx, c_slab[...], preferred_element_type=f32) + b_slab[...]

    a_all = a_slab[...]                                       # (P, 2*T*P), f32
    z = theta_ref[...].astype(f32)                            # (TB, P)
    logdet = jnp.zeros((TB, 1), f32)
    for t in range(T):
        lo = 2 * P * t
        # One tiny dot per transform gives both the mu- and log_s- contributions.
        zz = jnp.dot(z, a_all[:, lo:lo + 2 * P], preferred_element_type=f32)
        pre = zz + ctx_all[:, lo:lo + 2 * P]
        mu = pre[:, :P]
        log_s = jnp.tanh(pre[:, P:])
        z = (z - mu) * jnp.exp(-log_s)
        logdet = logdet - jnp.sum(log_s, axis=-1, keepdims=True)

    log_prob = (-0.5 * jnp.sum(z * z, axis=-1, keepdims=True)
                - 0.5 * P * math.log(2.0 * math.pi)
                + logdet)                                     # (TB, 1)
    # Lane-dense output: one row of TB log-probs per grid step.
    out_ref[...] = jnp.transpose(log_prob, (1, 0))            # (1, TB)


def _fold_flow_params(a_mu, c_mu, b_mu, a_s, c_s, b_s, perm):
    """Fold the inter-transform reversal permutation into the per-transform weights
    and concatenate (mu, log_s) x T along the output axis, so the in-kernel flow
    loop needs one tiny z-matmul per transform and no permutation matmul.
    Relies on the permutation being an involution (perm @ perm == I)."""
    T, P, _ = a_mu.shape
    eye = jnp.eye(P, dtype=jnp.float32)
    a_cols, c_cols, b_cols = [], [], []
    for t in range(T):
        Jk = eye if t % 2 == 0 else perm   # J^{k_t}, k_t = #permutations before step t
        a_cols += [Jk @ a_mu[t] @ Jk, Jk @ a_s[t] @ Jk]
        c_cols += [c_mu[t] @ Jk, c_s[t] @ Jk]
        b_cols += [b_mu[t] @ Jk, b_s[t] @ Jk]
    a_slab = jnp.concatenate(a_cols, axis=-1)      # (P, 2*T*P)
    c_slab = jnp.concatenate(c_cols, axis=-1)      # (NPE_H, 2*T*P)
    b_slab = jnp.concatenate(b_cols, axis=-1)      # (1, 2*T*P)
    return a_slab, c_slab, b_slab


def npe_with_deepset_forward(theta, inputs, params, *, tb=128,
                             matmul_dtype=jnp.float32):
    """tb: batch rows per grid step (multiple of 128 keeps the output lane-dense;
    for v7x pick tb <= B/2 when B is large so grid >= 2 and both TCs get work).
    matmul_dtype: jnp.bfloat16 on v6e/v7x halves input HBM traffic and runs the MXU
    at native bf16 rate; elementwise math and the flow stay f32."""
    (fw1, fb1, fw2, fb2, fw3, fb3,
     rw1, rb1, rw2, rb2, rw3, rb3, rw4, rb4,
     wc1, bc1, a_mu, c_mu, b_mu, a_s, c_s, b_s, perm) = params

    B, N, F = inputs.shape
    P = theta.shape[-1]
    md = matmul_dtype

    # ---- pack the many small parameters into a few slabs (fewer BlockSpecs / DMAs)
    w_hh = jnp.stack([fw2, fw3, rw1, rw2, rw3]).astype(md)    # (5, H, H)
    b_hh = jnp.stack([fb2, fb3, rb1, rb2, rb3])               # (5, 1, H), f32
    a_slab, c_slab, b_slab = _fold_flow_params(a_mu, c_mu, b_mu, a_s, c_s, b_s, perm)
    packed = (fw1.astype(md), fb1, w_hh, b_hh, rw4.astype(md), rb4,
              wc1.astype(md), bc1, a_slab, c_slab, b_slab)

    # ---- pad the batch to a multiple of tb; tb rows per grid step
    G = pl.cdiv(B, tb)
    Bp = G * tb
    x = inputs.astype(jnp.float32)
    th = theta.astype(jnp.float32)
    if Bp != B:
        x = jnp.pad(x, ((0, Bp - B), (0, 0), (0, 0)))   # zero rows -> mask == 0
        th = jnp.pad(th, ((0, Bp - B), (0, 0)))
    x = x.astype(md)   # bf16 input slab halves HBM->VMEM bytes on v6e/v7x

    def _full(p):
        nd = p.ndim
        return pl.BlockSpec(p.shape, lambda g, _nd=nd: (0,) * _nd)

    in_specs = [
        pl.BlockSpec((tb, N, F), lambda g: (g, 0, 0)),
        pl.BlockSpec((tb, P), lambda g: (g, 0)),
    ] + [_full(p) for p in packed]

    out = pl.pallas_call(
        npe_deepset_kernel,
        out_shape=jax.ShapeDtypeStruct((G, tb), jnp.float32),
        grid=(G,),
        in_specs=in_specs,
        out_specs=pl.BlockSpec((1, tb), lambda g: (g, 0)),
        compiler_params=pltpu.CompilerParams(
            dimension_semantics=("parallel",),       # shards grid over v7x's 2 TCs
            vmem_limit_bytes=32 * 1024 * 1024,       # explicit: safe on v7x's 64 MiB VMEM
        ),
    )(x, th, *packed)
    return out.reshape(Bp)[:B]


def _linear(key, fan_in, fan_out):
    kw, kb = jax.random.split(key)
    bound = 1.0 / math.sqrt(fan_in)
    w = jax.random.uniform(kw, (fan_in, fan_out), jnp.float32, -bound, bound)
    b = jax.random.uniform(kb, (1, fan_out), jnp.float32, -bound, bound)
    return w, b


def init_params(key, F, H, E, P, NPE_H, T):
    ks = jax.random.split(key, 14)
    fw1, fb1 = _linear(ks[0], F, H)
    fw2, fb2 = _linear(ks[1], H, H)
    fw3, fb3 = _linear(ks[2], H, H)
    rw1, rb1 = _linear(ks[3], H, H)
    rw2, rb2 = _linear(ks[4], H, H)
    rw3, rb3 = _linear(ks[5], H, H)
    rw4, rb4 = _linear(ks[6], H, E)
    wc1, bc1 = _linear(ks[7], E, NPE_H)

    # strictly-autoregressive masks: output j depends only on theta_i with i < j
    strict = jnp.triu(jnp.ones((P, P), jnp.float32), k=1)
    a_mu = jax.random.uniform(ks[8], (T, P, P), jnp.float32, -0.3, 0.3) * strict
    a_s = jax.random.uniform(ks[9], (T, P, P), jnp.float32, -0.3, 0.3) * strict
    cb = 1.0 / math.sqrt(NPE_H)
    c_mu = jax.random.uniform(ks[10], (T, NPE_H, P), jnp.float32, -cb, cb)
    c_s = jax.random.uniform(ks[11], (T, NPE_H, P), jnp.float32, -cb, cb)
    b_mu = jax.random.uniform(ks[12], (T, 1, P), jnp.float32, -0.1, 0.1)
    b_s = jax.random.uniform(ks[13], (T, 1, P), jnp.float32, -0.1, 0.1)
    perm = jnp.eye(P, dtype=jnp.float32)[:, ::-1]   # reversal permutation matrix

    return (fw1, fb1, fw2, fb2, fw3, fb3,
            rw1, rb1, rw2, rb2, rw3, rb3, rw4, rb4,
            wc1, bc1, a_mu, c_mu, b_mu, a_s, c_s, b_s, perm)


def reference_forward(theta, inputs, params):
    """Pure-JAX reference of the original (un-folded, per-row) math."""
    (fw1, fb1, fw2, fb2, fw3, fb3, rw1, rb1, rw2, rb2, rw3, rb3, rw4, rb4,
     wc1, bc1, a_mu, c_mu, b_mu, a_s, c_s, b_s, perm) = params
    inp = inputs.astype(jnp.float32)
    mask = (inp[:, :, 0] != 0.0).astype(jnp.float32)
    h = jnp.maximum(jnp.einsum('bnf,fh->bnh', inp, fw1) + fb1, 0.0)
    h = jnp.maximum(jnp.einsum('bnh,hk->bnk', h, fw2) + fb2, 0.0)
    h = jnp.einsum('bnh,hk->bnk', h, fw3) + fb3
    h = h * mask[:, :, None]
    s = h.sum(axis=1)
    r = jnp.maximum(s @ rw1 + rb1, 0.0)
    r = jnp.maximum(r @ rw2 + rb2, 0.0)
    r = jnp.maximum(r @ rw3 + rb3, 0.0)
    emb = r @ rw4 + rb4
    ctx = jnp.maximum(emb @ wc1 + bc1, 0.0)
    z = theta.astype(jnp.float32)
    T = a_mu.shape[0]
    P = theta.shape[-1]
    logdet = jnp.zeros((theta.shape[0],), jnp.float32)
    for t in range(T):
        mu = z @ a_mu[t] + ctx @ c_mu[t] + b_mu[t]
        log_s = jnp.tanh(z @ a_s[t] + ctx @ c_s[t] + b_s[t])
        z = (z - mu) * jnp.exp(-log_s)
        logdet = logdet - jnp.sum(log_s, axis=-1)
        if t + 1 < T:
            z = z @ perm
    return (-0.5 * jnp.sum(z * z, axis=-1)
            - 0.5 * P * math.log(2.0 * math.pi) + logdet)


if __name__ == "__main__":
    B, N, F = 2, 8, 18        # batch, num_obs, per-observation features (mass_as_input=False)
    H, E = 32, 16             # embedding_hidden_features, embedding_output_dim
    P = 8                     # parameters
    NPE_H, T = 32, 3          # NPE_hidden_features, transforms

    key = jax.random.PRNGKey(0)
    k_in, k_th, k_par = jax.random.split(key, 3)
    inputs = jax.random.normal(k_in, (B, N, F), jnp.float32)
    # zero the leading feature of a few observations so the DeepSet mask is exercised
    inputs = inputs.at[0, 5:, 0].set(0.0)
    inputs = inputs.at[1, 2, 0].set(0.0)
    theta = jax.random.normal(k_th, (B, P), jnp.float32)
    params = init_params(k_par, F, H, E, P, NPE_H, T)

    ref = reference_forward(theta, inputs, params)

    # f32 MXU operands: exact-math path, tight correctness check.
    out = npe_with_deepset_forward(theta, inputs, params, matmul_dtype=jnp.float32)
    out = jax.block_until_ready(out)
    assert out.shape == (B,)
    assert jnp.allclose(out, ref, rtol=5e-2, atol=5e-2), (out, ref)

    # bf16 MXU operands (v6e/v7x fast path): same kernel code, smoke-level tolerance
    # against the f32 reference (only catches gross/structural errors).
    out_bf16 = npe_with_deepset_forward(theta, inputs, params, matmul_dtype=jnp.bfloat16)
    out_bf16 = jax.block_until_ready(out_bf16)
    assert jnp.all(jnp.isfinite(out_bf16))
    assert jnp.allclose(out_bf16, ref, rtol=0.5, atol=5.0), (out_bf16, ref)

    print("KERNEL_OK")
</pallas_src>

<mosaic_0001>
module attributes {stable_mosaic.version = 11 : i64} {
  func.func @npe_deepset_kernel(%arg0: i32, %arg1: memref<128x8x18xf32, #tpu.memory_space<vmem>>, %arg2: memref<128x8xf32, #tpu.memory_space<vmem>>, %arg3: memref<18x32xf32, #tpu.memory_space<vmem>>, %arg4: memref<1x32xf32, #tpu.memory_space<vmem>>, %arg5: memref<5x32x32xf32, #tpu.memory_space<vmem>>, %arg6: memref<5x1x32xf32, #tpu.memory_space<vmem>>, %arg7: memref<32x16xf32, #tpu.memory_space<vmem>>, %arg8: memref<1x16xf32, #tpu.memory_space<vmem>>, %arg9: memref<16x32xf32, #tpu.memory_space<vmem>>, %arg10: memref<1x32xf32, #tpu.memory_space<vmem>>, %arg11: memref<8x48xf32, #tpu.memory_space<vmem>>, %arg12: memref<32x48xf32, #tpu.memory_space<vmem>>, %arg13: memref<1x48xf32, #tpu.memory_space<vmem>>, %arg14: memref<1x128xf32, #tpu.memory_space<vmem>>) attributes {dimension_semantics = [#tpu.dimension_semantics<parallel>], iteration_bounds = array<i64: 1>, scalar_prefetch = 0 : i64, scratch_operands = 0 : i64, tpu.core_type = #tpu.core_type<tc>, window_params = [{transform_indices = @transform_0, window_bounds = array<i64: 128, 8, 18>}, {transform_indices = @transform_1, window_bounds = array<i64: 128, 8>}, {pipeline_mode = #tpu.pipeline_mode<synchronous>, transform_indices = @transform_2, window_bounds = array<i64: 18, 32>}, {pipeline_mode = #tpu.pipeline_mode<synchronous>, transform_indices = @transform_3, window_bounds = array<i64: 1, 32>}, {pipeline_mode = #tpu.pipeline_mode<synchronous>, transform_indices = @transform_4, window_bounds = array<i64: 5, 32, 32>}, {pipeline_mode = #tpu.pipeline_mode<synchronous>, transform_indices = @transform_5, window_bounds = array<i64: 5, 1, 32>}, {pipeline_mode = #tpu.pipeline_mode<synchronous>, transform_indices = @transform_6, window_bounds = array<i64: 32, 16>}, {pipeline_mode = #tpu.pipeline_mode<synchronous>, transform_indices = @transform_7, window_bounds = array<i64: 1, 16>}, {pipeline_mode = #tpu.pipeline_mode<synchronous>, transform_indices = @transform_8, window_bounds = array<i64: 16, 32>}, {pipeline_mode = #tpu.pipeline_mode<synchronous>, transform_indices = @transform_9, window_bounds = array<i64: 1, 32>}, {pipeline_mode = #tpu.pipeline_mode<synchronous>, transform_indices = @transform_10, window_bounds = array<i64: 8, 48>}, {pipeline_mode = #tpu.pipeline_mode<synchronous>, transform_indices = @transform_11, window_bounds = array<i64: 32, 48>}, {pipeline_mode = #tpu.pipeline_mode<synchronous>, transform_indices = @transform_12, window_bounds = array<i64: 1, 48>}, {transform_indices = @transform_13, window_bounds = array<i64: 1, 128>}]} {
    %c0 = arith.constant 0 : index
    %c0_0 = arith.constant 0 : index
    %c0_1 = arith.constant 0 : index
    %0 = vector.load %arg1[%c0, %c0_0, %c0_1] : memref<128x8x18xf32, #tpu.memory_space<vmem>>, vector<128x8x18xf32>
    %1 = vector.shape_cast %0 : vector<128x8x18xf32> to vector<1024x18xf32>
    %2 = vector.extract_strided_slice %1 {offsets = [0, 0], sizes = [1024, 1], strides = [1, 1]} : vector<1024x18xf32> to vector<1024x1xf32>
    %cst = arith.constant 0.000000e+00 : f32
    %3 = vector.broadcast %cst : f32 to vector<1024x1xf32>
    %4 = arith.cmpf one, %2, %3 : vector<1024x1xf32>
    %5 = arith.extui %4 : vector<1024x1xi1> to vector<1024x1xi32>
    %6 = arith.sitofp %5 : vector<1024x1xi32> to vector<1024x1xf32>
    %c0_2 = arith.constant 0 : index
    %c0_3 = arith.constant 0 : index
    %7 = vector.load %arg3[%c0_2, %c0_3] : memref<18x32xf32, #tpu.memory_space<vmem>>, vector<18x32xf32>
    %cst_4 = arith.constant dense<0.000000e+00> : vector<1024x32xf32>
    %8 = tpu.matmul %1, %7, %cst_4 {dimension_numbers = #tpu.dot_dimension_numbers<[1], [0], [0], [1], [0, 0, 1, 1], [], []>} : vector<1024x18xf32>, vector<18x32xf32>, vector<1024x32xf32> -> vector<1024x32xf32>
    %c0_5 = arith.constant 0 : index
    %c0_6 = arith.constant 0 : index
    %9 = vector.load %arg4[%c0_5, %c0_6] : memref<1x32xf32, #tpu.memory_space<vmem>>, vector<1x32xf32>
    %10 = vector.broadcast %9 : vector<1x32xf32> to vector<1024x32xf32>
    %11 = arith.addf %8, %10 : vector<1024x32xf32>
    %cst_7 = arith.constant 0.000000e+00 : f32
    %12 = vector.broadcast %cst_7 : f32 to vector<1024x32xf32>
    %13 = arith.maximumf %11, %12 : vector<1024x32xf32>
    %c0_8 = arith.constant 0 : index
    %c0_9 = arith.constant 0 : index
    %c0_10 = arith.constant 0 : index
    %14 = vector.load %arg5[%c0_8, %c0_9, %c0_10] : memref<5x32x32xf32, #tpu.memory_space<vmem>>, vector<1x32x32xf32>
    %15 = vector.shape_cast %14 : vector<1x32x32xf32> to vector<32x32xf32>
    %cst_11 = arith.constant dense<0.000000e+00> : vector<1024x32xf32>
    %16 = tpu.matmul %13, %15, %cst_11 {dimension_numbers = #tpu.dot_dimension_numbers<[1], [0], [0], [1], [0, 0, 1, 1], [], []>} : vector<1024x32xf32>, vector<32x32xf32>, vector<1024x32xf32> -> vector<1024x32xf32>
    %c0_12 = arith.constant 0 : index
    %c0_13 = arith.constant 0 : index
    %c0_14 = arith.constant 0 : index
    %17 = vector.load %arg6[%c0_12, %c0_13, %c0_14] : memref<5x1x32xf32, #tpu.memory_space<vmem>>, vector<1x1x32xf32>
    %18 = vector.shape_cast %17 : vector<1x1x32xf32> to vector<1x32xf32>
    %19 = vector.broadcast %18 : vector<1x32xf32> to vector<1024x32xf32>
    %20 = arith.addf %16, %19 : vector<1024x32xf32>
    %cst_15 = arith.constant 0.000000e+00 : f32
    %21 = vector.broadcast %cst_15 : f32 to vector<1024x32xf32>
    %22 = arith.maximumf %20, %21 : vector<1024x32xf32>
    %c1 = arith.constant 1 : index
    %c0_16 = arith.constant 0 : index
    %c0_17 = arith.constant 0 : index
    %23 = vector.load %arg5[%c1, %c0_16, %c0_17] : memref<5x32x32xf32, #tpu.memory_space<vmem>>, vector<1x32x32xf32>
    %24 = vector.shape_cast %23 : vector<1x32x32xf32> to vector<32x32xf32>
    %cst_18 = arith.constant dense<0.000000e+00> : vector<1024x32xf32>
    %25 = tpu.matmul %22, %24, %cst_18 {dimension_numbers = #tpu.dot_dimension_numbers<[1], [0], [0], [1], [0, 0, 1, 1], [], []>} : vector<1024x32xf32>, vector<32x32xf32>, vector<1024x32xf32> -> vector<1024x32xf32>
    %c1_19 = arith.constant 1 : index
    %c0_20 = arith.constant 0 : index
    %c0_21 = arith.constant 0 : index
    %26 = vector.load %arg6[%c1_19, %c0_20, %c0_21] : memref<5x1x32xf32, #tpu.memory_space<vmem>>, vector<1x1x32xf32>
    %27 = vector.shape_cast %26 : vector<1x1x32xf32> to vector<1x32xf32>
    %28 = vector.broadcast %27 : vector<1x32xf32> to vector<1024x32xf32>
    %29 = arith.addf %25, %28 : vector<1024x32xf32>
    %30 = vector.broadcast %6 : vector<1024x1xf32> to vector<1024x32xf32>
    %31 = arith.mulf %29, %30 : vector<1024x32xf32>
    %32 = vector.shape_cast %31 : vector<1024x32xf32> to vector<128x8x32xf32>
    %cst_22 = arith.constant dense<0.000000e+00> : vector<128x32xf32>
    %33 = vector.multi_reduction <add>, %32, %cst_22 [1] : vector<128x8x32xf32> to vector<128x32xf32>
    %c2 = arith.constant 2 : index
    %c0_23 = arith.constant 0 : index
    %c0_24 = arith.constant 0 : index
    %34 = vector.load %arg5[%c2, %c0_23, %c0_24] : memref<5x32x32xf32, #tpu.memory_space<vmem>>, vector<1x32x32xf32>
    %35 = vector.shape_cast %34 : vector<1x32x32xf32> to vector<32x32xf32>
    %cst_25 = arith.constant dense<0.000000e+00> : vector<128x32xf32>
    %36 = tpu.matmul %33, %35, %cst_25 {dimension_numbers = #tpu.dot_dimension_numbers<[1], [0], [0], [1], [0, 0, 1, 1], [], []>} : vector<128x32xf32>, vector<32x32xf32>, vector<128x32xf32> -> vector<128x32xf32>
    %c2_26 = arith.constant 2 : index
    %c0_27 = arith.constant 0 : index
    %c0_28 = arith.constant 0 : index
    %37 = vector.load %arg6[%c2_26, %c0_27, %c0_28] : memref<5x1x32xf32, #tpu.memory_space<vmem>>, vector<1x1x32xf32>
    %38 = vector.shape_cast %37 : vector<1x1x32xf32> to vector<1x32xf32>
    %39 = vector.broadcast %38 : vector<1x32xf32> to vector<128x32xf32>
    %40 = arith.addf %36, %39 : vector<128x32xf32>
    %cst_29 = arith.constant 0.000000e+00 : f32
    %41 = vector.broadcast %cst_29 : f32 to vector<128x32xf32>
    %42 = arith.maximumf %40, %41 : vector<128x32xf32>
    %c3 = arith.constant 3 : index
    %c0_30 = arith.constant 0 : index
    %c0_31 = arith.constant 0 : index
    %43 = vector.load %arg5[%c3, %c0_30, %c0_31] : memref<5x32x32xf32, #tpu.memory_space<vmem>>, vector<1x32x32xf32>
    %44 = vector.shape_cast %43 : vector<1x32x32xf32> to vector<32x32xf32>
    %cst_32 = arith.constant dense<0.000000e+00> : vector<128x32xf32>
    %45 = tpu.matmul %42, %44, %cst_32 {dimension_numbers = #tpu.dot_dimension_numbers<[1], [0], [0], [1], [0, 0, 1, 1], [], []>} : vector<128x32xf32>, vector<32x32xf32>, vector<128x32xf32> -> vector<128x32xf32>
    %c3_33 = arith.constant 3 : index
    %c0_34 = arith.constant 0 : index
    %c0_35 = arith.constant 0 : index
    %46 = vector.load %arg6[%c3_33, %c0_34, %c0_35] : memref<5x1x32xf32, #tpu.memory_space<vmem>>, vector<1x1x32xf32>
    %47 = vector.shape_cast %46 : vector<1x1x32xf32> to vector<1x32xf32>
    %48 = vector.broadcast %47 : vector<1x32xf32> to vector<128x32xf32>
    %49 = arith.addf %45, %48 : vector<128x32xf32>
    %cst_36 = arith.constant 0.000000e+00 : f32
    %50 = vector.broadcast %cst_36 : f32 to vector<128x32xf32>
    %51 = arith.maximumf %49, %50 : vector<128x32xf32>
    %c4 = arith.constant 4 : index
    %c0_37 = arith.constant 0 : index
    %c0_38 = arith.constant 0 : index
    %52 = vector.load %arg5[%c4, %c0_37, %c0_38] : memref<5x32x32xf32, #tpu.memory_space<vmem>>, vector<1x32x32xf32>
    %53 = vector.shape_cast %52 : vector<1x32x32xf32> to vector<32x32xf32>
    %cst_39 = arith.constant dense<0.000000e+00> : vector<128x32xf32>
    %54 = tpu.matmul %51, %53, %cst_39 {dimension_numbers = #tpu.dot_dimension_numbers<[1], [0], [0], [1], [0, 0, 1, 1], [], []>} : vector<128x32xf32>, vector<32x32xf32>, vector<128x32xf32> -> vector<128x32xf32>
    %c4_40 = arith.constant 4 : index
    %c0_41 = arith.constant 0 : index
    %c0_42 = arith.constant 0 : index
    %55 = vector.load %arg6[%c4_40, %c0_41, %c0_42] : memref<5x1x32xf32, #tpu.memory_space<vmem>>, vector<1x1x32xf32>
    %56 = vector.shape_cast %55 : vector<1x1x32xf32> to vector<1x32xf32>
    %57 = vector.broadcast %56 : vector<1x32xf32> to vector<128x32xf32>
    %58 = arith.addf %54, %57 : vector<128x32xf32>
    %cst_43 = arith.constant 0.000000e+00 : f32
    %59 = vector.broadcast %cst_43 : f32 to vector<128x32xf32>
    %60 = arith.maximumf %58, %59 : vector<128x32xf32>
    %c0_44 = arith.constant 0 : index
    %c0_45 = arith.constant 0 : index
    %61 = vector.load %arg7[%c0_44, %c0_45] : memref<32x16xf32, #tpu.memory_space<vmem>>, vector<32x16xf32>
    %cst_46 = arith.constant dense<0.000000e+00> : vector<128x16xf32>
    %62 = tpu.matmul %60, %61, %cst_46 {dimension_numbers = #tpu.dot_dimension_numbers<[1], [0], [0], [1], [0, 0, 1, 1], [], []>} : vector<128x32xf32>, vector<32x16xf32>, vector<128x16xf32> -> vector<128x16xf32>
    %c0_47 = arith.constant 0 : index
    %c0_48 = arith.constant 0 : index
    %63 = vector.load %arg8[%c0_47, %c0_48] : memref<1x16xf32, #tpu.memory_space<vmem>>, vector<1x16xf32>
    %64 = vector.broadcast %63 : vector<1x16xf32> to vector<128x16xf32>
    %65 = arith.addf %62, %64 : vector<128x16xf32>
    %c0_49 = arith.constant 0 : index
    %c0_50 = arith.constant 0 : index
    %66 = vector.load %arg9[%c0_49, %c0_50] : memref<16x32xf32, #tpu.memory_space<vmem>>, vector<16x32xf32>
    %cst_51 = arith.constant dense<0.000000e+00> : vector<128x32xf32>
    %67 = tpu.matmul %65, %66, %cst_51 {dimension_numbers = #tpu.dot_dimension_numbers<[1], [0], [0], [1], [0, 0, 1, 1], [], []>} : vector<128x16xf32>, vector<16x32xf32>, vector<128x32xf32> -> vector<128x32xf32>
    %c0_52 = arith.constant 0 : index
    %c0_53 = arith.constant 0 : index
    %68 = vector.load %arg10[%c0_52, %c0_53] : memref<1x32xf32, #tpu.memory_space<vmem>>, vector<1x32xf32>
    %69 = vector.broadcast %68 : vector<1x32xf32> to vector<128x32xf32>
    %70 = arith.addf %67, %69 : vector<128x32xf32>
    %cst_54 = arith.constant 0.000000e+00 : f32
    %71 = vector.broadcast %cst_54 : f32 to vector<128x32xf32>
    %72 = arith.maximumf %70, %71 : vector<128x32xf32>
    %c0_55 = arith.constant 0 : index
    %c0_56 = arith.constant 0 : index
    %73 = vector.load %arg12[%c0_55, %c0_56] : memref<32x48xf32, #tpu.memory_space<vmem>>, vector<32x48xf32>
    %cst_57 = arith.constant dense<0.000000e+00> : vector<128x48xf32>
    %74 = tpu.matmul %72, %73, %cst_57 {dimension_numbers = #tpu.dot_dimension_numbers<[1], [0], [0], [1], [0, 0, 1, 1], [], []>} : vector<128x32xf32>, vector<32x48xf32>, vector<128x48xf32> -> vector<128x48xf32>
    %c0_58 = arith.constant 0 : index
    %c0_59 = arith.constant 0 : index
    %75 = vector.load %arg13[%c0_58, %c0_59] : memref<1x48xf32, #tpu.memory_space<vmem>>, vector<1x48xf32>
    %76 = vector.broadcast %75 : vector<1x48xf32> to vector<128x48xf32>
    %77 = arith.addf %74, %76 : vector<128x48xf32>
    %c0_60 = arith.constant 0 : index
    %c0_61 = arith.constant 0 : index
    %78 = vector.load %arg11[%c0_60, %c0_61] : memref<8x48xf32, #tpu.memory_space<vmem>>, vector<8x48xf32>
    %c0_62 = arith.constant 0 : index
    %c0_63 = arith.constant 0 : index
    %79 = vector.load %arg2[%c0_62, %c0_63] : memref<128x8xf32, #tpu.memory_space<vmem>>, vector<128x8xf32>
    %cst_64 = arith.constant 0.000000e+00 : f32
    %80 = vector.broadcast %cst_64 : f32 to vector<128x1xf32>
    %81 = vector.extract_strided_slice %78 {offsets = [0, 0], sizes = [8, 16], strides = [1, 1]} : vector<8x48xf32> to vector<8x16xf32>
    %cst_65 = arith.constant dense<0.000000e+00> : vector<128x16xf32>
    %82 = tpu.matmul %79, %81, %cst_65 {dimension_numbers = #tpu.dot_dimension_numbers<[1], [0], [0], [1], [0, 0, 1, 1], [], []>} : vector<128x8xf32>, vector<8x16xf32>, vector<128x16xf32> -> vector<128x16xf32>
    %83 = vector.extract_strided_slice %77 {offsets = [0, 0], sizes = [128, 16], strides = [1, 1]} : vector<128x48xf32> to vector<128x16xf32>
    %84 = arith.addf %82, %83 : vector<128x16xf32>
    %85 = vector.extract_strided_slice %84 {offsets = [0, 0], sizes = [128, 8], strides = [1, 1]} : vector<128x16xf32> to vector<128x8xf32>
    %86 = vector.extract_strided_slice %84 {offsets = [0, 8], sizes = [128, 8], strides = [1, 1]} : vector<128x16xf32> to vector<128x8xf32>
    %87 = math.tanh %86 : vector<128x8xf32>
    %88 = arith.subf %79, %85 : vector<128x8xf32>
    %cst_66 = arith.constant 0.000000e+00 : f32
    %89 = vector.broadcast %cst_66 : f32 to vector<128x8xf32>
    %90 = arith.subf %89, %87 : vector<128x8xf32>
    %91 = math.exp %90 : vector<128x8xf32>
    %92 = arith.mulf %88, %91 : vector<128x8xf32>
    %cst_67 = arith.constant dense<0.000000e+00> : vector<128xf32>
    %93 = vector.multi_reduction <add>, %87, %cst_67 [1] : vector<128x8xf32> to vector<128xf32>
    %94 = vector.shape_cast %93 : vector<128xf32> to vector<128x1xf32>
    %95 = arith.subf %80, %94 : vector<128x1xf32>
    %96 = vector.extract_strided_slice %78 {offsets = [0, 16], sizes = [8, 16], strides = [1, 1]} : vector<8x48xf32> to vector<8x16xf32>
    %cst_68 = arith.constant dense<0.000000e+00> : vector<128x16xf32>
    %97 = tpu.matmul %92, %96, %cst_68 {dimension_numbers = #tpu.dot_dimension_numbers<[1], [0], [0], [1], [0, 0, 1, 1], [], []>} : vector<128x8xf32>, vector<8x16xf32>, vector<128x16xf32> -> vector<128x16xf32>
    %98 = vector.extract_strided_slice %77 {offsets = [0, 16], sizes = [128, 16], strides = [1, 1]} : vector<128x48xf32> to vector<128x16xf32>
    %99 = arith.addf %97, %98 : vector<128x16xf32>
    %100 = vector.extract_strided_slice %99 {offsets = [0, 0], sizes = [128, 8], strides = [1, 1]} : vector<128x16xf32> to vector<128x8xf32>
    %101 = vector.extract_strided_slice %99 {offsets = [0, 8], sizes = [128, 8], strides = [1, 1]} : vector<128x16xf32> to vector<128x8xf32>
    %102 = math.tanh %101 : vector<128x8xf32>
    %103 = arith.subf %92, %100 : vector<128x8xf32>
    %cst_69 = arith.constant 0.000000e+00 : f32
    %104 = vector.broadcast %cst_69 : f32 to vector<128x8xf32>
    %105 = arith.subf %104, %102 : vector<128x8xf32>
    %106 = math.exp %105 : vector<128x8xf32>
    %107 = arith.mulf %103, %106 : vector<128x8xf32>
    %cst_70 = arith.constant dense<0.000000e+00> : vector<128xf32>
    %108 = vector.multi_reduction <add>, %102, %cst_70 [1] : vector<128x8xf32> to vector<128xf32>
    %109 = vector.shape_cast %108 : vector<128xf32> to vector<128x1xf32>
    %110 = arith.subf %95, %109 : vector<128x1xf32>
    %111 = vector.extract_strided_slice %78 {offsets = [0, 32], sizes = [8, 16], strides = [1, 1]} : vector<8x48xf32> to vector<8x16xf32>
    %cst_71 = arith.constant dense<0.000000e+00> : vector<128x16xf32>
    %112 = tpu.matmul %107, %111, %cst_71 {dimension_numbers = #tpu.dot_dimension_numbers<[1], [0], [0], [1], [0, 0, 1, 1], [], []>} : vector<128x8xf32>, vector<8x16xf32>, vector<128x16xf32> -> vector<128x16xf32>
    %113 = vector.extract_strided_slice %77 {offsets = [0, 32], sizes = [128, 16], strides = [1, 1]} : vector<128x48xf32> to vector<128x16xf32>
    %114 = arith.addf %112, %113 : vector<128x16xf32>
    %115 = vector.extract_strided_slice %114 {offsets = [0, 0], sizes = [128, 8], strides = [1, 1]} : vector<128x16xf32> to vector<128x8xf32>
    %116 = vector.extract_strided_slice %114 {offsets = [0, 8], sizes = [128, 8], strides = [1, 1]} : vector<128x16xf32> to vector<128x8xf32>
    %117 = math.tanh %116 : vector<128x8xf32>
    %118 = arith.subf %107, %115 : vector<128x8xf32>
    %cst_72 = arith.constant 0.000000e+00 : f32
    %119 = vector.broadcast %cst_72 : f32 to vector<128x8xf32>
    %120 = arith.subf %119, %117 : vector<128x8xf32>
    %121 = math.exp %120 : vector<128x8xf32>
    %122 = arith.mulf %118, %121 : vector<128x8xf32>
    %cst_73 = arith.constant dense<0.000000e+00> : vector<128xf32>
    %123 = vector.multi_reduction <add>, %117, %cst_73 [1] : vector<128x8xf32> to vector<128xf32>
    %124 = vector.shape_cast %123 : vector<128xf32> to vector<128x1xf32>
    %125 = arith.subf %110, %124 : vector<128x1xf32>
    %126 = arith.mulf %122, %122 : vector<128x8xf32>
    %cst_74 = arith.constant dense<0.000000e+00> : vector<128xf32>
    %127 = vector.multi_reduction <add>, %126, %cst_74 [1] : vector<128x8xf32> to vector<128xf32>
    %128 = vector.shape_cast %127 : vector<128xf32> to vector<128x1xf32>
    %cst_75 = arith.constant -5.000000e-01 : f32
    %129 = vector.broadcast %cst_75 : f32 to vector<128x1xf32>
    %130 = arith.mulf %129, %128 : vector<128x1xf32>
    %cst_76 = arith.constant 7.35150814 : f32
    %131 = vector.broadcast %cst_76 : f32 to vector<128x1xf32>
    %132 = arith.subf %130, %131 : vector<128x1xf32>
    %133 = arith.addf %132, %125 : vector<128x1xf32>
    %134 = tpu.transpose %133, [1, 0] : vector<128x1xf32> -> vector<1x128xf32>
    %c0_77 = arith.constant 0 : index
    %c0_78 = arith.constant 0 : index
    %135 = vector.load %arg14[%c0_77, %c0_78] : memref<1x128xf32, #tpu.memory_space<vmem>>, vector<1x128xf32>
    tpu.vector_store %arg14[%c0_77, %c0_78], %134 {strides = array<i32>} : memref<1x128xf32, #tpu.memory_space<vmem>>, vector<1x128xf32>,
    return
  }
  func.func @transform_0(%arg0: i32) -> (i32, i32, i32) {
    %c0_i32 = arith.constant 0 : i32
    %c0_i32_0 = arith.constant 0 : i32
    %c0_i32_1 = arith.constant 0 : i32
    return %arg0, %c0_i32, %c0_i32_0 : i32, i32, i32
  }
  func.func @transform_1(%arg0: i32) -> (i32, i32) {
    %c0_i32 = arith.constant 0 : i32
    %c0_i32_0 = arith.constant 0 : i32
    return %arg0, %c0_i32 : i32, i32
  }
  func.func @transform_2(%arg0: i32) -> (i32, i32) {
    %c0_i32 = arith.constant 0 : i32
    %c0_i32_0 = arith.constant 0 : i32
    %c0_i32_1 = arith.constant 0 : i32
    return %c0_i32, %c0_i32_0 : i32, i32
  }
  func.func @transform_3(%arg0: i32) -> (i32, i32) {
    %c0_i32 = arith.constant 0 : i32
    %c0_i32_0 = arith.constant 0 : i32
    %c0_i32_1 = arith.constant 0 : i32
    return %c0_i32, %c0_i32_0 : i32, i32
  }
  func.func @transform_4(%arg0: i32) -> (i32, i32, i32) {
    %c0_i32 = arith.constant 0 : i32
    %c0_i32_0 = arith.constant 0 : i32
    %c0_i32_1 = arith.constant 0 : i32
    %c0_i32_2 = arith.constant 0 : i32
    return %c0_i32, %c0_i32_0, %c0_i32_1 : i32, i32, i32
  }
  func.func @transform_5(%arg0: i32) -> (i32, i32, i32) {
    %c0_i32 = arith.constant 0 : i32
    %c0_i32_0 = arith.constant 0 : i32
    %c0_i32_1 = arith.constant 0 : i32
    %c0_i32_2 = arith.constant 0 : i32
    return %c0_i32, %c0_i32_0, %c0_i32_1 : i32, i32, i32
  }
  func.func @transform_6(%arg0: i32) -> (i32, i32) {
    %c0_i32 = arith.constant 0 : i32
    %c0_i32_0 = arith.constant 0 : i32
    %c0_i32_1 = arith.constant 0 : i32
    return %c0_i32, %c0_i32_0 : i32, i32
  }
  func.func @transform_7(%arg0: i32) -> (i32, i32) {
    %c0_i32 = arith.constant 0 : i32
    %c0_i32_0 = arith.constant 0 : i32
    %c0_i32_1 = arith.constant 0 : i32
    return %c0_i32, %c0_i32_0 : i32, i32
  }
  func.func @transform_8(%arg0: i32) -> (i32, i32) {
    %c0_i32 = arith.constant 0 : i32
    %c0_i32_0 = arith.constant 0 : i32
    %c0_i32_1 = arith.constant 0 : i32
    return %c0_i32, %c0_i32_0 : i32, i32
  }
  func.func @transform_9(%arg0: i32) -> (i32, i32) {
    %c0_i32 = arith.constant 0 : i32
    %c0_i32_0 = arith.constant 0 : i32
    %c0_i32_1 = arith.constant 0 : i32
    return %c0_i32, %c0_i32_0 : i32, i32
  }
  func.func @transform_10(%arg0: i32) -> (i32, i32) {
    %c0_i32 = arith.constant 0 : i32
    %c0_i32_0 = arith.constant 0 : i32
    %c0_i32_1 = arith.constant 0 : i32
    return %c0_i32, %c0_i32_0 : i32, i32
  }
  func.func @transform_11(%arg0: i32) -> (i32, i32) {
    %c0_i32 = arith.constant 0 : i32
    %c0_i32_0 = arith.constant 0 : i32
    %c0_i32_1 = arith.constant 0 : i32
    return %c0_i32, %c0_i32_0 : i32, i32
  }
  func.func @transform_12(%arg0: i32) -> (i32, i32) {
    %c0_i32 = arith.constant 0 : i32
    %c0_i32_0 = arith.constant 0 : i32
    %c0_i32_1 = arith.constant 0 : i32
    return %c0_i32, %c0_i32_0 : i32, i32
  }
  func.func @transform_13(%arg0: i32) -> (i32, i32) {
    %c0_i32 = arith.constant 0 : i32
    %c0_i32_0 = arith.constant 0 : i32
    return %arg0, %c0_i32 : i32, i32
  }
}

</mosaic_0001>

<llo_original>
// kernel: tpu_custom_call.1
$region0: #{tpu_custom_call.1}
  #allocation0 [shape = 'u32[]', space=smem, size = 0x4, offset = 0x4, fixed_abs, tag = 'smem constant byte address 0x4 - core index']
  #allocation1 [shape = 'u32[144,128]{1,0:T(1,128)}', space=vmem, size = 0x12000, scoped, tag = 'internal scratch']
  %s0 = inlined_call_operand.vmem [shape: f32[128,8,18], index: 0, kind: input, shape index: {}]
  %s1 = inlined_call_operand.vmem [shape: f32[128,8], index: 1, kind: input, shape index: {}]
  %s2 = inlined_call_operand.vmem [shape: f32[18,32], index: 2, kind: input, shape index: {}]
  %s3 = inlined_call_operand.vmem [shape: f32[1,32], index: 3, kind: input, shape index: {}]
  %s4 = inlined_call_operand.vmem [shape: f32[5,32,32], index: 4, kind: input, shape index: {}]
  %s5 = inlined_call_operand.vmem [shape: f32[5,1,32], index: 5, kind: input, shape index: {}]
  %s6 = inlined_call_operand.vmem [shape: f32[32,16], index: 6, kind: input, shape index: {}]
  %s7 = inlined_call_operand.vmem [shape: f32[1,16], index: 7, kind: input, shape index: {}]
  %s8 = inlined_call_operand.vmem [shape: f32[16,32], index: 8, kind: input, shape index: {}]
  %s9 = inlined_call_operand.vmem [shape: f32[1,32], index: 9, kind: input, shape index: {}]
  %s10 = inlined_call_operand.vmem [shape: f32[8,48], index: 10, kind: input, shape index: {}]
  %s11 = inlined_call_operand.vmem [shape: f32[32,48], index: 11, kind: input, shape index: {}]
  %s12 = inlined_call_operand.vmem [shape: f32[1,48], index: 12, kind: input, shape index: {}]
  %s13 = inlined_call_operand.hbm [shape: f32[1,128], index: 13, kind: output, shape index: {}]
  %s14 = sld [smem:[#allocation0]]
  $region62: #{tpu_custom_call.1} parent=0
    _
  %s16 = ssub.s32 1, %s14
  %s17 = scalar_select 0, %s16, %s14
  $region1: #{tpu_custom_call.1} parent=0
    #allocation2 [shape = 'u8[512]{0}', space=vmem, size = 0x400, scoped, tag = 'output window, operand 0, single buffered']
    #allocation3 [shape = 's32[1]{0}', space=sflag, size = 0x4, scoped, tag = 'scoped memory for tpu_custom_call.1']
    %18 = vsyncpa [#allocation3], 0
    // Predicated region
    $region2: #{tpu_custom_call.1} parent=1 // pred_check
      _
    $region3: #{tpu_custom_call.1} parent=1 // pred_check_branch
      %20 = sbr.rel (0) target = $region5
    $region4: #{tpu_custom_call.1} parent=1 // pred_region
      _
    $region5: #{tpu_custom_call.1} parent=1 // pred_fallthru
      _
    // Predicated region
    $region6: #{tpu_custom_call.1} parent=1 // pred_check
      _
    $region7: #{tpu_custom_call.1} parent=1 // pred_check_branch
      %22 = sbr.rel (0) target = $region9
    $region8: #{tpu_custom_call.1} parent=1 // pred_region
      _
    $region9: #{tpu_custom_call.1} parent=1 // pred_fallthru
      _
    // Predicated region
    $region10: #{tpu_custom_call.1} parent=1 // pred_check
      _
    $region11: #{tpu_custom_call.1} parent=1 // pred_check_branch
      %24 = sbr.rel (0) target = $region13
    $region12: #{tpu_custom_call.1} parent=1 // pred_region
      _
    $region13: #{tpu_custom_call.1} parent=1 // pred_fallthru
      _
    // Predicated region
    $region14: #{tpu_custom_call.1} parent=1 // pred_check
      _
    $region15: #{tpu_custom_call.1} parent=1 // pred_check_branch
      %26 = sbr.rel (0) target = $region17
    $region16: #{tpu_custom_call.1} parent=1 // pred_region
      _
    $region17: #{tpu_custom_call.1} parent=1 // pred_fallthru
      _
    // Predicated region
    $region18: #{tpu_custom_call.1} parent=1 // pred_check
      _
    $region19: #{tpu_custom_call.1} parent=1 // pred_check_branch
      %28 = sbr.rel (0) target = $region21
    $region20: #{tpu_custom_call.1} parent=1 // pred_region
      _
    $region21: #{tpu_custom_call.1} parent=1 // pred_fallthru
      _
    // Predicated region
    $region22: #{tpu_custom_call.1} parent=1 // pred_check
      _
    $region23: #{tpu_custom_call.1} parent=1 // pred_check_branch
      %30 = sbr.rel (0) target = $region25
    $region24: #{tpu_custom_call.1} parent=1 // pred_region
      _
    $region25: #{tpu_custom_call.1} parent=1 // pred_fallthru
      _
    // Predicated region
    $region26: #{tpu_custom_call.1} parent=1 // pred_check
      _
    $region27: #{tpu_custom_call.1} parent=1 // pred_check_branch
      %32 = sbr.rel (0) target = $region29
    $region28: #{tpu_custom_call.1} parent=1 // pred_region
      _
    $region29: #{tpu_custom_call.1} parent=1 // pred_fallthru
      _
    // Predicated region
    $region30: #{tpu_custom_call.1} parent=1 // pred_check
      _
    $region31: #{tpu_custom_call.1} parent=1 // pred_check_branch
      %34 = sbr.rel (0) target = $region33
    $region32: #{tpu_custom_call.1} parent=1 // pred_region
      _
    $region33: #{tpu_custom_call.1} parent=1 // pred_fallthru
      _
    // Predicated region
    $region34: #{tpu_custom_call.1} parent=1 // pred_check
      _
    $region35: #{tpu_custom_call.1} parent=1 // pred_check_branch
      %36 = sbr.rel (0) target = $region37
    $region36: #{tpu_custom_call.1} parent=1 // pred_region
      _
    $region37: #{tpu_custom_call.1} parent=1 // pred_fallthru
      _
    // Predicated region
    $region38: #{tpu_custom_call.1} parent=1 // pred_check
      _
    $region39: #{tpu_custom_call.1} parent=1 // pred_check_branch
      %38 = sbr.rel (0) target = $region41
    $region40: #{tpu_custom_call.1} parent=1 // pred_region
      _
    $region41: #{tpu_custom_call.1} parent=1 // pred_fallthru
      _
    // Predicated region
    $region42: #{tpu_custom_call.1} parent=1 // pred_check
      _
    $region43: #{tpu_custom_call.1} parent=1 // pred_check_branch
      %40 = sbr.rel (0) target = $region45
    $region44: #{tpu_custom_call.1} parent=1 // pred_region
      _
    $region45: #{tpu_custom_call.1} parent=1 // pred_fallthru
      _
    // Predicated region
    $region46: #{tpu_custom_call.1} parent=1 // pred_check
      _
    $region47: #{tpu_custom_call.1} parent=1 // pred_check_branch
      %42 = sbr.rel (0) target = $region49
    $region48: #{tpu_custom_call.1} parent=1 // pred_region
      _
    $region49: #{tpu_custom_call.1} parent=1 // pred_fallthru
      _
    // Predicated region
    $region50: #{tpu_custom_call.1} parent=1 // pred_check
      _
    $region51: #{tpu_custom_call.1} parent=1 // pred_check_branch
      %44 = sbr.rel (0) target = $region53
    $region52: #{tpu_custom_call.1} parent=1 // pred_region
      _
    $region53: #{tpu_custom_call.1} parent=1 // pred_fallthru
      _
    %v45 = vld [vmem:[%s0] sm:$0xff]
    %v46 = vld [vmem:[%s0 + $0x8] sm:$0xff]
    %v47 = vld [vmem:[%s0 + $0x10] sm:$0xff]
    %v48 = vld [vmem:[%s0 + $0x18] sm:$0xff]
    %v49 = vld [vmem:[%s0 + $0x20] sm:$0xff]
    %v50 = vld [vmem:[%s0 + $0x28] sm:$0xff]
    %v51 = vld [vmem:[%s0 + $0x30] sm:$0xff]
    %v52 = vld [vmem:[%s0 + $0x38] sm:$0xff]
    %v53 = vld [vmem:[%s0 + $0x40] sm:$0xff]
    %v54 = vld [vmem:[%s0 + $0x48] sm:$0xff]
    %v55 = vld [vmem:[%s0 + $0x50] sm:$0xff]
    %v56 = vld [vmem:[%s0 + $0x58] sm:$0xff]
    %v57 = vld [vmem:[%s0 + $0x60] sm:$0xff]
    %v58 = vld [vmem:[%s0 + $0x68] sm:$0xff]
    %v59 = vld [vmem:[%s0 + $0x70] sm:$0xff]
    %v60 = vld [vmem:[%s0 + $0x78] sm:$0xff]
    %v61 = vld [vmem:[%s0 + $0x80] sm:$0xff]
    %v62 = vld [vmem:[%s0 + $0x88] sm:$0xff]
    %v63 = vld [vmem:[%s0 + $0x90] sm:$0xff]
    %v64 = vld [vmem:[%s0 + $0x98] sm:$0xff]
    %v65 = vld [vmem:[%s0 + $0xa0] sm:$0xff]
    %v66 = vld [vmem:[%s0 + $0xa8] sm:$0xff]
    %v67 = vld [vmem:[%s0 + $0xb0] sm:$0xff]
    %v68 = vld [vmem:[%s0 + $0xb8] sm:$0xff]
    %v69 = vld [vmem:[%s0 + $0xc0] sm:$0xff]
    %v70 = vld [vmem:[%s0 + $0xc8] sm:$0xff]
    %v71 = vld [vmem:[%s0 + $0xd0] sm:$0xff]
    %v72 = vld [vmem:[%s0 + $0xd8] sm:$0xff]
    %v73 = vld [vmem:[%s0 + $0xe0] sm:$0xff]
    %v74 = vld [vmem:[%s0 + $0xe8] sm:$0xff]
    %v75 = vld [vmem:[%s0 + $0xf0] sm:$0xff]
    %v76 = vld [vmem:[%s0 + $0xf8] sm:$0xff]
    %v77 = vld [vmem:[%s0 + $0x100] sm:$0xff]
    %v78 = vld [vmem:[%s0 + $0x108] sm:$0xff]
    %v79 = vld [vmem:[%s0 + $0x110] sm:$0xff]
    %v80 = vld [vmem:[%s0 + $0x118] sm:$0xff]
    %v81 = vld [vmem:[%s0 + $0x120] sm:$0xff]
    %v82 = vld [vmem:[%s0 + $0x128] sm:$0xff]
    %v83 = vld [vmem:[%s0 + $0x130] sm:$0xff]
    %v84 = vld [vmem:[%s0 + $0x138] sm:$0xff]
    %v85 = vld [vmem:[%s0 + $0x140] sm:$0xff]
    %v86 = vld [vmem:[%s0 + $0x148] sm:$0xff]
    %v87 = vld [vmem:[%s0 + $0x150] sm:$0xff]
    %v88 = vld [vmem:[%s0 + $0x158] sm:$0xff]
    %v89 = vld [vmem:[%s0 + $0x160] sm:$0xff]
    %v90 = vld [vmem:[%s0 + $0x168] sm:$0xff]
    %v91 = vld [vmem:[%s0 + $0x170] sm:$0xff]
    %v92 = vld [vmem:[%s0 + $0x178] sm:$0xff]
    %v93 = vld [vmem:[%s0 + $0x180] sm:$0xff]
    %v94 = vld [vmem:[%s0 + $0x188] sm:$0xff]
    %v95 = vld [vmem:[%s0 + $0x190] sm:$0xff]
    %v96 = vld [vmem:[%s0 + $0x198] sm:$0xff]
    %v97 = vld [vmem:[%s0 + $0x1a0] sm:$0xff]
    %v98 = vld [vmem:[%s0 + $0x1a8] sm:$0xff]
    %v99 = vld [vmem:[%s0 + $0x1b0] sm:$0xff]
    %v100 = vld [vmem:[%s0 + $0x1b8] sm:$0xff]
    %v101 = vld [vmem:[%s0 + $0x1c0] sm:$0xff]
    %v102 = vld [vmem:[%s0 + $0x1c8] sm:$0xff]
    %v103 = vld [vmem:[%s0 + $0x1d0] sm:$0xff]
    %v104 = vld [vmem:[%s0 + $0x1d8] sm:$0xff]
    %v105 = vld [vmem:[%s0 + $0x1e0] sm:$0xff]
    %v106 = vld [vmem:[%s0 + $0x1e8] sm:$0xff]
    %v107 = vld [vmem:[%s0 + $0x1f0] sm:$0xff]
    %v108 = vld [vmem:[%s0 + $0x1f8] sm:$0xff]
    %v109 = vld [vmem:[%s0 + $0x200] sm:$0xff]
    %v110 = vld [vmem:[%s0 + $0x208] sm:$0xff]
    %v111 = vld [vmem:[%s0 + $0x210] sm:$0xff]
    %v112 = vld [vmem:[%s0 + $0x218] sm:$0xff]
    %v113 = vld [vmem:[%s0 + $0x220] sm:$0xff]
    %v114 = vld [vmem:[%s0 + $0x228] sm:$0xff]
    %v115 = vld [vmem:[%s0 + $0x230] sm:$0xff]
    %v116 = vld [vmem:[%s0 + $0x238] sm:$0xff]
    %v117 = vld [vmem:[%s0 + $0x240] sm:$0xff]
    %v118 = vld [vmem:[%s0 + $0x248] sm:$0xff]
    %v119 = vld [vmem:[%s0 + $0x250] sm:$0xff]
    %v120 = vld [vmem:[%s0 + $0x258] sm:$0xff]
    %v121 = vld [vmem:[%s0 + $0x260] sm:$0xff]
    %v122 = vld [vmem:[%s0 + $0x268] sm:$0xff]
    %v123 = vld [vmem:[%s0 + $0x270] sm:$0xff]
    %v124 = vld [vmem:[%s0 + $0x278] sm:$0xff]
    %v125 = vld [vmem:[%s0 + $0x280] sm:$0xff]
    %v126 = vld [vmem:[%s0 + $0x288] sm:$0xff]
    %v127 = vld [vmem:[%s0 + $0x290] sm:$0xff]
    %v128 = vld [vmem:[%s0 + $0x298] sm:$0xff]
    %v129 = vld [vmem:[%s0 + $0x2a0] sm:$0xff]
    %v130 = vld [vmem:[%s0 + $0x2a8] sm:$0xff]
    %v131 = vld [vmem:[%s0 + $0x2b0] sm:$0xff]
    %v132 = vld [vmem:[%s0 + $0x2b8] sm:$0xff]
    %v133 = vld [vmem:[%s0 + $0x2c0] sm:$0xff]
    %v134 = vld [vmem:[%s0 + $0x2c8] sm:$0xff]
    %v135 = vld [vmem:[%s0 + $0x2d0] sm:$0xff]
    %v136 = vld [vmem:[%s0 + $0x2d8] sm:$0xff]
    %v137 = vld [vmem:[%s0 + $0x2e0] sm:$0xff]
    %v138 = vld [vmem:[%s0 + $0x2e8] sm:$0xff]
    %v139 = vld [vmem:[%s0 + $0x2f0] sm:$0xff]
    %v140 = vld [vmem:[%s0 + $0x2f8] sm:$0xff]
    %v141 = vld [vmem:[%s0 + $0x300] sm:$0xff]
    %v142 = vld [vmem:[%s0 + $0x308] sm:$0xff]
    %v143 = vld [vmem:[%s0 + $0x310] sm:$0xff]
    %v144 = vld [vmem:[%s0 + $0x318] sm:$0xff]
    %v145 = vld [vmem:[%s0 + $0x320] sm:$0xff]
    %v146 = vld [vmem:[%s0 + $0x328] sm:$0xff]
    %v147 = vld [vmem:[%s0 + $0x330] sm:$0xff]
    %v148 = vld [vmem:[%s0 + $0x338] sm:$0xff]
    %v149 = vld [vmem:[%s0 + $0x340] sm:$0xff]
    %v150 = vld [vmem:[%s0 + $0x348] sm:$0xff]
    %v151 = vld [vmem:[%s0 + $0x350] sm:$0xff]
    %v152 = vld [vmem:[%s0 + $0x358] sm:$0xff]
    %v153 = vld [vmem:[%s0 + $0x360] sm:$0xff]
    %v154 = vld [vmem:[%s0 + $0x368] sm:$0xff]
    %v155 = vld [vmem:[%s0 + $0x370] sm:$0xff]
    %v156 = vld [vmem:[%s0 + $0x378] sm:$0xff]
    %v157 = vld [vmem:[%s0 + $0x380] sm:$0xff]
    %v158 = vld [vmem:[%s0 + $0x388] sm:$0xff]
    %v159 = vld [vmem:[%s0 + $0x390] sm:$0xff]
    %v160 = vld [vmem:[%s0 + $0x398] sm:$0xff]
    %v161 = vld [vmem:[%s0 + $0x3a0] sm:$0xff]
    %v162 = vld [vmem:[%s0 + $0x3a8] sm:$0xff]
    %v163 = vld [vmem:[%s0 + $0x3b0] sm:$0xff]
    %v164 = vld [vmem:[%s0 + $0x3b8] sm:$0xff]
    %v165 = vld [vmem:[%s0 + $0x3c0] sm:$0xff]
    %v166 = vld [vmem:[%s0 + $0x3c8] sm:$0xff]
    %v167 = vld [vmem:[%s0 + $0x3d0] sm:$0xff]
    %v168 = vld [vmem:[%s0 + $0x3d8] sm:$0xff]
    %v169 = vld [vmem:[%s0 + $0x3e0] sm:$0xff]
    %v170 = vld [vmem:[%s0 + $0x3e8] sm:$0xff]
    %v171 = vld [vmem:[%s0 + $0x3f0] sm:$0xff]
    %v172 = vld [vmem:[%s0 + $0x3f8] sm:$0xff]
    %vm173 = vcmp.ne.f32.partialorder %v45, 0.0
    %vm174 = vcmp.ne.f32.partialorder %v46, 0.0
    %vm175 = vcmp.ne.f32.partialorder %v47, 0.0
    %vm176 = vcmp.ne.f32.partialorder %v48, 0.0
    %vm177 = vcmp.ne.f32.partialorder %v49, 0.0
    %vm178 = vcmp.ne.f32.partialorder %v50, 0.0
    %vm179 = vcmp.ne.f32.partialorder %v51, 0.0
    %vm180 = vcmp.ne.f32.partialorder %v52, 0.0
    %vm181 = vcmp.ne.f32.partialorder %v53, 0.0
    %vm182 = vcmp.ne.f32.partialorder %v54, 0.0
    %vm183 = vcmp.ne.f32.partialorder %v55, 0.0
    %vm184 = vcmp.ne.f32.partialorder %v56, 0.0
    %vm185 = vcmp.ne.f32.partialorder %v57, 0.0
    %vm186 = vcmp.ne.f32.partialorder %v58, 0.0
    %vm187 = vcmp.ne.f32.partialorder %v59, 0.0
    %vm188 = vcmp.ne.f32.partialorder %v60, 0.0
    %vm189 = vcmp.ne.f32.partialorder %v61, 0.0
    %vm190 = vcmp.ne.f32.partialorder %v62, 0.0
    %vm191 = vcmp.ne.f32.partialorder %v63, 0.0
    %vm192 = vcmp.ne.f32.partialorder %v64, 0.0
    %vm193 = vcmp.ne.f32.partialorder %v65, 0.0
    %vm194 = vcmp.ne.f32.partialorder %v66, 0.0
    %vm195 = vcmp.ne.f32.partialorder %v67, 0.0
    %vm196 = vcmp.ne.f32.partialorder %v68, 0.0
    %vm197 = vcmp.ne.f32.partialorder %v69, 0.0
    %vm198 = vcmp.ne.f32.partialorder %v70, 0.0
    %vm199 = vcmp.ne.f32.partialorder %v71, 0.0
    %vm200 = vcmp.ne.f32.partialorder %v72, 0.0
    %vm201 = vcmp.ne.f32.partialorder %v73, 0.0
    %vm202 = vcmp.ne.f32.partialorder %v74, 0.0
    %vm203 = vcmp.ne.f32.partialorder %v75, 0.0
    %vm204 = vcmp.ne.f32.partialorder %v76, 0.0
    %vm205 = vcmp.ne.f32.partialorder %v77, 0.0
    %vm206 = vcmp.ne.f32.partialorder %v78, 0.0
    %vm207 = vcmp.ne.f32.partialorder %v79, 0.0
    %vm208 = vcmp.ne.f32.partialorder %v80, 0.0
    %vm209 = vcmp.ne.f32.partialorder %v81, 0.0
    %vm210 = vcmp.ne.f32.partialorder %v82, 0.0
    %vm211 = vcmp.ne.f32.partialorder %v83, 0.0
    %vm212 = vcmp.ne.f32.partialorder %v84, 0.0
    %vm213 = vcmp.ne.f32.partialorder %v85, 0.0
    %vm214 = vcmp.ne.f32.partialorder %v86, 0.0
    %vm215 = vcmp.ne.f32.partialorder %v87, 0.0
    %vm216 = vcmp.ne.f32.partialorder %v88, 0.0
    %vm217 = vcmp.ne.f32.partialorder %v89, 0.0
    %vm218 = vcmp.ne.f32.partialorder %v90, 0.0
    %vm219 = vcmp.ne.f32.partialorder %v91, 0.0
    %vm220 = vcmp.ne.f32.partialorder %v92, 0.0
    %vm221 = vcmp.ne.f32.partialorder %v93, 0.0
    %vm222 = vcmp.ne.f32.partialorder %v94, 0.0
    %vm223 = vcmp.ne.f32.partialorder %v95, 0.0
    %vm224 = vcmp.ne.f32.partialorder %v96, 0.0
    %vm225 = vcmp.ne.f32.partialorder %v97, 0.0
    %vm226 = vcmp.ne.f32.partialorder %v98, 0.0
    %vm227 = vcmp.ne.f32.partialorder %v99, 0.0
    %vm228 = vcmp.ne.f32.partialorder %v100, 0.0
    %vm229 = vcmp.ne.f32.partialorder %v101, 0.0
    %vm230 = vcmp.ne.f32.partialorder %v102, 0.0
    %vm231 = vcmp.ne.f32.partialorder %v103, 0.0
    %vm232 = vcmp.ne.f32.partialorder %v104, 0.0
    %vm233 = vcmp.ne.f32.partialorder %v105, 0.0
    %vm234 = vcmp.ne.f32.partialorder %v106, 0.0
    %vm235 = vcmp.ne.f32.partialorder %v107, 0.0
    %vm236 = vcmp.ne.f32.partialorder %v108, 0.0
    %vm237 = vcmp.ne.f32.partialorder %v109, 0.0
    %vm238 = vcmp.ne.f32.partialorder %v110, 0.0
    %vm239 = vcmp.ne.f32.partialorder %v111, 0.0
    %vm240 = vcmp.ne.f32.partialorder %v112, 0.0
    %vm241 = vcmp.ne.f32.partialorder %v113, 0.0
    %vm242 = vcmp.ne.f32.partialorder %v114, 0.0
    %vm243 = vcmp.ne.f32.partialorder %v115, 0.0
    %vm244 = vcmp.ne.f32.partialorder %v116, 0.0
    %vm245 = vcmp.ne.f32.partialorder %v117, 0.0
    %vm246 = vcmp.ne.f32.partialorder %v118, 0.0
    %vm247 = vcmp.ne.f32.partialorder %v119, 0.0
    %vm248 = vcmp.ne.f32.partialorder %v120, 0.0
    %vm249 = vcmp.ne.f32.partialorder %v121, 0.0
    %vm250 = vcmp.ne.f32.partialorder %v122, 0.0
    %vm251 = vcmp.ne.f32.partialorder %v123, 0.0
    %vm252 = vcmp.ne.f32.partialorder %v124, 0.0
    %vm253 = vcmp.ne.f32.partialorder %v125, 0.0
    %vm254 = vcmp.ne.f32.partialorder %v126, 0.0
    %vm255 = vcmp.ne.f32.partialorder %v127, 0.0
    %vm256 = vcmp.ne.f32.partialorder %v128, 0.0
    %vm257 = vcmp.ne.f32.partialorder %v129, 0.0
    %vm258 = vcmp.ne.f32.partialorder %v130, 0.0
    %vm259 = vcmp.ne.f32.partialorder %v131, 0.0
    %vm260 = vcmp.ne.f32.partialorder %v132, 0.0
    %vm261 = vcmp.ne.f32.partialorder %v133, 0.0
    %vm262 = vcmp.ne.f32.partialorder %v134, 0.0
    %vm263 = vcmp.ne.f32.partialorder %v135, 0.0
    %vm264 = vcmp.ne.f32.partialorder %v136, 0.0
    %vm265 = vcmp.ne.f32.partialorder %v137, 0.0
    %vm266 = vcmp.ne.f32.partialorder %v138, 0.0
    %vm267 = vcmp.ne.f32.partialorder %v139, 0.0
    %vm268 = vcmp.ne.f32.partialorder %v140, 0.0
    %vm269 = vcmp.ne.f32.partialorder %v141, 0.0
    %vm270 = vcmp.ne.f32.partialorder %v142, 0.0
    %vm271 = vcmp.ne.f32.partialorder %v143, 0.0
    %vm272 = vcmp.ne.f32.partialorder %v144, 0.0
    %vm273 = vcmp.ne.f32.partialorder %v145, 0.0
    %vm274 = vcmp.ne.f32.partialorder %v146, 0.0
    %vm275 = vcmp.ne.f32.partialorder %v147, 0.0
    %vm276 = vcmp.ne.f32.partialorder %v148, 0.0
    %vm277 = vcmp.ne.f32.partialorder %v149, 0.0
    %vm278 = vcmp.ne.f32.partialorder %v150, 0.0
    %vm279 = vcmp.ne.f32.partialorder %v151, 0.0
    %vm280 = vcmp.ne.f32.partialorder %v152, 0.0
    %vm281 = vcmp.ne.f32.partialorder %v153, 0.0
    %vm282 = vcmp.ne.f32.partialorder %v154, 0.0
    %vm283 = vcmp.ne.f32.partialorder %v155, 0.0
    %vm284 = vcmp.ne.f32.partialorder %v156, 0.0
    %vm285 = vcmp.ne.f32.partialorder %v157, 0.0
    %vm286 = vcmp.ne.f32.partialorder %v158, 0.0
    %vm287 = vcmp.ne.f32.partialorder %v159, 0.0
    %vm288 = vcmp.ne.f32.partialorder %v160, 0.0
    %vm289 = vcmp.ne.f32.partialorder %v161, 0.0
    %vm290 = vcmp.ne.f32.partialorder %v162, 0.0
    %vm291 = vcmp.ne.f32.partialorder %v163, 0.0
    %vm292 = vcmp.ne.f32.partialorder %v164, 0.0
    %vm293 = vcmp.ne.f32.partialorder %v165, 0.0
    %vm294 = vcmp.ne.f32.partialorder %v166, 0.0
    %vm295 = vcmp.ne.f32.partialorder %v167, 0.0
    %vm296 = vcmp.ne.f32.partialorder %v168, 0.0
    %vm297 = vcmp.ne.f32.partialorder %v169, 0.0
    %vm298 = vcmp.ne.f32.partialorder %v170, 0.0
    %vm299 = vcmp.ne.f32.partialorder %v171, 0.0
    %vm300 = vcmp.ne.f32.partialorder %v172, 0.0
    %v301 = vsel %vm173, 1, 0
    %v302 = vsel %vm174, 1, 0
    %v303 = vsel %vm175, 1, 0
    %v304 = vsel %vm176, 1, 0
    %v305 = vsel %vm177, 1, 0
    %v306 = vsel %vm178, 1, 0
    %v307 = vsel %vm179, 1, 0
    %v308 = vsel %vm180, 1, 0
    %v309 = vsel %vm181, 1, 0
    %v310 = vsel %vm182, 1, 0
    %v311 = vsel %vm183, 1, 0
    %v312 = vsel %vm184, 1, 0
    %v313 = vsel %vm185, 1, 0
    %v314 = vsel %vm186, 1, 0
    %v315 = vsel %vm187, 1, 0
    %v316 = vsel %vm188, 1, 0
    %v317 = vsel %vm189, 1, 0
    %v318 = vsel %vm190, 1, 0
    %v319 = vsel %vm191, 1, 0
    %v320 = vsel %vm192, 1, 0
    %v321 = vsel %vm193, 1, 0
    %v322 = vsel %vm194, 1, 0
    %v323 = vsel %vm195, 1, 0
    %v324 = vsel %vm196, 1, 0
    %v325 = vsel %vm197, 1, 0
    %v326 = vsel %vm198, 1, 0
    %v327 = vsel %vm199, 1, 0
    %v328 = vsel %vm200, 1, 0
    %v329 = vsel %vm201, 1, 0
    %v330 = vsel %vm202, 1, 0
    %v331 = vsel %vm203, 1, 0
    %v332 = vsel %vm204, 1, 0
    %v333 = vsel %vm205, 1, 0
    %v334 = vsel %vm206, 1, 0
    %v335 = vsel %vm207, 1, 0
    %v336 = vsel %vm208, 1, 0
    %v337 = vsel %vm209, 1, 0
    %v338 = vsel %vm210, 1, 0
    %v339 = vsel %vm211, 1, 0
    %v340 = vsel %vm212, 1, 0
    %v341 = vsel %vm213, 1, 0
    %v342 = vsel %vm214, 1, 0
    %v343 = vsel %vm215, 1, 0
    %v344 = vsel %vm216, 1, 0
    %v345 = vsel %vm217, 1, 0
    %v346 = vsel %vm218, 1, 0
    %v347 = vsel %vm219, 1, 0
    %v348 = vsel %vm220, 1, 0
    %v349 = vsel %vm221, 1, 0
    %v350 = vsel %vm222, 1, 0
    %v351 = vsel %vm223, 1, 0
    %v352 = vsel %vm224, 1, 0
    %v353 = vsel %vm225, 1, 0
    %v354 = vsel %vm226, 1, 0
    %v355 = vsel %vm227, 1, 0
    %v356 = vsel %vm228, 1, 0
    %v357 = vsel %vm229, 1, 0
    %v358 = vsel %vm230, 1, 0
    %v359 = vsel %vm231, 1, 0
    %v360 = vsel %vm232, 1, 0
    %v361 = vsel %vm233, 1, 0
    %v362 = vsel %vm234, 1, 0
    %v363 = vsel %vm235, 1, 0
    %v364 = vsel %vm236, 1, 0
    %v365 = vsel %vm237, 1, 0
    %v366 = vsel %vm238, 1, 0
    %v367 = vsel %vm239, 1, 0
    %v368 = vsel %vm240, 1, 0
    %v369 = vsel %vm241, 1, 0
    %v370 = vsel %vm242, 1, 0
    %v371 = vsel %vm243, 1, 0
    %v372 = vsel %vm244, 1, 0
    %v373 = vsel %vm245, 1, 0
    %v374 = vsel %vm246, 1, 0
    %v375 = vsel %vm247, 1, 0
    %v376 = vsel %vm248, 1, 0
    %v377 = vsel %vm249, 1, 0
    %v378 = vsel %vm250, 1, 0
    %v379 = vsel %vm251, 1, 0
    %v380 = vsel %vm252, 1, 0
    %v381 = vsel %vm253, 1, 0
    %v382 = vsel %vm254, 1, 0
    %v383 = vsel %vm255, 1, 0
    %v384 = vsel %vm256, 1, 0
    %v385 = vsel %vm257, 1, 0
    %v386 = vsel %vm258, 1, 0
    %v387 = vsel %vm259, 1, 0
    %v388 = vsel %vm260, 1, 0
    %v389 = vsel %vm261, 1, 0
    %v390 = vsel %vm262, 1, 0
    %v391 = vsel %vm263, 1, 0
    %v392 = vsel %vm264, 1, 0
    %v393 = vsel %vm265, 1, 0
    %v394 = vsel %vm266, 1, 0
    %v395 = vsel %vm267, 1, 0
    %v396 = vsel %vm268, 1, 0
    %v397 = vsel %vm269, 1, 0
    %v398 = vsel %vm270, 1, 0
    %v399 = vsel %vm271, 1, 0
    %v400 = vsel %vm272, 1, 0
    %v401 = vsel %vm273, 1, 0
    %v402 = vsel %vm274, 1, 0
    %v403 = vsel %vm275, 1, 0
    %v404 = vsel %vm276, 1, 0
    %v405 = vsel %vm277, 1, 0
    %v406 = vsel %vm278, 1, 0
    %v407 = vsel %vm279, 1, 0
    %v408 = vsel %vm280, 1, 0
    %v409 = vsel %vm281, 1, 0
    %v410 = vsel %vm282, 1, 0
    %v411 = vsel %vm283, 1, 0
    %v412 = vsel %vm284, 1, 0
    %v413 = vsel %vm285, 1, 0
    %v414 = vsel %vm286, 1, 0
    %v415 = vsel %vm287, 1, 0
    %v416 = vsel %vm288, 1, 0
    %v417 = vsel %vm289, 1, 0
    %v418 = vsel %vm290, 1, 0
    %v419 = vsel %vm291, 1, 0
    %v420 = vsel %vm292, 1, 0
    %v421 = vsel %vm293, 1, 0
    %v422 = vsel %vm294, 1, 0
    %v423 = vsel %vm295, 1, 0
    %v424 = vsel %vm296, 1, 0
    %v425 = vsel %vm297, 1, 0
    %v426 = vsel %vm298, 1, 0
    %v427 = vsel %vm299, 1, 0
    %v428 = vsel %vm300, 1, 0
    %v429 = vcvt.s32.f32 %v301
    %v430 = vcvt.s32.f32 %v302
    %v431 = vcvt.s32.f32 %v303
    %v432 = vcvt.s32.f32 %v304
    %v433 = vcvt.s32.f32 %v305
    %v434 = vcvt.s32.f32 %v306
    %v435 = vcvt.s32.f32 %v307
    %v436 = vcvt.s32.f32 %v308
    %v437 = vcvt.s32.f32 %v309
    %v438 = vcvt.s32.f32 %v310
    %v439 = vcvt.s32.f32 %v311
    %v440 = vcvt.s32.f32 %v312
    %v441 = vcvt.s32.f32 %v313
    %v442 = vcvt.s32.f32 %v314
    %v443 = vcvt.s32.f32 %v315
    %v444 = vcvt.s32.f32 %v316
    %v445 = vcvt.s32.f32 %v317
    %v446 = vcvt.s32.f32 %v318
    %v447 = vcvt.s32.f32 %v319
    %v448 = vcvt.s32.f32 %v320
    %v449 = vcvt.s32.f32 %v321
    %v450 = vcvt.s32.f32 %v322
    %v451 = vcvt.s32.f32 %v323
    %v452 = vcvt.s32.f32 %v324
    %v453 = vcvt.s32.f32 %v325
    %v454 = vcvt.s32.f32 %v326
    %v455 = vcvt.s32.f32 %v327
    %v456 = vcvt.s32.f32 %v328
    %v457 = vcvt.s32.f32 %v329
    %v458 = vcvt.s32.f32 %v330
    %v459 = vcvt.s32.f32 %v331
    %v460 = vcvt.s32.f32 %v332
    %v461 = vcvt.s32.f32 %v333
    %v462 = vcvt.s32.f32 %v334
    %v463 = vcvt.s32.f32 %v335
    %v464 = vcvt.s32.f32 %v336
    %v465 = vcvt.s32.f32 %v337
    %v466 = vcvt.s32.f32 %v338
    %v467 = vcvt.s32.f32 %v339
    %v468 = vcvt.s32.f32 %v340
    %v469 = vcvt.s32.f32 %v341
    %v470 = vcvt.s32.f32 %v342
    %v471 = vcvt.s32.f32 %v343
    %v472 = vcvt.s32.f32 %v344
    %v473 = vcvt.s32.f32 %v345
    %v474 = vcvt.s32.f32 %v346
    %v475 = vcvt.s32.f32 %v347
    %v476 = vcvt.s32.f32 %v348
    %v477 = vcvt.s32.f32 %v349
    %v478 = vcvt.s32.f32 %v350
    %v479 = vcvt.s32.f32 %v351
    %v480 = vcvt.s32.f32 %v352
    %v481 = vcvt.s32.f32 %v353
    %v482 = vcvt.s32.f32 %v354
    %v483 = vcvt.s32.f32 %v355
    %v484 = vcvt.s32.f32 %v356
    %v485 = vcvt.s32.f32 %v357
    %v486 = vcvt.s32.f32 %v358
    %v487 = vcvt.s32.f32 %v359
    %v488 = vcvt.s32.f32 %v360
    %v489 = vcvt.s32.f32 %v361
    %v490 = vcvt.s32.f32 %v362
    %v491 = vcvt.s32.f32 %v363
    %v492 = vcvt.s32.f32 %v364
    %v493 = vcvt.s32.f32 %v365
    %v494 = vcvt.s32.f32 %v366
    %v495 = vcvt.s32.f32 %v367
    %v496 = vcvt.s32.f32 %v368
    %v497 = vcvt.s32.f32 %v369
    %v498 = vcvt.s32.f32 %v370
    %v499 = vcvt.s32.f32 %v371
    %v500 = vcvt.s32.f32 %v372
    %v501 = vcvt.s32.f32 %v373
    %v502 = vcvt.s32.f32 %v374
    %v503 = vcvt.s32.f32 %v375
    %v504 = vcvt.s32.f32 %v376
    %v505 = vcvt.s32.f32 %v377
    %v506 = vcvt.s32.f32 %v378
    %v507 = vcvt.s32.f32 %v379
    %v508 = vcvt.s32.f32 %v380
    %v509 = vcvt.s32.f32 %v381
    %v510 = vcvt.s32.f32 %v382
    %v511 = vcvt.s32.f32 %v383
    %v512 = vcvt.s32.f32 %v384
    %v513 = vcvt.s32.f32 %v385
    %v514 = vcvt.s32.f32 %v386
    %v515 = vcvt.s32.f32 %v387
    %v516 = vcvt.s32.f32 %v388
    %v517 = vcvt.s32.f32 %v389
    %v518 = vcvt.s32.f32 %v390
    %v519 = vcvt.s32.f32 %v391
    %v520 = vcvt.s32.f32 %v392
    %v521 = vcvt.s32.f32 %v393
    %v522 = vcvt.s32.f32 %v394
    %v523 = vcvt.s32.f32 %v395
    %v524 = vcvt.s32.f32 %v396
    %v525 = vcvt.s32.f32 %v397
    %v526 = vcvt.s32.f32 %v398
    %v527 = vcvt.s32.f32 %v399
    %v528 = vcvt.s32.f32 %v400
    %v529 = vcvt.s32.f32 %v401
    %v530 = vcvt.s32.f32 %v402
    %v531 = vcvt.s32.f32 %v403
    %v532 = vcvt.s32.f32 %v404
    %v533 = vcvt.s32.f32 %v405
    %v534 = vcvt.s32.f32 %v406
    %v535 = vcvt.s32.f32 %v407
    %v536 = vcvt.s32.f32 %v408
    %v537 = vcvt.s32.f32 %v409
    %v538 = vcvt.s32.f32 %v410
    %v539 = vcvt.s32.f32 %v411
    %v540 = vcvt.s32.f32 %v412
    %v541 = vcvt.s32.f32 %v413
    %v542 = vcvt.s32.f32 %v414
    %v543 = vcvt.s32.f32 %v415
    %v544 = vcvt.s32.f32 %v416
    %v545 = vcvt.s32.f32 %v417
    %v546 = vcvt.s32.f32 %v418
    %v547 = vcvt.s32.f32 %v419
    %v548 = vcvt.s32.f32 %v420
    %v549 = vcvt.s32.f32 %v421
    %v550 = vcvt.s32.f32 %v422
    %v551 = vcvt.s32.f32 %v423
    %v552 = vcvt.s32.f32 %v424
    %v553 = vcvt.s32.f32 %v425
    %v554 = vcvt.s32.f32 %v426
    %v555 = vcvt.s32.f32 %v427
    %v556 = vcvt.s32.f32 %v428
    %v557 = vld [vmem:[%s2] sm:$0xff]
    %v558 = vld [vmem:[%s2 + $0x8] sm:$0xff]
    %v559 = vld [vmem:[%s2 + $0x10] sm:$0x3]
    %v560 = vld [vmem:[%s3] sm:$0x1]
    %v562 = vlaneseq
    %v563 = vshrl.u32 %v562, 7
    %v564 = vsub.s32 0, %v563
    %v565 = vrot.slane %v560, %v564
    %vm567 = vcmask 146432
    %v569 = vsel %vm567, %v45, 0
    %v572 = vsel %vm567, %v46, 0
    %v575 = vsel %vm567, %v47, 0
    %v578 = vsel %vm567, %v48, 0
    %v581 = vsel %vm567, %v49, 0
    %v584 = vsel %vm567, %v50, 0
    %v587 = vsel %vm567, %v51, 0
    %v590 = vsel %vm567, %v52, 0
    %v593 = vsel %vm567, %v53, 0
    %v596 = vsel %vm567, %v54, 0
    %v599 = vsel %vm567, %v55, 0
    %v602 = vsel %vm567, %v56, 0
    %v605 = vsel %vm567, %v57, 0
    %v608 = vsel %vm567, %v58, 0
    %v611 = vsel %vm567, %v59, 0
    %v614 = vsel %vm567, %v60, 0
    %v617 = vsel %vm567, %v61, 0
    %v620 = vsel %vm567, %v62, 0
    %v623 = vsel %vm567, %v63, 0
    %v626 = vsel %vm567, %v64, 0
    %v629 = vsel %vm567, %v65, 0
    %v632 = vsel %vm567, %v66, 0
    %v635 = vsel %vm567, %v67, 0
    %v638 = vsel %vm567, %v68, 0
    %v641 = vsel %vm567, %v69, 0
    %v644 = vsel %vm567, %v70, 0
    %v647 = vsel %vm567, %v71, 0
    %v650 = vsel %vm567, %v72, 0
    %v653 = vsel %vm567, %v73, 0
    %v656 = vsel %vm567, %v74, 0
    %v659 = vsel %vm567, %v75, 0
    %v662 = vsel %vm567, %v76, 0
    %v665 = vsel %vm567, %v77, 0
    %v668 = vsel %vm567, %v78, 0
    %v671 = vsel %vm567, %v79, 0
    %v674 = vsel %vm567, %v80, 0
    %v677 = vsel %vm567, %v81, 0
    %v680 = vsel %vm567, %v82, 0
    %v683 = vsel %vm567, %v83, 0
    %v686 = vsel %vm567, %v84, 0
    %v689 = vsel %vm567, %v85, 0
    %v692 = vsel %vm567, %v86, 0
    %v695 = vsel %vm567, %v87, 0
    %v698 = vsel %vm567, %v88, 0
    %v701 = vsel %vm567, %v89, 0
    %v704 = vsel %vm567, %v90, 0
    %v707 = vsel %vm567, %v91, 0
    %v710 = vsel %vm567, %v92, 0
    %v713 = vsel %vm567, %v93, 0
    %v716 = vsel %vm567, %v94, 0
    %v719 = vsel %vm567, %v95, 0
    %v722 = vsel %vm567, %v96, 0
    %v725 = vsel %vm567, %v97, 0
    %v728 = vsel %vm567, %v98, 0
    %v731 = vsel %vm567, %v99, 0
    %v734 = vsel %vm567, %v100, 0
    %v737 = vsel %vm567, %v101, 0
    %v740 = vsel %vm567, %v102, 0
    %v743 = vsel %vm567, %v103, 0
    %v746 = vsel %vm567, %v104, 0
    %v749 = vsel %vm567, %v105, 0
    %v752 = vsel %vm567, %v106, 0
    %v755 = vsel %vm567, %v107, 0
    %v758 = vsel %vm567, %v108, 0
    %v761 = vsel %vm567, %v109, 0
    %v764 = vsel %vm567, %v110, 0
    %v767 = vsel %vm567, %v111, 0
    %v770 = vsel %vm567, %v112, 0
    %v773 = vsel %vm567, %v113, 0
    %v776 = vsel %vm567, %v114, 0
    %v779 = vsel %vm567, %v115, 0
    %v782 = vsel %vm567, %v116, 0
    %v785 = vsel %vm567, %v117, 0
    %v788 = vsel %vm567, %v118, 0
    %v791 = vsel %vm567, %v119, 0
    %v794 = vsel %vm567, %v120, 0
    %v797 = vsel %vm567, %v121, 0
    %v800 = vsel %vm567, %v122, 0
    %v803 = vsel %vm567, %v123, 0
    %v806 = vsel %vm567, %v124, 0
    %v809 = vsel %vm567, %v125, 0
    %v812 = vsel %vm567, %v126, 0
    %v815 = vsel %vm567, %v127, 0
    %v818 = vsel %vm567, %v128, 0
    %v821 = vsel %vm567, %v129, 0
    %v824 = vsel %vm567, %v130, 0
    %v827 = vsel %vm567, %v131, 0
    %v830 = vsel %vm567, %v132, 0
    %v833 = vsel %vm567, %v133, 0
    %v836 = vsel %vm567, %v134, 0
    %v839 = vsel %vm567, %v135, 0
    %v842 = vsel %vm567, %v136, 0
    %v845 = vsel %vm567, %v137, 0
    %v848 = vsel %vm567, %v138, 0
    %v851 = vsel %vm567, %v139, 0
    %v854 = vsel %vm567, %v140, 0
    %v857 = vsel %vm567, %v141, 0
    %v860 = vsel %vm567, %v142, 0
    %v863 = vsel %vm567, %v143, 0
    %v866 = vsel %vm567, %v144, 0
    %v869 = vsel %vm567, %v145, 0
    %v872 = vsel %vm567, %v146, 0
    %v875 = vsel %vm567, %v147, 0
    %v878 = vsel %vm567, %v148, 0
    %v881 = vsel %vm567, %v149, 0
    %v884 = vsel %vm567, %v150, 0
    %v887 = vsel %vm567, %v151, 0
    %v890 = vsel %vm567, %v152, 0
    %v893 = vsel %vm567, %v153, 0
    %v896 = vsel %vm567, %v154, 0
    %v899 = vsel %vm567, %v155, 0
    %v902 = vsel %vm567, %v156, 0
    %v905 = vsel %vm567, %v157, 0
    %v908 = vsel %vm567, %v158, 0
    %v911 = vsel %vm567, %v159, 0
    %v914 = vsel %vm567, %v160, 0
    %v917 = vsel %vm567, %v161, 0
    %v920 = vsel %vm567, %v162, 0
    %v923 = vsel %vm567, %v163, 0
    %v926 = vsel %vm567, %v164, 0
    %v929 = vsel %vm567, %v165, 0
    %v932 = vsel %vm567, %v166, 0
    %v935 = vsel %vm567, %v167, 0
    %v938 = vsel %vm567, %v168, 0
    %v941 = vsel %vm567, %v169, 0
    %v944 = vsel %vm567, %v170, 0
    %v947 = vsel %vm567, %v171, 0
    %v950 = vsel %vm567, %v172, 0
    %vm952 = vcmask 1041408
    %v954 = vsel %vm952, %v559, 0
    %956 = vmatprep.subr.mxu0 0.0
    %957 = vmatpush1.msra.mxu0 %v557
    %958 = vmatprep.subr.mxu0 0.0
    %959 = vmatpush1.msra.mxu0 %v558
    %960 = vmatprep.subr.mxu0 0.0
    %961 = vmatpush1.msra.mxu0 %v954
    %962 = vmatprep.subr.mxu0 0.0
    %963 = vmatpush1.msra.mxu0 0.0
    %964 = vmatprep.subr.mxu0 0.0
    %965 = vmatpush1.msra.mxu0 0.0
    %966 = vmatprep.subr.mxu0 0.0
    %967 = vmatpush1.msra.mxu0 0.0
    %968 = vmatprep.subr.mxu0 0.0
    %969 = vmatpush1.msra.mxu0 0.0
    %970 = vmatprep.subr.mxu0 0.0
    %971 = vmatpush1.msra.mxu0 0.0
    %972 = vmatprep.subr.mxu0 0.0
    %973 = vmatpush1.msra.mxu0 0.0
    %974 = vmatprep.subr.mxu0 0.0
    %975 = vmatpush1.msra.mxu0 0.0
    %976 = vmatprep.subr.mxu0 0.0
    %977 = vmatpush1.msra.mxu0 0.0
    %978 = vmatprep.subr.mxu0 0.0
    %979 = vmatpush1.msra.mxu0 0.0
    %980 = vmatprep.subr.mxu0 0.0
    %981 = vmatpush1.msra.mxu0 0.0
    %982 = vmatprep.subr.mxu0 0.0
    %983 = vmatpush1.msra.mxu0 0.0
    %984 = vmatprep.subr.mxu0 0.0
    %985 = vmatpush1.msra.mxu0 0.0
    %986 = vmatprep.subr.mxu0 0.0
    %987 = vmatpush1.msra.mxu0 0.0
    %988 = vmatprep.subr.mxu0 0.0
    %989 = vmatpush1.msra.mxu0 0.0
    %990 = vmatprep.subr.mxu0 0.0
    %991 = vmatpush1.msra.mxu0 0.0
    %992 = vmatprep.subr.mxu0 0.0
    %993 = vmatpush1.msra.mxu0 0.0
    %994 = vmatprep.subr.mxu0 0.0
    %995 = vmatpush1.msra.mxu0 0.0
    %996 = vmatprep.subr.mxu0 0.0
    %997 = vmatpush1.msra.mxu0 0.0
    %998 = vmatprep.subr.mxu0 0.0
    %999 = vmatpush1.msra.mxu0 0.0
    %1000 = vmatprep.subr.mxu0 0.0
    %1001 = vmatpush1.msra.mxu0 0.0
    %1002 = vmatprep.subr.mxu0 0.0
    %1003 = vmatpush1.msra.mxu0 0.0
    %1004 = vmatprep.subr.mxu0 0.0
    %1005 = vmatpush1.msra.mxu0 0.0
    %1006 = vmatprep.subr.mxu0 0.0
    %1007 = vmatpush1.msra.mxu0 0.0
    %1008 = vmatprep.subr.mxu0 0.0
    %1009 = vmatpush1.msra.mxu0 0.0
    %1010 = vmatprep.subr.mxu0 0.0
    %1011 = vmatpush1.msra.mxu0 0.0
    %1012 = vmatprep.subr.mxu0 0.0
    %1013 = vmatpush1.msra.mxu0 0.0
    %1014 = vmatprep.subr.mxu0 0.0
    %1015 = vmatpush1.msra.mxu0 0.0
    %1016 = vmatprep.subr.mxu0 0.0
    %1017 = vmatpush1.msra.mxu0 0.0
    %1018 = vmatprep.subr.mxu0 0.0
    %1019 = vmatpush1.msra.mxu0 0.0
    %1020 = vmatprep.mubr.f32.mxu0 0.0
    %1021 = vmatmul.mubr.f32.gmra.mrb[0].mxu0 %v569
    %v1022 = vpop.f32.mrb[0].mxu0
    %v1023 = vadd.f32 %v565, %v1022
    %v1024 = vpop.f32.mrb[0].mxu0
    %1025 = vmatprep.mubr.f32.mxu0 0.0
    %1026 = vmatmul.mubr.f32.gmra.mrb[0].mxu0 %v572
    %v1027 = vpop.f32.mrb[0].mxu0
    %v1028 = vadd.f32 %v565, %v1027
    %v1029 = vpop.f32.mrb[0].mxu0
    %1030 = vmatprep.mubr.f32.mxu0 0.0
    %1031 = vmatmul.mubr.f32.gmra.mrb[0].mxu0 %v575
    %v1032 = vpop.f32.mrb[0].mxu0
    %v1033 = vadd.f32 %v565, %v1032
    %v1034 = vpop.f32.mrb[0].mxu0
    %1035 = vmatprep.mubr.f32.mxu0 0.0
    %1036 = vmatmul.mubr.f32.gmra.mrb[0].mxu0 %v578
    %v1037 = vpop.f32.mrb[0].mxu0
    %v1038 = vadd.f32 %v565, %v1037
    %v1039 = vpop.f32.mrb[0].mxu0
    %1040 = vmatprep.mubr.f32.mxu0 0.0
    %1041 = vmatmul.mubr.f32.gmra.mrb[0].mxu0 %v581
    %v1042 = vpop.f32.mrb[0].mxu0
    %v1043 = vadd.f32 %v565, %v1042
    %v1044 = vpop.f32.mrb[0].mxu0
    %1045 = vmatprep.mubr.f32.mxu0 0.0
    %1046 = vmatmul.mubr.f32.gmra.mrb[0].mxu0 %v584
    %v1047 = vpop.f32.mrb[0].mxu0
    %v1048 = vadd.f32 %v565, %v1047
    %v1049 = vpop.f32.mrb[0].mxu0
    %1050 = vmatprep.mubr.f32.mxu0 0.0
    %1051 = vmatmul.mubr.f32.gmra.mrb[0].mxu0 %v587
    %v1052 = vpop.f32.mrb[0].mxu0
    %v1053 = vadd.f32 %v565, %v1052
    %v1054 = vpop.f32.mrb[0].mxu0
    %1055 = vmatprep.mubr.f32.mxu0 0.0
    %1056 = vmatmul.mubr.f32.gmra.mrb[0].mxu0 %v590
    %v1057 = vpop.f32.mrb[0].mxu0
    %v1058 = vadd.f32 %v565, %v1057
    %v1059 = vpop.f32.mrb[0].mxu0
    %1060 = vmatprep.mubr.f32.mxu0 0.0
    %1061 = vmatmul.mubr.f32.gmra.mrb[0].mxu0 %v593
    %v1062 = vpop.f32.mrb[0].mxu0
    %v1063 = vadd.f32 %v565, %v1062
    %v1064 = vpop.f32.mrb[0].mxu0
    %1065 = vmatprep.mubr.f32.mxu0 0.0
    %1066 = vmatmul.mubr.f32.gmra.mrb[0].mxu0 %v596
    %v1067 = vpop.f32.mrb[0].mxu0
    %v1068 = vadd.f32 %v565, %v1067
    %v1069 = vpop.f32.mrb[0].mxu0
    %1070 = vmatprep.mubr.f32.mxu0 0.0
    %1071 = vmatmul.mubr.f32.gmra.mrb[0].mxu0 %v599
    %v1072 = vpop.f32.mrb[0].mxu0
    %v1073 = vadd.f32 %v565, %v1072
    %v1074 = vpop.f32.mrb[0].mxu0
    %1075 = vmatprep.mubr.f32.mxu0 0.0
    %1076 = vmatmul.mubr.f32.gmra.mrb[0].mxu0 %v602
    %v1077 = vpop.f32.mrb[0].mxu0
    %v1078 = vadd.f32 %v565, %v1077
    %v1079 = vpop.f32.mrb[0].mxu0
    %1080 = vmatprep.mubr.f32.mxu0 0.0
    %1081 = vmatmul.mubr.f32.gmra.mrb[0].mxu0 %v605
    %v1082 = vpop.f32.mrb[0].mxu0
    %v1083 = vadd.f32 %v565, %v1082
    %v1084 = vpop.f32.mrb[0].mxu0
    %1085 = vmatprep.mubr.f32.mxu0 0.0
    %1086 = vmatmul.mubr.f32.gmra.mrb[0].mxu0 %v608
    %v1087 = vpop.f32.mrb[0].mxu0
    %v1088 = vadd.f32 %v565, %v1087
    %v1089 = vpop.f32.mrb[0].mxu0
    %1090 = vmatprep.mubr.f32.mxu0 0.0
    %1091 = vmatmul.mubr.f32.gmra.mrb[0].mxu0 %v611
    %v1092 = vpop.f32.mrb[0].mxu0
    %v1093 = vadd.f32 %v565, %v1092
    %v1094 = vpop.f32.mrb[0].mxu0
    %1095 = vmatprep.mubr.f32.mxu0 0.0
    %1096 = vmatmul.mubr.f32.gmra.mrb[0].mxu0 %v614
    %v1097 = vpop.f32.mrb[0].mxu0
    %v1098 = vadd.f32 %v565, %v1097
    %v1099 = vpop.f32.mrb[0].mxu0
    %1100 = vmatprep.mubr.f32.mxu0 0.0
    %1101 = vmatmul.mubr.f32.gmra.mrb[0].mxu0 %v617
    %v1102 = vpop.f32.mrb[0].mxu0
    %v1103 = vadd.f32 %v565, %v1102
    %v1104 = vpop.f32.mrb[0].mxu0
    %1105 = vmatprep.mubr.f32.mxu0 0.0
    %1106 = vmatmul.mubr.f32.gmra.mrb[0].mxu0 %v620
    %v1107 = vpop.f32.mrb[0].mxu0
    %v1108 = vadd.f32 %v565, %v1107
    %v1109 = vpop.f32.mrb[0].mxu0
    %1110 = vmatprep.mubr.f32.mxu0 0.0
    %1111 = vmatmul.mubr.f32.gmra.mrb[0].mxu0 %v623
    %v1112 = vpop.f32.mrb[0].mxu0
    %v1113 = vadd.f32 %v565, %v1112
    %v1114 = vpop.f32.mrb[0].mxu0
    %1115 = vmatprep.mubr.f32.mxu0 0.0
    %1116 = vmatmul.mubr.f32.gmra.mrb[0].mxu0 %v626
    %v1117 = vpop.f32.mrb[0].mxu0
    %v1118 = vadd.f32 %v565, %v1117
    %v1119 = vpop.f32.mrb[0].mxu0
    %1120 = vmatprep.mubr.f32.mxu0 0.0
    %1121 = vmatmul.mubr.f32.gmra.mrb[0].mxu0 %v629
    %v1122 = vpop.f32.mrb[0].mxu0
    %v1123 = vadd.f32 %v565, %v1122
    %v1124 = vpop.f32.mrb[0].mxu0
    %1125 = vmatprep.mubr.f32.mxu0 0.0
    %1126 = vmatmul.mubr.f32.gmra.mrb[0].mxu0 %v632
    %v1127 = vpop.f32.mrb[0].mxu0
    %v1128 = vadd.f32 %v565, %v1127
    %v1129 = vpop.f32.mrb[0].mxu0
    %1130 = vmatprep.mubr.f32.mxu0 0.0
    %1131 = vmatmul.mubr.f32.gmra.mrb[0].mxu0 %v635
    %v1132 = vpop.f32.mrb[0].mxu0
    %v1133 = vadd.f32 %v565, %v1132
    %v1134 = vpop.f32.mrb[0].mxu0
    %1135 = vmatprep.mubr.f32.mxu0 0.0
    %1136 = vmatmul.mubr.f32.gmra.mrb[0].mxu0 %v638
    %v1137 = vpop.f32.mrb[0].mxu0
    %v1138 = vadd.f32 %v565, %v1137
    %v1139 = vpop.f32.mrb[0].mxu0
    %1140 = vmatprep.mubr.f32.mxu0 0.0
    %1141 = vmatmul.mubr.f32.gmra.mrb[0].mxu0 %v641
    %v1142 = vpop.f32.mrb[0].mxu0
    %v1143 = vadd.f32 %v565, %v1142
    %v1144 = vpop.f32.mrb[0].mxu0
    %1145 = vmatprep.mubr.f32.mxu0 0.0
    %1146 = vmatmul.mubr.f32.gmra.mrb[0].mxu0 %v644
    %v1147 = vpop.f32.mrb[0].mxu0
    %v1148 = vadd.f32 %v565, %v1147
    %v1149 = vpop.f32.mrb[0].mxu0
    %1150 = vmatprep.mubr.f32.mxu0 0.0
    %1151 = vmatmul.mubr.f32.gmra.mrb[0].mxu0 %v647
    %v1152 = vpop.f32.mrb[0].mxu0
    %v1153 = vadd.f32 %v565, %v1152
    %v1154 = vpop.f32.mrb[0].mxu0
    %1155 = vmatprep.mubr.f32.mxu0 0.0
    %1156 = vmatmul.mubr.f32.gmra.mrb[0].mxu0 %v650
    %v1157 = vpop.f32.mrb[0].mxu0
    %v1158 = vadd.f32 %v565, %v1157
    %v1159 = vpop.f32.mrb[0].mxu0
    %1160 = vmatprep.mubr.f32.mxu0 0.0
    %1161 = vmatmul.mubr.f32.gmra.mrb[0].mxu0 %v653
    %v1162 = vpop.f32.mrb[0].mxu0
    %v1163 = vadd.f32 %v565, %v1162
    %v1164 = vpop.f32.mrb[0].mxu0
    %1165 = vmatprep.mubr.f32.mxu0 0.0
    %1166 = vmatmul.mubr.f32.gmra.mrb[0].mxu0 %v656
    %v1167 = vpop.f32.mrb[0].mxu0
    %v1168 = vadd.f32 %v565, %v1167
    %v1169 = vpop.f32.mrb[0].mxu0
    %1170 = vmatprep.mubr.f32.mxu0 0.0
    %1171 = vmatmul.mubr.f32.gmra.mrb[0].mxu0 %v659
    %v1172 = vpop.f32.mrb[0].mxu0
    %v1173 = vadd.f32 %v565, %v1172
    %v1174 = vpop.f32.mrb[0].mxu0
    %1175 = vmatprep.mubr.f32.mxu0 0.0
    %1176 = vmatmul.mubr.f32.gmra.mrb[0].mxu0 %v662
    %v1177 = vpop.f32.mrb[0].mxu0
    %v1178 = vadd.f32 %v565, %v1177
    %v1179 = vpop.f32.mrb[0].mxu0
    %1180 = vmatprep.mubr.f32.mxu0 0.0
    %1181 = vmatmul.mubr.f32.gmra.mrb[0].mxu0 %v665
    %v1182 = vpop.f32.mrb[0].mxu0
    %v1183 = vadd.f32 %v565, %v1182
    %v1184 = vpop.f32.mrb[0].mxu0
    %1185 = vmatprep.mubr.f32.mxu0 0.0
    %1186 = vmatmul.mubr.f32.gmra.mrb[0].mxu0 %v668
    %v1187 = vpop.f32.mrb[0].mxu0
    %v1188 = vadd.f32 %v565, %v1187
    %v1189 = vpop.f32.mrb[0].mxu0
    %1190 = vmatprep.mubr.f32.mxu0 0.0
    %1191 = vmatmul.mubr.f32.gmra.mrb[0].mxu0 %v671
    %v1192 = vpop.f32.mrb[0].mxu0
    %v1193 = vadd.f32 %v565, %v1192
    %v1194 = vpop.f32.mrb[0].mxu0
    %1195 = vmatprep.mubr.f32.mxu0 0.0
    %1196 = vmatmul.mubr.f32.gmra.mrb[0].mxu0 %v674
    %v1197 = vpop.f32.mrb[0].mxu0
    %v1198 = vadd.f32 %v565, %v1197
    %v1199 = vpop.f32.mrb[0].mxu0
    %1200 = vmatprep.mubr.f32.mxu0 0.0
    %1201 = vmatmul.mubr.f32.gmra.mrb[0].mxu0 %v677
    %v1202 = vpop.f32.mrb[0].mxu0
    %v1203 = vadd.f32 %v565, %v1202
    %v1204 = vpop.f32.mrb[0].mxu0
    %1205 = vmatprep.mubr.f32.mxu0 0.0
    %1206 = vmatmul.mubr.f32.gmra.mrb[0].mxu0 %v680
    %v1207 = vpop.f32.mrb[0].mxu0
    %v1208 = vadd.f32 %v565, %v1207
    %v1209 = vpop.f32.mrb[0].mxu0
    %1210 = vmatprep.mubr.f32.mxu0 0.0
    %1211 = vmatmul.mubr.f32.gmra.mrb[0].mxu0 %v683
    %v1212 = vpop.f32.mrb[0].mxu0
    %v1213 = vadd.f32 %v565, %v1212
    %v1214 = vpop.f32.mrb[0].mxu0
    %1215 = vmatprep.mubr.f32.mxu0 0.0
    %1216 = vmatmul.mubr.f32.gmra.mrb[0].mxu0 %v686
    %v1217 = vpop.f32.mrb[0].mxu0
    %v1218 = vadd.f32 %v565, %v1217
    %v1219 = vpop.f32.mrb[0].mxu0
    %1220 = vmatprep.mubr.f32.mxu0 0.0
    %1221 = vmatmul.mubr.f32.gmra.mrb[0].mxu0 %v689
    %v1222 = vpop.f32.mrb[0].mxu0
    %v1223 = vadd.f32 %v565, %v1222
    %v1224 = vpop.f32.mrb[0].mxu0
    %1225 = vmatprep.mubr.f32.mxu0 0.0
    %1226 = vmatmul.mubr.f32.gmra.mrb[0].mxu0 %v692
    %v1227 = vpop.f32.mrb[0].mxu0
    %v1228 = vadd.f32 %v565, %v1227
    %v1229 = vpop.f32.mrb[0].mxu0
    %1230 = vmatprep.mubr.f32.mxu0 0.0
    %1231 = vmatmul.mubr.f32.gmra.mrb[0].mxu0 %v695
    %v1232 = vpop.f32.mrb[0].mxu0
    %v1233 = vadd.f32 %v565, %v1232
    %v1234 = vpop.f32.mrb[0].mxu0
    %1235 = vmatprep.mubr.f32.mxu0 0.0
    %1236 = vmatmul.mubr.f32.gmra.mrb[0].mxu0 %v698
    %v1237 = vpop.f32.mrb[0].mxu0
    %v1238 = vadd.f32 %v565, %v1237
    %v1239 = vpop.f32.mrb[0].mxu0
    %1240 = vmatprep.mubr.f32.mxu0 0.0
    %1241 = vmatmul.mubr.f32.gmra.mrb[0].mxu0 %v701
    %v1242 = vpop.f32.mrb[0].mxu0
    %v1243 = vadd.f32 %v565, %v1242
    %v1244 = vpop.f32.mrb[0].mxu0
    %1245 = vmatprep.mubr.f32.mxu0 0.0
    %1246 = vmatmul.mubr.f32.gmra.mrb[0].mxu0 %v704
    %v1247 = vpop.f32.mrb[0].mxu0
    %v1248 = vadd.f32 %v565, %v1247
    %v1249 = vpop.f32.mrb[0].mxu0
    %1250 = vmatprep.mubr.f32.mxu0 0.0
    %1251 = vmatmul.mubr.f32.gmra.mrb[0].mxu0 %v707
    %v1252 = vpop.f32.mrb[0].mxu0
    %v1253 = vadd.f32 %v565, %v1252
    %v1254 = vpop.f32.mrb[0].mxu0
    %1255 = vmatprep.mubr.f32.mxu0 0.0
    %1256 = vmatmul.mubr.f32.gmra.mrb[0].mxu0 %v710
    %v1257 = vpop.f32.mrb[0].mxu0
    %v1258 = vadd.f32 %v565, %v1257
    %v1259 = vpop.f32.mrb[0].mxu0
    %1260 = vmatprep.mubr.f32.mxu0 0.0
    %1261 = vmatmul.mubr.f32.gmra.mrb[0].mxu0 %v713
    %v1262 = vpop.f32.mrb[0].mxu0
    %v1263 = vadd.f32 %v565, %v1262
    %v1264 = vpop.f32.mrb[0].mxu0
    %1265 = vmatprep.mubr.f32.mxu0 0.0
    %1266 = vmatmul.mubr.f32.gmra.mrb[0].mxu0 %v716
    %v1267 = vpop.f32.mrb[0].mxu0
    %v1268 = vadd.f32 %v565, %v1267
    %v1269 = vpop.f32.mrb[0].mxu0
    %1270 = vmatprep.mubr.f32.mxu0 0.0
    %1271 = vmatmul.mubr.f32.gmra.mrb[0].mxu0 %v719
    %v1272 = vpop.f32.mrb[0].mxu0
    %v1273 = vadd.f32 %v565, %v1272
    %v1274 = vpop.f32.mrb[0].mxu0
    %1275 = vmatprep.mubr.f32.mxu0 0.0
    %1276 = vmatmul.mubr.f32.gmra.mrb[0].mxu0 %v722
    %v1277 = vpop.f32.mrb[0].mxu0
    %v1278 = vadd.f32 %v565, %v1277
    %v1279 = vpop.f32.mrb[0].mxu0
    %1280 = vmatprep.mubr.f32.mxu0 0.0
    %1281 = vmatmul.mubr.f32.gmra.mrb[0].mxu0 %v725
    %v1282 = vpop.f32.mrb[0].mxu0
    %v1283 = vadd.f32 %v565, %v1282
    %v1284 = vpop.f32.mrb[0].mxu0
    %1285 = vmatprep.mubr.f32.mxu0 0.0
    %1286 = vmatmul.mubr.f32.gmra.mrb[0].mxu0 %v728
    %v1287 = vpop.f32.mrb[0].mxu0
    %v1288 = vadd.f32 %v565, %v1287
    %v1289 = vpop.f32.mrb[0].mxu0
    %1290 = vmatprep.mubr.f32.mxu0 0.0
    %1291 = vmatmul.mubr.f32.gmra.mrb[0].mxu0 %v731
    %v1292 = vpop.f32.mrb[0].mxu0
    %v1293 = vadd.f32 %v565, %v1292
    %v1294 = vpop.f32.mrb[0].mxu0
    %1295 = vmatprep.mubr.f32.mxu0 0.0
    %1296 = vmatmul.mubr.f32.gmra.mrb[0].mxu0 %v734
    %v1297 = vpop.f32.mrb[0].mxu0
    %v1298 = vadd.f32 %v565, %v1297
    %v1299 = vpop.f32.mrb[0].mxu0
    %1300 = vmatprep.mubr.f32.mxu0 0.0
    %1301 = vmatmul.mubr.f32.gmra.mrb[0].mxu0 %v737
    %v1302 = vpop.f32.mrb[0].mxu0
    %v1303 = vadd.f32 %v565, %v1302
    %v1304 = vpop.f32.mrb[0].mxu0
    %1305 = vmatprep.mubr.f32.mxu0 0.0
    %1306 = vmatmul.mubr.f32.gmra.mrb[0].mxu0 %v740
    %v1307 = vpop.f32.mrb[0].mxu0
    %v1308 = vadd.f32 %v565, %v1307
    %v1309 = vpop.f32.mrb[0].mxu0
    %1310 = vmatprep.mubr.f32.mxu0 0.0
    %1311 = vmatmul.mubr.f32.gmra.mrb[0].mxu0 %v743
    %v1312 = vpop.f32.mrb[0].mxu0
    %v1313 = vadd.f32 %v565, %v1312
    %v1314 = vpop.f32.mrb[0].mxu0
    %1315 = vmatprep.mubr.f32.mxu0 0.0
    %1316 = vmatmul.mubr.f32.gmra.mrb[0].mxu0 %v746
    %v1317 = vpop.f32.mrb[0].mxu0
    %v1318 = vadd.f32 %v565, %v1317
    %v1319 = vpop.f32.mrb[0].mxu0
    %1320 = vmatprep.mubr.f32.mxu0 0.0
    %1321 = vmatmul.mubr.f32.gmra.mrb[0].mxu0 %v749
    %v1322 = vpop.f32.mrb[0].mxu0
    %v1323 = vadd.f32 %v565, %v1322
    %v1324 = vpop.f32.mrb[0].mxu0
    %1325 = vmatprep.mubr.f32.mxu0 0.0
    %1326 = vmatmul.mubr.f32.gmra.mrb[0].mxu0 %v752
    %v1327 = vpop.f32.mrb[0].mxu0
    %v1328 = vadd.f32 %v565, %v1327
    %v1329 = vpop.f32.mrb[0].mxu0
    %1330 = vmatprep.mubr.f32.mxu0 0.0
    %1331 = vmatmul.mubr.f32.gmra.mrb[0].mxu0 %v755
    %v1332 = vpop.f32.mrb[0].mxu0
    %v1333 = vadd.f32 %v565, %v1332
    %v1334 = vpop.f32.mrb[0].mxu0
    %1335 = vmatprep.mubr.f32.mxu0 0.0
    %1336 = vmatmul.mubr.f32.gmra.mrb[0].mxu0 %v758
    %v1337 = vpop.f32.mrb[0].mxu0
    %v1338 = vadd.f32 %v565, %v1337
    %v1339 = vpop.f32.mrb[0].mxu0
    %1340 = vmatprep.mubr.f32.mxu0 0.0
    %1341 = vmatmul.mubr.f32.gmra.mrb[0].mxu0 %v761
    %v1342 = vpop.f32.mrb[0].mxu0
    %v1343 = vadd.f32 %v565, %v1342
    %v1344 = vpop.f32.mrb[0].mxu0
    %1345 = vmatprep.mubr.f32.mxu0 0.0
    %1346 = vmatmul.mubr.f32.gmra.mrb[0].mxu0 %v764
    %v1347 = vpop.f32.mrb[0].mxu0
    %v1348 = vadd.f32 %v565, %v1347
    %v1349 = vpop.f32.mrb[0].mxu0
    %1350 = vmatprep.mubr.f32.mxu0 0.0
    %1351 = vmatmul.mubr.f32.gmra.mrb[0].mxu0 %v767
    %v1352 = vpop.f32.mrb[0].mxu0
    %v1353 = vadd.f32 %v565, %v1352
    %v1354 = vpop.f32.mrb[0].mxu0
    %1355 = vmatprep.mubr.f32.mxu0 0.0
    %1356 = vmatmul.mubr.f32.gmra.mrb[0].mxu0 %v770
    %v1357 = vpop.f32.mrb[0].mxu0
    %v1358 = vadd.f32 %v565, %v1357
    %v1359 = vpop.f32.mrb[0].mxu0
    %1360 = vmatprep.mubr.f32.mxu0 0.0
    %1361 = vmatmul.mubr.f32.gmra.mrb[0].mxu0 %v773
    %v1362 = vpop.f32.mrb[0].mxu0
    %v1363 = vadd.f32 %v565, %v1362
    %v1364 = vpop.f32.mrb[0].mxu0
    %1365 = vmatprep.mubr.f32.mxu0 0.0
    %1366 = vmatmul.mubr.f32.gmra.mrb[0].mxu0 %v776
    %v1367 = vpop.f32.mrb[0].mxu0
    %v1368 = vadd.f32 %v565, %v1367
    %v1369 = vpop.f32.mrb[0].mxu0
    %1370 = vmatprep.mubr.f32.mxu0 0.0
    %1371 = vmatmul.mubr.f32.gmra.mrb[0].mxu0 %v779
    %v1372 = vpop.f32.mrb[0].mxu0
    %v1373 = vadd.f32 %v565, %v1372
    %v1374 = vpop.f32.mrb[0].mxu0
    %1375 = vmatprep.mubr.f32.mxu0 0.0
    %1376 = vmatmul.mubr.f32.gmra.mrb[0].mxu0 %v782
    %v1377 = vpop.f32.mrb[0].mxu0
    %v1378 = vadd.f32 %v565, %v1377
    %v1379 = vpop.f32.mrb[0].mxu0
    %1380 = vmatprep.mubr.f32.mxu0 0.0
    %1381 = vmatmul.mubr.f32.gmra.mrb[0].mxu0 %v785
    %v1382 = vpop.f32.mrb[0].mxu0
    %v1383 = vadd.f32 %v565, %v1382
    %v1384 = vpop.f32.mrb[0].mxu0
    %1385 = vmatprep.mubr.f32.mxu0 0.0
    %1386 = vmatmul.mubr.f32.gmra.mrb[0].mxu0 %v788
    %v1387 = vpop.f32.mrb[0].mxu0
    %v1388 = vadd.f32 %v565, %v1387
    %v1389 = vpop.f32.mrb[0].mxu0
    %1390 = vmatprep.mubr.f32.mxu0 0.0
    %1391 = vmatmul.mubr.f32.gmra.mrb[0].mxu0 %v791
    %v1392 = vpop.f32.mrb[0].mxu0
    %v1393 = vadd.f32 %v565, %v1392
    %v1394 = vpop.f32.mrb[0].mxu0
    %1395 = vmatprep.mubr.f32.mxu0 0.0
    %1396 = vmatmul.mubr.f32.gmra.mrb[0].mxu0 %v794
    %v1397 = vpop.f32.mrb[0].mxu0
    %v1398 = vadd.f32 %v565, %v1397
    %v1399 = vpop.f32.mrb[0].mxu0
    %1400 = vmatprep.mubr.f32.mxu0 0.0
    %1401 = vmatmul.mubr.f32.gmra.mrb[0].mxu0 %v797
    %v1402 = vpop.f32.mrb[0].mxu0
    %v1403 = vadd.f32 %v565, %v1402
    %v1404 = vpop.f32.mrb[0].mxu0
    %1405 = vmatprep.mubr.f32.mxu0 0.0
    %1406 = vmatmul.mubr.f32.gmra.mrb[0].mxu0 %v800
    %v1407 = vpop.f32.mrb[0].mxu0
    %v1408 = vadd.f32 %v565, %v1407
    %v1409 = vpop.f32.mrb[0].mxu0
    %1410 = vmatprep.mubr.f32.mxu0 0.0
    %1411 = vmatmul.mubr.f32.gmra.mrb[0].mxu0 %v803
    %v1412 = vpop.f32.mrb[0].mxu0
    %v1413 = vadd.f32 %v565, %v1412
    %v1414 = vpop.f32.mrb[0].mxu0
    %1415 = vmatprep.mubr.f32.mxu0 0.0
    %1416 = vmatmul.mubr.f32.gmra.mrb[0].mxu0 %v806
    %v1417 = vpop.f32.mrb[0].mxu0
    %v1418 = vadd.f32 %v565, %v1417
    %v1419 = vpop.f32.mrb[0].mxu0
    %1420 = vmatprep.mubr.f32.mxu0 0.0
    %1421 = vmatmul.mubr.f32.gmra.mrb[0].mxu0 %v809
    %v1422 = vpop.f32.mrb[0].mxu0
    %v1423 = vadd.f32 %v565, %v1422
    %v1424 = vpop.f32.mrb[0].mxu0
    %1425 = vmatprep.mubr.f32.mxu0 0.0
    %1426 = vmatmul.mubr.f32.gmra.mrb[0].mxu0 %v812
    %v1427 = vpop.f32.mrb[0].mxu0
    %v1428 = vadd.f32 %v565, %v1427
    %v1429 = vpop.f32.mrb[0].mxu0
    %1430 = vmatprep.mubr.f32.mxu0 0.0
    %1431 = vmatmul.mubr.f32.gmra.mrb[0].mxu0 %v815
    %v1432 = vpop.f32.mrb[0].mxu0
    %v1433 = vadd.f32 %v565, %v1432
    %v1434 = vpop.f32.mrb[0].mxu0
    %1435 = vmatprep.mubr.f32.mxu0 0.0
    %1436 = vmatmul.mubr.f32.gmra.mrb[0].mxu0 %v818
    %v1437 = vpop.f32.mrb[0].mxu0
    %v1438 = vadd.f32 %v565, %v1437
    %v1439 = vpop.f32.mrb[0].mxu0
    %1440 = vmatprep.mubr.f32.mxu0 0.0
    %1441 = vmatmul.mubr.f32.gmra.mrb[0].mxu0 %v821
    %v1442 = vpop.f32.mrb[0].mxu0
    %v1443 = vadd.f32 %v565, %v1442
    %v1444 = vpop.f32.mrb[0].mxu0
    %1445 = vmatprep.mubr.f32.mxu0 0.0
    %1446 = vmatmul.mubr.f32.gmra.mrb[0].mxu0 %v824
    %v1447 = vpop.f32.mrb[0].mxu0
    %v1448 = vadd.f32 %v565, %v1447
    %v1449 = vpop.f32.mrb[0].mxu0
    %1450 = vmatprep.mubr.f32.mxu0 0.0
    %1451 = vmatmul.mubr.f32.gmra.mrb[0].mxu0 %v827
    %v1452 = vpop.f32.mrb[0].mxu0
    %v1453 = vadd.f32 %v565, %v1452
    %v1454 = vpop.f32.mrb[0].mxu0
    %1455 = vmatprep.mubr.f32.mxu0 0.0
    %1456 = vmatmul.mubr.f32.gmra.mrb[0].mxu0 %v830
    %v1457 = vpop.f32.mrb[0].mxu0
    %v1458 = vadd.f32 %v565, %v1457
    %v1459 = vpop.f32.mrb[0].mxu0
    %1460 = vmatprep.mubr.f32.mxu0 0.0
    %1461 = vmatmul.mubr.f32.gmra.mrb[0].mxu0 %v833
    %v1462 = vpop.f32.mrb[0].mxu0
    %v1463 = vadd.f32 %v565, %v1462
    %v1464 = vpop.f32.mrb[0].mxu0
    %1465 = vmatprep.mubr.f32.mxu0 0.0
    %1466 = vmatmul.mubr.f32.gmra.mrb[0].mxu0 %v836
    %v1467 = vpop.f32.mrb[0].mxu0
    %v1468 = vadd.f32 %v565, %v1467
    %v1469 = vpop.f32.mrb[0].mxu0
    %1470 = vmatprep.mubr.f32.mxu0 0.0
    %1471 = vmatmul.mubr.f32.gmra.mrb[0].mxu0 %v839
    %v1472 = vpop.f32.mrb[0].mxu0
    %v1473 = vadd.f32 %v565, %v1472
    %v1474 = vpop.f32.mrb[0].mxu0
    %1475 = vmatprep.mubr.f32.mxu0 0.0
    %1476 = vmatmul.mubr.f32.gmra.mrb[0].mxu0 %v842
    %v1477 = vpop.f32.mrb[0].mxu0
    %v1478 = vadd.f32 %v565, %v1477
    %v1479 = vpop.f32.mrb[0].mxu0
    %1480 = vmatprep.mubr.f32.mxu0 0.0
    %1481 = vmatmul.mubr.f32.gmra.mrb[0].mxu0 %v845
    %v1482 = vpop.f32.mrb[0].mxu0
    %v1483 = vadd.f32 %v565, %v1482
    %v1484 = vpop.f32.mrb[0].mxu0
    %1485 = vmatprep.mubr.f32.mxu0 0.0
    %1486 = vmatmul.mubr.f32.gmra.mrb[0].mxu0 %v848
    %v1487 = vpop.f32.mrb[0].mxu0
    %v1488 = vadd.f32 %v565, %v1487
    %v1489 = vpop.f32.mrb[0].mxu0
    %1490 = vmatprep.mubr.f32.mxu0 0.0
    %1491 = vmatmul.mubr.f32.gmra.mrb[0].mxu0 %v851
    %v1492 = vpop.f32.mrb[0].mxu0
    %v1493 = vadd.f32 %v565, %v1492
    %v1494 = vpop.f32.mrb[0].mxu0
    %1495 = vmatprep.mubr.f32.mxu0 0.0
    %1496 = vmatmul.mubr.f32.gmra.mrb[0].mxu0 %v854
    %v1497 = vpop.f32.mrb[0].mxu0
    %v1498 = vadd.f32 %v565, %v1497
    %v1499 = vpop.f32.mrb[0].mxu0
    %1500 = vmatprep.mubr.f32.mxu0 0.0
    %1501 = vmatmul.mubr.f32.gmra.mrb[0].mxu0 %v857
    %v1502 = vpop.f32.mrb[0].mxu0
    %v1503 = vadd.f32 %v565, %v1502
    %v1504 = vpop.f32.mrb[0].mxu0
    %1505 = vmatprep.mubr.f32.mxu0 0.0
    %1506 = vmatmul.mubr.f32.gmra.mrb[0].mxu0 %v860
    %v1507 = vpop.f32.mrb[0].mxu0
    %v1508 = vadd.f32 %v565, %v1507
    %v1509 = vpop.f32.mrb[0].mxu0
    %1510 = vmatprep.mubr.f32.mxu0 0.0
    %1511 = vmatmul.mubr.f32.gmra.mrb[0].mxu0 %v863
    %v1512 = vpop.f32.mrb[0].mxu0
    %v1513 = vadd.f32 %v565, %v1512
    %v1514 = vpop.f32.mrb[0].mxu0
    %1515 = vmatprep.mubr.f32.mxu0 0.0
    %1516 = vmatmul.mubr.f32.gmra.mrb[0].mxu0 %v866
    %v1517 = vpop.f32.mrb[0].mxu0
    %v1518 = vadd.f32 %v565, %v1517
    %v1519 = vpop.f32.mrb[0].mxu0
    %1520 = vmatprep.mubr.f32.mxu0 0.0
    %1521 = vmatmul.mubr.f32.gmra.mrb[0].mxu0 %v869
    %v1522 = vpop.f32.mrb[0].mxu0
    %v1523 = vadd.f32 %v565, %v1522
    %v1524 = vpop.f32.mrb[0].mxu0
    %1525 = vmatprep.mubr.f32.mxu0 0.0
    %1526 = vmatmul.mubr.f32.gmra.mrb[0].mxu0 %v872
    %v1527 = vpop.f32.mrb[0].mxu0
    %v1528 = vadd.f32 %v565, %v1527
    %v1529 = vpop.f32.mrb[0].mxu0
    %1530 = vmatprep.mubr.f32.mxu0 0.0
    %1531 = vmatmul.mubr.f32.gmra.mrb[0].mxu0 %v875
    %v1532 = vpop.f32.mrb[0].mxu0
    %v1533 = vadd.f32 %v565, %v1532
    %v1534 = vpop.f32.mrb[0].mxu0
    %1535 = vmatprep.mubr.f32.mxu0 0.0
    %1536 = vmatmul.mubr.f32.gmra.mrb[0].mxu0 %v878
    %v1537 = vpop.f32.mrb[0].mxu0
    %v1538 = vadd.f32 %v565, %v1537
    %v1539 = vpop.f32.mrb[0].mxu0
    %1540 = vmatprep.mubr.f32.mxu0 0.0
    %1541 = vmatmul.mubr.f32.gmra.mrb[0].mxu0 %v881
    %v1542 = vpop.f32.mrb[0].mxu0
    %v1543 = vadd.f32 %v565, %v1542
    %v1544 = vpop.f32.mrb[0].mxu0
    %1545 = vmatprep.mubr.f32.mxu0 0.0
    %1546 = vmatmul.mubr.f32.gmra.mrb[0].mxu0 %v884
    %v1547 = vpop.f32.mrb[0].mxu0
    %v1548 = vadd.f32 %v565, %v1547
    %v1549 = vpop.f32.mrb[0].mxu0
    %1550 = vmatprep.mubr.f32.mxu0 0.0
    %1551 = vmatmul.mubr.f32.gmra.mrb[0].mxu0 %v887
    %v1552 = vpop.f32.mrb[0].mxu0
    %v1553 = vadd.f32 %v565, %v1552
    %v1554 = vpop.f32.mrb[0].mxu0
    %1555 = vmatprep.mubr.f32.mxu0 0.0
    %1556 = vmatmul.mubr.f32.gmra.mrb[0].mxu0 %v890
    %v1557 = vpop.f32.mrb[0].mxu0
    %v1558 = vadd.f32 %v565, %v1557
    %v1559 = vpop.f32.mrb[0].mxu0
    %1560 = vmatprep.mubr.f32.mxu0 0.0
    %1561 = vmatmul.mubr.f32.gmra.mrb[0].mxu0 %v893
    %v1562 = vpop.f32.mrb[0].mxu0
    %v1563 = vadd.f32 %v565, %v1562
    %v1564 = vpop.f32.mrb[0].mxu0
    %1565 = vmatprep.mubr.f32.mxu0 0.0
    %1566 = vmatmul.mubr.f32.gmra.mrb[0].mxu0 %v896
    %v1567 = vpop.f32.mrb[0].mxu0
    %v1568 = vadd.f32 %v565, %v1567
    %v1569 = vpop.f32.mrb[0].mxu0
    %1570 = vmatprep.mubr.f32.mxu0 0.0
    %1571 = vmatmul.mubr.f32.gmra.mrb[0].mxu0 %v899
    %v1572 = vpop.f32.mrb[0].mxu0
    %v1573 = vadd.f32 %v565, %v1572
    %v1574 = vpop.f32.mrb[0].mxu0
    %1575 = vmatprep.mubr.f32.mxu0 0.0
    %1576 = vmatmul.mubr.f32.gmra.mrb[0].mxu0 %v902
    %v1577 = vpop.f32.mrb[0].mxu0
    %v1578 = vadd.f32 %v565, %v1577
    %v1579 = vpop.f32.mrb[0].mxu0
    %1580 = vmatprep.mubr.f32.mxu0 0.0
    %1581 = vmatmul.mubr.f32.gmra.mrb[0].mxu0 %v905
    %v1582 = vpop.f32.mrb[0].mxu0
    %v1583 = vadd.f32 %v565, %v1582
    %v1584 = vpop.f32.mrb[0].mxu0
    %1585 = vmatprep.mubr.f32.mxu0 0.0
    %1586 = vmatmul.mubr.f32.gmra.mrb[0].mxu0 %v908
    %v1587 = vpop.f32.mrb[0].mxu0
    %v1588 = vadd.f32 %v565, %v1587
    %v1589 = vpop.f32.mrb[0].mxu0
    %1590 = vmatprep.mubr.f32.mxu0 0.0
    %1591 = vmatmul.mubr.f32.gmra.mrb[0].mxu0 %v911
    %v1592 = vpop.f32.mrb[0].mxu0
    %v1593 = vadd.f32 %v565, %v1592
    %v1594 = vpop.f32.mrb[0].mxu0
    %1595 = vmatprep.mubr.f32.mxu0 0.0
    %1596 = vmatmul.mubr.f32.gmra.mrb[0].mxu0 %v914
    %v1597 = vpop.f32.mrb[0].mxu0
    %v1598 = vadd.f32 %v565, %v1597
    %v1599 = vpop.f32.mrb[0].mxu0
    %1600 = vmatprep.mubr.f32.mxu0 0.0
    %1601 = vmatmul.mubr.f32.gmra.mrb[0].mxu0 %v917
    %v1602 = vpop.f32.mrb[0].mxu0
    %v1603 = vadd.f32 %v565, %v1602
    %v1604 = vpop.f32.mrb[0].mxu0
    %1605 = vmatprep.mubr.f32.mxu0 0.0
    %1606 = vmatmul.mubr.f32.gmra.mrb[0].mxu0 %v920
    %v1607 = vpop.f32.mrb[0].mxu0
    %v1608 = vadd.f32 %v565, %v1607
    %v1609 = vpop.f32.mrb[0].mxu0
    %1610 = vmatprep.mubr.f32.mxu0 0.0
    %1611 = vmatmul.mubr.f32.gmra.mrb[0].mxu0 %v923
    %v1612 = vpop.f32.mrb[0].mxu0
    %v1613 = vadd.f32 %v565, %v1612
    %v1614 = vpop.f32.mrb[0].mxu0
    %1615 = vmatprep.mubr.f32.mxu0 0.0
    %1616 = vmatmul.mubr.f32.gmra.mrb[0].mxu0 %v926
    %v1617 = vpop.f32.mrb[0].mxu0
    %v1618 = vadd.f32 %v565, %v1617
    %v1619 = vpop.f32.mrb[0].mxu0
    %1620 = vmatprep.mubr.f32.mxu0 0.0
    %1621 = vmatmul.mubr.f32.gmra.mrb[0].mxu0 %v929
    %v1622 = vpop.f32.mrb[0].mxu0
    %v1623 = vadd.f32 %v565, %v1622
    %v1624 = vpop.f32.mrb[0].mxu0
    %1625 = vmatprep.mubr.f32.mxu0 0.0
    %1626 = vmatmul.mubr.f32.gmra.mrb[0].mxu0 %v932
    %v1627 = vpop.f32.mrb[0].mxu0
    %v1628 = vadd.f32 %v565, %v1627
    %v1629 = vpop.f32.mrb[0].mxu0
    %1630 = vmatprep.mubr.f32.mxu0 0.0
    %1631 = vmatmul.mubr.f32.gmra.mrb[0].mxu0 %v935
    %v1632 = vpop.f32.mrb[0].mxu0
    %v1633 = vadd.f32 %v565, %v1632
    %v1634 = vpop.f32.mrb[0].mxu0
    %1635 = vmatprep.mubr.f32.mxu0 0.0
    %1636 = vmatmul.mubr.f32.gmra.mrb[0].mxu0 %v938
    %v1637 = vpop.f32.mrb[0].mxu0
    %v1638 = vadd.f32 %v565, %v1637
    %v1639 = vpop.f32.mrb[0].mxu0
    %1640 = vmatprep.mubr.f32.mxu0 0.0
    %1641 = vmatmul.mubr.f32.gmra.mrb[0].mxu0 %v941
    %v1642 = vpop.f32.mrb[0].mxu0
    %v1643 = vadd.f32 %v565, %v1642
    %v1644 = vpop.f32.mrb[0].mxu0
    %1645 = vmatprep.mubr.f32.mxu0 0.0
    %1646 = vmatmul.mubr.f32.gmra.mrb[0].mxu0 %v944
    %v1647 = vpop.f32.mrb[0].mxu0
    %v1648 = vadd.f32 %v565, %v1647
    %v1649 = vpop.f32.mrb[0].mxu0
    %1650 = vmatprep.mubr.f32.mxu0 0.0
    %1651 = vmatmul.mubr.f32.gmra.mrb[0].mxu0 %v947
    %v1652 = vpop.f32.mrb[0].mxu0
    %v1653 = vadd.f32 %v565, %v1652
    %v1654 = vpop.f32.mrb[0].mxu0
    %1655 = vmatprep.mubr.f32.mxu0 0.0
    %1656 = vmatmul.mubr.f32.gmra.mrb[0].mxu0 %v950
    %v1657 = vpop.f32.mrb[0].mxu0
    %v1658 = vadd.f32 %v565, %v1657
    %v1659 = vpop.f32.mrb[0].mxu0
    %1660 = vdwg.mxu0
    %v1661 = vmax.f32 %v1023, 0.0
    %v1662 = vmax.f32 %v1028, 0.0
    %v1663 = vmax.f32 %v1033, 0.0
    %v1664 = vmax.f32 %v1038, 0.0
    %v1665 = vmax.f32 %v1043, 0.0
    %v1666 = vmax.f32 %v1048, 0.0
    %v1667 = vmax.f32 %v1053, 0.0
    %v1668 = vmax.f32 %v1058, 0.0
    %v1669 = vmax.f32 %v1063, 0.0
    %v1670 = vmax.f32 %v1068, 0.0
    %v1671 = vmax.f32 %v1073, 0.0
    %v1672 = vmax.f32 %v1078, 0.0
    %v1673 = vmax.f32 %v1083, 0.0
    %v1674 = vmax.f32 %v1088, 0.0
    %v1675 = vmax.f32 %v1093, 0.0
    %v1676 = vmax.f32 %v1098, 0.0
    %v1677 = vmax.f32 %v1103, 0.0
    %v1678 = vmax.f32 %v1108, 0.0
    %v1679 = vmax.f32 %v1113, 0.0
    %v1680 = vmax.f32 %v1118, 0.0
    %v1681 = vmax.f32 %v1123, 0.0
    %v1682 = vmax.f32 %v1128, 0.0
    %v1683 = vmax.f32 %v1133, 0.0
    %v1684 = vmax.f32 %v1138, 0.0
    %v1685 = vmax.f32 %v1143, 0.0
    %v1686 = vmax.f32 %v1148, 0.0
    %v1687 = vmax.f32 %v1153, 0.0
    %v1688 = vmax.f32 %v1158, 0.0
    %v1689 = vmax.f32 %v1163, 0.0
    %v1690 = vmax.f32 %v1168, 0.0
    %v1691 = vmax.f32 %v1173, 0.0
    %v1692 = vmax.f32 %v1178, 0.0
    %v1693 = vmax.f32 %v1183, 0.0
    %v1694 = vmax.f32 %v1188, 0.0
    %v1695 = vmax.f32 %v1193, 0.0
    %v1696 = vmax.f32 %v1198, 0.0
    %v1697 = vmax.f32 %v1203, 0.0
    %v1698 = vmax.f32 %v1208, 0.0
    %v1699 = vmax.f32 %v1213, 0.0
    %v1700 = vmax.f32 %v1218, 0.0
    %v1701 = vmax.f32 %v1223, 0.0
    %v1702 = vmax.f32 %v1228, 0.0
    %v1703 = vmax.f32 %v1233, 0.0
    %v1704 = vmax.f32 %v1238, 0.0
    %v1705 = vmax.f32 %v1243, 0.0
    %v1706 = vmax.f32 %v1248, 0.0
    %v1707 = vmax.f32 %v1253, 0.0
    %v1708 = vmax.f32 %v1258, 0.0
    %v1709 = vmax.f32 %v1263, 0.0
    %v1710 = vmax.f32 %v1268, 0.0
    %v1711 = vmax.f32 %v1273, 0.0
    %v1712 = vmax.f32 %v1278, 0.0
    %v1713 = vmax.f32 %v1283, 0.0
    %v1714 = vmax.f32 %v1288, 0.0
    %v1715 = vmax.f32 %v1293, 0.0
    %v1716 = vmax.f32 %v1298, 0.0
    %v1717 = vmax.f32 %v1303, 0.0
    %v1718 = vmax.f32 %v1308, 0.0
    %v1719 = vmax.f32 %v1313, 0.0
    %v1720 = vmax.f32 %v1318, 0.0
    %v1721 = vmax.f32 %v1323, 0.0
    %v1722 = vmax.f32 %v1328, 0.0
    %v1723 = vmax.f32 %v1333, 0.0
    %v1724 = vmax.f32 %v1338, 0.0
    %v1725 = vmax.f32 %v1343, 0.0
    %v1726 = vmax.f32 %v1348, 0.0
    %v1727 = vmax.f32 %v1353, 0.0
    %v1728 = vmax.f32 %v1358, 0.0
    %v1729 = vmax.f32 %v1363, 0.0
    %v1730 = vmax.f32 %v1368, 0.0
    %v1731 = vmax.f32 %v1373, 0.0
    %v1732 = vmax.f32 %v1378, 0.0
    %v1733 = vmax.f32 %v1383, 0.0
    %v1734 = vmax.f32 %v1388, 0.0
    %v1735 = vmax.f32 %v1393, 0.0
    %v1736 = vmax.f32 %v1398, 0.0
    %v1737 = vmax.f32 %v1403, 0.0
    %v1738 = vmax.f32 %v1408, 0.0
    %v1739 = vmax.f32 %v1413, 0.0
    %v1740 = vmax.f32 %v1418, 0.0
    %v1741 = vmax.f32 %v1423, 0.0
    %v1742 = vmax.f32 %v1428, 0.0
    %v1743 = vmax.f32 %v1433, 0.0
    %v1744 = vmax.f32 %v1438, 0.0
    %v1745 = vmax.f32 %v1443, 0.0
    %v1746 = vmax.f32 %v1448, 0.0
    %v1747 = vmax.f32 %v1453, 0.0
    %v1748 = vmax.f32 %v1458, 0.0
    %v1749 = vmax.f32 %v1463, 0.0
    %v1750 = vmax.f32 %v1468, 0.0
    %v1751 = vmax.f32 %v1473, 0.0
    %v1752 = vmax.f32 %v1478, 0.0
    %v1753 = vmax.f32 %v1483, 0.0
    %v1754 = vmax.f32 %v1488, 0.0
    %v1755 = vmax.f32 %v1493, 0.0
    %v1756 = vmax.f32 %v1498, 0.0
    %v1757 = vmax.f32 %v1503, 0.0
    %v1758 = vmax.f32 %v1508, 0.0
    %v1759 = vmax.f32 %v1513, 0.0
    %v1760 = vmax.f32 %v1518, 0.0
    %v1761 = vmax.f32 %v1523, 0.0
    %v1762 = vmax.f32 %v1528, 0.0
    %v1763 = vmax.f32 %v1533, 0.0
    %v1764 = vmax.f32 %v1538, 0.0
    %v1765 = vmax.f32 %v1543, 0.0
    %v1766 = vmax.f32 %v1548, 0.0
    %v1767 = vmax.f32 %v1553, 0.0
    %v1768 = vmax.f32 %v1558, 0.0
    %v1769 = vmax.f32 %v1563, 0.0
    %v1770 = vmax.f32 %v1568, 0.0
    %v1771 = vmax.f32 %v1573, 0.0
    %v1772 = vmax.f32 %v1578, 0.0
    %v1773 = vmax.f32 %v1583, 0.0
    %v1774 = vmax.f32 %v1588, 0.0
    %v1775 = vmax.f32 %v1593, 0.0
    %v1776 = vmax.f32 %v1598, 0.0
    %v1777 = vmax.f32 %v1603, 0.0
    %v1778 = vmax.f32 %v1608, 0.0
    %v1779 = vmax.f32 %v1613, 0.0
    %v1780 = vmax.f32 %v1618, 0.0
    %v1781 = vmax.f32 %v1623, 0.0
    %v1782 = vmax.f32 %v1628, 0.0
    %v1783 = vmax.f32 %v1633, 0.0
    %v1784 = vmax.f32 %v1638, 0.0
    %v1785 = vmax.f32 %v1643, 0.0
    %v1786 = vmax.f32 %v1648, 0.0
    %v1787 = vmax.f32 %v1653, 0.0
    %v1788 = vmax.f32 %v1658, 0.0
    %v1789 = vld [vmem:[%s4] sm:$0xff]
    %v1790 = vld [vmem:[%s4 + $0x8] sm:$0xff]
    %v1791 = vld [vmem:[%s4 + $0x10] sm:$0xff]
    %v1792 = vld [vmem:[%s4 + $0x18] sm:$0xff]
    %v1793 = vld [vmem:[%s5] sm:$0x1]
    %v1795 = vlaneseq
    %v1796 = vshrl.u32 %v1795, 7
    %v1797 = vsub.s32 0, %v1796
    %v1798 = vrot.slane %v1793, %v1797
    %vm1800 = vcmask 261120
    %v1802 = vsel %vm1800, %v1661, 0
    %v1805 = vsel %vm1800, %v1662, 0
    %v1808 = vsel %vm1800, %v1663, 0
    %v1811 = vsel %vm1800, %v1664, 0
    %v1814 = vsel %vm1800, %v1665, 0
    %v1817 = vsel %vm1800, %v1666, 0
    %v1820 = vsel %vm1800, %v1667, 0
    %v1823 = vsel %vm1800, %v1668, 0
    %v1826 = vsel %vm1800, %v1669, 0
    %v1829 = vsel %vm1800, %v1670, 0
    %v1832 = vsel %vm1800, %v1671, 0
    %v1835 = vsel %vm1800, %v1672, 0
    %v1838 = vsel %vm1800, %v1673, 0
    %v1841 = vsel %vm1800, %v1674, 0
    %v1844 = vsel %vm1800, %v1675, 0
    %v1847 = vsel %vm1800, %v1676, 0
    %v1850 = vsel %vm1800, %v1677, 0
    %v1853 = vsel %vm1800, %v1678, 0
    %v1856 = vsel %vm1800, %v1679, 0
    %v1859 = vsel %vm1800, %v1680, 0
    %v1862 = vsel %vm1800, %v1681, 0
    %v1865 = vsel %vm1800, %v1682, 0
    %v1868 = vsel %vm1800, %v1683, 0
    %v1871 = vsel %vm1800, %v1684, 0
    %v1874 = vsel %vm1800, %v1685, 0
    %v1877 = vsel %vm1800, %v1686, 0
    %v1880 = vsel %vm1800, %v1687, 0
    %v1883 = vsel %vm1800, %v1688, 0
    %v1886 = vsel %vm1800, %v1689, 0
    %v1889 = vsel %vm1800, %v1690, 0
    %v1892 = vsel %vm1800, %v1691, 0
    %v1895 = vsel %vm1800, %v1692, 0
    %v1898 = vsel %vm1800, %v1693, 0
    %v1901 = vsel %vm1800, %v1694, 0
    %v1904 = vsel %vm1800, %v1695, 0
    %v1907 = vsel %vm1800, %v1696, 0
    %v1910 = vsel %vm1800, %v1697, 0
    %v1913 = vsel %vm1800, %v1698, 0
    %v1916 = vsel %vm1800, %v1699, 0
    %v1919 = vsel %vm1800, %v1700, 0
    %v1922 = vsel %vm1800, %v1701, 0
    %v1925 = vsel %vm1800, %v1702, 0
    %v1928 = vsel %vm1800, %v1703, 0
    %v1931 = vsel %vm1800, %v1704, 0
    %v1934 = vsel %vm1800, %v1705, 0
    %v1937 = vsel %vm1800, %v1706, 0
    %v1940 = vsel %vm1800, %v1707, 0
    %v1943 = vsel %vm1800, %v1708, 0
    %v1946 = vsel %vm1800, %v1709, 0
    %v1949 = vsel %vm1800, %v1710, 0
    %v1952 = vsel %vm1800, %v1711, 0
    %v1955 = vsel %vm1800, %v1712, 0
    %v1958 = vsel %vm1800, %v1713, 0
    %v1961 = vsel %vm1800, %v1714, 0
    %v1964 = vsel %vm1800, %v1715, 0
    %v1967 = vsel %vm1800, %v1716, 0
    %v1970 = vsel %vm1800, %v1717, 0
    %v1973 = vsel %vm1800, %v1718, 0
    %v1976 = vsel %vm1800, %v1719, 0
    %v1979 = vsel %vm1800, %v1720, 0
    %v1982 = vsel %vm1800, %v1721, 0
    %v1985 = vsel %vm1800, %v1722, 0
    %v1988 = vsel %vm1800, %v1723, 0
    %v1991 = vsel %vm1800, %v1724, 0
    %v1994 = vsel %vm1800, %v1725, 0
    %v1997 = vsel %vm1800, %v1726, 0
    %v2000 = vsel %vm1800, %v1727, 0
    %v2003 = vsel %vm1800, %v1728, 0
    %v2006 = vsel %vm1800, %v1729, 0
    %v2009 = vsel %vm1800, %v1730, 0
    %v2012 = vsel %vm1800, %v1731, 0
    %v2015 = vsel %vm1800, %v1732, 0
    %v2018 = vsel %vm1800, %v1733, 0
    %v2021 = vsel %vm1800, %v1734, 0
    %v2024 = vsel %vm1800, %v1735, 0
    %v2027 = vsel %vm1800, %v1736, 0
    %v2030 = vsel %vm1800, %v1737, 0
    %v2033 = vsel %vm1800, %v1738, 0
    %v2036 = vsel %vm1800, %v1739, 0
    %v2039 = vsel %vm1800, %v1740, 0
    %v2042 = vsel %vm1800, %v1741, 0
    %v2045 = vsel %vm1800, %v1742, 0
    %v2048 = vsel %vm1800, %v1743, 0
    %v2051 = vsel %vm1800, %v1744, 0
    %v2054 = vsel %vm1800, %v1745, 0
    %v2057 = vsel %vm1800, %v1746, 0
    %v2060 = vsel %vm1800, %v1747, 0
    %v2063 = vsel %vm1800, %v1748, 0
    %v2066 = vsel %vm1800, %v1749, 0
    %v2069 = vsel %vm1800, %v1750, 0
    %v2072 = vsel %vm1800, %v1751, 0
    %v2075 = vsel %vm1800, %v1752, 0
    %v2078 = vsel %vm1800, %v1753, 0
    %v2081 = vsel %vm1800, %v1754, 0
    %v2084 = vsel %vm1800, %v1755, 0
    %v2087 = vsel %vm1800, %v1756, 0
    %v2090 = vsel %vm1800, %v1757, 0
    %v2093 = vsel %vm1800, %v1758, 0
    %v2096 = vsel %vm1800, %v1759, 0
    %v2099 = vsel %vm1800, %v1760, 0
    %v2102 = vsel %vm1800, %v1761, 0
    %v2105 = vsel %vm1800, %v1762, 0
    %v2108 = vsel %vm1800, %v1763, 0
    %v2111 = vsel %vm1800, %v1764, 0
    %v2114 = vsel %vm1800, %v1765, 0
    %v2117 = vsel %vm1800, %v1766, 0
    %v2120 = vsel %vm1800, %v1767, 0
    %v2123 = vsel %vm1800, %v1768, 0
    %v2126 = vsel %vm1800, %v1769, 0
    %v2129 = vsel %vm1800, %v1770, 0
    %v2132 = vsel %vm1800, %v1771, 0
    %v2135 = vsel %vm1800, %v1772, 0
    %v2138 = vsel %vm1800, %v1773, 0
    %v2141 = vsel %vm1800, %v1774, 0
    %v2144 = vsel %vm1800, %v1775, 0
    %v2147 = vsel %vm1800, %v1776, 0
    %v2150 = vsel %vm1800, %v1777, 0
    %v2153 = vsel %vm1800, %v1778, 0
    %v2156 = vsel %vm1800, %v1779, 0
    %v2159 = vsel %vm1800, %v1780, 0
    %v2162 = vsel %vm1800, %v1781, 0
    %v2165 = vsel %vm1800, %v1782, 0
    %v2168 = vsel %vm1800, %v1783, 0
    %v2171 = vsel %vm1800, %v1784, 0
    %v2174 = vsel %vm1800, %v1785, 0
    %v2177 = vsel %vm1800, %v1786, 0
    %v2180 = vsel %vm1800, %v1787, 0
    %v2183 = vsel %vm1800, %v1788, 0
    %2185 = vmatprep.subr.mxu0 0.0
    %2186 = vmatpush1.msra.mxu0 %v1789
    %2187 = vmatprep.subr.mxu0 0.0
    %2188 = vmatpush1.msra.mxu0 %v1790
    %2189 = vmatprep.subr.mxu0 0.0
    %2190 = vmatpush1.msra.mxu0 %v1791
    %2191 = vmatprep.subr.mxu0 0.0
    %2192 = vmatpush1.msra.mxu0 %v1792
    %2193 = vmatprep.subr.mxu0 0.0
    %2194 = vmatpush1.msra.mxu0 0.0
    %2195 = vmatprep.subr.mxu0 0.0
    %2196 = vmatpush1.msra.mxu0 0.0
    %2197 = vmatprep.subr.mxu0 0.0
    %2198 = vmatpush1.msra.mxu0 0.0
    %2199 = vmatprep.subr.mxu0 0.0
    %2200 = vmatpush1.msra.mxu0 0.0
    %2201 = vmatprep.subr.mxu0 0.0
    %2202 = vmatpush1.msra.mxu0 0.0
    %2203 = vmatprep.subr.mxu0 0.0
    %2204 = vmatpush1.msra.mxu0 0.0
    %2205 = vmatprep.subr.mxu0 0.0
    %2206 = vmatpush1.msra.mxu0 0.0
    %2207 = vmatprep.subr.mxu0 0.0
    %2208 = vmatpush1.msra.mxu0 0.0
    %2209 = vmatprep.subr.mxu0 0.0
    %2210 = vmatpush1.msra.mxu0 0.0
    %2211 = vmatprep.subr.mxu0 0.0
    %2212 = vmatpush1.msra.mxu0 0.0
    %2213 = vmatprep.subr.mxu0 0.0
    %2214 = vmatpush1.msra.mxu0 0.0
    %2215 = vmatprep.subr.mxu0 0.0
    %2216 = vmatpush1.msra.mxu0 0.0
    %2217 = vmatprep.subr.mxu0 0.0
    %2218 = vmatpush1.msra.mxu0 0.0
    %2219 = vmatprep.subr.mxu0 0.0
    %2220 = vmatpush1.msra.mxu0 0.0
    %2221 = vmatprep.subr.mxu0 0.0
    %2222 = vmatpush1.msra.mxu0 0.0
    %2223 = vmatprep.subr.mxu0 0.0
    %2224 = vmatpush1.msra.mxu0 0.0
    %2225 = vmatprep.subr.mxu0 0.0
    %2226 = vmatpush1.msra.mxu0 0.0
    %2227 = vmatprep.subr.mxu0 0.0
    %2228 = vmatpush1.msra.mxu0 0.0
    %2229 = vmatprep.subr.mxu0 0.0
    %2230 = vmatpush1.msra.mxu0 0.0
    %2231 = vmatprep.subr.mxu0 0.0
    %2232 = vmatpush1.msra.mxu0 0.0
    %2233 = vmatprep.subr.mxu0 0.0
    %2234 = vmatpush1.msra.mxu0 0.0
    %2235 = vmatprep.subr.mxu0 0.0
    %2236 = vmatpush1.msra.mxu0 0.0
    %2237 = vmatprep.subr.mxu0 0.0
    %2238 = vmatpush1.msra.mxu0 0.0
    %2239 = vmatprep.subr.mxu0 0.0
    %2240 = vmatpush1.msra.mxu0 0.0
    %2241 = vmatprep.subr.mxu0 0.0
    %2242 = vmatpush1.msra.mxu0 0.0
    %2243 = vmatprep.subr.mxu0 0.0
    %2244 = vmatpush1.msra.mxu0 0.0
    %2245 = vmatprep.subr.mxu0 0.0
    %2246 = vmatpush1.msra.mxu0 0.0
    %2247 = vmatprep.subr.mxu0 0.0
    %2248 = vmatpush1.msra.mxu0 0.0
    %2249 = vmatprep.mubr.f32.mxu0 0.0
    %2250 = vmatmul.mubr.f32.gmra.mrb[0].mxu0 %v1802
    %v2251 = vpop.f32.mrb[0].mxu0
    %v2252 = vadd.f32 %v1798, %v2251
    %v2253 = vpop.f32.mrb[0].mxu0
    %2254 = vmatprep.mubr.f32.mxu0 0.0
    %2255 = vmatmul.mubr.f32.gmra.mrb[0].mxu0 %v1805
    %v2256 = vpop.f32.mrb[0].mxu0
    %v2257 = vadd.f32 %v1798, %v2256
    %v2258 = vpop.f32.mrb[0].mxu0
    %2259 = vmatprep.mubr.f32.mxu0 0.0
    %2260 = vmatmul.mubr.f32.gmra.mrb[0].mxu0 %v1808
    %v2261 = vpop.f32.mrb[0].mxu0
    %v2262 = vadd.f32 %v1798, %v2261
    %v2263 = vpop.f32.mrb[0].mxu0
    %2264 = vmatprep.mubr.f32.mxu0 0.0
    %2265 = vmatmul.mubr.f32.gmra.mrb[0].mxu0 %v1811
    %v2266 = vpop.f32.mrb[0].mxu0
    %v2267 = vadd.f32 %v1798, %v2266
    %v2268 = vpop.f32.mrb[0].mxu0
    %2269 = vmatprep.mubr.f32.mxu0 0.0
    %2270 = vmatmul.mubr.f32.gmra.mrb[0].mxu0 %v1814
    %v2271 = vpop.f32.mrb[0].mxu0
    %v2272 = vadd.f32 %v1798, %v2271
    %v2273 = vpop.f32.mrb[0].mxu0
    %2274 = vmatprep.mubr.f32.mxu0 0.0
    %2275 = vmatmul.mubr.f32.gmra.mrb[0].mxu0 %v1817
    %v2276 = vpop.f32.mrb[0].mxu0
    %v2277 = vadd.f32 %v1798, %v2276
    %v2278 = vpop.f32.mrb[0].mxu0
    %2279 = vmatprep.mubr.f32.mxu0 0.0
    %2280 = vmatmul.mubr.f32.gmra.mrb[0].mxu0 %v1820
    %v2281 = vpop.f32.mrb[0].mxu0
    %v2282 = vadd.f32 %v1798, %v2281
    %v2283 = vpop.f32.mrb[0].mxu0
    %2284 = vmatprep.mubr.f32.mxu0 0.0
    %2285 = vmatmul.mubr.f32.gmra.mrb[0].mxu0 %v1823
    %v2286 = vpop.f32.mrb[0].mxu0
    %v2287 = vadd.f32 %v1798, %v2286
    %v2288 = vpop.f32.mrb[0].mxu0
    %2289 = vmatprep.mubr.f32.mxu0 0.0
    %2290 = vmatmul.mubr.f32.gmra.mrb[0].mxu0 %v1826
    %v2291 = vpop.f32.mrb[0].mxu0
    %v2292 = vadd.f32 %v1798, %v2291
    %v2293 = vpop.f32.mrb[0].mxu0
    %2294 = vmatprep.mubr.f32.mxu0 0.0
    %2295 = vmatmul.mubr.f32.gmra.mrb[0].mxu0 %v1829
    %v2296 = vpop.f32.mrb[0].mxu0
    %v2297 = vadd.f32 %v1798, %v2296
    %v2298 = vpop.f32.mrb[0].mxu0
    %2299 = vmatprep.mubr.f32.mxu0 0.0
    %2300 = vmatmul.mubr.f32.gmra.mrb[0].mxu0 %v1832
    %v2301 = vpop.f32.mrb[0].mxu0
    %v2302 = vadd.f32 %v1798, %v2301
    %v2303 = vpop.f32.mrb[0].mxu0
    %2304 = vmatprep.mubr.f32.mxu0 0.0
    %2305 = vmatmul.mubr.f32.gmra.mrb[0].mxu0 %v1835
    %v2306 = vpop.f32.mrb[0].mxu0
    %v2307 = vadd.f32 %v1798, %v2306
    %v2308 = vpop.f32.mrb[0].mxu0
    %2309 = vmatprep.mubr.f32.mxu0 0.0
    %2310 = vmatmul.mubr.f32.gmra.mrb[0].mxu0 %v1838
    %v2311 = vpop.f32.mrb[0].mxu0
    %v2312 = vadd.f32 %v1798, %v2311
    %v2313 = vpop.f32.mrb[0].mxu0
    %2314 = vmatprep.mubr.f32.mxu0 0.0
    %2315 = vmatmul.mubr.f32.gmra.mrb[0].mxu0 %v1841
    %v2316 = vpop.f32.mrb[0].mxu0
    %v2317 = vadd.f32 %v1798, %v2316
    %v2318 = vpop.f32.mrb[0].mxu0
    %2319 = vmatprep.mubr.f32.mxu0 0.0
    %2320 = vmatmul.mubr.f32.gmra.mrb[0].mxu0 %v1844
    %v2321 = vpop.f32.mrb[0].mxu0
    %v2322 = vadd.f32 %v1798, %v2321
    %v2323 = vpop.f32.mrb[0].mxu0
    %2324 = vmatprep.mubr.f32.mxu0 0.0
    %2325 = vmatmul.mubr.f32.gmra.mrb[0].mxu0 %v1847
    %v2326 = vpop.f32.mrb[0].mxu0
    %v2327 = vadd.f32 %v1798, %v2326
    %v2328 = vpop.f32.mrb[0].mxu0
    %2329 = vmatprep.mubr.f32.mxu0 0.0
    %2330 = vmatmul.mubr.f32.gmra.mrb[0].mxu0 %v1850
    %v2331 = vpop.f32.mrb[0].mxu0
    %v2332 = vadd.f32 %v1798, %v2331
    %v2333 = vpop.f32.mrb[0].mxu0
    %2334 = vmatprep.mubr.f32.mxu0 0.0
    %2335 = vmatmul.mubr.f32.gmra.mrb[0].mxu0 %v1853
    %v2336 = vpop.f32.mrb[0].mxu0
    %v2337 = vadd.f32 %v1798, %v2336
    %v2338 = vpop.f32.mrb[0].mxu0
    %2339 = vmatprep.mubr.f32.mxu0 0.0
    %2340 = vmatmul.mubr.f32.gmra.mrb[0].mxu0 %v1856
    %v2341 = vpop.f32.mrb[0].mxu0
    %v2342 = vadd.f32 %v1798, %v2341
    %v2343 = vpop.f32.mrb[0].mxu0
    %2344 = vmatprep.mubr.f32.mxu0 0.0
    %2345 = vmatmul.mubr.f32.gmra.mrb[0].mxu0 %v1859
    %v2346 = vpop.f32.mrb[0].mxu0
    %v2347 = vadd.f32 %v1798, %v2346
    %v2348 = vpop.f32.mrb[0].mxu0
    %2349 = vmatprep.mubr.f32.mxu0 0.0
    %2350 = vmatmul.mubr.f32.gmra.mrb[0].mxu0 %v1862
    %v2351 = vpop.f32.mrb[0].mxu0
    %v2352 = vadd.f32 %v1798, %v2351
    %v2353 = vpop.f32.mrb[0].mxu0
    %2354 = vmatprep.mubr.f32.mxu0 0.0
    %2355 = vmatmul.mubr.f32.gmra.mrb[0].mxu0 %v1865
    %v2356 = vpop.f32.mrb[0].mxu0
    %v2357 = vadd.f32 %v1798, %v2356
    %v2358 = vpop.f32.mrb[0].mxu0
    %2359 = vmatprep.mubr.f32.mxu0 0.0
    %2360 = vmatmul.mubr.f32.gmra.mrb[0].mxu0 %v1868
    %v2361 = vpop.f32.mrb[0].mxu0
    %v2362 = vadd.f32 %v1798, %v2361
    %v2363 = vpop.f32.mrb[0].mxu0
    %2364 = vmatprep.mubr.f32.mxu0 0.0
    %2365 = vmatmul.mubr.f32.gmra.mrb[0].mxu0 %v1871
    %v2366 = vpop.f32.mrb[0].mxu0
    %v2367 = vadd.f32 %v1798, %v2366
    %v2368 = vpop.f32.mrb[0].mxu0
    %2369 = vmatprep.mubr.f32.mxu0 0.0
    %2370 = vmatmul.mubr.f32.gmra.mrb[0].mxu0 %v1874
    %v2371 = vpop.f32.mrb[0].mxu0
    %v2372 = vadd.f32 %v1798, %v2371
    %v2373 = vpop.f32.mrb[0].mxu0
    %2374 = vmatprep.mubr.f32.mxu0 0.0
    %2375 = vmatmul.mubr.f32.gmra.mrb[0].mxu0 %v1877
    %v2376 = vpop.f32.mrb[0].mxu0
    %v2377 = vadd.f32 %v1798, %v2376
    %v2378 = vpop.f32.mrb[0].mxu0
    %2379 = vmatprep.mubr.f32.mxu0 0.0
    %2380 = vmatmul.mubr.f32.gmra.mrb[0].mxu0 %v1880
    %v2381 = vpop.f32.mrb[0].mxu0
    %v2382 = vadd.f32 %v1798, %v2381
    %v2383 = vpop.f32.mrb[0].mxu0
    %2384 = vmatprep.mubr.f32.mxu0 0.0
    %2385 = vmatmul.mubr.f32.gmra.mrb[0].mxu0 %v1883
    %v2386 = vpop.f32.mrb[0].mxu0
    %v2387 = vadd.f32 %v1798, %v2386
    %v2388 = vpop.f32.mrb[0].mxu0
    %2389 = vmatprep.mubr.f32.mxu0 0.0
    %2390 = vmatmul.mubr.f32.gmra.mrb[0].mxu0 %v1886
    %v2391 = vpop.f32.mrb[0].mxu0
    %v2392 = vadd.f32 %v1798, %v2391
    %v2393 = vpop.f32.mrb[0].mxu0
    %2394 = vmatprep.mubr.f32.mxu0 0.0
    %2395 = vmatmul.mubr.f32.gmra.mrb[0].mxu0 %v1889
    %v2396 = vpop.f32.mrb[0].mxu0
    %v2397 = vadd.f32 %v1798, %v2396
    %v2398 = vpop.f32.mrb[0].mxu0
    %2399 = vmatprep.mubr.f32.mxu0 0.0
    %2400 = vmatmul.mubr.f32.gmra.mrb[0].mxu0 %v1892
    %v2401 = vpop.f32.mrb[0].mxu0
    %v2402 = vadd.f32 %v1798, %v2401
    %v2403 = vpop.f32.mrb[0].mxu0
    %2404 = vmatprep.mubr.f32.mxu0 0.0
    %2405 = vmatmul.mubr.f32.gmra.mrb[0].mxu0 %v1895
    %v2406 = vpop.f32.mrb[0].mxu0
    %v2407 = vadd.f32 %v1798, %v2406
    %v2408 = vpop.f32.mrb[0].mxu0
    %2409 = vmatprep.mubr.f32.mxu0 0.0
    %2410 = vmatmul.mubr.f32.gmra.mrb[0].mxu0 %v1898
    %v2411 = vpop.f32.mrb[0].mxu0
    %v2412 = vadd.f32 %v1798, %v2411
    %v2413 = vpop.f32.mrb[0].mxu0
    %2414 = vmatprep.mubr.f32.mxu0 0.0
    %2415 = vmatmul.mubr.f32.gmra.mrb[0].mxu0 %v1901
    %v2416 = vpop.f32.mrb[0].mxu0
    %v2417 = vadd.f32 %v1798, %v2416
    %v2418 = vpop.f32.mrb[0].mxu0
    %2419 = vmatprep.mubr.f32.mxu0 0.0
    %2420 = vmatmul.mubr.f32.gmra.mrb[0].mxu0 %v1904
    %v2421 = vpop.f32.mrb[0].mxu0
    %v2422 = vadd.f32 %v1798, %v2421
    %v2423 = vpop.f32.mrb[0].mxu0
    %2424 = vmatprep.mubr.f32.mxu0 0.0
    %2425 = vmatmul.mubr.f32.gmra.mrb[0].mxu0 %v1907
    %v2426 = vpop.f32.mrb[0].mxu0
    %v2427 = vadd.f32 %v1798, %v2426
    %v2428 = vpop.f32.mrb[0].mxu0
    %2429 = vmatprep.mubr.f32.mxu0 0.0
    %2430 = vmatmul.mubr.f32.gmra.mrb[0].mxu0 %v1910
    %v2431 = vpop.f32.mrb[0].mxu0
    %v2432 = vadd.f32 %v1798, %v2431
    %v2433 = vpop.f32.mrb[0].mxu0
    %2434 = vmatprep.mubr.f32.mxu0 0.0
    %2435 = vmatmul.mubr.f32.gmra.mrb[0].mxu0 %v1913
    %v2436 = vpop.f32.mrb[0].mxu0
    %v2437 = vadd.f32 %v1798, %v2436
    %v2438 = vpop.f32.mrb[0].mxu0
    %2439 = vmatprep.mubr.f32.mxu0 0.0
    %2440 = vmatmul.mubr.f32.gmra.mrb[0].mxu0 %v1916
    %v2441 = vpop.f32.mrb[0].mxu0
    %v2442 = vadd.f32 %v1798, %v2441
    %v2443 = vpop.f32.mrb[0].mxu0
    %2444 = vmatprep.mubr.f32.mxu0 0.0
    %2445 = vmatmul.mubr.f32.gmra.mrb[0].mxu0 %v1919
    %v2446 = vpop.f32.mrb[0].mxu0
    %v2447 = vadd.f32 %v1798, %v2446
    %v2448 = vpop.f32.mrb[0].mxu0
    %2449 = vmatprep.mubr.f32.mxu0 0.0
    %2450 = vmatmul.mubr.f32.gmra.mrb[0].mxu0 %v1922
    %v2451 = vpop.f32.mrb[0].mxu0
    %v2452 = vadd.f32 %v1798, %v2451
    %v2453 = vpop.f32.mrb[0].mxu0
    %2454 = vmatprep.mubr.f32.mxu0 0.0
    %2455 = vmatmul.mubr.f32.gmra.mrb[0].mxu0 %v1925
    %v2456 = vpop.f32.mrb[0].mxu0
    %v2457 = vadd.f32 %v1798, %v2456
    %v2458 = vpop.f32.mrb[0].mxu0
    %2459 = vmatprep.mubr.f32.mxu0 0.0
    %2460 = vmatmul.mubr.f32.gmra.mrb[0].mxu0 %v1928
    %v2461 = vpop.f32.mrb[0].mxu0
    %v2462 = vadd.f32 %v1798, %v2461
    %v2463 = vpop.f32.mrb[0].mxu0
    %2464 = vmatprep.mubr.f32.mxu0 0.0
    %2465 = vmatmul.mubr.f32.gmra.mrb[0].mxu0 %v1931
    %v2466 = vpop.f32.mrb[0].mxu0
    %v2467 = vadd.f32 %v1798, %v2466
    %v2468 = vpop.f32.mrb[0].mxu0
    %2469 = vmatprep.mubr.f32.mxu0 0.0
    %2470 = vmatmul.mubr.f32.gmra.mrb[0].mxu0 %v1934
    %v2471 = vpop.f32.mrb[0].mxu0
    %v2472 = vadd.f32 %v1798, %v2471
    %v2473 = vpop.f32.mrb[0].mxu0
    %2474 = vmatprep.mubr.f32.mxu0 0.0
    %2475 = vmatmul.mubr.f32.gmra.mrb[0].mxu0 %v1937
    %v2476 = vpop.f32.mrb[0].mxu0
    %v2477 = vadd.f32 %v1798, %v2476
    %v2478 = vpop.f32.mrb[0].mxu0
    %2479 = vmatprep.mubr.f32.mxu0 0.0
    %2480 = vmatmul.mubr.f32.gmra.mrb[0].mxu0 %v1940
    %v2481 = vpop.f32.mrb[0].mxu0
    %v2482 = vadd.f32 %v1798, %v2481
    %v2483 = vpop.f32.mrb[0].mxu0
    %2484 = vmatprep.mubr.f32.mxu0 0.0
    %2485 = vmatmul.mubr.f32.gmra.mrb[0].mxu0 %v1943
    %v2486 = vpop.f32.mrb[0].mxu0
    %v2487 = vadd.f32 %v1798, %v2486
    %v2488 = vpop.f32.mrb[0].mxu0
    %2489 = vmatprep.mubr.f32.mxu0 0.0
    %2490 = vmatmul.mubr.f32.gmra.mrb[0].mxu0 %v1946
    %v2491 = vpop.f32.mrb[0].mxu0
    %v2492 = vadd.f32 %v1798, %v2491
    %v2493 = vpop.f32.mrb[0].mxu0
    %2494 = vmatprep.mubr.f32.mxu0 0.0
    %2495 = vmatmul.mubr.f32.gmra.mrb[0].mxu0 %v1949
    %v2496 = vpop.f32.mrb[0].mxu0
    %v2497 = vadd.f32 %v1798, %v2496
    %v2498 = vpop.f32.mrb[0].mxu0
    %2499 = vmatprep.mubr.f32.mxu0 0.0
    %2500 = vmatmul.mubr.f32.gmra.mrb[0].mxu0 %v1952
    %v2501 = vpop.f32.mrb[0].mxu0
    %v2502 = vadd.f32 %v1798, %v2501
    %v2503 = vpop.f32.mrb[0].mxu0
    %2504 = vmatprep.mubr.f32.mxu0 0.0
    %2505 = vmatmul.mubr.f32.gmra.mrb[0].mxu0 %v1955
    %v2506 = vpop.f32.mrb[0].mxu0
    %v2507 = vadd.f32 %v1798, %v2506
    %v2508 = vpop.f32.mrb[0].mxu0
    %2509 = vmatprep.mubr.f32.mxu0 0.0
    %2510 = vmatmul.mubr.f32.gmra.mrb[0].mxu0 %v1958
    %v2511 = vpop.f32.mrb[0].mxu0
    %v2512 = vadd.f32 %v1798, %v2511
    %v2513 = vpop.f32.mrb[0].mxu0
    %2514 = vmatprep.mubr.f32.mxu0 0.0
    %2515 = vmatmul.mubr.f32.gmra.mrb[0].mxu0 %v1961
    %v2516 = vpop.f32.mrb[0].mxu0
    %v2517 = vadd.f32 %v1798, %v2516
    %v2518 = vpop.f32.mrb[0].mxu0
    %2519 = vmatprep.mubr.f32.mxu0 0.0
    %2520 = vmatmul.mubr.f32.gmra.mrb[0].mxu0 %v1964
    %v2521 = vpop.f32.mrb[0].mxu0
    %v2522 = vadd.f32 %v1798, %v2521
    %v2523 = vpop.f32.mrb[0].mxu0
    %2524 = vmatprep.mubr.f32.mxu0 0.0
    %2525 = vmatmul.mubr.f32.gmra.mrb[0].mxu0 %v1967
    %v2526 = vpop.f32.mrb[0].mxu0
    %v2527 = vadd.f32 %v1798, %v2526
    %v2528 = vpop.f32.mrb[0].mxu0
    %2529 = vmatprep.mubr.f32.mxu0 0.0
    %2530 = vmatmul.mubr.f32.gmra.mrb[0].mxu0 %v1970
    %v2531 = vpop.f32.mrb[0].mxu0
    %v2532 = vadd.f32 %v1798, %v2531
    %v2533 = vpop.f32.mrb[0].mxu0
    %2534 = vmatprep.mubr.f32.mxu0 0.0
    %2535 = vmatmul.mubr.f32.gmra.mrb[0].mxu0 %v1973
    %v2536 = vpop.f32.mrb[0].mxu0
    %v2537 = vadd.f32 %v1798, %v2536
    %v2538 = vpop.f32.mrb[0].mxu0
    %2539 = vmatprep.mubr.f32.mxu0 0.0
    %2540 = vmatmul.mubr.f32.gmra.mrb[0].mxu0 %v1976
    %v2541 = vpop.f32.mrb[0].mxu0
    %v2542 = vadd.f32 %v1798, %v2541
    %v2543 = vpop.f32.mrb[0].mxu0
    %2544 = vmatprep.mubr.f32.mxu0 0.0
    %2545 = vmatmul.mubr.f32.gmra.mrb[0].mxu0 %v1979
    %v2546 = vpop.f32.mrb[0].mxu0
    %v2547 = vadd.f32 %v1798, %v2546
    %v2548 = vpop.f32.mrb[0].mxu0
    %2549 = vmatprep.mubr.f32.mxu0 0.0
    %2550 = vmatmul.mubr.f32.gmra.mrb[0].mxu0 %v1982
    %v2551 = vpop.f32.mrb[0].mxu0
    %v2552 = vadd.f32 %v1798, %v2551
    %v2553 = vpop.f32.mrb[0].mxu0
    %2554 = vmatprep.mubr.f32.mxu0 0.0
    %2555 = vmatmul.mubr.f32.gmra.mrb[0].mxu0 %v1985
    %v2556 = vpop.f32.mrb[0].mxu0
    %v2557 = vadd.f32 %v1798, %v2556
    %v2558 = vpop.f32.mrb[0].mxu0
    %2559 = vmatprep.mubr.f32.mxu0 0.0
    %2560 = vmatmul.mubr.f32.gmra.mrb[0].mxu0 %v1988
    %v2561 = vpop.f32.mrb[0].mxu0
    %v2562 = vadd.f32 %v1798, %v2561
    %v2563 = vpop.f32.mrb[0].mxu0
    %2564 = vmatprep.mubr.f32.mxu0 0.0
    %2565 = vmatmul.mubr.f32.gmra.mrb[0].mxu0 %v1991
    %v2566 = vpop.f32.mrb[0].mxu0
    %v2567 = vadd.f32 %v1798, %v2566
    %v2568 = vpop.f32.mrb[0].mxu0
    %2569 = vmatprep.mubr.f32.mxu0 0.0
    %2570 = vmatmul.mubr.f32.gmra.mrb[0].mxu0 %v1994
    %v2571 = vpop.f32.mrb[0].mxu0
    %v2572 = vadd.f32 %v1798, %v2571
    %v2573 = vpop.f32.mrb[0].mxu0
    %2574 = vmatprep.mubr.f32.mxu0 0.0
    %2575 = vmatmul.mubr.f32.gmra.mrb[0].mxu0 %v1997
    %v2576 = vpop.f32.mrb[0].mxu0
    %v2577 = vadd.f32 %v1798, %v2576
    %v2578 = vpop.f32.mrb[0].mxu0
    %2579 = vmatprep.mubr.f32.mxu0 0.0
    %2580 = vmatmul.mubr.f32.gmra.mrb[0].mxu0 %v2000
    %v2581 = vpop.f32.mrb[0].mxu0
    %v2582 = vadd.f32 %v1798, %v2581
    %v2583 = vpop.f32.mrb[0].mxu0
    %2584 = vmatprep.mubr.f32.mxu0 0.0
    %2585 = vmatmul.mubr.f32.gmra.mrb[0].mxu0 %v2003
    %v2586 = vpop.f32.mrb[0].mxu0
    %v2587 = vadd.f32 %v1798, %v2586
    %v2588 = vpop.f32.mrb[0].mxu0
    %2589 = vmatprep.mubr.f32.mxu0 0.0
    %2590 = vmatmul.mubr.f32.gmra.mrb[0].mxu0 %v2006
    %v2591 = vpop.f32.mrb[0].mxu0
    %v2592 = vadd.f32 %v1798, %v2591
    %v2593 = vpop.f32.mrb[0].mxu0
    %2594 = vmatprep.mubr.f32.mxu0 0.0
    %2595 = vmatmul.mubr.f32.gmra.mrb[0].mxu0 %v2009
    %v2596 = vpop.f32.mrb[0].mxu0
    %v2597 = vadd.f32 %v1798, %v2596
    %v2598 = vpop.f32.mrb[0].mxu0
    %2599 = vmatprep.mubr.f32.mxu0 0.0
    %2600 = vmatmul.mubr.f32.gmra.mrb[0].mxu0 %v2012
    %v2601 = vpop.f32.mrb[0].mxu0
    %v2602 = vadd.f32 %v1798, %v2601
    %v2603 = vpop.f32.mrb[0].mxu0
    %2604 = vmatprep.mubr.f32.mxu0 0.0
    %2605 = vmatmul.mubr.f32.gmra.mrb[0].mxu0 %v2015
    %v2606 = vpop.f32.mrb[0].mxu0
    %v2607 = vadd.f32 %v1798, %v2606
    %v2608 = vpop.f32.mrb[0].mxu0
    %2609 = vmatprep.mubr.f32.mxu0 0.0
    %2610 = vmatmul.mubr.f32.gmra.mrb[0].mxu0 %v2018
    %v2611 = vpop.f32.mrb[0].mxu0
    %v2612 = vadd.f32 %v1798, %v2611
    %v2613 = vpop.f32.mrb[0].mxu0
    %2614 = vmatprep.mubr.f32.mxu0 0.0
    %2615 = vmatmul.mubr.f32.gmra.mrb[0].mxu0 %v2021
    %v2616 = vpop.f32.mrb[0].mxu0
    %v2617 = vadd.f32 %v1798, %v2616
    %v2618 = vpop.f32.mrb[0].mxu0
    %2619 = vmatprep.mubr.f32.mxu0 0.0
    %2620 = vmatmul.mubr.f32.gmra.mrb[0].mxu0 %v2024
    %v2621 = vpop.f32.mrb[0].mxu0
    %v2622 = vadd.f32 %v1798, %v2621
    %v2623 = vpop.f32.mrb[0].mxu0
    %2624 = vmatprep.mubr.f32.mxu0 0.0
    %2625 = vmatmul.mubr.f32.gmra.mrb[0].mxu0 %v2027
    %v2626 = vpop.f32.mrb[0].mxu0
    %v2627 = vadd.f32 %v1798, %v2626
    %v2628 = vpop.f32.mrb[0].mxu0
    %2629 = vmatprep.mubr.f32.mxu0 0.0
    %2630 = vmatmul.mubr.f32.gmra.mrb[0].mxu0 %v2030
    %v2631 = vpop.f32.mrb[0].mxu0
    %v2632 = vadd.f32 %v1798, %v2631
    %v2633 = vpop.f32.mrb[0].mxu0
    %2634 = vmatprep.mubr.f32.mxu0 0.0
    %2635 = vmatmul.mubr.f32.gmra.mrb[0].mxu0 %v2033
    %v2636 = vpop.f32.mrb[0].mxu0
    %v2637 = vadd.f32 %v1798, %v2636
    %v2638 = vpop.f32.mrb[0].mxu0
    %2639 = vmatprep.mubr.f32.mxu0 0.0
    %2640 = vmatmul.mubr.f32.gmra.mrb[0].mxu0 %v2036
    %v2641 = vpop.f32.mrb[0].mxu0
    %v2642 = vadd.f32 %v1798, %v2641
    %v2643 = vpop.f32.mrb[0].mxu0
    %2644 = vmatprep.mubr.f32.mxu0 0.0
    %2645 = vmatmul.mubr.f32.gmra.mrb[0].mxu0 %v2039
    %v2646 = vpop.f32.mrb[0].mxu0
    %v2647 = vadd.f32 %v1798, %v2646
    %v2648 = vpop.f32.mrb[0].mxu0
    %2649 = vmatprep.mubr.f32.mxu0 0.0
    %2650 = vmatmul.mubr.f32.gmra.mrb[0].mxu0 %v2042
    %v2651 = vpop.f32.mrb[0].mxu0
    %v2652 = vadd.f32 %v1798, %v2651
    %v2653 = vpop.f32.mrb[0].mxu0
    %2654 = vmatprep.mubr.f32.mxu0 0.0
    %2655 = vmatmul.mubr.f32.gmra.mrb[0].mxu0 %v2045
    %v2656 = vpop.f32.mrb[0].mxu0
    %v2657 = vadd.f32 %v1798, %v2656
    %v2658 = vpop.f32.mrb[0].mxu0
    %2659 = vmatprep.mubr.f32.mxu0 0.0
    %2660 = vmatmul.mubr.f32.gmra.mrb[0].mxu0 %v2048
    %v2661 = vpop.f32.mrb[0].mxu0
    %v2662 = vadd.f32 %v1798, %v2661
    %v2663 = vpop.f32.mrb[0].mxu0
    %2664 = vmatprep.mubr.f32.mxu0 0.0
    %2665 = vmatmul.mubr.f32.gmra.mrb[0].mxu0 %v2051
    %v2666 = vpop.f32.mrb[0].mxu0
    %v2667 = vadd.f32 %v1798, %v2666
    %v2668 = vpop.f32.mrb[0].mxu0
    %2669 = vmatprep.mubr.f32.mxu0 0.0
    %2670 = vmatmul.mubr.f32.gmra.mrb[0].mxu0 %v2054
    %v2671 = vpop.f32.mrb[0].mxu0
    %v2672 = vadd.f32 %v1798, %v2671
    %v2673 = vpop.f32.mrb[0].mxu0
    %2674 = vmatprep.mubr.f32.mxu0 0.0
    %2675 = vmatmul.mubr.f32.gmra.mrb[0].mxu0 %v2057
    %v2676 = vpop.f32.mrb[0].mxu0
    %v2677 = vadd.f32 %v1798, %v2676
    %v2678 = vpop.f32.mrb[0].mxu0
    %2679 = vmatprep.mubr.f32.mxu0 0.0
    %2680 = vmatmul.mubr.f32.gmra.mrb[0].mxu0 %v2060
    %v2681 = vpop.f32.mrb[0].mxu0
    %v2682 = vadd.f32 %v1798, %v2681
    %v2683 = vpop.f32.mrb[0].mxu0
    %2684 = vmatprep.mubr.f32.mxu0 0.0
    %2685 = vmatmul.mubr.f32.gmra.mrb[0].mxu0 %v2063
    %v2686 = vpop.f32.mrb[0].mxu0
    %v2687 = vadd.f32 %v1798, %v2686
    %v2688 = vpop.f32.mrb[0].mxu0
    %2689 = vmatprep.mubr.f32.mxu0 0.0
    %2690 = vmatmul.mubr.f32.gmra.mrb[0].mxu0 %v2066
    %v2691 = vpop.f32.mrb[0].mxu0
    %v2692 = vadd.f32 %v1798, %v2691
    %v2693 = vpop.f32.mrb[0].mxu0
    %2694 = vmatprep.mubr.f32.mxu0 0.0
    %2695 = vmatmul.mubr.f32.gmra.mrb[0].mxu0 %v2069
    %v2696 = vpop.f32.mrb[0].mxu0
    %v2697 = vadd.f32 %v1798, %v2696
    %v2698 = vpop.f32.mrb[0].mxu0
    %2699 = vmatprep.mubr.f32.mxu0 0.0
    %2700 = vmatmul.mubr.f32.gmra.mrb[0].mxu0 %v2072
    %v2701 = vpop.f32.mrb[0].mxu0
    %v2702 = vadd.f32 %v1798, %v2701
    %v2703 = vpop.f32.mrb[0].mxu0
    %2704 = vmatprep.mubr.f32.mxu0 0.0
    %2705 = vmatmul.mubr.f32.gmra.mrb[0].mxu0 %v2075
    %v2706 = vpop.f32.mrb[0].mxu0
    %v2707 = vadd.f32 %v1798, %v2706
    %v2708 = vpop.f32.mrb[0].mxu0
    %2709 = vmatprep.mubr.f32.mxu0 0.0
    %2710 = vmatmul.mubr.f32.gmra.mrb[0].mxu0 %v2078
    %v2711 = vpop.f32.mrb[0].mxu0
    %v2712 = vadd.f32 %v1798, %v2711
    %v2713 = vpop.f32.mrb[0].mxu0
    %2714 = vmatprep.mubr.f32.mxu0 0.0
    %2715 = vmatmul.mubr.f32.gmra.mrb[0].mxu0 %v2081
    %v2716 = vpop.f32.mrb[0].mxu0
    %v2717 = vadd.f32 %v1798, %v2716
    %v2718 = vpop.f32.mrb[0].mxu0
    %2719 = vmatprep.mubr.f32.mxu0 0.0
    %2720 = vmatmul.mubr.f32.gmra.mrb[0].mxu0 %v2084
    %v2721 = vpop.f32.mrb[0].mxu0
    %v2722 = vadd.f32 %v1798, %v2721
    %v2723 = vpop.f32.mrb[0].mxu0
    %2724 = vmatprep.mubr.f32.mxu0 0.0
    %2725 = vmatmul.mubr.f32.gmra.mrb[0].mxu0 %v2087
    %v2726 = vpop.f32.mrb[0].mxu0
    %v2727 = vadd.f32 %v1798, %v2726
    %v2728 = vpop.f32.mrb[0].mxu0
    %2729 = vmatprep.mubr.f32.mxu0 0.0
    %2730 = vmatmul.mubr.f32.gmra.mrb[0].mxu0 %v2090
    %v2731 = vpop.f32.mrb[0].mxu0
    %v2732 = vadd.f32 %v1798, %v2731
    %v2733 = vpop.f32.mrb[0].mxu0
    %2734 = vmatprep.mubr.f32.mxu0 0.0
    %2735 = vmatmul.mubr.f32.gmra.mrb[0].mxu0 %v2093
    %v2736 = vpop.f32.mrb[0].mxu0
    %v2737 = vadd.f32 %v1798, %v2736
    %v2738 = vpop.f32.mrb[0].mxu0
    %2739 = vmatprep.mubr.f32.mxu0 0.0
    %2740 = vmatmul.mubr.f32.gmra.mrb[0].mxu0 %v2096
    %v2741 = vpop.f32.mrb[0].mxu0
    %v2742 = vadd.f32 %v1798, %v2741
    %v2743 = vpop.f32.mrb[0].mxu0
    %2744 = vmatprep.mubr.f32.mxu0 0.0
    %2745 = vmatmul.mubr.f32.gmra.mrb[0].mxu0 %v2099
    %v2746 = vpop.f32.mrb[0].mxu0
    %v2747 = vadd.f32 %v1798, %v2746
    %v2748 = vpop.f32.mrb[0].mxu0
    %2749 = vmatprep.mubr.f32.mxu0 0.0
    %2750 = vmatmul.mubr.f32.gmra.mrb[0].mxu0 %v2102
    %v2751 = vpop.f32.mrb[0].mxu0
    %v2752 = vadd.f32 %v1798, %v2751
    %v2753 = vpop.f32.mrb[0].mxu0
    %2754 = vmatprep.mubr.f32.mxu0 0.0
    %2755 = vmatmul.mubr.f32.gmra.mrb[0].mxu0 %v2105
    %v2756 = vpop.f32.mrb[0].mxu0
    %v2757 = vadd.f32 %v1798, %v2756
    %v2758 = vpop.f32.mrb[0].mxu0
    %2759 = vmatprep.mubr.f32.mxu0 0.0
    %2760 = vmatmul.mubr.f32.gmra.mrb[0].mxu0 %v2108
    %v2761 = vpop.f32.mrb[0].mxu0
    %v2762 = vadd.f32 %v1798, %v2761
    %v2763 = vpop.f32.mrb[0].mxu0
    %2764 = vmatprep.mubr.f32.mxu0 0.0
    %2765 = vmatmul.mubr.f32.gmra.mrb[0].mxu0 %v2111
    %v2766 = vpop.f32.mrb[0].mxu0
    %v2767 = vadd.f32 %v1798, %v2766
    %v2768 = vpop.f32.mrb[0].mxu0
    %2769 = vmatprep.mubr.f32.mxu0 0.0
    %2770 = vmatmul.mubr.f32.gmra.mrb[0].mxu0 %v2114
    %v2771 = vpop.f32.mrb[0].mxu0
    %v2772 = vadd.f32 %v1798, %v2771
    %v2773 = vpop.f32.mrb[0].mxu0
    %2774 = vmatprep.mubr.f32.mxu0 0.0
    %2775 = vmatmul.mubr.f32.gmra.mrb[0].mxu0 %v2117
    %v2776 = vpop.f32.mrb[0].mxu0
    %v2777 = vadd.f32 %v1798, %v2776
    %v2778 = vpop.f32.mrb[0].mxu0
    %2779 = vmatprep.mubr.f32.mxu0 0.0
    %2780 = vmatmul.mubr.f32.gmra.mrb[0].mxu0 %v2120
    %v2781 = vpop.f32.mrb[0].mxu0
    %v2782 = vadd.f32 %v1798, %v2781
    %v2783 = vpop.f32.mrb[0].mxu0
    %2784 = vmatprep.mubr.f32.mxu0 0.0
    %2785 = vmatmul.mubr.f32.gmra.mrb[0].mxu0 %v2123
    %v2786 = vpop.f32.mrb[0].mxu0
    %v2787 = vadd.f32 %v1798, %v2786
    %v2788 = vpop.f32.mrb[0].mxu0
    %2789 = vmatprep.mubr.f32.mxu0 0.0
    %2790 = vmatmul.mubr.f32.gmra.mrb[0].mxu0 %v2126
    %v2791 = vpop.f32.mrb[0].mxu0
    %v2792 = vadd.f32 %v1798, %v2791
    %v2793 = vpop.f32.mrb[0].mxu0
    %2794 = vmatprep.mubr.f32.mxu0 0.0
    %2795 = vmatmul.mubr.f32.gmra.mrb[0].mxu0 %v2129
    %v2796 = vpop.f32.mrb[0].mxu0
    %v2797 = vadd.f32 %v1798, %v2796
    %v2798 = vpop.f32.mrb[0].mxu0
    %2799 = vmatprep.mubr.f32.mxu0 0.0
    %2800 = vmatmul.mubr.f32.gmra.mrb[0].mxu0 %v2132
    %v2801 = vpop.f32.mrb[0].mxu0
    %v2802 = vadd.f32 %v1798, %v2801
    %v2803 = vpop.f32.mrb[0].mxu0
    %2804 = vmatprep.mubr.f32.mxu0 0.0
    %2805 = vmatmul.mubr.f32.gmra.mrb[0].mxu0 %v2135
    %v2806 = vpop.f32.mrb[0].mxu0
    %v2807 = vadd.f32 %v1798, %v2806
    %v2808 = vpop.f32.mrb[0].mxu0
    %2809 = vmatprep.mubr.f32.mxu0 0.0
    %2810 = vmatmul.mubr.f32.gmra.mrb[0].mxu0 %v2138
    %v2811 = vpop.f32.mrb[0].mxu0
    %v2812 = vadd.f32 %v1798, %v2811
    %v2813 = vpop.f32.mrb[0].mxu0
    %2814 = vmatprep.mubr.f32.mxu0 0.0
    %2815 = vmatmul.mubr.f32.gmra.mrb[0].mxu0 %v2141
    %v2816 = vpop.f32.mrb[0].mxu0
    %v2817 = vadd.f32 %v1798, %v2816
    %v2818 = vpop.f32.mrb[0].mxu0
    %2819 = vmatprep.mubr.f32.mxu0 0.0
    %2820 = vmatmul.mubr.f32.gmra.mrb[0].mxu0 %v2144
    %v2821 = vpop.f32.mrb[0].mxu0
    %v2822 = vadd.f32 %v1798, %v2821
    %v2823 = vpop.f32.mrb[0].mxu0
    %2824 = vmatprep.mubr.f32.mxu0 0.0
    %2825 = vmatmul.mubr.f32.gmra.mrb[0].mxu0 %v2147
    %v2826 = vpop.f32.mrb[0].mxu0
    %v2827 = vadd.f32 %v1798, %v2826
    %v2828 = vpop.f32.mrb[0].mxu0
    %2829 = vmatprep.mubr.f32.mxu0 0.0
    %2830 = vmatmul.mubr.f32.gmra.mrb[0].mxu0 %v2150
    %v2831 = vpop.f32.mrb[0].mxu0
    %v2832 = vadd.f32 %v1798, %v2831
    %v2833 = vpop.f32.mrb[0].mxu0
    %2834 = vmatprep.mubr.f32.mxu0 0.0
    %2835 = vmatmul.mubr.f32.gmra.mrb[0].mxu0 %v2153
    %v2836 = vpop.f32.mrb[0].mxu0
    %v2837 = vadd.f32 %v1798, %v2836
    %v2838 = vpop.f32.mrb[0].mxu0
    %2839 = vmatprep.mubr.f32.mxu0 0.0
    %2840 = vmatmul.mubr.f32.gmra.mrb[0].mxu0 %v2156
    %v2841 = vpop.f32.mrb[0].mxu0
    %v2842 = vadd.f32 %v1798, %v2841
    %v2843 = vpop.f32.mrb[0].mxu0
    %2844 = vmatprep.mubr.f32.mxu0 0.0
    %2845 = vmatmul.mubr.f32.gmra.mrb[0].mxu0 %v2159
    %v2846 = vpop.f32.mrb[0].mxu0
    %v2847 = vadd.f32 %v1798, %v2846
    %v2848 = vpop.f32.mrb[0].mxu0
    %2849 = vmatprep.mubr.f32.mxu0 0.0
    %2850 = vmatmul.mubr.f32.gmra.mrb[0].mxu0 %v2162
    %v2851 = vpop.f32.mrb[0].mxu0
    %v2852 = vadd.f32 %v1798, %v2851
    %v2853 = vpop.f32.mrb[0].mxu0
    %2854 = vmatprep.mubr.f32.mxu0 0.0
    %2855 = vmatmul.mubr.f32.gmra.mrb[0].mxu0 %v2165
    %v2856 = vpop.f32.mrb[0].mxu0
    %v2857 = vadd.f32 %v1798, %v2856
    %v2858 = vpop.f32.mrb[0].mxu0
    %2859 = vmatprep.mubr.f32.mxu0 0.0
    %2860 = vmatmul.mubr.f32.gmra.mrb[0].mxu0 %v2168
    %v2861 = vpop.f32.mrb[0].mxu0
    %v2862 = vadd.f32 %v1798, %v2861
    %v2863 = vpop.f32.mrb[0].mxu0
    %2864 = vmatprep.mubr.f32.mxu0 0.0
    %2865 = vmatmul.mubr.f32.gmra.mrb[0].mxu0 %v2171
    %v2866 = vpop.f32.mrb[0].mxu0
    %v2867 = vadd.f32 %v1798, %v2866
    %v2868 = vpop.f32.mrb[0].mxu0
    %2869 = vmatprep.mubr.f32.mxu0 0.0
    %2870 = vmatmul.mubr.f32.gmra.mrb[0].mxu0 %v2174
    %v2871 = vpop.f32.mrb[0].mxu0
    %v2872 = vadd.f32 %v1798, %v2871
    %v2873 = vpop.f32.mrb[0].mxu0
    %2874 = vmatprep.mubr.f32.mxu0 0.0
    %2875 = vmatmul.mubr.f32.gmra.mrb[0].mxu0 %v2177
    %v2876 = vpop.f32.mrb[0].mxu0
    %v2877 = vadd.f32 %v1798, %v2876
    %v2878 = vpop.f32.mrb[0].mxu0
    %2879 = vmatprep.mubr.f32.mxu0 0.0
    %2880 = vmatmul.mubr.f32.gmra.mrb[0].mxu0 %v2180
    %v2881 = vpop.f32.mrb[0].mxu0
    %v2882 = vadd.f32 %v1798, %v2881
    %v2883 = vpop.f32.mrb[0].mxu0
    %2884 = vmatprep.mubr.f32.mxu0 0.0
    %2885 = vmatmul.mubr.f32.gmra.mrb[0].mxu0 %v2183
    %v2886 = vpop.f32.mrb[0].mxu0
    %v2887 = vadd.f32 %v1798, %v2886
    %v2888 = vpop.f32.mrb[0].mxu0
    %2889 = vdwg.mxu0
    %v2890 = vmax.f32 %v2252, 0.0
    %v2891 = vmax.f32 %v2257, 0.0
    %v2892 = vmax.f32 %v2262, 0.0
    %v2893 = vmax.f32 %v2267, 0.0
    %v2894 = vmax.f32 %v2272, 0.0
    %v2895 = vmax.f32 %v2277, 0.0
    %v2896 = vmax.f32 %v2282, 0.0
    %v2897 = vmax.f32 %v2287, 0.0
    %v2898 = vmax.f32 %v2292, 0.0
    %v2899 = vmax.f32 %v2297, 0.0
    %v2900 = vmax.f32 %v2302, 0.0
    %v2901 = vmax.f32 %v2307, 0.0
    %v2902 = vmax.f32 %v2312, 0.0
    %v2903 = vmax.f32 %v2317, 0.0
    %v2904 = vmax.f32 %v2322, 0.0
    %v2905 = vmax.f32 %v2327, 0.0
    %v2906 = vmax.f32 %v2332, 0.0
    %v2907 = vmax.f32 %v2337, 0.0
    %v2908 = vmax.f32 %v2342, 0.0
    %v2909 = vmax.f32 %v2347, 0.0
    %v2910 = vmax.f32 %v2352, 0.0
    %v2911 = vmax.f32 %v2357, 0.0
    %v2912 = vmax.f32 %v2362, 0.0
    %v2913 = vmax.f32 %v2367, 0.0
    %v2914 = vmax.f32 %v2372, 0.0
    %v2915 = vmax.f32 %v2377, 0.0
    %v2916 = vmax.f32 %v2382, 0.0
    %v2917 = vmax.f32 %v2387, 0.0
    %v2918 = vmax.f32 %v2392, 0.0
    %v2919 = vmax.f32 %v2397, 0.0
    %v2920 = vmax.f32 %v2402, 0.0
    %v2921 = vmax.f32 %v2407, 0.0
    %v2922 = vmax.f32 %v2412, 0.0
    %v2923 = vmax.f32 %v2417, 0.0
    %v2924 = vmax.f32 %v2422, 0.0
    %v2925 = vmax.f32 %v2427, 0.0
    %v2926 = vmax.f32 %v2432, 0.0
    %v2927 = vmax.f32 %v2437, 0.0
    %v2928 = vmax.f32 %v2442, 0.0
    %v2929 = vmax.f32 %v2447, 0.0
    %v2930 = vmax.f32 %v2452, 0.0
    %v2931 = vmax.f32 %v2457, 0.0
    %v2932 = vmax.f32 %v2462, 0.0
    %v2933 = vmax.f32 %v2467, 0.0
    %v2934 = vmax.f32 %v2472, 0.0
    %v2935 = vmax.f32 %v2477, 0.0
    %v2936 = vmax.f32 %v2482, 0.0
    %v2937 = vmax.f32 %v2487, 0.0
    %v2938 = vmax.f32 %v2492, 0.0
    %v2939 = vmax.f32 %v2497, 0.0
    %v2940 = vmax.f32 %v2502, 0.0
    %v2941 = vmax.f32 %v2507, 0.0
    %v2942 = vmax.f32 %v2512, 0.0
    %v2943 = vmax.f32 %v2517, 0.0
    %v2944 = vmax.f32 %v2522, 0.0
    %v2945 = vmax.f32 %v2527, 0.0
    %v2946 = vmax.f32 %v2532, 0.0
    %v2947 = vmax.f32 %v2537, 0.0
    %v2948 = vmax.f32 %v2542, 0.0
    %v2949 = vmax.f32 %v2547, 0.0
    %v2950 = vmax.f32 %v2552, 0.0
    %v2951 = vmax.f32 %v2557, 0.0
    %v2952 = vmax.f32 %v2562, 0.0
    %v2953 = vmax.f32 %v2567, 0.0
    %v2954 = vmax.f32 %v2572, 0.0
    %v2955 = vmax.f32 %v2577, 0.0
    %v2956 = vmax.f32 %v2582, 0.0
    %v2957 = vmax.f32 %v2587, 0.0
    %v2958 = vmax.f32 %v2592, 0.0
    %v2959 = vmax.f32 %v2597, 0.0
    %v2960 = vmax.f32 %v2602, 0.0
    %v2961 = vmax.f32 %v2607, 0.0
    %v2962 = vmax.f32 %v2612, 0.0
    %v2963 = vmax.f32 %v2617, 0.0
    %v2964 = vmax.f32 %v2622, 0.0
    %v2965 = vmax.f32 %v2627, 0.0
    %v2966 = vmax.f32 %v2632, 0.0
    %v2967 = vmax.f32 %v2637, 0.0
    %v2968 = vmax.f32 %v2642, 0.0
    %v2969 = vmax.f32 %v2647, 0.0
    %v2970 = vmax.f32 %v2652, 0.0
    %v2971 = vmax.f32 %v2657, 0.0
    %v2972 = vmax.f32 %v2662, 0.0
    %v2973 = vmax.f32 %v2667, 0.0
    %v2974 = vmax.f32 %v2672, 0.0
    %v2975 = vmax.f32 %v2677, 0.0
    %v2976 = vmax.f32 %v2682, 0.0
    %v2977 = vmax.f32 %v2687, 0.0
    %v2978 = vmax.f32 %v2692, 0.0
    %v2979 = vmax.f32 %v2697, 0.0
    %v2980 = vmax.f32 %v2702, 0.0
    %v2981 = vmax.f32 %v2707, 0.0
    %v2982 = vmax.f32 %v2712, 0.0
    %v2983 = vmax.f32 %v2717, 0.0
    %v2984 = vmax.f32 %v2722, 0.0
    %v2985 = vmax.f32 %v2727, 0.0
    %v2986 = vmax.f32 %v2732, 0.0
    %v2987 = vmax.f32 %v2737, 0.0
    %v2988 = vmax.f32 %v2742, 0.0
    %v2989 = vmax.f32 %v2747, 0.0
    %v2990 = vmax.f32 %v2752, 0.0
    %v2991 = vmax.f32 %v2757, 0.0
    %v2992 = vmax.f32 %v2762, 0.0
    %v2993 = vmax.f32 %v2767, 0.0
    %v2994 = vmax.f32 %v2772, 0.0
    %v2995 = vmax.f32 %v2777, 0.0
    %v2996 = vmax.f32 %v2782, 0.0
    %v2997 = vmax.f32 %v2787, 0.0
    %v2998 = vmax.f32 %v2792, 0.0
    %v2999 = vmax.f32 %v2797, 0.0
    %v3000 = vmax.f32 %v2802, 0.0
    %v3001 = vmax.f32 %v2807, 0.0
    %v3002 = vmax.f32 %v2812, 0.0
    %v3003 = vmax.f32 %v2817, 0.0
    %v3004 = vmax.f32 %v2822, 0.0
    %v3005 = vmax.f32 %v2827, 0.0
    %v3006 = vmax.f32 %v2832, 0.0
    %v3007 = vmax.f32 %v2837, 0.0
    %v3008 = vmax.f32 %v2842, 0.0
    %v3009 = vmax.f32 %v2847, 0.0
    %v3010 = vmax.f32 %v2852, 0.0
    %v3011 = vmax.f32 %v2857, 0.0
    %v3012 = vmax.f32 %v2862, 0.0
    %v3013 = vmax.f32 %v2867, 0.0
    %v3014 = vmax.f32 %v2872, 0.0
    %v3015 = vmax.f32 %v2877, 0.0
    %v3016 = vmax.f32 %v2882, 0.0
    %v3017 = vmax.f32 %v2887, 0.0
    %s3018 = scalar_lea.vmem %s4, 32
    %v3019 = vld [vmem:[%s3018] sm:$0xff]
    %v3020 = vld [vmem:[%s3018 + $0x8] sm:$0xff]
    %v3021 = vld [vmem:[%s3018 + $0x10] sm:$0xff]
    %v3022 = vld [vmem:[%s3018 + $0x18] sm:$0xff]
    %s3023 = scalar_lea.vmem %s5, 1
    %v3024 = vld [vmem:[%s3023] sm:$0x1]
    %v3026 = vlaneseq
    %v3027 = vshrl.u32 %v3026, 7
    %v3028 = vsub.s32 0, %v3027
    %v3029 = vrot.slane %v3024, %v3028
    %v3032 = vsel %vm1800, %v2890, 0
    %v3035 = vsel %vm1800, %v2891, 0
    %v3038 = vsel %vm1800, %v2892, 0
    %v3041 = vsel %vm1800, %v2893, 0
    %v3044 = vsel %vm1800, %v2894, 0
    %v3047 = vsel %vm1800, %v2895, 0
    %v3050 = vsel %vm1800, %v2896, 0
    %v3053 = vsel %vm1800, %v2897, 0
    %v3056 = vsel %vm1800, %v2898, 0
    %v3059 = vsel %vm1800, %v2899, 0
    %v3062 = vsel %vm1800, %v2900, 0
    %v3065 = vsel %vm1800, %v2901, 0
    %v3068 = vsel %vm1800, %v2902, 0
    %v3071 = vsel %vm1800, %v2903, 0
    %v3074 = vsel %vm1800, %v2904, 0
    %v3077 = vsel %vm1800, %v2905, 0
    %v3080 = vsel %vm1800, %v2906, 0
    %v3083 = vsel %vm1800, %v2907, 0
    %v3086 = vsel %vm1800, %v2908, 0
    %v3089 = vsel %vm1800, %v2909, 0
    %v3092 = vsel %vm1800, %v2910, 0
    %v3095 = vsel %vm1800, %v2911, 0
    %v3098 = vsel %vm1800, %v2912, 0
    %v3101 = vsel %vm1800, %v2913, 0
    %v3104 = vsel %vm1800, %v2914, 0
    %v3107 = vsel %vm1800, %v2915, 0
    %v3110 = vsel %vm1800, %v2916, 0
    %v3113 = vsel %vm1800, %v2917, 0
    %v3116 = vsel %vm1800, %v2918, 0
    %v3119 = vsel %vm1800, %v2919, 0
    %v3122 = vsel %vm1800, %v2920, 0
    %v3125 = vsel %vm1800, %v2921, 0
    %v3128 = vsel %vm1800, %v2922, 0
    %v3131 = vsel %vm1800, %v2923, 0
    %v3134 = vsel %vm1800, %v2924, 0
    %v3137 = vsel %vm1800, %v2925, 0
    %v3140 = vsel %vm1800, %v2926, 0
    %v3143 = vsel %vm1800, %v2927, 0
    %v3146 = vsel %vm1800, %v2928, 0
    %v3149 = vsel %vm1800, %v2929, 0
    %v3152 = vsel %vm1800, %v2930, 0
    %v3155 = vsel %vm1800, %v2931, 0
    %v3158 = vsel %vm1800, %v2932, 0
    %v3161 = vsel %vm1800, %v2933, 0
    %v3164 = vsel %vm1800, %v2934, 0
    %v3167 = vsel %vm1800, %v2935, 0
    %v3170 = vsel %vm1800, %v2936, 0
    %v3173 = vsel %vm1800, %v2937, 0
    %v3176 = vsel %vm1800, %v2938, 0
    %v3179 = vsel %vm1800, %v2939, 0
    %v3182 = vsel %vm1800, %v2940, 0
    %v3185 = vsel %vm1800, %v2941, 0
    %v3188 = vsel %vm1800, %v2942, 0
    %v3191 = vsel %vm1800, %v2943, 0
    %v3194 = vsel %vm1800, %v2944, 0
    %v3197 = vsel %vm1800, %v2945, 0
    %v3200 = vsel %vm1800, %v2946, 0
    %v3203 = vsel %vm1800, %v2947, 0
    %v3206 = vsel %vm1800, %v2948, 0
    %v3209 = vsel %vm1800, %v2949, 0
    %v3212 = vsel %vm1800, %v2950, 0
    %v3215 = vsel %vm1800, %v2951, 0
    %v3218 = vsel %vm1800, %v2952, 0
    %v3221 = vsel %vm1800, %v2953, 0
    %v3224 = vsel %vm1800, %v2954, 0
    %v3227 = vsel %vm1800, %v2955, 0
    %v3230 = vsel %vm1800, %v2956, 0
    %v3233 = vsel %vm1800, %v2957, 0
    %v3236 = vsel %vm1800, %v2958, 0
    %v3239 = vsel %vm1800, %v2959, 0
    %v3242 = vsel %vm1800, %v2960, 0
    %v3245 = vsel %vm1800, %v2961, 0
    %v3248 = vsel %vm1800, %v2962, 0
    %v3251 = vsel %vm1800, %v2963, 0
    %v3254 = vsel %vm1800, %v2964, 0
    %v3257 = vsel %vm1800, %v2965, 0
    %v3260 = vsel %vm1800, %v2966, 0
    %v3263 = vsel %vm1800, %v2967, 0
    %v3266 = vsel %vm1800, %v2968, 0
    %v3269 = vsel %vm1800, %v2969, 0
    %v3272 = vsel %vm1800, %v2970, 0
    %v3275 = vsel %vm1800, %v2971, 0
    %v3278 = vsel %vm1800, %v2972, 0
    %v3281 = vsel %vm1800, %v2973, 0
    %v3284 = vsel %vm1800, %v2974, 0
    %v3287 = vsel %vm1800, %v2975, 0
    %v3290 = vsel %vm1800, %v2976, 0
    %v3293 = vsel %vm1800, %v2977, 0
    %v3296 = vsel %vm1800, %v2978, 0
    %v3299 = vsel %vm1800, %v2979, 0
    %v3302 = vsel %vm1800, %v2980, 0
    %v3305 = vsel %vm1800, %v2981, 0
    %v3308 = vsel %vm1800, %v2982, 0
    %v3311 = vsel %vm1800, %v2983, 0
    %v3314 = vsel %vm1800, %v2984, 0
    %v3317 = vsel %vm1800, %v2985, 0
    %v3320 = vsel %vm1800, %v2986, 0
    %v3323 = vsel %vm1800, %v2987, 0
    %v3326 = vsel %vm1800, %v2988, 0
    %v3329 = vsel %vm1800, %v2989, 0
    %v3332 = vsel %vm1800, %v2990, 0
    %v3335 = vsel %vm1800, %v2991, 0
    %v3338 = vsel %vm1800, %v2992, 0
    %v3341 = vsel %vm1800, %v2993, 0
    %v3344 = vsel %vm1800, %v2994, 0
    %v3347 = vsel %vm1800, %v2995, 0
    %v3350 = vsel %vm1800, %v2996, 0
    %v3353 = vsel %vm1800, %v2997, 0
    %v3356 = vsel %vm1800, %v2998, 0
    %v3359 = vsel %vm1800, %v2999, 0
    %v3362 = vsel %vm1800, %v3000, 0
    %v3365 = vsel %vm1800, %v3001, 0
    %v3368 = vsel %vm1800, %v3002, 0
    %v3371 = vsel %vm1800, %v3003, 0
    %v3374 = vsel %vm1800, %v3004, 0
    %v3377 = vsel %vm1800, %v3005, 0
    %v3380 = vsel %vm1800, %v3006, 0
    %v3383 = vsel %vm1800, %v3007, 0
    %v3386 = vsel %vm1800, %v3008, 0
    %v3389 = vsel %vm1800, %v3009, 0
    %v3392 = vsel %vm1800, %v3010, 0
    %v3395 = vsel %vm1800, %v3011, 0
    %v3398 = vsel %vm1800, %v3012, 0
    %v3401 = vsel %vm1800, %v3013, 0
    %v3404 = vsel %vm1800, %v3014, 0
    %v3407 = vsel %vm1800, %v3015, 0
    %v3410 = vsel %vm1800, %v3016, 0
    %v3413 = vsel %vm1800, %v3017, 0
    %3415 = vmatprep.subr.mxu0 0.0
    %3416 = vmatpush1.msra.mxu0 %v3019
    %3417 = vmatprep.subr.mxu0 0.0
    %3418 = vmatpush1.msra.mxu0 %v3020
    %3419 = vmatprep.subr.mxu0 0.0
    %3420 = vmatpush1.msra.mxu0 %v3021
    %3421 = vmatprep.subr.mxu0 0.0
    %3422 = vmatpush1.msra.mxu0 %v3022
    %3423 = vmatprep.subr.mxu0 0.0
    %3424 = vmatpush1.msra.mxu0 0.0
    %3425 = vmatprep.subr.mxu0 0.0
    %3426 = vmatpush1.msra.mxu0 0.0
    %3427 = vmatprep.subr.mxu0 0.0
    %3428 = vmatpush1.msra.mxu0 0.0
    %3429 = vmatprep.subr.mxu0 0.0
    %3430 = vmatpush1.msra.mxu0 0.0
    %3431 = vmatprep.subr.mxu0 0.0
    %3432 = vmatpush1.msra.mxu0 0.0
    %3433 = vmatprep.subr.mxu0 0.0
    %3434 = vmatpush1.msra.mxu0 0.0
    %3435 = vmatprep.subr.mxu0 0.0
    %3436 = vmatpush1.msra.mxu0 0.0
    %3437 = vmatprep.subr.mxu0 0.0
    %3438 = vmatpush1.msra.mxu0 0.0
    %3439 = vmatprep.subr.mxu0 0.0
    %3440 = vmatpush1.msra.mxu0 0.0
    %3441 = vmatprep.subr.mxu0 0.0
    %3442 = vmatpush1.msra.mxu0 0.0
    %3443 = vmatprep.subr.mxu0 0.0
    %3444 = vmatpush1.msra.mxu0 0.0
    %3445 = vmatprep.subr.mxu0 0.0
    %3446 = vmatpush1.msra.mxu0 0.0
    %3447 = vmatprep.subr.mxu0 0.0
    %3448 = vmatpush1.msra.mxu0 0.0
    %3449 = vmatprep.subr.mxu0 0.0
    %3450 = vmatpush1.msra.mxu0 0.0
    %3451 = vmatprep.subr.mxu0 0.0
    %3452 = vmatpush1.msra.mxu0 0.0
    %3453 = vmatprep.subr.mxu0 0.0
    %3454 = vmatpush1.msra.mxu0 0.0
    %3455 = vmatprep.subr.mxu0 0.0
    %3456 = vmatpush1.msra.mxu0 0.0
    %3457 = vmatprep.subr.mxu0 0.0
    %3458 = vmatpush1.msra.mxu0 0.0
    %3459 = vmatprep.subr.mxu0 0.0
    %3460 = vmatpush1.msra.mxu0 0.0
    %3461 = vmatprep.subr.mxu0 0.0
    %3462 = vmatpush1.msra.mxu0 0.0
    %3463 = vmatprep.subr.mxu0 0.0
    %3464 = vmatpush1.msra.mxu0 0.0
    %3465 = vmatprep.subr.mxu0 0.0
    %3466 = vmatpush1.msra.mxu0 0.0
    %3467 = vmatprep.subr.mxu0 0.0
    %3468 = vmatpush1.msra.mxu0 0.0
    %3469 = vmatprep.subr.mxu0 0.0
    %3470 = vmatpush1.msra.mxu0 0.0
    %3471 = vmatprep.subr.mxu0 0.0
    %3472 = vmatpush1.msra.mxu0 0.0
    %3473 = vmatprep.subr.mxu0 0.0
    %3474 = vmatpush1.msra.mxu0 0.0
    %3475 = vmatprep.subr.mxu0 0.0
    %3476 = vmatpush1.msra.mxu0 0.0
    %3477 = vmatprep.subr.mxu0 0.0
    %3478 = vmatpush1.msra.mxu0 0.0
    %3479 = vmatprep.mubr.f32.mxu0 0.0
    %3480 = vmatmul.mubr.f32.gmra.mrb[0].mxu0 %v3032
    %v3481 = vpop.f32.mrb[0].mxu0
    %v3482 = vadd.f32 %v3029, %v3481
    %v3483 = vpop.f32.mrb[0].mxu0
    %3484 = vmatprep.mubr.f32.mxu0 0.0
    %3485 = vmatmul.mubr.f32.gmra.mrb[0].mxu0 %v3035
    %v3486 = vpop.f32.mrb[0].mxu0
    %v3487 = vadd.f32 %v3029, %v3486
    %v3488 = vpop.f32.mrb[0].mxu0
    %3489 = vmatprep.mubr.f32.mxu0 0.0
    %3490 = vmatmul.mubr.f32.gmra.mrb[0].mxu0 %v3038
    %v3491 = vpop.f32.mrb[0].mxu0
    %v3492 = vadd.f32 %v3029, %v3491
    %v3493 = vpop.f32.mrb[0].mxu0
    %3494 = vmatprep.mubr.f32.mxu0 0.0
    %3495 = vmatmul.mubr.f32.gmra.mrb[0].mxu0 %v3041
    %v3496 = vpop.f32.mrb[0].mxu0
    %v3497 = vadd.f32 %v3029, %v3496
    %v3498 = vpop.f32.mrb[0].mxu0
    %3499 = vmatprep.mubr.f32.mxu0 0.0
    %3500 = vmatmul.mubr.f32.gmra.mrb[0].mxu0 %v3044
    %v3501 = vpop.f32.mrb[0].mxu0
    %v3502 = vadd.f32 %v3029, %v3501
    %v3503 = vpop.f32.mrb[0].mxu0
    %3504 = vmatprep.mubr.f32.mxu0 0.0
    %3505 = vmatmul.mubr.f32.gmra.mrb[0].mxu0 %v3047
    %v3506 = vpop.f32.mrb[0].mxu0
    %v3507 = vadd.f32 %v3029, %v3506
    %v3508 = vpop.f32.mrb[0].mxu0
    %3509 = vmatprep.mubr.f32.mxu0 0.0
    %3510 = vmatmul.mubr.f32.gmra.mrb[0].mxu0 %v3050
    %v3511 = vpop.f32.mrb[0].mxu0
    %v3512 = vadd.f32 %v3029, %v3511
    %v3513 = vpop.f32.mrb[0].mxu0
    %3514 = vmatprep.mubr.f32.mxu0 0.0
    %3515 = vmatmul.mubr.f32.gmra.mrb[0].mxu0 %v3053
    %v3516 = vpop.f32.mrb[0].mxu0
    %v3517 = vadd.f32 %v3029, %v3516
    %v3518 = vpop.f32.mrb[0].mxu0
    %3519 = vmatprep.mubr.f32.mxu0 0.0
    %3520 = vmatmul.mubr.f32.gmra.mrb[0].mxu0 %v3056
    %v3521 = vpop.f32.mrb[0].mxu0
    %v3522 = vadd.f32 %v3029, %v3521
    %v3523 = vpop.f32.mrb[0].mxu0
    %3524 = vmatprep.mubr.f32.mxu0 0.0
    %3525 = vmatmul.mubr.f32.gmra.mrb[0].mxu0 %v3059
    %v3526 = vpop.f32.mrb[0].mxu0
    %v3527 = vadd.f32 %v3029, %v3526
    %v3528 = vpop.f32.mrb[0].mxu0
    %3529 = vmatprep.mubr.f32.mxu0 0.0
    %3530 = vmatmul.mubr.f32.gmra.mrb[0].mxu0 %v3062
    %v3531 = vpop.f32.mrb[0].mxu0
    %v3532 = vadd.f32 %v3029, %v3531
    %v3533 = vpop.f32.mrb[0].mxu0
    %3534 = vmatprep.mubr.f32.mxu0 0.0
    %3535 = vmatmul.mubr.f32.gmra.mrb[0].mxu0 %v3065
    %v3536 = vpop.f32.mrb[0].mxu0
    %v3537 = vadd.f32 %v3029, %v3536
    %v3538 = vpop.f32.mrb[0].mxu0
    %3539 = vmatprep.mubr.f32.mxu0 0.0
    %3540 = vmatmul.mubr.f32.gmra.mrb[0].mxu0 %v3068
    %v3541 = vpop.f32.mrb[0].mxu0
    %v3542 = vadd.f32 %v3029, %v3541
    %v3543 = vpop.f32.mrb[0].mxu0
    %3544 = vmatprep.mubr.f32.mxu0 0.0
    %3545 = vmatmul.mubr.f32.gmra.mrb[0].mxu0 %v3071
    %v3546 = vpop.f32.mrb[0].mxu0
    %v3547 = vadd.f32 %v3029, %v3546
    %v3548 = vpop.f32.mrb[0].mxu0
    %3549 = vmatprep.mubr.f32.mxu0 0.0
    %3550 = vmatmul.mubr.f32.gmra.mrb[0].mxu0 %v3074
    %v3551 = vpop.f32.mrb[0].mxu0
    %v3552 = vadd.f32 %v3029, %v3551
    %v3553 = vpop.f32.mrb[0].mxu0
    %3554 = vmatprep.mubr.f32.mxu0 0.0
    %3555 = vmatmul.mubr.f32.gmra.mrb[0].mxu0 %v3077
    %v3556 = vpop.f32.mrb[0].mxu0
    %v3557 = vadd.f32 %v3029, %v3556
    %v3558 = vpop.f32.mrb[0].mxu0
    %3559 = vmatprep.mubr.f32.mxu0 0.0
    %3560 = vmatmul.mubr.f32.gmra.mrb[0].mxu0 %v3080
    %v3561 = vpop.f32.mrb[0].mxu0
    %v3562 = vadd.f32 %v3029, %v3561
    %v3563 = vpop.f32.mrb[0].mxu0
    %3564 = vmatprep.mubr.f32.mxu0 0.0
    %3565 = vmatmul.mubr.f32.gmra.mrb[0].mxu0 %v3083
    %v3566 = vpop.f32.mrb[0].mxu0
    %v3567 = vadd.f32 %v3029, %v3566
    %v3568 = vpop.f32.mrb[0].mxu0
    %3569 = vmatprep.mubr.f32.mxu0 0.0
    %3570 = vmatmul.mubr.f32.gmra.mrb[0].mxu0 %v3086
    %v3571 = vpop.f32.mrb[0].mxu0
    %v3572 = vadd.f32 %v3029, %v3571
    %v3573 = vpop.f32.mrb[0].mxu0
    %3574 = vmatprep.mubr.f32.mxu0 0.0
    %3575 = vmatmul.mubr.f32.gmra.mrb[0].mxu0 %v3089
    %v3576 = vpop.f32.mrb[0].mxu0
    %v3577 = vadd.f32 %v3029, %v3576
    %v3578 = vpop.f32.mrb[0].mxu0
    %3579 = vmatprep.mubr.f32.mxu0 0.0
    %3580 = vmatmul.mubr.f32.gmra.mrb[0].mxu0 %v3092
    %v3581 = vpop.f32.mrb[0].mxu0
    %v3582 = vadd.f32 %v3029, %v3581
    %v3583 = vpop.f32.mrb[0].mxu0
    %3584 = vmatprep.mubr.f32.mxu0 0.0
    %3585 = vmatmul.mubr.f32.gmra.mrb[0].mxu0 %v3095
    %v3586 = vpop.f32.mrb[0].mxu0
    %v3587 = vadd.f32 %v3029, %v3586
    %v3588 = vpop.f32.mrb[0].mxu0
    %3589 = vmatprep.mubr.f32.mxu0 0.0
    %3590 = vmatmul.mubr.f32.gmra.mrb[0].mxu0 %v3098
    %v3591 = vpop.f32.mrb[0].mxu0
    %v3592 = vadd.f32 %v3029, %v3591
    %v3593 = vpop.f32.mrb[0].mxu0
    %3594 = vmatprep.mubr.f32.mxu0 0.0
    %3595 = vmatmul.mubr.f32.gmra.mrb[0].mxu0 %v3101
    %v3596 = vpop.f32.mrb[0].mxu0
    %v3597 = vadd.f32 %v3029, %v3596
    %v3598 = vpop.f32.mrb[0].mxu0
    %3599 = vmatprep.mubr.f32.mxu0 0.0
    %3600 = vmatmul.mubr.f32.gmra.mrb[0].mxu0 %v3104
    %v3601 = vpop.f32.mrb[0].mxu0
    %v3602 = vadd.f32 %v3029, %v3601
    %v3603 = vpop.f32.mrb[0].mxu0
    %3604 = vmatprep.mubr.f32.mxu0 0.0
    %3605 = vmatmul.mubr.f32.gmra.mrb[0].mxu0 %v3107
    %v3606 = vpop.f32.mrb[0].mxu0
    %v3607 = vadd.f32 %v3029, %v3606
    %v3608 = vpop.f32.mrb[0].mxu0
    %3609 = vmatprep.mubr.f32.mxu0 0.0
    %3610 = vmatmul.mubr.f32.gmra.mrb[0].mxu0 %v3110
    %v3611 = vpop.f32.mrb[0].mxu0
    %v3612 = vadd.f32 %v3029, %v3611
    %v3613 = vpop.f32.mrb[0].mxu0
    %3614 = vmatprep.mubr.f32.mxu0 0.0
    %3615 = vmatmul.mubr.f32.gmra.mrb[0].mxu0 %v3113
    %v3616 = vpop.f32.mrb[0].mxu0
    %v3617 = vadd.f32 %v3029, %v3616
    %v3618 = vpop.f32.mrb[0].mxu0
    %3619 = vmatprep.mubr.f32.mxu0 0.0
    %3620 = vmatmul.mubr.f32.gmra.mrb[0].mxu0 %v3116
    %v3621 = vpop.f32.mrb[0].mxu0
    %v3622 = vadd.f32 %v3029, %v3621
    %v3623 = vpop.f32.mrb[0].mxu0
    %3624 = vmatprep.mubr.f32.mxu0 0.0
    %3625 = vmatmul.mubr.f32.gmra.mrb[0].mxu0 %v3119
    %v3626 = vpop.f32.mrb[0].mxu0
    %v3627 = vadd.f32 %v3029, %v3626
    %v3628 = vpop.f32.mrb[0].mxu0
    %3629 = vmatprep.mubr.f32.mxu0 0.0
    %3630 = vmatmul.mubr.f32.gmra.mrb[0].mxu0 %v3122
    %v3631 = vpop.f32.mrb[0].mxu0
    %v3632 = vadd.f32 %v3029, %v3631
    %v3633 = vpop.f32.mrb[0].mxu0
    %3634 = vmatprep.mubr.f32.mxu0 0.0
    %3635 = vmatmul.mubr.f32.gmra.mrb[0].mxu0 %v3125
    %v3636 = vpop.f32.mrb[0].mxu0
    %v3637 = vadd.f32 %v3029, %v3636
    %v3638 = vpop.f32.mrb[0].mxu0
    %3639 = vmatprep.mubr.f32.mxu0 0.0
    %3640 = vmatmul.mubr.f32.gmra.mrb[0].mxu0 %v3128
    %v3641 = vpop.f32.mrb[0].mxu0
    %v3642 = vadd.f32 %v3029, %v3641
    %v3643 = vpop.f32.mrb[0].mxu0
    %3644 = vmatprep.mubr.f32.mxu0 0.0
    %3645 = vmatmul.mubr.f32.gmra.mrb[0].mxu0 %v3131
    %v3646 = vpop.f32.mrb[0].mxu0
    %v3647 = vadd.f32 %v3029, %v3646
    %v3648 = vpop.f32.mrb[0].mxu0
    %3649 = vmatprep.mubr.f32.mxu0 0.0
    %3650 = vmatmul.mubr.f32.gmra.mrb[0].mxu0 %v3134
    %v3651 = vpop.f32.mrb[0].mxu0
    %v3652 = vadd.f32 %v3029, %v3651
    %v3653 = vpop.f32.mrb[0].mxu0
    %3654 = vmatprep.mubr.f32.mxu0 0.0
    %3655 = vmatmul.mubr.f32.gmra.mrb[0].mxu0 %v3137
    %v3656 = vpop.f32.mrb[0].mxu0
    %v3657 = vadd.f32 %v3029, %v3656
    %v3658 = vpop.f32.mrb[0].mxu0
    %3659 = vmatprep.mubr.f32.mxu0 0.0
    %3660 = vmatmul.mubr.f32.gmra.mrb[0].mxu0 %v3140
    %v3661 = vpop.f32.mrb[0].mxu0
    %v3662 = vadd.f32 %v3029, %v3661
    %v3663 = vpop.f32.mrb[0].mxu0
    %3664 = vmatprep.mubr.f32.mxu0 0.0
    %3665 = vmatmul.mubr.f32.gmra.mrb[0].mxu0 %v3143
    %v3666 = vpop.f32.mrb[0].mxu0
    %v3667 = vadd.f32 %v3029, %v3666
    %v3668 = vpop.f32.mrb[0].mxu0
    %3669 = vmatprep.mubr.f32.mxu0 0.0
    %3670 = vmatmul.mubr.f32.gmra.mrb[0].mxu0 %v3146
    %v3671 = vpop.f32.mrb[0].mxu0
    %v3672 = vadd.f32 %v3029, %v3671
    %v3673 = vpop.f32.mrb[0].mxu0
    %3674 = vmatprep.mubr.f32.mxu0 0.0
    %3675 = vmatmul.mubr.f32.gmra.mrb[0].mxu0 %v3149
    %v3676 = vpop.f32.mrb[0].mxu0
    %v3677 = vadd.f32 %v3029, %v3676
    %v3678 = vpop.f32.mrb[0].mxu0
    %3679 = vmatprep.mubr.f32.mxu0 0.0
    %3680 = vmatmul.mubr.f32.gmra.mrb[0].mxu0 %v3152
    %v3681 = vpop.f32.mrb[0].mxu0
    %v3682 = vadd.f32 %v3029, %v3681
    %v3683 = vpop.f32.mrb[0].mxu0
    %3684 = vmatprep.mubr.f32.mxu0 0.0
    %3685 = vmatmul.mubr.f32.gmra.mrb[0].mxu0 %v3155
    %v3686 = vpop.f32.mrb[0].mxu0
    %v3687 = vadd.f32 %v3029, %v3686
    %v3688 = vpop.f32.mrb[0].mxu0
    %3689 = vmatprep.mubr.f32.mxu0 0.0
    %3690 = vmatmul.mubr.f32.gmra.mrb[0].mxu0 %v3158
    %v3691 = vpop.f32.mrb[0].mxu0
    %v3692 = vadd.f32 %v3029, %v3691
    %v3693 = vpop.f32.mrb[0].mxu0
    %3694 = vmatprep.mubr.f32.mxu0 0.0
    %3695 = vmatmul.mubr.f32.gmra.mrb[0].mxu0 %v3161
    %v3696 = vpop.f32.mrb[0].mxu0
    %v3697 = vadd.f32 %v3029, %v3696
    %v3698 = vpop.f32.mrb[0].mxu0
    %3699 = vmatprep.mubr.f32.mxu0 0.0
    %3700 = vmatmul.mubr.f32.gmra.mrb[0].mxu0 %v3164
    %v3701 = vpop.f32.mrb[0].mxu0
    %v3702 = vadd.f32 %v3029, %v3701
    %v3703 = vpop.f32.mrb[0].mxu0
    %3704 = vmatprep.mubr.f32.mxu0 0.0
    %3705 = vmatmul.mubr.f32.gmra.mrb[0].mxu0 %v3167
    %v3706 = vpop.f32.mrb[0].mxu0
    %v3707 = vadd.f32 %v3029, %v3706
    %v3708 = vpop.f32.mrb[0].mxu0
    %3709 = vmatprep.mubr.f32.mxu0 0.0
    %3710 = vmatmul.mubr.f32.gmra.mrb[0].mxu0 %v3170
    %v3711 = vpop.f32.mrb[0].mxu0
    %v3712 = vadd.f32 %v3029, %v3711
    %v3713 = vpop.f32.mrb[0].mxu0
    %3714 = vmatprep.mubr.f32.mxu0 0.0
    %3715 = vmatmul.mubr.f32.gmra.mrb[0].mxu0 %v3173
    %v3716 = vpop.f32.mrb[0].mxu0
    %v3717 = vadd.f32 %v3029, %v3716
    %v3718 = vpop.f32.mrb[0].mxu0
    %3719 = vmatprep.mubr.f32.mxu0 0.0
    %3720 = vmatmul.mubr.f32.gmra.mrb[0].mxu0 %v3176
    %v3721 = vpop.f32.mrb[0].mxu0
    %v3722 = vadd.f32 %v3029, %v3721
    %v3723 = vpop.f32.mrb[0].mxu0
    %3724 = vmatprep.mubr.f32.mxu0 0.0
    %3725 = vmatmul.mubr.f32.gmra.mrb[0].mxu0 %v3179
    %v3726 = vpop.f32.mrb[0].mxu0
    %v3727 = vadd.f32 %v3029, %v3726
    %v3728 = vpop.f32.mrb[0].mxu0
    %3729 = vmatprep.mubr.f32.mxu0 0.0
    %3730 = vmatmul.mubr.f32.gmra.mrb[0].mxu0 %v3182
    %v3731 = vpop.f32.mrb[0].mxu0
    %v3732 = vadd.f32 %v3029, %v3731
    %v3733 = vpop.f32.mrb[0].mxu0
    %3734 = vmatprep.mubr.f32.mxu0 0.0
    %3735 = vmatmul.mubr.f32.gmra.mrb[0].mxu0 %v3185
    %v3736 = vpop.f32.mrb[0].mxu0
    %v3737 = vadd.f32 %v3029, %v3736
    %v3738 = vpop.f32.mrb[0].mxu0
    %3739 = vmatprep.mubr.f32.mxu0 0.0
    %3740 = vmatmul.mubr.f32.gmra.mrb[0].mxu0 %v3188
    %v3741 = vpop.f32.mrb[0].mxu0
    %v3742 = vadd.f32 %v3029, %v3741
    %v3743 = vpop.f32.mrb[0].mxu0
    %3744 = vmatprep.mubr.f32.mxu0 0.0
    %3745 = vmatmul.mubr.f32.gmra.mrb[0].mxu0 %v3191
    %v3746 = vpop.f32.mrb[0].mxu0
    %v3747 = vadd.f32 %v3029, %v3746
    %v3748 = vpop.f32.mrb[0].mxu0
    %3749 = vmatprep.mubr.f32.mxu0 0.0
    %3750 = vmatmul.mubr.f32.gmra.mrb[0].mxu0 %v3194
    %v3751 = vpop.f32.mrb[0].mxu0
    %v3752 = vadd.f32 %v3029, %v3751
    %v3753 = vpop.f32.mrb[0].mxu0
    %3754 = vmatprep.mubr.f32.mxu0 0.0
    %3755 = vmatmul.mubr.f32.gmra.mrb[0].mxu0 %v3197
    %v3756 = vpop.f32.mrb[0].mxu0
    %v3757 = vadd.f32 %v3029, %v3756
    %v3758 = vpop.f32.mrb[0].mxu0
    %3759 = vmatprep.mubr.f32.mxu0 0.0
    %3760 = vmatmul.mubr.f32.gmra.mrb[0].mxu0 %v3200
    %v3761 = vpop.f32.mrb[0].mxu0
    %v3762 = vadd.f32 %v3029, %v3761
    %v3763 = vpop.f32.mrb[0].mxu0
    %3764 = vmatprep.mubr.f32.mxu0 0.0
    %3765 = vmatmul.mubr.f32.gmra.mrb[0].mxu0 %v3203
    %v3766 = vpop.f32.mrb[0].mxu0
    %v3767 = vadd.f32 %v3029, %v3766
    %v3768 = vpop.f32.mrb[0].mxu0
    %3769 = vmatprep.mubr.f32.mxu0 0.0
    %3770 = vmatmul.mubr.f32.gmra.mrb[0].mxu0 %v3206
    %v3771 = vpop.f32.mrb[0].mxu0
    %v3772 = vadd.f32 %v3029, %v3771
    %v3773 = vpop.f32.mrb[0].mxu0
    %3774 = vmatprep.mubr.f32.mxu0 0.0
    %3775 = vmatmul.mubr.f32.gmra.mrb[0].mxu0 %v3209
    %v3776 = vpop.f32.mrb[0].mxu0
    %v3777 = vadd.f32 %v3029, %v3776
    %v3778 = vpop.f32.mrb[0].mxu0
    %3779 = vmatprep.mubr.f32.mxu0 0.0
    %3780 = vmatmul.mubr.f32.gmra.mrb[0].mxu0 %v3212
    %v3781 = vpop.f32.mrb[0].mxu0
    %v3782 = vadd.f32 %v3029, %v3781
    %v3783 = vpop.f32.mrb[0].mxu0
    %3784 = vmatprep.mubr.f32.mxu0 0.0
    %3785 = vmatmul.mubr.f32.gmra.mrb[0].mxu0 %v3215
    %v3786 = vpop.f32.mrb[0].mxu0
    %v3787 = vadd.f32 %v3029, %v3786
    %v3788 = vpop.f32.mrb[0].mxu0
    %3789 = vmatprep.mubr.f32.mxu0 0.0
    %3790 = vmatmul.mubr.f32.gmra.mrb[0].mxu0 %v3218
    %v3791 = vpop.f32.mrb[0].mxu0
    %v3792 = vadd.f32 %v3029, %v3791
    %v3793 = vpop.f32.mrb[0].mxu0
    %3794 = vmatprep.mubr.f32.mxu0 0.0
    %3795 = vmatmul.mubr.f32.gmra.mrb[0].mxu0 %v3221
    %v3796 = vpop.f32.mrb[0].mxu0
    %v3797 = vadd.f32 %v3029, %v3796
    %v3798 = vpop.f32.mrb[0].mxu0
    %3799 = vmatprep.mubr.f32.mxu0 0.0
    %3800 = vmatmul.mubr.f32.gmra.mrb[0].mxu0 %v3224
    %v3801 = vpop.f32.mrb[0].mxu0
    %v3802 = vadd.f32 %v3029, %v3801
    %v3803 = vpop.f32.mrb[0].mxu0
    %3804 = vmatprep.mubr.f32.mxu0 0.0
    %3805 = vmatmul.mubr.f32.gmra.mrb[0].mxu0 %v3227
    %v3806 = vpop.f32.mrb[0].mxu0
    %v3807 = vadd.f32 %v3029, %v3806
    %v3808 = vpop.f32.mrb[0].mxu0
    %3809 = vmatprep.mubr.f32.mxu0 0.0
    %3810 = vmatmul.mubr.f32.gmra.mrb[0].mxu0 %v3230
    %v3811 = vpop.f32.mrb[0].mxu0
    %v3812 = vadd.f32 %v3029, %v3811
    %v3813 = vpop.f32.mrb[0].mxu0
    %3814 = vmatprep.mubr.f32.mxu0 0.0
    %3815 = vmatmul.mubr.f32.gmra.mrb[0].mxu0 %v3233
    %v3816 = vpop.f32.mrb[0].mxu0
    %v3817 = vadd.f32 %v3029, %v3816
    %v3818 = vpop.f32.mrb[0].mxu0
    %3819 = vmatprep.mubr.f32.mxu0 0.0
    %3820 = vmatmul.mubr.f32.gmra.mrb[0].mxu0 %v3236
    %v3821 = vpop.f32.mrb[0].mxu0
    %v3822 = vadd.f32 %v3029, %v3821
    %v3823 = vpop.f32.mrb[0].mxu0
    %3824 = vmatprep.mubr.f32.mxu0 0.0
    %3825 = vmatmul.mubr.f32.gmra.mrb[0].mxu0 %v3239
    %v3826 = vpop.f32.mrb[0].mxu0
    %v3827 = vadd.f32 %v3029, %v3826
    %v3828 = vpop.f32.mrb[0].mxu0
    %3829 = vmatprep.mubr.f32.mxu0 0.0
    %3830 = vmatmul.mubr.f32.gmra.mrb[0].mxu0 %v3242
    %v3831 = vpop.f32.mrb[0].mxu0
    %v3832 = vadd.f32 %v3029, %v3831
    %v3833 = vpop.f32.mrb[0].mxu0
    %3834 = vmatprep.mubr.f32.mxu0 0.0
    %3835 = vmatmul.mubr.f32.gmra.mrb[0].mxu0 %v3245
    %v3836 = vpop.f32.mrb[0].mxu0
    %v3837 = vadd.f32 %v3029, %v3836
    %v3838 = vpop.f32.mrb[0].mxu0
    %3839 = vmatprep.mubr.f32.mxu0 0.0
    %3840 = vmatmul.mubr.f32.gmra.mrb[0].mxu0 %v3248
    %v3841 = vpop.f32.mrb[0].mxu0
    %v3842 = vadd.f32 %v3029, %v3841
    %v3843 = vpop.f32.mrb[0].mxu0
    %3844 = vmatprep.mubr.f32.mxu0 0.0
    %3845 = vmatmul.mubr.f32.gmra.mrb[0].mxu0 %v3251
    %v3846 = vpop.f32.mrb[0].mxu0
    %v3847 = vadd.f32 %v3029, %v3846
    %v3848 = vpop.f32.mrb[0].mxu0
    %3849 = vmatprep.mubr.f32.mxu0 0.0
    %3850 = vmatmul.mubr.f32.gmra.mrb[0].mxu0 %v3254
    %v3851 = vpop.f32.mrb[0].mxu0
    %v3852 = vadd.f32 %v3029, %v3851
    %v3853 = vpop.f32.mrb[0].mxu0
    %3854 = vmatprep.mubr.f32.mxu0 0.0
    %3855 = vmatmul.mubr.f32.gmra.mrb[0].mxu0 %v3257
    %v3856 = vpop.f32.mrb[0].mxu0
    %v3857 = vadd.f32 %v3029, %v3856
    %v3858 = vpop.f32.mrb[0].mxu0
    %3859 = vmatprep.mubr.f32.mxu0 0.0
    %3860 = vmatmul.mubr.f32.gmra.mrb[0].mxu0 %v3260
    %v3861 = vpop.f32.mrb[0].mxu0
    %v3862 = vadd.f32 %v3029, %v3861
    %v3863 = vpop.f32.mrb[0].mxu0
    %3864 = vmatprep.mubr.f32.mxu0 0.0
    %3865 = vmatmul.mubr.f32.gmra.mrb[0].mxu0 %v3263
    %v3866 = vpop.f32.mrb[0].mxu0
    %v3867 = vadd.f32 %v3029, %v3866
    %v3868 = vpop.f32.mrb[0].mxu0
    %3869 = vmatprep.mubr.f32.mxu0 0.0
    %3870 = vmatmul.mubr.f32.gmra.mrb[0].mxu0 %v3266
    %v3871 = vpop.f32.mrb[0].mxu0
    %v3872 = vadd.f32 %v3029, %v3871
    %v3873 = vpop.f32.mrb[0].mxu0
    %3874 = vmatprep.mubr.f32.mxu0 0.0
    %3875 = vmatmul.mubr.f32.gmra.mrb[0].mxu0 %v3269
    %v3876 = vpop.f32.mrb[0].mxu0
    %v3877 = vadd.f32 %v3029, %v3876
    %v3878 = vpop.f32.mrb[0].mxu0
    %3879 = vmatprep.mubr.f32.mxu0 0.0
    %3880 = vmatmul.mubr.f32.gmra.mrb[0].mxu0 %v3272
    %v3881 = vpop.f32.mrb[0].mxu0
    %v3882 = vadd.f32 %v3029, %v3881
    %v3883 = vpop.f32.mrb[0].mxu0
    %3884 = vmatprep.mubr.f32.mxu0 0.0
    %3885 = vmatmul.mubr.f32.gmra.mrb[0].mxu0 %v3275
    %v3886 = vpop.f32.mrb[0].mxu0
    %v3887 = vadd.f32 %v3029, %v3886
    %v3888 = vpop.f32.mrb[0].mxu0
    %3889 = vmatprep.mubr.f32.mxu0 0.0
    %3890 = vmatmul.mubr.f32.gmra.mrb[0].mxu0 %v3278
    %v3891 = vpop.f32.mrb[0].mxu0
    %v3892 = vadd.f32 %v3029, %v3891
    %v3893 = vpop.f32.mrb[0].mxu0
    %3894 = vmatprep.mubr.f32.mxu0 0.0
    %3895 = vmatmul.mubr.f32.gmra.mrb[0].mxu0 %v3281
    %v3896 = vpop.f32.mrb[0].mxu0
    %v3897 = vadd.f32 %v3029, %v3896
    %v3898 = vpop.f32.mrb[0].mxu0
    %3899 = vmatprep.mubr.f32.mxu0 0.0
    %3900 = vmatmul.mubr.f32.gmra.mrb[0].mxu0 %v3284
    %v3901 = vpop.f32.mrb[0].mxu0
    %v3902 = vadd.f32 %v3029, %v3901
    %v3903 = vpop.f32.mrb[0].mxu0
    %3904 = vmatprep.mubr.f32.mxu0 0.0
    %3905 = vmatmul.mubr.f32.gmra.mrb[0].mxu0 %v3287
    %v3906 = vpop.f32.mrb[0].mxu0
    %v3907 = vadd.f32 %v3029, %v3906
    %v3908 = vpop.f32.mrb[0].mxu0
    %3909 = vmatprep.mubr.f32.mxu0 0.0
    %3910 = vmatmul.mubr.f32.gmra.mrb[0].mxu0 %v3290
    %v3911 = vpop.f32.mrb[0].mxu0
    %v3912 = vadd.f32 %v3029, %v3911
    %v3913 = vpop.f32.mrb[0].mxu0
    %3914 = vmatprep.mubr.f32.mxu0 0.0
    %3915 = vmatmul.mubr.f32.gmra.mrb[0].mxu0 %v3293
    %v3916 = vpop.f32.mrb[0].mxu0
    %v3917 = vadd.f32 %v3029, %v3916
    %v3918 = vpop.f32.mrb[0].mxu0
    %3919 = vmatprep.mubr.f32.mxu0 0.0
    %3920 = vmatmul.mubr.f32.gmra.mrb[0].mxu0 %v3296
    %v3921 = vpop.f32.mrb[0].mxu0
    %v3922 = vadd.f32 %v3029, %v3921
    %v3923 = vpop.f32.mrb[0].mxu0
    %3924 = vmatprep.mubr.f32.mxu0 0.0
    %3925 = vmatmul.mubr.f32.gmra.mrb[0].mxu0 %v3299
    %v3926 = vpop.f32.mrb[0].mxu0
    %v3927 = vadd.f32 %v3029, %v3926
    %v3928 = vpop.f32.mrb[0].mxu0
    %3929 = vmatprep.mubr.f32.mxu0 0.0
    %3930 = vmatmul.mubr.f32.gmra.mrb[0].mxu0 %v3302
    %v3931 = vpop.f32.mrb[0].mxu0
    %v3932 = vadd.f32 %v3029, %v3931
    %v3933 = vpop.f32.mrb[0].mxu0
    %3934 = vmatprep.mubr.f32.mxu0 0.0
    %3935 = vmatmul.mubr.f32.gmra.mrb[0].mxu0 %v3305
    %v3936 = vpop.f32.mrb[0].mxu0
    %v3937 = vadd.f32 %v3029, %v3936
    %v3938 = vpop.f32.mrb[0].mxu0
    %3939 = vmatprep.mubr.f32.mxu0 0.0
    %3940 = vmatmul.mubr.f32.gmra.mrb[0].mxu0 %v3308
    %v3941 = vpop.f32.mrb[0].mxu0
    %v3942 = vadd.f32 %v3029, %v3941
    %v3943 = vpop.f32.mrb[0].mxu0
    %3944 = vmatprep.mubr.f32.mxu0 0.0
    %3945 = vmatmul.mubr.f32.gmra.mrb[0].mxu0 %v3311
    %v3946 = vpop.f32.mrb[0].mxu0
    %v3947 = vadd.f32 %v3029, %v3946
    %v3948 = vpop.f32.mrb[0].mxu0
    %3949 = vmatprep.mubr.f32.mxu0 0.0
    %3950 = vmatmul.mubr.f32.gmra.mrb[0].mxu0 %v3314
    %v3951 = vpop.f32.mrb[0].mxu0
    %v3952 = vadd.f32 %v3029, %v3951
    %v3953 = vpop.f32.mrb[0].mxu0
    %3954 = vmatprep.mubr.f32.mxu0 0.0
    %3955 = vmatmul.mubr.f32.gmra.mrb[0].mxu0 %v3317
    %v3956 = vpop.f32.mrb[0].mxu0
    %v3957 = vadd.f32 %v3029, %v3956
    %v3958 = vpop.f32.mrb[0].mxu0
    %3959 = vmatprep.mubr.f32.mxu0 0.0
    %3960 = vmatmul.mubr.f32.gmra.mrb[0].mxu0 %v3320
    %v3961 = vpop.f32.mrb[0].mxu0
    %v3962 = vadd.f32 %v3029, %v3961
    %v3963 = vpop.f32.mrb[0].mxu0
    %3964 = vmatprep.mubr.f32.mxu0 0.0
    %3965 = vmatmul.mubr.f32.gmra.mrb[0].mxu0 %v3323
    %v3966 = vpop.f32.mrb[0].mxu0
    %v3967 = vadd.f32 %v3029, %v3966
    %v3968 = vpop.f32.mrb[0].mxu0
    %3969 = vmatprep.mubr.f32.mxu0 0.0
    %3970 = vmatmul.mubr.f32.gmra.mrb[0].mxu0 %v3326
    %v3971 = vpop.f32.mrb[0].mxu0
    %v3972 = vadd.f32 %v3029, %v3971
    %v3973 = vpop.f32.mrb[0].mxu0
    %3974 = vmatprep.mubr.f32.mxu0 0.0
    %3975 = vmatmul.mubr.f32.gmra.mrb[0].mxu0 %v3329
    %v3976 = vpop.f32.mrb[0].mxu0
    %v3977 = vadd.f32 %v3029, %v3976
    %v3978 = vpop.f32.mrb[0].mxu0
    %3979 = vmatprep.mubr.f32.mxu0 0.0
    %3980 = vmatmul.mubr.f32.gmra.mrb[0].mxu0 %v3332
    %v3981 = vpop.f32.mrb[0].mxu0
    %v3982 = vadd.f32 %v3029, %v3981
    %v3983 = vpop.f32.mrb[0].mxu0
    %3984 = vmatprep.mubr.f32.mxu0 0.0
    %3985 = vmatmul.mubr.f32.gmra.mrb[0].mxu0 %v3335
    %v3986 = vpop.f32.mrb[0].mxu0
    %v3987 = vadd.f32 %v3029, %v3986
    %v3988 = vpop.f32.mrb[0].mxu0
    %3989 = vmatprep.mubr.f32.mxu0 0.0
    %3990 = vmatmul.mubr.f32.gmra.mrb[0].mxu0 %v3338
    %v3991 = vpop.f32.mrb[0].mxu0
    %v3992 = vadd.f32 %v3029, %v3991
    %v3993 = vpop.f32.mrb[0].mxu0
    %3994 = vmatprep.mubr.f32.mxu0 0.0
    %3995 = vmatmul.mubr.f32.gmra.mrb[0].mxu0 %v3341
    %v3996 = vpop.f32.mrb[0].mxu0
    %v3997 = vadd.f32 %v3029, %v3996
    %v3998 = vpop.f32.mrb[0].mxu0
    %3999 = vmatprep.mubr.f32.mxu0 0.0
    %4000 = vmatmul.mubr.f32.gmra.mrb[0].mxu0 %v3344
    %v4001 = vpop.f32.mrb[0].mxu0
    %v4002 = vadd.f32 %v3029, %v4001
    %v4003 = vpop.f32.mrb[0].mxu0
    %4004 = vmatprep.mubr.f32.mxu0 0.0
    %4005 = vmatmul.mubr.f32.gmra.mrb[0].mxu0 %v3347
    %v4006 = vpop.f32.mrb[0].mxu0
    %v4007 = vadd.f32 %v3029, %v4006
    %v4008 = vpop.f32.mrb[0].mxu0
    %4009 = vmatprep.mubr.f32.mxu0 0.0
    %4010 = vmatmul.mubr.f32.gmra.mrb[0].mxu0 %v3350
    %v4011 = vpop.f32.mrb[0].mxu0
    %v4012 = vadd.f32 %v3029, %v4011
    %v4013 = vpop.f32.mrb[0].mxu0
    %4014 = vmatprep.mubr.f32.mxu0 0.0
    %4015 = vmatmul.mubr.f32.gmra.mrb[0].mxu0 %v3353
    %v4016 = vpop.f32.mrb[0].mxu0
    %v4017 = vadd.f32 %v3029, %v4016
    %v4018 = vpop.f32.mrb[0].mxu0
    %4019 = vmatprep.mubr.f32.mxu0 0.0
    %4020 = vmatmul.mubr.f32.gmra.mrb[0].mxu0 %v3356
    %v4021 = vpop.f32.mrb[0].mxu0
    %v4022 = vadd.f32 %v3029, %v4021
    %v4023 = vpop.f32.mrb[0].mxu0
    %4024 = vmatprep.mubr.f32.mxu0 0.0
    %4025 = vmatmul.mubr.f32.gmra.mrb[0].mxu0 %v3359
    %v4026 = vpop.f32.mrb[0].mxu0
    %v4027 = vadd.f32 %v3029, %v4026
    %v4028 = vpop.f32.mrb[0].mxu0
    %4029 = vmatprep.mubr.f32.mxu0 0.0
    %4030 = vmatmul.mubr.f32.gmra.mrb[0].mxu0 %v3362
    %v4031 = vpop.f32.mrb[0].mxu0
    %v4032 = vadd.f32 %v3029, %v4031
    %v4033 = vpop.f32.mrb[0].mxu0
    %4034 = vmatprep.mubr.f32.mxu0 0.0
    %4035 = vmatmul.mubr.f32.gmra.mrb[0].mxu0 %v3365
    %v4036 = vpop.f32.mrb[0].mxu0
    %v4037 = vadd.f32 %v3029, %v4036
    %v4038 = vpop.f32.mrb[0].mxu0
    %4039 = vmatprep.mubr.f32.mxu0 0.0
    %4040 = vmatmul.mubr.f32.gmra.mrb[0].mxu0 %v3368
    %v4041 = vpop.f32.mrb[0].mxu0
    %v4042 = vadd.f32 %v3029, %v4041
    %v4043 = vpop.f32.mrb[0].mxu0
    %4044 = vmatprep.mubr.f32.mxu0 0.0
    %4045 = vmatmul.mubr.f32.gmra.mrb[0].mxu0 %v3371
    %v4046 = vpop.f32.mrb[0].mxu0
    %v4047 = vadd.f32 %v3029, %v4046
    %v4048 = vpop.f32.mrb[0].mxu0
    %4049 = vmatprep.mubr.f32.mxu0 0.0
    %4050 = vmatmul.mubr.f32.gmra.mrb[0].mxu0 %v3374
    %v4051 = vpop.f32.mrb[0].mxu0
    %v4052 = vadd.f32 %v3029, %v4051
    %v4053 = vpop.f32.mrb[0].mxu0
    %4054 = vmatprep.mubr.f32.mxu0 0.0
    %4055 = vmatmul.mubr.f32.gmra.mrb[0].mxu0 %v3377
    %v4056 = vpop.f32.mrb[0].mxu0
    %v4057 = vadd.f32 %v3029, %v4056
    %v4058 = vpop.f32.mrb[0].mxu0
    %4059 = vmatprep.mubr.f32.mxu0 0.0
    %4060 = vmatmul.mubr.f32.gmra.mrb[0].mxu0 %v3380
    %v4061 = vpop.f32.mrb[0].mxu0
    %v4062 = vadd.f32 %v3029, %v4061
    %v4063 = vpop.f32.mrb[0].mxu0
    %4064 = vmatprep.mubr.f32.mxu0 0.0
    %4065 = vmatmul.mubr.f32.gmra.mrb[0].mxu0 %v3383
    %v4066 = vpop.f32.mrb[0].mxu0
    %v4067 = vadd.f32 %v3029, %v4066
    %v4068 = vpop.f32.mrb[0].mxu0
    %4069 = vmatprep.mubr.f32.mxu0 0.0
    %4070 = vmatmul.mubr.f32.gmra.mrb[0].mxu0 %v3386
    %v4071 = vpop.f32.mrb[0].mxu0
    %v4072 = vadd.f32 %v3029, %v4071
    %v4073 = vpop.f32.mrb[0].mxu0
    %4074 = vmatprep.mubr.f32.mxu0 0.0
    %4075 = vmatmul.mubr.f32.gmra.mrb[0].mxu0 %v3389
    %v4076 = vpop.f32.mrb[0].mxu0
    %v4077 = vadd.f32 %v3029, %v4076
    %v4078 = vpop.f32.mrb[0].mxu0
    %4079 = vmatprep.mubr.f32.mxu0 0.0
    %4080 = vmatmul.mubr.f32.gmra.mrb[0].mxu0 %v3392
    %v4081 = vpop.f32.mrb[0].mxu0
    %v4082 = vadd.f32 %v3029, %v4081
    %v4083 = vpop.f32.mrb[0].mxu0
    %4084 = vmatprep.mubr.f32.mxu0 0.0
    %4085 = vmatmul.mubr.f32.gmra.mrb[0].mxu0 %v3395
    %v4086 = vpop.f32.mrb[0].mxu0
    %v4087 = vadd.f32 %v3029, %v4086
    %v4088 = vpop.f32.mrb[0].mxu0
    %4089 = vmatprep.mubr.f32.mxu0 0.0
    %4090 = vmatmul.mubr.f32.gmra.mrb[0].mxu0 %v3398
    %v4091 = vpop.f32.mrb[0].mxu0
    %v4092 = vadd.f32 %v3029, %v4091
    %v4093 = vpop.f32.mrb[0].mxu0
    %4094 = vmatprep.mubr.f32.mxu0 0.0
    %4095 = vmatmul.mubr.f32.gmra.mrb[0].mxu0 %v3401
    %v4096 = vpop.f32.mrb[0].mxu0
    %v4097 = vadd.f32 %v3029, %v4096
    %v4098 = vpop.f32.mrb[0].mxu0
    %4099 = vmatprep.mubr.f32.mxu0 0.0
    %4100 = vmatmul.mubr.f32.gmra.mrb[0].mxu0 %v3404
    %v4101 = vpop.f32.mrb[0].mxu0
    %v4102 = vadd.f32 %v3029, %v4101
    %v4103 = vpop.f32.mrb[0].mxu0
    %4104 = vmatprep.mubr.f32.mxu0 0.0
    %4105 = vmatmul.mubr.f32.gmra.mrb[0].mxu0 %v3407
    %v4106 = vpop.f32.mrb[0].mxu0
    %v4107 = vadd.f32 %v3029, %v4106
    %v4108 = vpop.f32.mrb[0].mxu0
    %4109 = vmatprep.mubr.f32.mxu0 0.0
    %4110 = vmatmul.mubr.f32.gmra.mrb[0].mxu0 %v3410
    %v4111 = vpop.f32.mrb[0].mxu0
    %v4112 = vadd.f32 %v3029, %v4111
    %v4113 = vpop.f32.mrb[0].mxu0
    %4114 = vmatprep.mubr.f32.mxu0 0.0
    %4115 = vmatmul.mubr.f32.gmra.mrb[0].mxu0 %v3413
    %v4116 = vpop.f32.mrb[0].mxu0
    %v4117 = vadd.f32 %v3029, %v4116
    %v4118 = vpop.f32.mrb[0].mxu0
    %4119 = vdwg.mxu0
    %4121 = vset.pattern.permute.xlu0 0
    %4122 = vperm.xlu0 %4121, %v429
    %v4123 = vpop.permute.xlu0 %4122
    %4126 = vset.pattern.permute.xlu0 0
    %4127 = vperm.xlu0 %4126, %v430
    %v4128 = vpop.permute.xlu0 %4127
    %4131 = vset.pattern.permute.xlu0 0
    %4132 = vperm.xlu0 %4131, %v431
    %v4133 = vpop.permute.xlu0 %4132
    %4136 = vset.pattern.permute.xlu0 0
    %4137 = vperm.xlu0 %4136, %v432
    %v4138 = vpop.permute.xlu0 %4137
    %4141 = vset.pattern.permute.xlu0 0
    %4142 = vperm.xlu0 %4141, %v433
    %v4143 = vpop.permute.xlu0 %4142
    %4146 = vset.pattern.permute.xlu0 0
    %4147 = vperm.xlu0 %4146, %v434
    %v4148 = vpop.permute.xlu0 %4147
    %4151 = vset.pattern.permute.xlu0 0
    %4152 = vperm.xlu0 %4151, %v435
    %v4153 = vpop.permute.xlu0 %4152
    %4156 = vset.pattern.permute.xlu0 0
    %4157 = vperm.xlu0 %4156, %v436
    %v4158 = vpop.permute.xlu0 %4157
    %4161 = vset.pattern.permute.xlu0 0
    %4162 = vperm.xlu0 %4161, %v437
    %v4163 = vpop.permute.xlu0 %4162
    %4166 = vset.pattern.permute.xlu0 0
    %4167 = vperm.xlu0 %4166, %v438
    %v4168 = vpop.permute.xlu0 %4167
    %4171 = vset.pattern.permute.xlu0 0
    %4172 = vperm.xlu0 %4171, %v439
    %v4173 = vpop.permute.xlu0 %4172
    %4176 = vset.pattern.permute.xlu0 0
    %4177 = vperm.xlu0 %4176, %v440
    %v4178 = vpop.permute.xlu0 %4177
    %4181 = vset.pattern.permute.xlu0 0
    %4182 = vperm.xlu0 %4181, %v441
    %v4183 = vpop.permute.xlu0 %4182
    %4186 = vset.pattern.permute.xlu0 0
    %4187 = vperm.xlu0 %4186, %v442
    %v4188 = vpop.permute.xlu0 %4187
    %4191 = vset.pattern.permute.xlu0 0
    %4192 = vperm.xlu0 %4191, %v443
    %v4193 = vpop.permute.xlu0 %4192
    %4196 = vset.pattern.permute.xlu0 0
    %4197 = vperm.xlu0 %4196, %v444
    %v4198 = vpop.permute.xlu0 %4197
    %4201 = vset.pattern.permute.xlu0 0
    %4202 = vperm.xlu0 %4201, %v445
    %v4203 = vpop.permute.xlu0 %4202
    %4206 = vset.pattern.permute.xlu0 0
    %4207 = vperm.xlu0 %4206, %v446
    %v4208 = vpop.permute.xlu0 %4207
    %4211 = vset.pattern.permute.xlu0 0
    %4212 = vperm.xlu0 %4211, %v447
    %v4213 = vpop.permute.xlu0 %4212
    %4216 = vset.pattern.permute.xlu0 0
    %4217 = vperm.xlu0 %4216, %v448
    %v4218 = vpop.permute.xlu0 %4217
    %4221 = vset.pattern.permute.xlu0 0
    %4222 = vperm.xlu0 %4221, %v449
    %v4223 = vpop.permute.xlu0 %4222
    %4226 = vset.pattern.permute.xlu0 0
    %4227 = vperm.xlu0 %4226, %v450
    %v4228 = vpop.permute.xlu0 %4227
    %4231 = vset.pattern.permute.xlu0 0
    %4232 = vperm.xlu0 %4231, %v451
    %v4233 = vpop.permute.xlu0 %4232
    %4236 = vset.pattern.permute.xlu0 0
    %4237 = vperm.xlu0 %4236, %v452
    %v4238 = vpop.permute.xlu0 %4237
    %4241 = vset.pattern.permute.xlu0 0
    %4242 = vperm.xlu0 %4241, %v453
    %v4243 = vpop.permute.xlu0 %4242
    %4246 = vset.pattern.permute.xlu0 0
    %4247 = vperm.xlu0 %4246, %v454
    %v4248 = vpop.permute.xlu0 %4247
    %4251 = vset.pattern.permute.xlu0 0
    %4252 = vperm.xlu0 %4251, %v455
    %v4253 = vpop.permute.xlu0 %4252
    %4256 = vset.pattern.permute.xlu0 0
    %4257 = vperm.xlu0 %4256, %v456
    %v4258 = vpop.permute.xlu0 %4257
    %4261 = vset.pattern.permute.xlu0 0
    %4262 = vperm.xlu0 %4261, %v457
    %v4263 = vpop.permute.xlu0 %4262
    %4266 = vset.pattern.permute.xlu0 0
    %4267 = vperm.xlu0 %4266, %v458
    %v4268 = vpop.permute.xlu0 %4267
    %4271 = vset.pattern.permute.xlu0 0
    %4272 = vperm.xlu0 %4271, %v459
    %v4273 = vpop.permute.xlu0 %4272
    %4276 = vset.pattern.permute.xlu0 0
    %4277 = vperm.xlu0 %4276, %v460
    %v4278 = vpop.permute.xlu0 %4277
    %4281 = vset.pattern.permute.xlu0 0
    %4282 = vperm.xlu0 %4281, %v461
    %v4283 = vpop.permute.xlu0 %4282
    %4286 = vset.pattern.permute.xlu0 0
    %4287 = vperm.xlu0 %4286, %v462
    %v4288 = vpop.permute.xlu0 %4287
    %4291 = vset.pattern.permute.xlu0 0
    %4292 = vperm.xlu0 %4291, %v463
    %v4293 = vpop.permute.xlu0 %4292
    %4296 = vset.pattern.permute.xlu0 0
    %4297 = vperm.xlu0 %4296, %v464
    %v4298 = vpop.permute.xlu0 %4297
    %4301 = vset.pattern.permute.xlu0 0
    %4302 = vperm.xlu0 %4301, %v465
    %v4303 = vpop.permute.xlu0 %4302
    %4306 = vset.pattern.permute.xlu0 0
    %4307 = vperm.xlu0 %4306, %v466
    %v4308 = vpop.permute.xlu0 %4307
    %4311 = vset.pattern.permute.xlu0 0
    %4312 = vperm.xlu0 %4311, %v467
    %v4313 = vpop.permute.xlu0 %4312
    %4316 = vset.pattern.permute.xlu0 0
    %4317 = vperm.xlu0 %4316, %v468
    %v4318 = vpop.permute.xlu0 %4317
    %4321 = vset.pattern.permute.xlu0 0
    %4322 = vperm.xlu0 %4321, %v469
    %v4323 = vpop.permute.xlu0 %4322
    %4326 = vset.pattern.permute.xlu0 0
    %4327 = vperm.xlu0 %4326, %v470
    %v4328 = vpop.permute.xlu0 %4327
    %4331 = vset.pattern.permute.xlu0 0
    %4332 = vperm.xlu0 %4331, %v471
    %v4333 = vpop.permute.xlu0 %4332
    %4336 = vset.pattern.permute.xlu0 0
    %4337 = vperm.xlu0 %4336, %v472
    %v4338 = vpop.permute.xlu0 %4337
    %4341 = vset.pattern.permute.xlu0 0
    %4342 = vperm.xlu0 %4341, %v473
    %v4343 = vpop.permute.xlu0 %4342
    %4346 = vset.pattern.permute.xlu0 0
    %4347 = vperm.xlu0 %4346, %v474
    %v4348 = vpop.permute.xlu0 %4347
    %4351 = vset.pattern.permute.xlu0 0
    %4352 = vperm.xlu0 %4351, %v475
    %v4353 = vpop.permute.xlu0 %4352
    %4356 = vset.pattern.permute.xlu0 0
    %4357 = vperm.xlu0 %4356, %v476
    %v4358 = vpop.permute.xlu0 %4357
    %4361 = vset.pattern.permute.xlu0 0
    %4362 = vperm.xlu0 %4361, %v477
    %v4363 = vpop.permute.xlu0 %4362
    %4366 = vset.pattern.permute.xlu0 0
    %4367 = vperm.xlu0 %4366, %v478
    %v4368 = vpop.permute.xlu0 %4367
    %4371 = vset.pattern.permute.xlu0 0
    %4372 = vperm.xlu0 %4371, %v479
    %v4373 = vpop.permute.xlu0 %4372
    %4376 = vset.pattern.permute.xlu0 0
    %4377 = vperm.xlu0 %4376, %v480
    %v4378 = vpop.permute.xlu0 %4377
    %4381 = vset.pattern.permute.xlu0 0
    %4382 = vperm.xlu0 %4381, %v481
    %v4383 = vpop.permute.xlu0 %4382
    %4386 = vset.pattern.permute.xlu0 0
    %4387 = vperm.xlu0 %4386, %v482
    %v4388 = vpop.permute.xlu0 %4387
    %4391 = vset.pattern.permute.xlu0 0
    %4392 = vperm.xlu0 %4391, %v483
    %v4393 = vpop.permute.xlu0 %4392
    %4396 = vset.pattern.permute.xlu0 0
    %4397 = vperm.xlu0 %4396, %v484
    %v4398 = vpop.permute.xlu0 %4397
    %4401 = vset.pattern.permute.xlu0 0
    %4402 = vperm.xlu0 %4401, %v485
    %v4403 = vpop.permute.xlu0 %4402
    %4406 = vset.pattern.permute.xlu0 0
    %4407 = vperm.xlu0 %4406, %v486
    %v4408 = vpop.permute.xlu0 %4407
    %4411 = vset.pattern.permute.xlu0 0
    %4412 = vperm.xlu0 %4411, %v487
    %v4413 = vpop.permute.xlu0 %4412
    %4416 = vset.pattern.permute.xlu0 0
    %4417 = vperm.xlu0 %4416, %v488
    %v4418 = vpop.permute.xlu0 %4417
    %4421 = vset.pattern.permute.xlu0 0
    %4422 = vperm.xlu0 %4421, %v489
    %v4423 = vpop.permute.xlu0 %4422
    %4426 = vset.pattern.permute.xlu0 0
    %4427 = vperm.xlu0 %4426, %v490
    %v4428 = vpop.permute.xlu0 %4427
    %4431 = vset.pattern.permute.xlu0 0
    %4432 = vperm.xlu0 %4431, %v491
    %v4433 = vpop.permute.xlu0 %4432
    %4436 = vset.pattern.permute.xlu0 0
    %4437 = vperm.xlu0 %4436, %v492
    %v4438 = vpop.permute.xlu0 %4437
    %4441 = vset.pattern.permute.xlu0 0
    %4442 = vperm.xlu0 %4441, %v493
    %v4443 = vpop.permute.xlu0 %4442
    %4446 = vset.pattern.permute.xlu0 0
    %4447 = vperm.xlu0 %4446, %v494
    %v4448 = vpop.permute.xlu0 %4447
    %4451 = vset.pattern.permute.xlu0 0
    %4452 = vperm.xlu0 %4451, %v495
    %v4453 = vpop.permute.xlu0 %4452
    %4456 = vset.pattern.permute.xlu0 0
    %4457 = vperm.xlu0 %4456, %v496
    %v4458 = vpop.permute.xlu0 %4457
    %4461 = vset.pattern.permute.xlu0 0
    %4462 = vperm.xlu0 %4461, %v497
    %v4463 = vpop.permute.xlu0 %4462
    %4466 = vset.pattern.permute.xlu0 0
    %4467 = vperm.xlu0 %4466, %v498
    %v4468 = vpop.permute.xlu0 %4467
    %4471 = vset.pattern.permute.xlu0 0
    %4472 = vperm.xlu0 %4471, %v499
    %v4473 = vpop.permute.xlu0 %4472
    %4476 = vset.pattern.permute.xlu0 0
    %4477 = vperm.xlu0 %4476, %v500
    %v4478 = vpop.permute.xlu0 %4477
    %4481 = vset.pattern.permute.xlu0 0
    %4482 = vperm.xlu0 %4481, %v501
    %v4483 = vpop.permute.xlu0 %4482
    %4486 = vset.pattern.permute.xlu0 0
    %4487 = vperm.xlu0 %4486, %v502
    %v4488 = vpop.permute.xlu0 %4487
    %4491 = vset.pattern.permute.xlu0 0
    %4492 = vperm.xlu0 %4491, %v503
    %v4493 = vpop.permute.xlu0 %4492
    %4496 = vset.pattern.permute.xlu0 0
    %4497 = vperm.xlu0 %4496, %v504
    %v4498 = vpop.permute.xlu0 %4497
    %4501 = vset.pattern.permute.xlu0 0
    %4502 = vperm.xlu0 %4501, %v505
    %v4503 = vpop.permute.xlu0 %4502
    %4506 = vset.pattern.permute.xlu0 0
    %4507 = vperm.xlu0 %4506, %v506
    %v4508 = vpop.permute.xlu0 %4507
    %4511 = vset.pattern.permute.xlu0 0
    %4512 = vperm.xlu0 %4511, %v507
    %v4513 = vpop.permute.xlu0 %4512
    %4516 = vset.pattern.permute.xlu0 0
    %4517 = vperm.xlu0 %4516, %v508
    %v4518 = vpop.permute.xlu0 %4517
    %4521 = vset.pattern.permute.xlu0 0
    %4522 = vperm.xlu0 %4521, %v509
    %v4523 = vpop.permute.xlu0 %4522
    %4526 = vset.pattern.permute.xlu0 0
    %4527 = vperm.xlu0 %4526, %v510
    %v4528 = vpop.permute.xlu0 %4527
    %4531 = vset.pattern.permute.xlu0 0
    %4532 = vperm.xlu0 %4531, %v511
    %v4533 = vpop.permute.xlu0 %4532
    %4536 = vset.pattern.permute.xlu0 0
    %4537 = vperm.xlu0 %4536, %v512
    %v4538 = vpop.permute.xlu0 %4537
    %4541 = vset.pattern.permute.xlu0 0
    %4542 = vperm.xlu0 %4541, %v513
    %v4543 = vpop.permute.xlu0 %4542
    %4546 = vset.pattern.permute.xlu0 0
    %4547 = vperm.xlu0 %4546, %v514
    %v4548 = vpop.permute.xlu0 %4547
    %4551 = vset.pattern.permute.xlu0 0
    %4552 = vperm.xlu0 %4551, %v515
    %v4553 = vpop.permute.xlu0 %4552
    %4556 = vset.pattern.permute.xlu0 0
    %4557 = vperm.xlu0 %4556, %v516
    %v4558 = vpop.permute.xlu0 %4557
    %4561 = vset.pattern.permute.xlu0 0
    %4562 = vperm.xlu0 %4561, %v517
    %v4563 = vpop.permute.xlu0 %4562
    %4566 = vset.pattern.permute.xlu0 0
    %4567 = vperm.xlu0 %4566, %v518
    %v4568 = vpop.permute.xlu0 %4567
    %4571 = vset.pattern.permute.xlu0 0
    %4572 = vperm.xlu0 %4571, %v519
    %v4573 = vpop.permute.xlu0 %4572
    %4576 = vset.pattern.permute.xlu0 0
    %4577 = vperm.xlu0 %4576, %v520
    %v4578 = vpop.permute.xlu0 %4577
    %4581 = vset.pattern.permute.xlu0 0
    %4582 = vperm.xlu0 %4581, %v521
    %v4583 = vpop.permute.xlu0 %4582
    %4586 = vset.pattern.permute.xlu0 0
    %4587 = vperm.xlu0 %4586, %v522
    %v4588 = vpop.permute.xlu0 %4587
    %4591 = vset.pattern.permute.xlu0 0
    %4592 = vperm.xlu0 %4591, %v523
    %v4593 = vpop.permute.xlu0 %4592
    %4596 = vset.pattern.permute.xlu0 0
    %4597 = vperm.xlu0 %4596, %v524
    %v4598 = vpop.permute.xlu0 %4597
    %4601 = vset.pattern.permute.xlu0 0
    %4602 = vperm.xlu0 %4601, %v525
    %v4603 = vpop.permute.xlu0 %4602
    %4606 = vset.pattern.permute.xlu0 0
    %4607 = vperm.xlu0 %4606, %v526
    %v4608 = vpop.permute.xlu0 %4607
    %4611 = vset.pattern.permute.xlu0 0
    %4612 = vperm.xlu0 %4611, %v527
    %v4613 = vpop.permute.xlu0 %4612
    %4616 = vset.pattern.permute.xlu0 0
    %4617 = vperm.xlu0 %4616, %v528
    %v4618 = vpop.permute.xlu0 %4617
    %4621 = vset.pattern.permute.xlu0 0
    %4622 = vperm.xlu0 %4621, %v529
    %v4623 = vpop.permute.xlu0 %4622
    %4626 = vset.pattern.permute.xlu0 0
    %4627 = vperm.xlu0 %4626, %v530
    %v4628 = vpop.permute.xlu0 %4627
    %4631 = vset.pattern.permute.xlu0 0
    %4632 = vperm.xlu0 %4631, %v531
    %v4633 = vpop.permute.xlu0 %4632
    %4636 = vset.pattern.permute.xlu0 0
    %4637 = vperm.xlu0 %4636, %v532
    %v4638 = vpop.permute.xlu0 %4637
    %4641 = vset.pattern.permute.xlu0 0
    %4642 = vperm.xlu0 %4641, %v533
    %v4643 = vpop.permute.xlu0 %4642
    %4646 = vset.pattern.permute.xlu0 0
    %4647 = vperm.xlu0 %4646, %v534
    %v4648 = vpop.permute.xlu0 %4647
    %4651 = vset.pattern.permute.xlu0 0
    %4652 = vperm.xlu0 %4651, %v535
    %v4653 = vpop.permute.xlu0 %4652
    %4656 = vset.pattern.permute.xlu0 0
    %4657 = vperm.xlu0 %4656, %v536
    %v4658 = vpop.permute.xlu0 %4657
    %4661 = vset.pattern.permute.xlu0 0
    %4662 = vperm.xlu0 %4661, %v537
    %v4663 = vpop.permute.xlu0 %4662
    %4666 = vset.pattern.permute.xlu0 0
    %4667 = vperm.xlu0 %4666, %v538
    %v4668 = vpop.permute.xlu0 %4667
    %4671 = vset.pattern.permute.xlu0 0
    %4672 = vperm.xlu0 %4671, %v539
    %v4673 = vpop.permute.xlu0 %4672
    %4676 = vset.pattern.permute.xlu0 0
    %4677 = vperm.xlu0 %4676, %v540
    %v4678 = vpop.permute.xlu0 %4677
    %4681 = vset.pattern.permute.xlu0 0
    %4682 = vperm.xlu0 %4681, %v541
    %v4683 = vpop.permute.xlu0 %4682
    %4686 = vset.pattern.permute.xlu0 0
    %4687 = vperm.xlu0 %4686, %v542
    %v4688 = vpop.permute.xlu0 %4687
    %4691 = vset.pattern.permute.xlu0 0
    %4692 = vperm.xlu0 %4691, %v543
    %v4693 = vpop.permute.xlu0 %4692
    %4696 = vset.pattern.permute.xlu0 0
    %4697 = vperm.xlu0 %4696, %v544
    %v4698 = vpop.permute.xlu0 %4697
    %4701 = vset.pattern.permute.xlu0 0
    %4702 = vperm.xlu0 %4701, %v545
    %v4703 = vpop.permute.xlu0 %4702
    %4706 = vset.pattern.permute.xlu0 0
    %4707 = vperm.xlu0 %4706, %v546
    %v4708 = vpop.permute.xlu0 %4707
    %4711 = vset.pattern.permute.xlu0 0
    %4712 = vperm.xlu0 %4711, %v547
    %v4713 = vpop.permute.xlu0 %4712
    %4716 = vset.pattern.permute.xlu0 0
    %4717 = vperm.xlu0 %4716, %v548
    %v4718 = vpop.permute.xlu0 %4717
    %4721 = vset.pattern.permute.xlu0 0
    %4722 = vperm.xlu0 %4721, %v549
    %v4723 = vpop.permute.xlu0 %4722
    %4726 = vset.pattern.permute.xlu0 0
    %4727 = vperm.xlu0 %4726, %v550
    %v4728 = vpop.permute.xlu0 %4727
    %4731 = vset.pattern.permute.xlu0 0
    %4732 = vperm.xlu0 %4731, %v551
    %v4733 = vpop.permute.xlu0 %4732
    %4736 = vset.pattern.permute.xlu0 0
    %4737 = vperm.xlu0 %4736, %v552
    %v4738 = vpop.permute.xlu0 %4737
    %4741 = vset.pattern.permute.xlu0 0
    %4742 = vperm.xlu0 %4741, %v553
    %v4743 = vpop.permute.xlu0 %4742
    %4746 = vset.pattern.permute.xlu0 0
    %4747 = vperm.xlu0 %4746, %v554
    %v4748 = vpop.permute.xlu0 %4747
    %4751 = vset.pattern.permute.xlu0 0
    %4752 = vperm.xlu0 %4751, %v555
    %v4753 = vpop.permute.xlu0 %4752
    %4756 = vset.pattern.permute.xlu0 0
    %4757 = vperm.xlu0 %4756, %v556
    %v4758 = vpop.permute.xlu0 %4757
    %v4760 = vmul.f32 %v3482, %v4123
    %v4761 = vmul.f32 %v3487, %v4128
    %v4762 = vmul.f32 %v3492, %v4133
    %v4763 = vmul.f32 %v3497, %v4138
    %v4764 = vmul.f32 %v3502, %v4143
    %v4765 = vmul.f32 %v3507, %v4148
    %v4766 = vmul.f32 %v3512, %v4153
    %v4767 = vmul.f32 %v3517, %v4158
    %v4768 = vmul.f32 %v3522, %v4163
    %v4769 = vmul.f32 %v3527, %v4168
    %v4770 = vmul.f32 %v3532, %v4173
    %v4771 = vmul.f32 %v3537, %v4178
    %v4772 = vmul.f32 %v3542, %v4183
    %v4773 = vmul.f32 %v3547, %v4188
    %v4774 = vmul.f32 %v3552, %v4193
    %v4775 = vmul.f32 %v3557, %v4198
    %v4776 = vmul.f32 %v3562, %v4203
    %v4777 = vmul.f32 %v3567, %v4208
    %v4778 = vmul.f32 %v3572, %v4213
    %v4779 = vmul.f32 %v3577, %v4218
    %v4780 = vmul.f32 %v3582, %v4223
    %v4781 = vmul.f32 %v3587, %v4228
    %v4782 = vmul.f32 %v3592, %v4233
    %v4783 = vmul.f32 %v3597, %v4238
    %v4784 = vmul.f32 %v3602, %v4243
    %v4785 = vmul.f32 %v3607, %v4248
    %v4786 = vmul.f32 %v3612, %v4253
    %v4787 = vmul.f32 %v3617, %v4258
    %v4788 = vmul.f32 %v3622, %v4263
    %v4789 = vmul.f32 %v3627, %v4268
    %v4790 = vmul.f32 %v3632, %v4273
    %v4791 = vmul.f32 %v3637, %v4278
    %v4792 = vmul.f32 %v3642, %v4283
    %v4793 = vmul.f32 %v3647, %v4288
    %v4794 = vmul.f32 %v3652, %v4293
    %v4795 = vmul.f32 %v3657, %v4298
    %v4796 = vmul.f32 %v3662, %v4303
    %v4797 = vmul.f32 %v3667, %v4308
    %v4798 = vmul.f32 %v3672, %v4313
    %v4799 = vmul.f32 %v3677, %v4318
    %v4800 = vmul.f32 %v3682, %v4323
    %v4801 = vmul.f32 %v3687, %v4328
    %v4802 = vmul.f32 %v3692, %v4333
    %v4803 = vmul.f32 %v3697, %v4338
    %v4804 = vmul.f32 %v3702, %v4343
    %v4805 = vmul.f32 %v3707, %v4348
    %v4806 = vmul.f32 %v3712, %v4353
    %v4807 = vmul.f32 %v3717, %v4358
    %v4808 = vmul.f32 %v3722, %v4363
    %v4809 = vmul.f32 %v3727, %v4368
    %v4810 = vmul.f32 %v3732, %v4373
    %v4811 = vmul.f32 %v3737, %v4378
    %v4812 = vmul.f32 %v3742, %v4383
    %v4813 = vmul.f32 %v3747, %v4388
    %v4814 = vmul.f32 %v3752, %v4393
    %v4815 = vmul.f32 %v3757, %v4398
    %v4816 = vmul.f32 %v3762, %v4403
    %v4817 = vmul.f32 %v3767, %v4408
    %v4818 = vmul.f32 %v3772, %v4413
    %v4819 = vmul.f32 %v3777, %v4418
    %v4820 = vmul.f32 %v3782, %v4423
    %v4821 = vmul.f32 %v3787, %v4428
    %v4822 = vmul.f32 %v3792, %v4433
    %v4823 = vmul.f32 %v3797, %v4438
    %v4824 = vmul.f32 %v3802, %v4443
    %v4825 = vmul.f32 %v3807, %v4448
    %v4826 = vmul.f32 %v3812, %v4453
    %v4827 = vmul.f32 %v3817, %v4458
    %v4828 = vmul.f32 %v3822, %v4463
    %v4829 = vmul.f32 %v3827, %v4468
    %v4830 = vmul.f32 %v3832, %v4473
    %v4831 = vmul.f32 %v3837, %v4478
    %v4832 = vmul.f32 %v3842, %v4483
    %v4833 = vmul.f32 %v3847, %v4488
    %v4834 = vmul.f32 %v3852, %v4493
    %v4835 = vmul.f32 %v3857, %v4498
    %v4836 = vmul.f32 %v3862, %v4503
    %v4837 = vmul.f32 %v3867, %v4508
    %v4838 = vmul.f32 %v3872, %v4513
    %v4839 = vmul.f32 %v3877, %v4518
    %v4840 = vmul.f32 %v3882, %v4523
    %v4841 = vmul.f32 %v3887, %v4528
    %v4842 = vmul.f32 %v3892, %v4533
    %v4843 = vmul.f32 %v3897, %v4538
    %v4844 = vmul.f32 %v3902, %v4543
    %v4845 = vmul.f32 %v3907, %v4548
    %v4846 = vmul.f32 %v3912, %v4553
    %v4847 = vmul.f32 %v3917, %v4558
    %v4848 = vmul.f32 %v3922, %v4563
    %v4849 = vmul.f32 %v3927, %v4568
    %v4850 = vmul.f32 %v3932, %v4573
    %v4851 = vmul.f32 %v3937, %v4578
    %v4852 = vmul.f32 %v3942, %v4583
    %v4853 = vmul.f32 %v3947, %v4588
    %v4854 = vmul.f32 %v3952, %v4593
    %v4855 = vmul.f32 %v3957, %v4598
    %v4856 = vmul.f32 %v3962, %v4603
    %v4857 = vmul.f32 %v3967, %v4608
    %v4858 = vmul.f32 %v3972, %v4613
    %v4859 = vmul.f32 %v3977, %v4618
    %v4860 = vmul.f32 %v3982, %v4623
    %v4861 = vmul.f32 %v3987, %v4628
    %v4862 = vmul.f32 %v3992, %v4633
    %v4863 = vmul.f32 %v3997, %v4638
    %v4864 = vmul.f32 %v4002, %v4643
    %v4865 = vmul.f32 %v4007, %v4648
    %v4866 = vmul.f32 %v4012, %v4653
    %v4867 = vmul.f32 %v4017, %v4658
    %v4868 = vmul.f32 %v4022, %v4663
    %v4869 = vmul.f32 %v4027, %v4668
    %v4870 = vmul.f32 %v4032, %v4673
    %v4871 = vmul.f32 %v4037, %v4678
    %v4872 = vmul.f32 %v4042, %v4683
    %v4873 = vmul.f32 %v4047, %v4688
    %v4874 = vmul.f32 %v4052, %v4693
    %v4875 = vmul.f32 %v4057, %v4698
    %v4876 = vmul.f32 %v4062, %v4703
    %v4877 = vmul.f32 %v4067, %v4708
    %v4878 = vmul.f32 %v4072, %v4713
    %v4879 = vmul.f32 %v4077, %v4718
    %v4880 = vmul.f32 %v4082, %v4723
    %v4881 = vmul.f32 %v4087, %v4728
    %v4882 = vmul.f32 %v4092, %v4733
    %v4883 = vmul.f32 %v4097, %v4738
    %v4884 = vmul.f32 %v4102, %v4743
    %v4885 = vmul.f32 %v4107, %v4748
    %v4886 = vmul.f32 %v4112, %v4753
    %v4887 = vmul.f32 %v4117, %v4758
    %v4888 = vsel %vm1800, %v4760, 0.0
    %v4889 = vrot.slane %v4888, 4
    %v4890 = vadd.f32 %v4888, %v4889
    %v4891 = vrot.slane %v4890, 2
    %v4892 = vadd.f32 %v4890, %v4891
    %v4893 = vrot.slane %v4892, 1
    %v4894 = vadd.f32 %v4892, %v4893
    %v4895 = vsel %vm1800, %v4761, 0.0
    %v4896 = vrot.slane %v4895, 4
    %v4897 = vadd.f32 %v4895, %v4896
    %v4898 = vrot.slane %v4897, 2
    %v4899 = vadd.f32 %v4897, %v4898
    %v4900 = vrot.slane %v4899, 1
    %v4901 = vadd.f32 %v4899, %v4900
    %v4902 = vsel %vm1800, %v4762, 0.0
    %v4903 = vrot.slane %v4902, 4
    %v4904 = vadd.f32 %v4902, %v4903
    %v4905 = vrot.slane %v4904, 2
    %v4906 = vadd.f32 %v4904, %v4905
    %v4907 = vrot.slane %v4906, 1
    %v4908 = vadd.f32 %v4906, %v4907
    %v4909 = vsel %vm1800, %v4763, 0.0
    %v4910 = vrot.slane %v4909, 4
    %v4911 = vadd.f32 %v4909, %v4910
    %v4912 = vrot.slane %v4911, 2
    %v4913 = vadd.f32 %v4911, %v4912
    %v4914 = vrot.slane %v4913, 1
    %v4915 = vadd.f32 %v4913, %v4914
    %v4916 = vsel %vm1800, %v4764, 0.0
    %v4917 = vrot.slane %v4916, 4
    %v4918 = vadd.f32 %v4916, %v4917
    %v4919 = vrot.slane %v4918, 2
    %v4920 = vadd.f32 %v4918, %v4919
    %v4921 = vrot.slane %v4920, 1
    %v4922 = vadd.f32 %v4920, %v4921
    %v4923 = vsel %vm1800, %v4765, 0.0
    %v4924 = vrot.slane %v4923, 4
    %v4925 = vadd.f32 %v4923, %v4924
    %v4926 = vrot.slane %v4925, 2
    %v4927 = vadd.f32 %v4925, %v4926
    %v4928 = vrot.slane %v4927, 1
    %v4929 = vadd.f32 %v4927, %v4928
    %v4930 = vsel %vm1800, %v4766, 0.0
    %v4931 = vrot.slane %v4930, 4
    %v4932 = vadd.f32 %v4930, %v4931
    %v4933 = vrot.slane %v4932, 2
    %v4934 = vadd.f32 %v4932, %v4933
    %v4935 = vrot.slane %v4934, 1
    %v4936 = vadd.f32 %v4934, %v4935
    %v4937 = vsel %vm1800, %v4767, 0.0
    %v4938 = vrot.slane %v4937, 4
    %v4939 = vadd.f32 %v4937, %v4938
    %v4940 = vrot.slane %v4939, 2
    %v4941 = vadd.f32 %v4939, %v4940
    %v4942 = vrot.slane %v4941, 1
    %v4943 = vadd.f32 %v4941, %v4942
    %v4944 = vsel %vm1800, %v4768, 0.0
    %v4945 = vrot.slane %v4944, 4
    %v4946 = vadd.f32 %v4944, %v4945
    %v4947 = vrot.slane %v4946, 2
    %v4948 = vadd.f32 %v4946, %v4947
    %v4949 = vrot.slane %v4948, 1
    %v4950 = vadd.f32 %v4948, %v4949
    %v4951 = vsel %vm1800, %v4769, 0.0
    %v4952 = vrot.slane %v4951, 4
    %v4953 = vadd.f32 %v4951, %v4952
    %v4954 = vrot.slane %v4953, 2
    %v4955 = vadd.f32 %v4953, %v4954
    %v4956 = vrot.slane %v4955, 1
    %v4957 = vadd.f32 %v4955, %v4956
    %v4958 = vsel %vm1800, %v4770, 0.0
    %v4959 = vrot.slane %v4958, 4
    %v4960 = vadd.f32 %v4958, %v4959
    %v4961 = vrot.slane %v4960, 2
    %v4962 = vadd.f32 %v4960, %v4961
    %v4963 = vrot.slane %v4962, 1
    %v4964 = vadd.f32 %v4962, %v4963
    %v4965 = vsel %vm1800, %v4771, 0.0
    %v4966 = vrot.slane %v4965, 4
    %v4967 = vadd.f32 %v4965, %v4966
    %v4968 = vrot.slane %v4967, 2
    %v4969 = vadd.f32 %v4967, %v4968
    %v4970 = vrot.slane %v4969, 1
    %v4971 = vadd.f32 %v4969, %v4970
    %v4972 = vsel %vm1800, %v4772, 0.0
    %v4973 = vrot.slane %v4972, 4
    %v4974 = vadd.f32 %v4972, %v4973
    %v4975 = vrot.slane %v4974, 2
    %v4976 = vadd.f32 %v4974, %v4975
    %v4977 = vrot.slane %v4976, 1
    %v4978 = vadd.f32 %v4976, %v4977
    %v4979 = vsel %vm1800, %v4773, 0.0
    %v4980 = vrot.slane %v4979, 4
    %v4981 = vadd.f32 %v4979, %v4980
    %v4982 = vrot.slane %v4981, 2
    %v4983 = vadd.f32 %v4981, %v4982
    %v4984 = vrot.slane %v4983, 1
    %v4985 = vadd.f32 %v4983, %v4984
    %v4986 = vsel %vm1800, %v4774, 0.0
    %v4987 = vrot.slane %v4986, 4
    %v4988 = vadd.f32 %v4986, %v4987
    %v4989 = vrot.slane %v4988, 2
    %v4990 = vadd.f32 %v4988, %v4989
    %v4991 = vrot.slane %v4990, 1
    %v4992 = vadd.f32 %v4990, %v4991
    %v4993 = vsel %vm1800, %v4775, 0.0
    %v4994 = vrot.slane %v4993, 4
    %v4995 = vadd.f32 %v4993, %v4994
    %v4996 = vrot.slane %v4995, 2
    %v4997 = vadd.f32 %v4995, %v4996
    %v4998 = vrot.slane %v4997, 1
    %v4999 = vadd.f32 %v4997, %v4998
    %v5000 = vsel %vm1800, %v4776, 0.0
    %v5001 = vrot.slane %v5000, 4
    %v5002 = vadd.f32 %v5000, %v5001
    %v5003 = vrot.slane %v5002, 2
    %v5004 = vadd.f32 %v5002, %v5003
    %v5005 = vrot.slane %v5004, 1
    %v5006 = vadd.f32 %v5004, %v5005
    %v5007 = vsel %vm1800, %v4777, 0.0
    %v5008 = vrot.slane %v5007, 4
    %v5009 = vadd.f32 %v5007, %v5008
    %v5010 = vrot.slane %v5009, 2
    %v5011 = vadd.f32 %v5009, %v5010
    %v5012 = vrot.slane %v5011, 1
    %v5013 = vadd.f32 %v5011, %v5012
    %v5014 = vsel %vm1800, %v4778, 0.0
    %v5015 = vrot.slane %v5014, 4
    %v5016 = vadd.f32 %v5014, %v5015
    %v5017 = vrot.slane %v5016, 2
    %v5018 = vadd.f32 %v5016, %v5017
    %v5019 = vrot.slane %v5018, 1
    %v5020 = vadd.f32 %v5018, %v5019
    %v5021 = vsel %vm1800, %v4779, 0.0
    %v5022 = vrot.slane %v5021, 4
    %v5023 = vadd.f32 %v5021, %v5022
    %v5024 = vrot.slane %v5023, 2
    %v5025 = vadd.f32 %v5023, %v5024
    %v5026 = vrot.slane %v5025, 1
    %v5027 = vadd.f32 %v5025, %v5026
    %v5028 = vsel %vm1800, %v4780, 0.0
    %v5029 = vrot.slane %v5028, 4
    %v5030 = vadd.f32 %v5028, %v5029
    %v5031 = vrot.slane %v5030, 2
    %v5032 = vadd.f32 %v5030, %v5031
    %v5033 = vrot.slane %v5032, 1
    %v5034 = vadd.f32 %v5032, %v5033
    %v5035 = vsel %vm1800, %v4781, 0.0
    %v5036 = vrot.slane %v5035, 4
    %v5037 = vadd.f32 %v5035, %v5036
    %v5038 = vrot.slane %v5037, 2
    %v5039 = vadd.f32 %v5037, %v5038
    %v5040 = vrot.slane %v5039, 1
    %v5041 = vadd.f32 %v5039, %v5040
    %v5042 = vsel %vm1800, %v4782, 0.0
    %v5043 = vrot.slane %v5042, 4
    %v5044 = vadd.f32 %v5042, %v5043
    %v5045 = vrot.slane %v5044, 2
    %v5046 = vadd.f32 %v5044, %v5045
    %v5047 = vrot.slane %v5046, 1
    %v5048 = vadd.f32 %v5046, %v5047
    %v5049 = vsel %vm1800, %v4783, 0.0
    %v5050 = vrot.slane %v5049, 4
    %v5051 = vadd.f32 %v5049, %v5050
    %v5052 = vrot.slane %v5051, 2
    %v5053 = vadd.f32 %v5051, %v5052
    %v5054 = vrot.slane %v5053, 1
    %v5055 = vadd.f32 %v5053, %v5054
    %v5056 = vsel %vm1800, %v4784, 0.0
    %v5057 = vrot.slane %v5056, 4
    %v5058 = vadd.f32 %v5056, %v5057
    %v5059 = vrot.slane %v5058, 2
    %v5060 = vadd.f32 %v5058, %v5059
    %v5061 = vrot.slane %v5060, 1
    %v5062 = vadd.f32 %v5060, %v5061
    %v5063 = vsel %vm1800, %v4785, 0.0
    %v5064 = vrot.slane %v5063, 4
    %v5065 = vadd.f32 %v5063, %v5064
    %v5066 = vrot.slane %v5065, 2
    %v5067 = vadd.f32 %v5065, %v5066
    %v5068 = vrot.slane %v5067, 1
    %v5069 = vadd.f32 %v5067, %v5068
    %v5070 = vsel %vm1800, %v4786, 0.0
    %v5071 = vrot.slane %v5070, 4
    %v5072 = vadd.f32 %v5070, %v5071
    %v5073 = vrot.slane %v5072, 2
    %v5074 = vadd.f32 %v5072, %v5073
    %v5075 = vrot.slane %v5074, 1
    %v5076 = vadd.f32 %v5074, %v5075
    %v5077 = vsel %vm1800, %v4787, 0.0
    %v5078 = vrot.slane %v5077, 4
    %v5079 = vadd.f32 %v5077, %v5078
    %v5080 = vrot.slane %v5079, 2
    %v5081 = vadd.f32 %v5079, %v5080
    %v5082 = vrot.slane %v5081, 1
    %v5083 = vadd.f32 %v5081, %v5082
    %v5084 = vsel %vm1800, %v4788, 0.0
    %v5085 = vrot.slane %v5084, 4
    %v5086 = vadd.f32 %v5084, %v5085
    %v5087 = vrot.slane %v5086, 2
    %v5088 = vadd.f32 %v5086, %v5087
    %v5089 = vrot.slane %v5088, 1
    %v5090 = vadd.f32 %v5088, %v5089
    %v5091 = vsel %vm1800, %v4789, 0.0
    %v5092 = vrot.slane %v5091, 4
    %v5093 = vadd.f32 %v5091, %v5092
    %v5094 = vrot.slane %v5093, 2
    %v5095 = vadd.f32 %v5093, %v5094
    %v5096 = vrot.slane %v5095, 1
    %v5097 = vadd.f32 %v5095, %v5096
    %v5098 = vsel %vm1800, %v4790, 0.0
    %v5099 = vrot.slane %v5098, 4
    %v5100 = vadd.f32 %v5098, %v5099
    %v5101 = vrot.slane %v5100, 2
    %v5102 = vadd.f32 %v5100, %v5101
    %v5103 = vrot.slane %v5102, 1
    %v5104 = vadd.f32 %v5102, %v5103
    %v5105 = vsel %vm1800, %v4791, 0.0
    %v5106 = vrot.slane %v5105, 4
    %v5107 = vadd.f32 %v5105, %v5106
    %v5108 = vrot.slane %v5107, 2
    %v5109 = vadd.f32 %v5107, %v5108
    %v5110 = vrot.slane %v5109, 1
    %v5111 = vadd.f32 %v5109, %v5110
    %v5112 = vsel %vm1800, %v4792, 0.0
    %v5113 = vrot.slane %v5112, 4
    %v5114 = vadd.f32 %v5112, %v5113
    %v5115 = vrot.slane %v5114, 2
    %v5116 = vadd.f32 %v5114, %v5115
    %v5117 = vrot.slane %v5116, 1
    %v5118 = vadd.f32 %v5116, %v5117
    %v5119 = vsel %vm1800, %v4793, 0.0
    %v5120 = vrot.slane %v5119, 4
    %v5121 = vadd.f32 %v5119, %v5120
    %v5122 = vrot.slane %v5121, 2
    %v5123 = vadd.f32 %v5121, %v5122
    %v5124 = vrot.slane %v5123, 1
    %v5125 = vadd.f32 %v5123, %v5124
    %v5126 = vsel %vm1800, %v4794, 0.0
    %v5127 = vrot.slane %v5126, 4
    %v5128 = vadd.f32 %v5126, %v5127
    %v5129 = vrot.slane %v5128, 2
    %v5130 = vadd.f32 %v5128, %v5129
    %v5131 = vrot.slane %v5130, 1
    %v5132 = vadd.f32 %v5130, %v5131
    %v5133 = vsel %vm1800, %v4795, 0.0
    %v5134 = vrot.slane %v5133, 4
    %v5135 = vadd.f32 %v5133, %v5134
    %v5136 = vrot.slane %v5135, 2
    %v5137 = vadd.f32 %v5135, %v5136
    %v5138 = vrot.slane %v5137, 1
    %v5139 = vadd.f32 %v5137, %v5138
    %v5140 = vsel %vm1800, %v4796, 0.0
    %v5141 = vrot.slane %v5140, 4
    %v5142 = vadd.f32 %v5140, %v5141
    %v5143 = vrot.slane %v5142, 2
    %v5144 = vadd.f32 %v5142, %v5143
    %v5145 = vrot.slane %v5144, 1
    %v5146 = vadd.f32 %v5144, %v5145
    %v5147 = vsel %vm1800, %v4797, 0.0
    %v5148 = vrot.slane %v5147, 4
    %v5149 = vadd.f32 %v5147, %v5148
    %v5150 = vrot.slane %v5149, 2
    %v5151 = vadd.f32 %v5149, %v5150
    %v5152 = vrot.slane %v5151, 1
    %v5153 = vadd.f32 %v5151, %v5152
    %v5154 = vsel %vm1800, %v4798, 0.0
    %v5155 = vrot.slane %v5154, 4
    %v5156 = vadd.f32 %v5154, %v5155
    %v5157 = vrot.slane %v5156, 2
    %v5158 = vadd.f32 %v5156, %v5157
    %v5159 = vrot.slane %v5158, 1
    %v5160 = vadd.f32 %v5158, %v5159
    %v5161 = vsel %vm1800, %v4799, 0.0
    %v5162 = vrot.slane %v5161, 4
    %v5163 = vadd.f32 %v5161, %v5162
    %v5164 = vrot.slane %v5163, 2
    %v5165 = vadd.f32 %v5163, %v5164
    %v5166 = vrot.slane %v5165, 1
    %v5167 = vadd.f32 %v5165, %v5166
    %v5168 = vsel %vm1800, %v4800, 0.0
    %v5169 = vrot.slane %v5168, 4
    %v5170 = vadd.f32 %v5168, %v5169
    %v5171 = vrot.slane %v5170, 2
    %v5172 = vadd.f32 %v5170, %v5171
    %v5173 = vrot.slane %v5172, 1
    %v5174 = vadd.f32 %v5172, %v5173
    %v5175 = vsel %vm1800, %v4801, 0.0
    %v5176 = vrot.slane %v5175, 4
    %v5177 = vadd.f32 %v5175, %v5176
    %v5178 = vrot.slane %v5177, 2
    %v5179 = vadd.f32 %v5177, %v5178
    %v5180 = vrot.slane %v5179, 1
    %v5181 = vadd.f32 %v5179, %v5180
    %v5182 = vsel %vm1800, %v4802, 0.0
    %v5183 = vrot.slane %v5182, 4
    %v5184 = vadd.f32 %v5182, %v5183
    %v5185 = vrot.slane %v5184, 2
    %v5186 = vadd.f32 %v5184, %v5185
    %v5187 = vrot.slane %v5186, 1
    %v5188 = vadd.f32 %v5186, %v5187
    %v5189 = vsel %vm1800, %v4803, 0.0
    %v5190 = vrot.slane %v5189, 4
    %v5191 = vadd.f32 %v5189, %v5190
    %v5192 = vrot.slane %v5191, 2
    %v5193 = vadd.f32 %v5191, %v5192
    %v5194 = vrot.slane %v5193, 1
    %v5195 = vadd.f32 %v5193, %v5194
    %v5196 = vsel %vm1800, %v4804, 0.0
    %v5197 = vrot.slane %v5196, 4
    %v5198 = vadd.f32 %v5196, %v5197
    %v5199 = vrot.slane %v5198, 2
    %v5200 = vadd.f32 %v5198, %v5199
    %v5201 = vrot.slane %v5200, 1
    %v5202 = vadd.f32 %v5200, %v5201
    %v5203 = vsel %vm1800, %v4805, 0.0
    %v5204 = vrot.slane %v5203, 4
    %v5205 = vadd.f32 %v5203, %v5204
    %v5206 = vrot.slane %v5205, 2
    %v5207 = vadd.f32 %v5205, %v5206
    %v5208 = vrot.slane %v5207, 1
    %v5209 = vadd.f32 %v5207, %v5208
    %v5210 = vsel %vm1800, %v4806, 0.0
    %v5211 = vrot.slane %v5210, 4
    %v5212 = vadd.f32 %v5210, %v5211
    %v5213 = vrot.slane %v5212, 2
    %v5214 = vadd.f32 %v5212, %v5213
    %v5215 = vrot.slane %v5214, 1
    %v5216 = vadd.f32 %v5214, %v5215
    %v5217 = vsel %vm1800, %v4807, 0.0
    %v5218 = vrot.slane %v5217, 4
    %v5219 = vadd.f32 %v5217, %v5218
    %v5220 = vrot.slane %v5219, 2
    %v5221 = vadd.f32 %v5219, %v5220
    %v5222 = vrot.slane %v5221, 1
    %v5223 = vadd.f32 %v5221, %v5222
    %v5224 = vsel %vm1800, %v4808, 0.0
    %v5225 = vrot.slane %v5224, 4
    %v5226 = vadd.f32 %v5224, %v5225
    %v5227 = vrot.slane %v5226, 2
    %v5228 = vadd.f32 %v5226, %v5227
    %v5229 = vrot.slane %v5228, 1
    %v5230 = vadd.f32 %v5228, %v5229
    %v5231 = vsel %vm1800, %v4809, 0.0
    %v5232 = vrot.slane %v5231, 4
    %v5233 = vadd.f32 %v5231, %v5232
    %v5234 = vrot.slane %v5233, 2
    %v5235 = vadd.f32 %v5233, %v5234
    %v5236 = vrot.slane %v5235, 1
    %v5237 = vadd.f32 %v5235, %v5236
    %v5238 = vsel %vm1800, %v4810, 0.0
    %v5239 = vrot.slane %v5238, 4
    %v5240 = vadd.f32 %v5238, %v5239
    %v5241 = vrot.slane %v5240, 2
    %v5242 = vadd.f32 %v5240, %v5241
    %v5243 = vrot.slane %v5242, 1
    %v5244 = vadd.f32 %v5242, %v5243
    %v5245 = vsel %vm1800, %v4811, 0.0
    %v5246 = vrot.slane %v5245, 4
    %v5247 = vadd.f32 %v5245, %v5246
    %v5248 = vrot.slane %v5247, 2
    %v5249 = vadd.f32 %v5247, %v5248
    %v5250 = vrot.slane %v5249, 1
    %v5251 = vadd.f32 %v5249, %v5250
    %v5252 = vsel %vm1800, %v4812, 0.0
    %v5253 = vrot.slane %v5252, 4
    %v5254 = vadd.f32 %v5252, %v5253
    %v5255 = vrot.slane %v5254, 2
    %v5256 = vadd.f32 %v5254, %v5255
    %v5257 = vrot.slane %v5256, 1
    %v5258 = vadd.f32 %v5256, %v5257
    %v5259 = vsel %vm1800, %v4813, 0.0
    %v5260 = vrot.slane %v5259, 4
    %v5261 = vadd.f32 %v5259, %v5260
    %v5262 = vrot.slane %v5261, 2
    %v5263 = vadd.f32 %v5261, %v5262
    %v5264 = vrot.slane %v5263, 1
    %v5265 = vadd.f32 %v5263, %v5264
    %v5266 = vsel %vm1800, %v4814, 0.0
    %v5267 = vrot.slane %v5266, 4
    %v5268 = vadd.f32 %v5266, %v5267
    %v5269 = vrot.slane %v5268, 2
    %v5270 = vadd.f32 %v5268, %v5269
    %v5271 = vrot.slane %v5270, 1
    %v5272 = vadd.f32 %v5270, %v5271
    %v5273 = vsel %vm1800, %v4815, 0.0
    %v5274 = vrot.slane %v5273, 4
    %v5275 = vadd.f32 %v5273, %v5274
    %v5276 = vrot.slane %v5275, 2
    %v5277 = vadd.f32 %v5275, %v5276
    %v5278 = vrot.slane %v5277, 1
    %v5279 = vadd.f32 %v5277, %v5278
    %v5280 = vsel %vm1800, %v4816, 0.0
    %v5281 = vrot.slane %v5280, 4
    %v5282 = vadd.f32 %v5280, %v5281
    %v5283 = vrot.slane %v5282, 2
    %v5284 = vadd.f32 %v5282, %v5283
    %v5285 = vrot.slane %v5284, 1
    %v5286 = vadd.f32 %v5284, %v5285
    %v5287 = vsel %vm1800, %v4817, 0.0
    %v5288 = vrot.slane %v5287, 4
    %v5289 = vadd.f32 %v5287, %v5288
    %v5290 = vrot.slane %v5289, 2
    %v5291 = vadd.f32 %v5289, %v5290
    %v5292 = vrot.slane %v5291, 1
    %v5293 = vadd.f32 %v5291, %v5292
    %v5294 = vsel %vm1800, %v4818, 0.0
    %v5295 = vrot.slane %v5294, 4
    %v5296 = vadd.f32 %v5294, %v5295
    %v5297 = vrot.slane %v5296, 2
    %v5298 = vadd.f32 %v5296, %v5297
    %v5299 = vrot.slane %v5298, 1
    %v5300 = vadd.f32 %v5298, %v5299
    %v5301 = vsel %vm1800, %v4819, 0.0
    %v5302 = vrot.slane %v5301, 4
    %v5303 = vadd.f32 %v5301, %v5302
    %v5304 = vrot.slane %v5303, 2
    %v5305 = vadd.f32 %v5303, %v5304
    %v5306 = vrot.slane %v5305, 1
    %v5307 = vadd.f32 %v5305, %v5306
    %v5308 = vsel %vm1800, %v4820, 0.0
    %v5309 = vrot.slane %v5308, 4
    %v5310 = vadd.f32 %v5308, %v5309
    %v5311 = vrot.slane %v5310, 2
    %v5312 = vadd.f32 %v5310, %v5311
    %v5313 = vrot.slane %v5312, 1
    %v5314 = vadd.f32 %v5312, %v5313
    %v5315 = vsel %vm1800, %v4821, 0.0
    %v5316 = vrot.slane %v5315, 4
    %v5317 = vadd.f32 %v5315, %v5316
    %v5318 = vrot.slane %v5317, 2
    %v5319 = vadd.f32 %v5317, %v5318
    %v5320 = vrot.slane %v5319, 1
    %v5321 = vadd.f32 %v5319, %v5320
    %v5322 = vsel %vm1800, %v4822, 0.0
    %v5323 = vrot.slane %v5322, 4
    %v5324 = vadd.f32 %v5322, %v5323
    %v5325 = vrot.slane %v5324, 2
    %v5326 = vadd.f32 %v5324, %v5325
    %v5327 = vrot.slane %v5326, 1
    %v5328 = vadd.f32 %v5326, %v5327
    %v5329 = vsel %vm1800, %v4823, 0.0
    %v5330 = vrot.slane %v5329, 4
    %v5331 = vadd.f32 %v5329, %v5330
    %v5332 = vrot.slane %v5331, 2
    %v5333 = vadd.f32 %v5331, %v5332
    %v5334 = vrot.slane %v5333, 1
    %v5335 = vadd.f32 %v5333, %v5334
    %v5336 = vsel %vm1800, %v4824, 0.0
    %v5337 = vrot.slane %v5336, 4
    %v5338 = vadd.f32 %v5336, %v5337
    %v5339 = vrot.slane %v5338, 2
    %v5340 = vadd.f32 %v5338, %v5339
    %v5341 = vrot.slane %v5340, 1
    %v5342 = vadd.f32 %v5340, %v5341
    %v5343 = vsel %vm1800, %v4825, 0.0
    %v5344 = vrot.slane %v5343, 4
    %v5345 = vadd.f32 %v5343, %v5344
    %v5346 = vrot.slane %v5345, 2
    %v5347 = vadd.f32 %v5345, %v5346
    %v5348 = vrot.slane %v5347, 1
    %v5349 = vadd.f32 %v5347, %v5348
    %v5350 = vsel %vm1800, %v4826, 0.0
    %v5351 = vrot.slane %v5350, 4
    %v5352 = vadd.f32 %v5350, %v5351
    %v5353 = vrot.slane %v5352, 2
    %v5354 = vadd.f32 %v5352, %v5353
    %v5355 = vrot.slane %v5354, 1
    %v5356 = vadd.f32 %v5354, %v5355
    %v5357 = vsel %vm1800, %v4827, 0.0
    %v5358 = vrot.slane %v5357, 4
    %v5359 = vadd.f32 %v5357, %v5358
    %v5360 = vrot.slane %v5359, 2
    %v5361 = vadd.f32 %v5359, %v5360
    %v5362 = vrot.slane %v5361, 1
    %v5363 = vadd.f32 %v5361, %v5362
    %v5364 = vsel %vm1800, %v4828, 0.0
    %v5365 = vrot.slane %v5364, 4
    %v5366 = vadd.f32 %v5364, %v5365
    %v5367 = vrot.slane %v5366, 2
    %v5368 = vadd.f32 %v5366, %v5367
    %v5369 = vrot.slane %v5368, 1
    %v5370 = vadd.f32 %v5368, %v5369
    %v5371 = vsel %vm1800, %v4829, 0.0
    %v5372 = vrot.slane %v5371, 4
    %v5373 = vadd.f32 %v5371, %v5372
    %v5374 = vrot.slane %v5373, 2
    %v5375 = vadd.f32 %v5373, %v5374
    %v5376 = vrot.slane %v5375, 1
    %v5377 = vadd.f32 %v5375, %v5376
    %v5378 = vsel %vm1800, %v4830, 0.0
    %v5379 = vrot.slane %v5378, 4
    %v5380 = vadd.f32 %v5378, %v5379
    %v5381 = vrot.slane %v5380, 2
    %v5382 = vadd.f32 %v5380, %v5381
    %v5383 = vrot.slane %v5382, 1
    %v5384 = vadd.f32 %v5382, %v5383
    %v5385 = vsel %vm1800, %v4831, 0.0
    %v5386 = vrot.slane %v5385, 4
    %v5387 = vadd.f32 %v5385, %v5386
    %v5388 = vrot.slane %v5387, 2
    %v5389 = vadd.f32 %v5387, %v5388
    %v5390 = vrot.slane %v5389, 1
    %v5391 = vadd.f32 %v5389, %v5390
    %v5392 = vsel %vm1800, %v4832, 0.0
    %v5393 = vrot.slane %v5392, 4
    %v5394 = vadd.f32 %v5392, %v5393
    %v5395 = vrot.slane %v5394, 2
    %v5396 = vadd.f32 %v5394, %v5395
    %v5397 = vrot.slane %v5396, 1
    %v5398 = vadd.f32 %v5396, %v5397
    %v5399 = vsel %vm1800, %v4833, 0.0
    %v5400 = vrot.slane %v5399, 4
    %v5401 = vadd.f32 %v5399, %v5400
    %v5402 = vrot.slane %v5401, 2
    %v5403 = vadd.f32 %v5401, %v5402
    %v5404 = vrot.slane %v5403, 1
    %v5405 = vadd.f32 %v5403, %v5404
    %v5406 = vsel %vm1800, %v4834, 0.0
    %v5407 = vrot.slane %v5406, 4
    %v5408 = vadd.f32 %v5406, %v5407
    %v5409 = vrot.slane %v5408, 2
    %v5410 = vadd.f32 %v5408, %v5409
    %v5411 = vrot.slane %v5410, 1
    %v5412 = vadd.f32 %v5410, %v5411
    %v5413 = vsel %vm1800, %v4835, 0.0
    %v5414 = vrot.slane %v5413, 4
    %v5415 = vadd.f32 %v5413, %v5414
    %v5416 = vrot.slane %v5415, 2
    %v5417 = vadd.f32 %v5415, %v5416
    %v5418 = vrot.slane %v5417, 1
    %v5419 = vadd.f32 %v5417, %v5418
    %v5420 = vsel %vm1800, %v4836, 0.0
    %v5421 = vrot.slane %v5420, 4
    %v5422 = vadd.f32 %v5420, %v5421
    %v5423 = vrot.slane %v5422, 2
    %v5424 = vadd.f32 %v5422, %v5423
    %v5425 = vrot.slane %v5424, 1
    %v5426 = vadd.f32 %v5424, %v5425
    %v5427 = vsel %vm1800, %v4837, 0.0
    %v5428 = vrot.slane %v5427, 4
    %v5429 = vadd.f32 %v5427, %v5428
    %v5430 = vrot.slane %v5429, 2
    %v5431 = vadd.f32 %v5429, %v5430
    %v5432 = vrot.slane %v5431, 1
    %v5433 = vadd.f32 %v5431, %v5432
    %v5434 = vsel %vm1800, %v4838, 0.0
    %v5435 = vrot.slane %v5434, 4
    %v5436 = vadd.f32 %v5434, %v5435
    %v5437 = vrot.slane %v5436, 2
    %v5438 = vadd.f32 %v5436, %v5437
    %v5439 = vrot.slane %v5438, 1
    %v5440 = vadd.f32 %v5438, %v5439
    %v5441 = vsel %vm1800, %v4839, 0.0
    %v5442 = vrot.slane %v5441, 4
    %v5443 = vadd.f32 %v5441, %v5442
    %v5444 = vrot.slane %v5443, 2
    %v5445 = vadd.f32 %v5443, %v5444
    %v5446 = vrot.slane %v5445, 1
    %v5447 = vadd.f32 %v5445, %v5446
    %v5448 = vsel %vm1800, %v4840, 0.0
    %v5449 = vrot.slane %v5448, 4
    %v5450 = vadd.f32 %v5448, %v5449
    %v5451 = vrot.slane %v5450, 2
    %v5452 = vadd.f32 %v5450, %v5451
    %v5453 = vrot.slane %v5452, 1
    %v5454 = vadd.f32 %v5452, %v5453
    %v5455 = vsel %vm1800, %v4841, 0.0
    %v5456 = vrot.slane %v5455, 4
    %v5457 = vadd.f32 %v5455, %v5456
    %v5458 = vrot.slane %v5457, 2
    %v5459 = vadd.f32 %v5457, %v5458
    %v5460 = vrot.slane %v5459, 1
    %v5461 = vadd.f32 %v5459, %v5460
    %v5462 = vsel %vm1800, %v4842, 0.0
    %v5463 = vrot.slane %v5462, 4
    %v5464 = vadd.f32 %v5462, %v5463
    %v5465 = vrot.slane %v5464, 2
    %v5466 = vadd.f32 %v5464, %v5465
    %v5467 = vrot.slane %v5466, 1
    %v5468 = vadd.f32 %v5466, %v5467
    %v5469 = vsel %vm1800, %v4843, 0.0
    %v5470 = vrot.slane %v5469, 4
    %v5471 = vadd.f32 %v5469, %v5470
    %v5472 = vrot.slane %v5471, 2
    %v5473 = vadd.f32 %v5471, %v5472
    %v5474 = vrot.slane %v5473, 1
    %v5475 = vadd.f32 %v5473, %v5474
    %v5476 = vsel %vm1800, %v4844, 0.0
    %v5477 = vrot.slane %v5476, 4
    %v5478 = vadd.f32 %v5476, %v5477
    %v5479 = vrot.slane %v5478, 2
    %v5480 = vadd.f32 %v5478, %v5479
    %v5481 = vrot.slane %v5480, 1
    %v5482 = vadd.f32 %v5480, %v5481
    %v5483 = vsel %vm1800, %v4845, 0.0
    %v5484 = vrot.slane %v5483, 4
    %v5485 = vadd.f32 %v5483, %v5484
    %v5486 = vrot.slane %v5485, 2
    %v5487 = vadd.f32 %v5485, %v5486
    %v5488 = vrot.slane %v5487, 1
    %v5489 = vadd.f32 %v5487, %v5488
    %v5490 = vsel %vm1800, %v4846, 0.0
    %v5491 = vrot.slane %v5490, 4
    %v5492 = vadd.f32 %v5490, %v5491
    %v5493 = vrot.slane %v5492, 2
    %v5494 = vadd.f32 %v5492, %v5493
    %v5495 = vrot.slane %v5494, 1
    %v5496 = vadd.f32 %v5494, %v5495
    %v5497 = vsel %vm1800, %v4847, 0.0
    %v5498 = vrot.slane %v5497, 4
    %v5499 = vadd.f32 %v5497, %v5498
    %v5500 = vrot.slane %v5499, 2
    %v5501 = vadd.f32 %v5499, %v5500
    %v5502 = vrot.slane %v5501, 1
    %v5503 = vadd.f32 %v5501, %v5502
    %v5504 = vsel %vm1800, %v4848, 0.0
    %v5505 = vrot.slane %v5504, 4
    %v5506 = vadd.f32 %v5504, %v5505
    %v5507 = vrot.slane %v5506, 2
    %v5508 = vadd.f32 %v5506, %v5507
    %v5509 = vrot.slane %v5508, 1
    %v5510 = vadd.f32 %v5508, %v5509
    %v5511 = vsel %vm1800, %v4849, 0.0
    %v5512 = vrot.slane %v5511, 4
    %v5513 = vadd.f32 %v5511, %v5512
    %v5514 = vrot.slane %v5513, 2
    %v5515 = vadd.f32 %v5513, %v5514
    %v5516 = vrot.slane %v5515, 1
    %v5517 = vadd.f32 %v5515, %v5516
    %v5518 = vsel %vm1800, %v4850, 0.0
    %v5519 = vrot.slane %v5518, 4
    %v5520 = vadd.f32 %v5518, %v5519
    %v5521 = vrot.slane %v5520, 2
    %v5522 = vadd.f32 %v5520, %v5521
    %v5523 = vrot.slane %v5522, 1
    %v5524 = vadd.f32 %v5522, %v5523
    %v5525 = vsel %vm1800, %v4851, 0.0
    %v5526 = vrot.slane %v5525, 4
    %v5527 = vadd.f32 %v5525, %v5526
    %v5528 = vrot.slane %v5527, 2
    %v5529 = vadd.f32 %v5527, %v5528
    %v5530 = vrot.slane %v5529, 1
    %v5531 = vadd.f32 %v5529, %v5530
    %v5532 = vsel %vm1800, %v4852, 0.0
    %v5533 = vrot.slane %v5532, 4
    %v5534 = vadd.f32 %v5532, %v5533
    %v5535 = vrot.slane %v5534, 2
    %v5536 = vadd.f32 %v5534, %v5535
    %v5537 = vrot.slane %v5536, 1
    %v5538 = vadd.f32 %v5536, %v5537
    %v5539 = vsel %vm1800, %v4853, 0.0
    %v5540 = vrot.slane %v5539, 4
    %v5541 = vadd.f32 %v5539, %v5540
    %v5542 = vrot.slane %v5541, 2
    %v5543 = vadd.f32 %v5541, %v5542
    %v5544 = vrot.slane %v5543, 1
    %v5545 = vadd.f32 %v5543, %v5544
    %v5546 = vsel %vm1800, %v4854, 0.0
    %v5547 = vrot.slane %v5546, 4
    %v5548 = vadd.f32 %v5546, %v5547
    %v5549 = vrot.slane %v5548, 2
    %v5550 = vadd.f32 %v5548, %v5549
    %v5551 = vrot.slane %v5550, 1
    %v5552 = vadd.f32 %v5550, %v5551
    %v5553 = vsel %vm1800, %v4855, 0.0
    %v5554 = vrot.slane %v5553, 4
    %v5555 = vadd.f32 %v5553, %v5554
    %v5556 = vrot.slane %v5555, 2
    %v5557 = vadd.f32 %v5555, %v5556
    %v5558 = vrot.slane %v5557, 1
    %v5559 = vadd.f32 %v5557, %v5558
    %v5560 = vsel %vm1800, %v4856, 0.0
    %v5561 = vrot.slane %v5560, 4
    %v5562 = vadd.f32 %v5560, %v5561
    %v5563 = vrot.slane %v5562, 2
    %v5564 = vadd.f32 %v5562, %v5563
    %v5565 = vrot.slane %v5564, 1
    %v5566 = vadd.f32 %v5564, %v5565
    %v5567 = vsel %vm1800, %v4857, 0.0
    %v5568 = vrot.slane %v5567, 4
    %v5569 = vadd.f32 %v5567, %v5568
    %v5570 = vrot.slane %v5569, 2
    %v5571 = vadd.f32 %v5569, %v5570
    %v5572 = vrot.slane %v5571, 1
    %v5573 = vadd.f32 %v5571, %v5572
    %v5574 = vsel %vm1800, %v4858, 0.0
    %v5575 = vrot.slane %v5574, 4
    %v5576 = vadd.f32 %v5574, %v5575
    %v5577 = vrot.slane %v5576, 2
    %v5578 = vadd.f32 %v5576, %v5577
    %v5579 = vrot.slane %v5578, 1
    %v5580 = vadd.f32 %v5578, %v5579
    %v5581 = vsel %vm1800, %v4859, 0.0
    %v5582 = vrot.slane %v5581, 4
    %v5583 = vadd.f32 %v5581, %v5582
    %v5584 = vrot.slane %v5583, 2
    %v5585 = vadd.f32 %v5583, %v5584
    %v5586 = vrot.slane %v5585, 1
    %v5587 = vadd.f32 %v5585, %v5586
    %v5588 = vsel %vm1800, %v4860, 0.0
    %v5589 = vrot.slane %v5588, 4
    %v5590 = vadd.f32 %v5588, %v5589
    %v5591 = vrot.slane %v5590, 2
    %v5592 = vadd.f32 %v5590, %v5591
    %v5593 = vrot.slane %v5592, 1
    %v5594 = vadd.f32 %v5592, %v5593
    %v5595 = vsel %vm1800, %v4861, 0.0
    %v5596 = vrot.slane %v5595, 4
    %v5597 = vadd.f32 %v5595, %v5596
    %v5598 = vrot.slane %v5597, 2
    %v5599 = vadd.f32 %v5597, %v5598
    %v5600 = vrot.slane %v5599, 1
    %v5601 = vadd.f32 %v5599, %v5600
    %v5602 = vsel %vm1800, %v4862, 0.0
    %v5603 = vrot.slane %v5602, 4
    %v5604 = vadd.f32 %v5602, %v5603
    %v5605 = vrot.slane %v5604, 2
    %v5606 = vadd.f32 %v5604, %v5605
    %v5607 = vrot.slane %v5606, 1
    %v5608 = vadd.f32 %v5606, %v5607
    %v5609 = vsel %vm1800, %v4863, 0.0
    %v5610 = vrot.slane %v5609, 4
    %v5611 = vadd.f32 %v5609, %v5610
    %v5612 = vrot.slane %v5611, 2
    %v5613 = vadd.f32 %v5611, %v5612
    %v5614 = vrot.slane %v5613, 1
    %v5615 = vadd.f32 %v5613, %v5614
    %v5616 = vsel %vm1800, %v4864, 0.0
    %v5617 = vrot.slane %v5616, 4
    %v5618 = vadd.f32 %v5616, %v5617
    %v5619 = vrot.slane %v5618, 2
    %v5620 = vadd.f32 %v5618, %v5619
    %v5621 = vrot.slane %v5620, 1
    %v5622 = vadd.f32 %v5620, %v5621
    %v5623 = vsel %vm1800, %v4865, 0.0
    %v5624 = vrot.slane %v5623, 4
    %v5625 = vadd.f32 %v5623, %v5624
    %v5626 = vrot.slane %v5625, 2
    %v5627 = vadd.f32 %v5625, %v5626
    %v5628 = vrot.slane %v5627, 1
    %v5629 = vadd.f32 %v5627, %v5628
    %v5630 = vsel %vm1800, %v4866, 0.0
    %v5631 = vrot.slane %v5630, 4
    %v5632 = vadd.f32 %v5630, %v5631
    %v5633 = vrot.slane %v5632, 2
    %v5634 = vadd.f32 %v5632, %v5633
    %v5635 = vrot.slane %v5634, 1
    %v5636 = vadd.f32 %v5634, %v5635
    %v5637 = vsel %vm1800, %v4867, 0.0
    %v5638 = vrot.slane %v5637, 4
    %v5639 = vadd.f32 %v5637, %v5638
    %v5640 = vrot.slane %v5639, 2
    %v5641 = vadd.f32 %v5639, %v5640
    %v5642 = vrot.slane %v5641, 1
    %v5643 = vadd.f32 %v5641, %v5642
    %v5644 = vsel %vm1800, %v4868, 0.0
    %v5645 = vrot.slane %v5644, 4
    %v5646 = vadd.f32 %v5644, %v5645
    %v5647 = vrot.slane %v5646, 2
    %v5648 = vadd.f32 %v5646, %v5647
    %v5649 = vrot.slane %v5648, 1
    %v5650 = vadd.f32 %v5648, %v5649
    %v5651 = vsel %vm1800, %v4869, 0.0
    %v5652 = vrot.slane %v5651, 4
    %v5653 = vadd.f32 %v5651, %v5652
    %v5654 = vrot.slane %v5653, 2
    %v5655 = vadd.f32 %v5653, %v5654
    %v5656 = vrot.slane %v5655, 1
    %v5657 = vadd.f32 %v5655, %v5656
    %v5658 = vsel %vm1800, %v4870, 0.0
    %v5659 = vrot.slane %v5658, 4
    %v5660 = vadd.f32 %v5658, %v5659
    %v5661 = vrot.slane %v5660, 2
    %v5662 = vadd.f32 %v5660, %v5661
    %v5663 = vrot.slane %v5662, 1
    %v5664 = vadd.f32 %v5662, %v5663
    %v5665 = vsel %vm1800, %v4871, 0.0
    %v5666 = vrot.slane %v5665, 4
    %v5667 = vadd.f32 %v5665, %v5666
    %v5668 = vrot.slane %v5667, 2
    %v5669 = vadd.f32 %v5667, %v5668
    %v5670 = vrot.slane %v5669, 1
    %v5671 = vadd.f32 %v5669, %v5670
    %v5672 = vsel %vm1800, %v4872, 0.0
    %v5673 = vrot.slane %v5672, 4
    %v5674 = vadd.f32 %v5672, %v5673
    %v5675 = vrot.slane %v5674, 2
    %v5676 = vadd.f32 %v5674, %v5675
    %v5677 = vrot.slane %v5676, 1
    %v5678 = vadd.f32 %v5676, %v5677
    %v5679 = vsel %vm1800, %v4873, 0.0
    %v5680 = vrot.slane %v5679, 4
    %v5681 = vadd.f32 %v5679, %v5680
    %v5682 = vrot.slane %v5681, 2
    %v5683 = vadd.f32 %v5681, %v5682
    %v5684 = vrot.slane %v5683, 1
    %v5685 = vadd.f32 %v5683, %v5684
    %v5686 = vsel %vm1800, %v4874, 0.0
    %v5687 = vrot.slane %v5686, 4
    %v5688 = vadd.f32 %v5686, %v5687
    %v5689 = vrot.slane %v5688, 2
    %v5690 = vadd.f32 %v5688, %v5689
    %v5691 = vrot.slane %v5690, 1
    %v5692 = vadd.f32 %v5690, %v5691
    %v5693 = vsel %vm1800, %v4875, 0.0
    %v5694 = vrot.slane %v5693, 4
    %v5695 = vadd.f32 %v5693, %v5694
    %v5696 = vrot.slane %v5695, 2
    %v5697 = vadd.f32 %v5695, %v5696
    %v5698 = vrot.slane %v5697, 1
    %v5699 = vadd.f32 %v5697, %v5698
    %v5700 = vsel %vm1800, %v4876, 0.0
    %v5701 = vrot.slane %v5700, 4
    %v5702 = vadd.f32 %v5700, %v5701
    %v5703 = vrot.slane %v5702, 2
    %v5704 = vadd.f32 %v5702, %v5703
    %v5705 = vrot.slane %v5704, 1
    %v5706 = vadd.f32 %v5704, %v5705
    %v5707 = vsel %vm1800, %v4877, 0.0
    %v5708 = vrot.slane %v5707, 4
    %v5709 = vadd.f32 %v5707, %v5708
    %v5710 = vrot.slane %v5709, 2
    %v5711 = vadd.f32 %v5709, %v5710
    %v5712 = vrot.slane %v5711, 1
    %v5713 = vadd.f32 %v5711, %v5712
    %v5714 = vsel %vm1800, %v4878, 0.0
    %v5715 = vrot.slane %v5714, 4
    %v5716 = vadd.f32 %v5714, %v5715
    %v5717 = vrot.slane %v5716, 2
    %v5718 = vadd.f32 %v5716, %v5717
    %v5719 = vrot.slane %v5718, 1
    %v5720 = vadd.f32 %v5718, %v5719
    %v5721 = vsel %vm1800, %v4879, 0.0
    %v5722 = vrot.slane %v5721, 4
    %v5723 = vadd.f32 %v5721, %v5722
    %v5724 = vrot.slane %v5723, 2
    %v5725 = vadd.f32 %v5723, %v5724
    %v5726 = vrot.slane %v5725, 1
    %v5727 = vadd.f32 %v5725, %v5726
    %v5728 = vsel %vm1800, %v4880, 0.0
    %v5729 = vrot.slane %v5728, 4
    %v5730 = vadd.f32 %v5728, %v5729
    %v5731 = vrot.slane %v5730, 2
    %v5732 = vadd.f32 %v5730, %v5731
    %v5733 = vrot.slane %v5732, 1
    %v5734 = vadd.f32 %v5732, %v5733
    %v5735 = vsel %vm1800, %v4881, 0.0
    %v5736 = vrot.slane %v5735, 4
    %v5737 = vadd.f32 %v5735, %v5736
    %v5738 = vrot.slane %v5737, 2
    %v5739 = vadd.f32 %v5737, %v5738
    %v5740 = vrot.slane %v5739, 1
    %v5741 = vadd.f32 %v5739, %v5740
    %v5742 = vsel %vm1800, %v4882, 0.0
    %v5743 = vrot.slane %v5742, 4
    %v5744 = vadd.f32 %v5742, %v5743
    %v5745 = vrot.slane %v5744, 2
    %v5746 = vadd.f32 %v5744, %v5745
    %v5747 = vrot.slane %v5746, 1
    %v5748 = vadd.f32 %v5746, %v5747
    %v5749 = vsel %vm1800, %v4883, 0.0
    %v5750 = vrot.slane %v5749, 4
    %v5751 = vadd.f32 %v5749, %v5750
    %v5752 = vrot.slane %v5751, 2
    %v5753 = vadd.f32 %v5751, %v5752
    %v5754 = vrot.slane %v5753, 1
    %v5755 = vadd.f32 %v5753, %v5754
    %v5756 = vsel %vm1800, %v4884, 0.0
    %v5757 = vrot.slane %v5756, 4
    %v5758 = vadd.f32 %v5756, %v5757
    %v5759 = vrot.slane %v5758, 2
    %v5760 = vadd.f32 %v5758, %v5759
    %v5761 = vrot.slane %v5760, 1
    %v5762 = vadd.f32 %v5760, %v5761
    %v5763 = vsel %vm1800, %v4885, 0.0
    %v5764 = vrot.slane %v5763, 4
    %v5765 = vadd.f32 %v5763, %v5764
    %v5766 = vrot.slane %v5765, 2
    %v5767 = vadd.f32 %v5765, %v5766
    %v5768 = vrot.slane %v5767, 1
    %v5769 = vadd.f32 %v5767, %v5768
    %v5770 = vsel %vm1800, %v4886, 0.0
    %v5771 = vrot.slane %v5770, 4
    %v5772 = vadd.f32 %v5770, %v5771
    %v5773 = vrot.slane %v5772, 2
    %v5774 = vadd.f32 %v5772, %v5773
    %v5775 = vrot.slane %v5774, 1
    %v5776 = vadd.f32 %v5774, %v5775
    %v5777 = vsel %vm1800, %v4887, 0.0
    %v5778 = vrot.slane %v5777, 4
    %v5779 = vadd.f32 %v5777, %v5778
    %v5780 = vrot.slane %v5779, 2
    %v5781 = vadd.f32 %v5779, %v5780
    %v5782 = vrot.slane %v5781, 1
    %v5783 = vadd.f32 %v5781, %v5782
    %s5784 = scalar_lea.vmem %s4, 64
    %v5785 = vld [vmem:[%s5784] sm:$0xff]
    %v5786 = vld [vmem:[%s5784 + $0x8] sm:$0xff]
    %v5787 = vld [vmem:[%s5784 + $0x10] sm:$0xff]
    %v5788 = vld [vmem:[%s5784 + $0x18] sm:$0xff]
    %s5789 = scalar_lea.vmem %s5, 2
    %v5790 = vld [vmem:[%s5789] sm:$0x1]
    %v5792 = vlaneseq
    %v5793 = vshrl.u32 %v5792, 7
    %v5794 = vsub.s32 0, %v5793
    %v5795 = vrot.slane %v5790, %v5794
    %vm5925 = vcmask 1041409
    %v5926 = vsel %vm5925, %v4901, %v4894
    %vm5927 = vcmask 1042434
    %v5928 = vsel %vm5927, %v4908, %v5926
    %vm5929 = vcmask 1043459
    %v5930 = vsel %vm5929, %v4915, %v5928
    %vm5931 = vcmask 1044484
    %v5932 = vsel %vm5931, %v4922, %v5930
    %vm5933 = vcmask 1045509
    %v5934 = vsel %vm5933, %v4929, %v5932
    %vm5935 = vcmask 1046534
    %v5936 = vsel %vm5935, %v4936, %v5934
    %vm5937 = vcmask 1047559
    %v5938 = vsel %vm5937, %v4943, %v5936
    %v5939 = vsel %vm5925, %v4957, %v4950
    %v5940 = vsel %vm5927, %v4964, %v5939
    %v5941 = vsel %vm5929, %v4971, %v5940
    %v5942 = vsel %vm5931, %v4978, %v5941
    %v5943 = vsel %vm5933, %v4985, %v5942
    %v5944 = vsel %vm5935, %v4992, %v5943
    %v5945 = vsel %vm5937, %v4999, %v5944
    %v5946 = vsel %vm5925, %v5013, %v5006
    %v5947 = vsel %vm5927, %v5020, %v5946
    %v5948 = vsel %vm5929, %v5027, %v5947
    %v5949 = vsel %vm5931, %v5034, %v5948
    %v5950 = vsel %vm5933, %v5041, %v5949
    %v5951 = vsel %vm5935, %v5048, %v5950
    %v5952 = vsel %vm5937, %v5055, %v5951
    %v5953 = vsel %vm5925, %v5069, %v5062
    %v5954 = vsel %vm5927, %v5076, %v5953
    %v5955 = vsel %vm5929, %v5083, %v5954
    %v5956 = vsel %vm5931, %v5090, %v5955
    %v5957 = vsel %vm5933, %v5097, %v5956
    %v5958 = vsel %vm5935, %v5104, %v5957
    %v5959 = vsel %vm5937, %v5111, %v5958
    %v5960 = vsel %vm5925, %v5125, %v5118
    %v5961 = vsel %vm5927, %v5132, %v5960
    %v5962 = vsel %vm5929, %v5139, %v5961
    %v5963 = vsel %vm5931, %v5146, %v5962
    %v5964 = vsel %vm5933, %v5153, %v5963
    %v5965 = vsel %vm5935, %v5160, %v5964
    %v5966 = vsel %vm5937, %v5167, %v5965
    %v5967 = vsel %vm5925, %v5181, %v5174
    %v5968 = vsel %vm5927, %v5188, %v5967
    %v5969 = vsel %vm5929, %v5195, %v5968
    %v5970 = vsel %vm5931, %v5202, %v5969
    %v5971 = vsel %vm5933, %v5209, %v5970
    %v5972 = vsel %vm5935, %v5216, %v5971
    %v5973 = vsel %vm5937, %v5223, %v5972
    %v5974 = vsel %vm5925, %v5237, %v5230
    %v5975 = vsel %vm5927, %v5244, %v5974
    %v5976 = vsel %vm5929, %v5251, %v5975
    %v5977 = vsel %vm5931, %v5258, %v5976
    %v5978 = vsel %vm5933, %v5265, %v5977
    %v5979 = vsel %vm5935, %v5272, %v5978
    %v5980 = vsel %vm5937, %v5279, %v5979
    %v5981 = vsel %vm5925, %v5293, %v5286
    %v5982 = vsel %vm5927, %v5300, %v5981
    %v5983 = vsel %vm5929, %v5307, %v5982
    %v5984 = vsel %vm5931, %v5314, %v5983
    %v5985 = vsel %vm5933, %v5321, %v5984
    %v5986 = vsel %vm5935, %v5328, %v5985
    %v5987 = vsel %vm5937, %v5335, %v5986
    %v5988 = vsel %vm5925, %v5349, %v5342
    %v5989 = vsel %vm5927, %v5356, %v5988
    %v5990 = vsel %vm5929, %v5363, %v5989
    %v5991 = vsel %vm5931, %v5370, %v5990
    %v5992 = vsel %vm5933, %v5377, %v5991
    %v5993 = vsel %vm5935, %v5384, %v5992
    %v5994 = vsel %vm5937, %v5391, %v5993
    %v5995 = vsel %vm5925, %v5405, %v5398
    %v5996 = vsel %vm5927, %v5412, %v5995
    %v5997 = vsel %vm5929, %v5419, %v5996
    %v5998 = vsel %vm5931, %v5426, %v5997
    %v5999 = vsel %vm5933, %v5433, %v5998
    %v6000 = vsel %vm5935, %v5440, %v5999
    %v6001 = vsel %vm5937, %v5447, %v6000
    %v6002 = vsel %vm5925, %v5461, %v5454
    %v6003 = vsel %vm5927, %v5468, %v6002
    %v6004 = vsel %vm5929, %v5475, %v6003
    %v6005 = vsel %vm5931, %v5482, %v6004
    %v6006 = vsel %vm5933, %v5489, %v6005
    %v6007 = vsel %vm5935, %v5496, %v6006
    %v6008 = vsel %vm5937, %v5503, %v6007
    %v6009 = vsel %vm5925, %v5517, %v5510
    %v6010 = vsel %vm5927, %v5524, %v6009
    %v6011 = vsel %vm5929, %v5531, %v6010
    %v6012 = vsel %vm5931, %v5538, %v6011
    %v6013 = vsel %vm5933, %v5545, %v6012
    %v6014 = vsel %vm5935, %v5552, %v6013
    %v6015 = vsel %vm5937, %v5559, %v6014
    %v6016 = vsel %vm5925, %v5573, %v5566
    %v6017 = vsel %vm5927, %v5580, %v6016
    %v6018 = vsel %vm5929, %v5587, %v6017
    %v6019 = vsel %vm5931, %v5594, %v6018
    %v6020 = vsel %vm5933, %v5601, %v6019
    %v6021 = vsel %vm5935, %v5608, %v6020
    %v6022 = vsel %vm5937, %v5615, %v6021
    %v6023 = vsel %vm5925, %v5629, %v5622
    %v6024 = vsel %vm5927, %v5636, %v6023
    %v6025 = vsel %vm5929, %v5643, %v6024
    %v6026 = vsel %vm5931, %v5650, %v6025
    %v6027 = vsel %vm5933, %v5657, %v6026
    %v6028 = vsel %vm5935, %v5664, %v6027
    %v6029 = vsel %vm5937, %v5671, %v6028
    %v6030 = vsel %vm5925, %v5685, %v5678
    %v6031 = vsel %vm5927, %v5692, %v6030
    %v6032 = vsel %vm5929, %v5699, %v6031
    %v6033 = vsel %vm5931, %v5706, %v6032
    %v6034 = vsel %vm5933, %v5713, %v6033
    %v6035 = vsel %vm5935, %v5720, %v6034
    %v6036 = vsel %vm5937, %v5727, %v6035
    %v6037 = vsel %vm5925, %v5741, %v5734
    %v6038 = vsel %vm5927, %v5748, %v6037
    %v6039 = vsel %vm5929, %v5755, %v6038
    %v6040 = vsel %vm5931, %v5762, %v6039
    %v6041 = vsel %vm5933, %v5769, %v6040
    %v6042 = vsel %vm5935, %v5776, %v6041
    %v6043 = vsel %vm5937, %v5783, %v6042
    %v6044 = vsel %vm1800, %v5938, 0
    %v6046 = vsel %vm1800, %v5945, 0
    %v6048 = vsel %vm1800, %v5952, 0
    %v6050 = vsel %vm1800, %v5959, 0
    %v6052 = vsel %vm1800, %v5966, 0
    %v6054 = vsel %vm1800, %v5973, 0
    %v6056 = vsel %vm1800, %v5980, 0
    %v6058 = vsel %vm1800, %v5987, 0
    %v6060 = vsel %vm1800, %v5994, 0
    %v6062 = vsel %vm1800, %v6001, 0
    %v6064 = vsel %vm1800, %v6008, 0
    %v6066 = vsel %vm1800, %v6015, 0
    %v6068 = vsel %vm1800, %v6022, 0
    %v6070 = vsel %vm1800, %v6029, 0
    %v6072 = vsel %vm1800, %v6036, 0
    %v6074 = vsel %vm1800, %v6043, 0
    %6076 = vmatprep.subr.mxu0 0.0
    %6077 = vmatpush1.msra.mxu0 %v5785
    %6078 = vmatprep.subr.mxu0 0.0
    %6079 = vmatpush1.msra.mxu0 %v5786
    %6080 = vmatprep.subr.mxu0 0.0
    %6081 = vmatpush1.msra.mxu0 %v5787
    %6082 = vmatprep.subr.mxu0 0.0
    %6083 = vmatpush1.msra.mxu0 %v5788
    %6084 = vmatprep.subr.mxu0 0.0
    %6085 = vmatpush1.msra.mxu0 0.0
    %6086 = vmatprep.subr.mxu0 0.0
    %6087 = vmatpush1.msra.mxu0 0.0
    %6088 = vmatprep.subr.mxu0 0.0
    %6089 = vmatpush1.msra.mxu0 0.0
    %6090 = vmatprep.subr.mxu0 0.0
    %6091 = vmatpush1.msra.mxu0 0.0
    %6092 = vmatprep.subr.mxu0 0.0
    %6093 = vmatpush1.msra.mxu0 0.0
    %6094 = vmatprep.subr.mxu0 0.0
    %6095 = vmatpush1.msra.mxu0 0.0
    %6096 = vmatprep.subr.mxu0 0.0
    %6097 = vmatpush1.msra.mxu0 0.0
    %6098 = vmatprep.subr.mxu0 0.0
    %6099 = vmatpush1.msra.mxu0 0.0
    %6100 = vmatprep.subr.mxu0 0.0
    %6101 = vmatpush1.msra.mxu0 0.0
    %6102 = vmatprep.subr.mxu0 0.0
    %6103 = vmatpush1.msra.mxu0 0.0
    %6104 = vmatprep.subr.mxu0 0.0
    %6105 = vmatpush1.msra.mxu0 0.0
    %6106 = vmatprep.subr.mxu0 0.0
    %6107 = vmatpush1.msra.mxu0 0.0
    %6108 = vmatprep.subr.mxu0 0.0
    %6109 = vmatpush1.msra.mxu0 0.0
    %6110 = vmatprep.subr.mxu0 0.0
    %6111 = vmatpush1.msra.mxu0 0.0
    %6112 = vmatprep.subr.mxu0 0.0
    %6113 = vmatpush1.msra.mxu0 0.0
    %6114 = vmatprep.subr.mxu0 0.0
    %6115 = vmatpush1.msra.mxu0 0.0
    %6116 = vmatprep.subr.mxu0 0.0
    %6117 = vmatpush1.msra.mxu0 0.0
    %6118 = vmatprep.subr.mxu0 0.0
    %6119 = vmatpush1.msra.mxu0 0.0
    %6120 = vmatprep.subr.mxu0 0.0
    %6121 = vmatpush1.msra.mxu0 0.0
    %6122 = vmatprep.subr.mxu0 0.0
    %6123 = vmatpush1.msra.mxu0 0.0
    %6124 = vmatprep.subr.mxu0 0.0
    %6125 = vmatpush1.msra.mxu0 0.0
    %6126 = vmatprep.subr.mxu0 0.0
    %6127 = vmatpush1.msra.mxu0 0.0
    %6128 = vmatprep.subr.mxu0 0.0
    %6129 = vmatpush1.msra.mxu0 0.0
    %6130 = vmatprep.subr.mxu0 0.0
    %6131 = vmatpush1.msra.mxu0 0.0
    %6132 = vmatprep.subr.mxu0 0.0
    %6133 = vmatpush1.msra.mxu0 0.0
    %6134 = vmatprep.subr.mxu0 0.0
    %6135 = vmatpush1.msra.mxu0 0.0
    %6136 = vmatprep.subr.mxu0 0.0
    %6137 = vmatpush1.msra.mxu0 0.0
    %6138 = vmatprep.subr.mxu0 0.0
    %6139 = vmatpush1.msra.mxu0 0.0
    %6140 = vmatprep.mubr.f32.mxu0 0.0
    %6141 = vmatmul.mubr.f32.gmra.mrb[0].mxu0 %v6044
    %v6142 = vpop.f32.mrb[0].mxu0
    %v6143 = vadd.f32 %v5795, %v6142
    %v6144 = vpop.f32.mrb[0].mxu0
    %6145 = vmatprep.mubr.f32.mxu0 0.0
    %6146 = vmatmul.mubr.f32.gmra.mrb[0].mxu0 %v6046
    %v6147 = vpop.f32.mrb[0].mxu0
    %v6148 = vadd.f32 %v5795, %v6147
    %v6149 = vpop.f32.mrb[0].mxu0
    %6150 = vmatprep.mubr.f32.mxu0 0.0
    %6151 = vmatmul.mubr.f32.gmra.mrb[0].mxu0 %v6048
    %v6152 = vpop.f32.mrb[0].mxu0
    %v6153 = vadd.f32 %v5795, %v6152
    %v6154 = vpop.f32.mrb[0].mxu0
    %6155 = vmatprep.mubr.f32.mxu0 0.0
    %6156 = vmatmul.mubr.f32.gmra.mrb[0].mxu0 %v6050
    %v6157 = vpop.f32.mrb[0].mxu0
    %v6158 = vadd.f32 %v5795, %v6157
    %v6159 = vpop.f32.mrb[0].mxu0
    %6160 = vmatprep.mubr.f32.mxu0 0.0
    %6161 = vmatmul.mubr.f32.gmra.mrb[0].mxu0 %v6052
    %v6162 = vpop.f32.mrb[0].mxu0
    %v6163 = vadd.f32 %v5795, %v6162
    %v6164 = vpop.f32.mrb[0].mxu0
    %6165 = vmatprep.mubr.f32.mxu0 0.0
    %6166 = vmatmul.mubr.f32.gmra.mrb[0].mxu0 %v6054
    %v6167 = vpop.f32.mrb[0].mxu0
    %v6168 = vadd.f32 %v5795, %v6167
    %v6169 = vpop.f32.mrb[0].mxu0
    %6170 = vmatprep.mubr.f32.mxu0 0.0
    %6171 = vmatmul.mubr.f32.gmra.mrb[0].mxu0 %v6056
    %v6172 = vpop.f32.mrb[0].mxu0
    %v6173 = vadd.f32 %v5795, %v6172
    %v6174 = vpop.f32.mrb[0].mxu0
    %6175 = vmatprep.mubr.f32.mxu0 0.0
    %6176 = vmatmul.mubr.f32.gmra.mrb[0].mxu0 %v6058
    %v6177 = vpop.f32.mrb[0].mxu0
    %v6178 = vadd.f32 %v5795, %v6177
    %v6179 = vpop.f32.mrb[0].mxu0
    %6180 = vmatprep.mubr.f32.mxu0 0.0
    %6181 = vmatmul.mubr.f32.gmra.mrb[0].mxu0 %v6060
    %v6182 = vpop.f32.mrb[0].mxu0
    %v6183 = vadd.f32 %v5795, %v6182
    %v6184 = vpop.f32.mrb[0].mxu0
    %6185 = vmatprep.mubr.f32.mxu0 0.0
    %6186 = vmatmul.mubr.f32.gmra.mrb[0].mxu0 %v6062
    %v6187 = vpop.f32.mrb[0].mxu0
    %v6188 = vadd.f32 %v5795, %v6187
    %v6189 = vpop.f32.mrb[0].mxu0
    %6190 = vmatprep.mubr.f32.mxu0 0.0
    %6191 = vmatmul.mubr.f32.gmra.mrb[0].mxu0 %v6064
    %v6192 = vpop.f32.mrb[0].mxu0
    %v6193 = vadd.f32 %v5795, %v6192
    %v6194 = vpop.f32.mrb[0].mxu0
    %6195 = vmatprep.mubr.f32.mxu0 0.0
    %6196 = vmatmul.mubr.f32.gmra.mrb[0].mxu0 %v6066
    %v6197 = vpop.f32.mrb[0].mxu0
    %v6198 = vadd.f32 %v5795, %v6197
    %v6199 = vpop.f32.mrb[0].mxu0
    %6200 = vmatprep.mubr.f32.mxu0 0.0
    %6201 = vmatmul.mubr.f32.gmra.mrb[0].mxu0 %v6068
    %v6202 = vpop.f32.mrb[0].mxu0
    %v6203 = vadd.f32 %v5795, %v6202
    %v6204 = vpop.f32.mrb[0].mxu0
    %6205 = vmatprep.mubr.f32.mxu0 0.0
    %6206 = vmatmul.mubr.f32.gmra.mrb[0].mxu0 %v6070
    %v6207 = vpop.f32.mrb[0].mxu0
    %v6208 = vadd.f32 %v5795, %v6207
    %v6209 = vpop.f32.mrb[0].mxu0
    %6210 = vmatprep.mubr.f32.mxu0 0.0
    %6211 = vmatmul.mubr.f32.gmra.mrb[0].mxu0 %v6072
    %v6212 = vpop.f32.mrb[0].mxu0
    %v6213 = vadd.f32 %v5795, %v6212
    %v6214 = vpop.f32.mrb[0].mxu0
    %6215 = vmatprep.mubr.f32.mxu0 0.0
    %6216 = vmatmul.mubr.f32.gmra.mrb[0].mxu0 %v6074
    %v6217 = vpop.f32.mrb[0].mxu0
    %v6218 = vadd.f32 %v5795, %v6217
    %v6219 = vpop.f32.mrb[0].mxu0
    %6220 = vdwg.mxu0
    %v6221 = vmax.f32 %v6143, 0.0
    %v6222 = vmax.f32 %v6148, 0.0
    %v6223 = vmax.f32 %v6153, 0.0
    %v6224 = vmax.f32 %v6158, 0.0
    %v6225 = vmax.f32 %v6163, 0.0
    %v6226 = vmax.f32 %v6168, 0.0
    %v6227 = vmax.f32 %v6173, 0.0
    %v6228 = vmax.f32 %v6178, 0.0
    %v6229 = vmax.f32 %v6183, 0.0
    %v6230 = vmax.f32 %v6188, 0.0
    %v6231 = vmax.f32 %v6193, 0.0
    %v6232 = vmax.f32 %v6198, 0.0
    %v6233 = vmax.f32 %v6203, 0.0
    %v6234 = vmax.f32 %v6208, 0.0
    %v6235 = vmax.f32 %v6213, 0.0
    %v6236 = vmax.f32 %v6218, 0.0
    %s6237 = scalar_lea.vmem %s4, 96
    %v6238 = vld [vmem:[%s6237] sm:$0xff]
    %v6239 = vld [vmem:[%s6237 + $0x8] sm:$0xff]
    %v6240 = vld [vmem:[%s6237 + $0x10] sm:$0xff]
    %v6241 = vld [vmem:[%s6237 + $0x18] sm:$0xff]
    %s6242 = scalar_lea.vmem %s5, 3
    %v6243 = vld [vmem:[%s6242] sm:$0x1]
    %v6245 = vlaneseq
    %v6246 = vshrl.u32 %v6245, 7
    %v6247 = vsub.s32 0, %v6246
    %v6248 = vrot.slane %v6243, %v6247
    %v6251 = vsel %vm1800, %v6221, 0
    %v6254 = vsel %vm1800, %v6222, 0
    %v6257 = vsel %vm1800, %v6223, 0
    %v6260 = vsel %vm1800, %v6224, 0
    %v6263 = vsel %vm1800, %v6225, 0
    %v6266 = vsel %vm1800, %v6226, 0
    %v6269 = vsel %vm1800, %v6227, 0
    %v6272 = vsel %vm1800, %v6228, 0
    %v6275 = vsel %vm1800, %v6229, 0
    %v6278 = vsel %vm1800, %v6230, 0
    %v6281 = vsel %vm1800, %v6231, 0
    %v6284 = vsel %vm1800, %v6232, 0
    %v6287 = vsel %vm1800, %v6233, 0
    %v6290 = vsel %vm1800, %v6234, 0
    %v6293 = vsel %vm1800, %v6235, 0
    %v6296 = vsel %vm1800, %v6236, 0
    %6298 = vmatprep.subr.mxu0 0.0
    %6299 = vmatpush1.msra.mxu0 %v6238
    %6300 = vmatprep.subr.mxu0 0.0
    %6301 = vmatpush1.msra.mxu0 %v6239
    %6302 = vmatprep.subr.mxu0 0.0
    %6303 = vmatpush1.msra.mxu0 %v6240
    %6304 = vmatprep.subr.mxu0 0.0
    %6305 = vmatpush1.msra.mxu0 %v6241
    %6306 = vmatprep.subr.mxu0 0.0
    %6307 = vmatpush1.msra.mxu0 0.0
    %6308 = vmatprep.subr.mxu0 0.0
    %6309 = vmatpush1.msra.mxu0 0.0
    %6310 = vmatprep.subr.mxu0 0.0
    %6311 = vmatpush1.msra.mxu0 0.0
    %6312 = vmatprep.subr.mxu0 0.0
    %6313 = vmatpush1.msra.mxu0 0.0
    %6314 = vmatprep.subr.mxu0 0.0
    %6315 = vmatpush1.msra.mxu0 0.0
    %6316 = vmatprep.subr.mxu0 0.0
    %6317 = vmatpush1.msra.mxu0 0.0
    %6318 = vmatprep.subr.mxu0 0.0
    %6319 = vmatpush1.msra.mxu0 0.0
    %6320 = vmatprep.subr.mxu0 0.0
    %6321 = vmatpush1.msra.mxu0 0.0
    %6322 = vmatprep.subr.mxu0 0.0
    %6323 = vmatpush1.msra.mxu0 0.0
    %6324 = vmatprep.subr.mxu0 0.0
    %6325 = vmatpush1.msra.mxu0 0.0
    %6326 = vmatprep.subr.mxu0 0.0
    %6327 = vmatpush1.msra.mxu0 0.0
    %6328 = vmatprep.subr.mxu0 0.0
    %6329 = vmatpush1.msra.mxu0 0.0
    %6330 = vmatprep.subr.mxu0 0.0
    %6331 = vmatpush1.msra.mxu0 0.0
    %6332 = vmatprep.subr.mxu0 0.0
    %6333 = vmatpush1.msra.mxu0 0.0
    %6334 = vmatprep.subr.mxu0 0.0
    %6335 = vmatpush1.msra.mxu0 0.0
    %6336 = vmatprep.subr.mxu0 0.0
    %6337 = vmatpush1.msra.mxu0 0.0
    %6338 = vmatprep.subr.mxu0 0.0
    %6339 = vmatpush1.msra.mxu0 0.0
    %6340 = vmatprep.subr.mxu0 0.0
    %6341 = vmatpush1.msra.mxu0 0.0
    %6342 = vmatprep.subr.mxu0 0.0
    %6343 = vmatpush1.msra.mxu0 0.0
    %6344 = vmatprep.subr.mxu0 0.0
    %6345 = vmatpush1.msra.mxu0 0.0
    %6346 = vmatprep.subr.mxu0 0.0
    %6347 = vmatpush1.msra.mxu0 0.0
    %6348 = vmatprep.subr.mxu0 0.0
    %6349 = vmatpush1.msra.mxu0 0.0
    %6350 = vmatprep.subr.mxu0 0.0
    %6351 = vmatpush1.msra.mxu0 0.0
    %6352 = vmatprep.subr.mxu0 0.0
    %6353 = vmatpush1.msra.mxu0 0.0
    %6354 = vmatprep.subr.mxu0 0.0
    %6355 = vmatpush1.msra.mxu0 0.0
    %6356 = vmatprep.subr.mxu0 0.0
    %6357 = vmatpush1.msra.mxu0 0.0
    %6358 = vmatprep.subr.mxu0 0.0
    %6359 = vmatpush1.msra.mxu0 0.0
    %6360 = vmatprep.subr.mxu0 0.0
    %6361 = vmatpush1.msra.mxu0 0.0
    %6362 = vmatprep.mubr.f32.mxu0 0.0
    %6363 = vmatmul.mubr.f32.gmra.mrb[0].mxu0 %v6251
    %v6364 = vpop.f32.mrb[0].mxu0
    %v6365 = vadd.f32 %v6248, %v6364
    %v6366 = vpop.f32.mrb[0].mxu0
    %6367 = vmatprep.mubr.f32.mxu0 0.0
    %6368 = vmatmul.mubr.f32.gmra.mrb[0].mxu0 %v6254
    %v6369 = vpop.f32.mrb[0].mxu0
    %v6370 = vadd.f32 %v6248, %v6369
    %v6371 = vpop.f32.mrb[0].mxu0
    %6372 = vmatprep.mubr.f32.mxu0 0.0
    %6373 = vmatmul.mubr.f32.gmra.mrb[0].mxu0 %v6257
    %v6374 = vpop.f32.mrb[0].mxu0
    %v6375 = vadd.f32 %v6248, %v6374
    %v6376 = vpop.f32.mrb[0].mxu0
    %6377 = vmatprep.mubr.f32.mxu0 0.0
    %6378 = vmatmul.mubr.f32.gmra.mrb[0].mxu0 %v6260
    %v6379 = vpop.f32.mrb[0].mxu0
    %v6380 = vadd.f32 %v6248, %v6379
    %v6381 = vpop.f32.mrb[0].mxu0
    %6382 = vmatprep.mubr.f32.mxu0 0.0
    %6383 = vmatmul.mubr.f32.gmra.mrb[0].mxu0 %v6263
    %v6384 = vpop.f32.mrb[0].mxu0
    %v6385 = vadd.f32 %v6248, %v6384
    %v6386 = vpop.f32.mrb[0].mxu0
    %6387 = vmatprep.mubr.f32.mxu0 0.0
    %6388 = vmatmul.mubr.f32.gmra.mrb[0].mxu0 %v6266
    %v6389 = vpop.f32.mrb[0].mxu0
    %v6390 = vadd.f32 %v6248, %v6389
    %v6391 = vpop.f32.mrb[0].mxu0
    %6392 = vmatprep.mubr.f32.mxu0 0.0
    %6393 = vmatmul.mubr.f32.gmra.mrb[0].mxu0 %v6269
    %v6394 = vpop.f32.mrb[0].mxu0
    %v6395 = vadd.f32 %v6248, %v6394
    %v6396 = vpop.f32.mrb[0].mxu0
    %6397 = vmatprep.mubr.f32.mxu0 0.0
    %6398 = vmatmul.mubr.f32.gmra.mrb[0].mxu0 %v6272
    %v6399 = vpop.f32.mrb[0].mxu0
    %v6400 = vadd.f32 %v6248, %v6399
    %v6401 = vpop.f32.mrb[0].mxu0
    %6402 = vmatprep.mubr.f32.mxu0 0.0
    %6403 = vmatmul.mubr.f32.gmra.mrb[0].mxu0 %v6275
    %v6404 = vpop.f32.mrb[0].mxu0
    %v6405 = vadd.f32 %v6248, %v6404
    %v6406 = vpop.f32.mrb[0].mxu0
    %6407 = vmatprep.mubr.f32.mxu0 0.0
    %6408 = vmatmul.mubr.f32.gmra.mrb[0].mxu0 %v6278
    %v6409 = vpop.f32.mrb[0].mxu0
    %v6410 = vadd.f32 %v6248, %v6409
    %v6411 = vpop.f32.mrb[0].mxu0
    %6412 = vmatprep.mubr.f32.mxu0 0.0
    %6413 = vmatmul.mubr.f32.gmra.mrb[0].mxu0 %v6281
    %v6414 = vpop.f32.mrb[0].mxu0
    %v6415 = vadd.f32 %v6248, %v6414
    %v6416 = vpop.f32.mrb[0].mxu0
    %6417 = vmatprep.mubr.f32.mxu0 0.0
    %6418 = vmatmul.mubr.f32.gmra.mrb[0].mxu0 %v6284
    %v6419 = vpop.f32.mrb[0].mxu0
    %v6420 = vadd.f32 %v6248, %v6419
    %v6421 = vpop.f32.mrb[0].mxu0
    %6422 = vmatprep.mubr.f32.mxu0 0.0
    %6423 = vmatmul.mubr.f32.gmra.mrb[0].mxu0 %v6287
    %v6424 = vpop.f32.mrb[0].mxu0
    %v6425 = vadd.f32 %v6248, %v6424
    %v6426 = vpop.f32.mrb[0].mxu0
    %6427 = vmatprep.mubr.f32.mxu0 0.0
    %6428 = vmatmul.mubr.f32.gmra.mrb[0].mxu0 %v6290
    %v6429 = vpop.f32.mrb[0].mxu0
    %v6430 = vadd.f32 %v6248, %v6429
    %v6431 = vpop.f32.mrb[0].mxu0
    %6432 = vmatprep.mubr.f32.mxu0 0.0
    %6433 = vmatmul.mubr.f32.gmra.mrb[0].mxu0 %v6293
    %v6434 = vpop.f32.mrb[0].mxu0
    %v6435 = vadd.f32 %v6248, %v6434
    %v6436 = vpop.f32.mrb[0].mxu0
    %6437 = vmatprep.mubr.f32.mxu0 0.0
    %6438 = vmatmul.mubr.f32.gmra.mrb[0].mxu0 %v6296
    %v6439 = vpop.f32.mrb[0].mxu0
    %v6440 = vadd.f32 %v6248, %v6439
    %v6441 = vpop.f32.mrb[0].mxu0
    %6442 = vdwg.mxu0
    %v6443 = vmax.f32 %v6365, 0.0
    %v6444 = vmax.f32 %v6370, 0.0
    %v6445 = vmax.f32 %v6375, 0.0
    %v6446 = vmax.f32 %v6380, 0.0
    %v6447 = vmax.f32 %v6385, 0.0
    %v6448 = vmax.f32 %v6390, 0.0
    %v6449 = vmax.f32 %v6395, 0.0
    %v6450 = vmax.f32 %v6400, 0.0
    %v6451 = vmax.f32 %v6405, 0.0
    %v6452 = vmax.f32 %v6410, 0.0
    %v6453 = vmax.f32 %v6415, 0.0
    %v6454 = vmax.f32 %v6420, 0.0
    %v6455 = vmax.f32 %v6425, 0.0
    %v6456 = vmax.f32 %v6430, 0.0
    %v6457 = vmax.f32 %v6435, 0.0
    %v6458 = vmax.f32 %v6440, 0.0
    %s6459 = scalar_lea.vmem %s4, 128
    %v6460 = vld [vmem:[%s6459] sm:$0xff]
    %v6461 = vld [vmem:[%s6459 + $0x8] sm:$0xff]
    %v6462 = vld [vmem:[%s6459 + $0x10] sm:$0xff]
    %v6463 = vld [vmem:[%s6459 + $0x18] sm:$0xff]
    %s6464 = scalar_lea.vmem %s5, 4
    %v6465 = vld [vmem:[%s6464] sm:$0x1]
    %v6467 = vlaneseq
    %v6468 = vshrl.u32 %v6467, 7
    %v6469 = vsub.s32 0, %v6468
    %v6470 = vrot.slane %v6465, %v6469
    %v6473 = vsel %vm1800, %v6443, 0
    %v6476 = vsel %vm1800, %v6444, 0
    %v6479 = vsel %vm1800, %v6445, 0
    %v6482 = vsel %vm1800, %v6446, 0
    %v6485 = vsel %vm1800, %v6447, 0
    %v6488 = vsel %vm1800, %v6448, 0
    %v6491 = vsel %vm1800, %v6449, 0
    %v6494 = vsel %vm1800, %v6450, 0
    %v6497 = vsel %vm1800, %v6451, 0
    %v6500 = vsel %vm1800, %v6452, 0
    %v6503 = vsel %vm1800, %v6453, 0
    %v6506 = vsel %vm1800, %v6454, 0
    %v6509 = vsel %vm1800, %v6455, 0
    %v6512 = vsel %vm1800, %v6456, 0
    %v6515 = vsel %vm1800, %v6457, 0
    %v6518 = vsel %vm1800, %v6458, 0
    %6520 = vmatprep.subr.mxu0 0.0
    %6521 = vmatpush1.msra.mxu0 %v6460
    %6522 = vmatprep.subr.mxu0 0.0
    %6523 = vmatpush1.msra.mxu0 %v6461
    %6524 = vmatprep.subr.mxu0 0.0
    %6525 = vmatpush1.msra.mxu0 %v6462
    %6526 = vmatprep.subr.mxu0 0.0
    %6527 = vmatpush1.msra.mxu0 %v6463
    %6528 = vmatprep.subr.mxu0 0.0
    %6529 = vmatpush1.msra.mxu0 0.0
    %6530 = vmatprep.subr.mxu0 0.0
    %6531 = vmatpush1.msra.mxu0 0.0
    %6532 = vmatprep.subr.mxu0 0.0
    %6533 = vmatpush1.msra.mxu0 0.0
    %6534 = vmatprep.subr.mxu0 0.0
    %6535 = vmatpush1.msra.mxu0 0.0
    %6536 = vmatprep.subr.mxu0 0.0
    %6537 = vmatpush1.msra.mxu0 0.0
    %6538 = vmatprep.subr.mxu0 0.0
    %6539 = vmatpush1.msra.mxu0 0.0
    %6540 = vmatprep.subr.mxu0 0.0
    %6541 = vmatpush1.msra.mxu0 0.0
    %6542 = vmatprep.subr.mxu0 0.0
    %6543 = vmatpush1.msra.mxu0 0.0
    %6544 = vmatprep.subr.mxu0 0.0
    %6545 = vmatpush1.msra.mxu0 0.0
    %6546 = vmatprep.subr.mxu0 0.0
    %6547 = vmatpush1.msra.mxu0 0.0
    %6548 = vmatprep.subr.mxu0 0.0
    %6549 = vmatpush1.msra.mxu0 0.0
    %6550 = vmatprep.subr.mxu0 0.0
    %6551 = vmatpush1.msra.mxu0 0.0
    %6552 = vmatprep.subr.mxu0 0.0
    %6553 = vmatpush1.msra.mxu0 0.0
    %6554 = vmatprep.subr.mxu0 0.0
    %6555 = vmatpush1.msra.mxu0 0.0
    %6556 = vmatprep.subr.mxu0 0.0
    %6557 = vmatpush1.msra.mxu0 0.0
    %6558 = vmatprep.subr.mxu0 0.0
    %6559 = vmatpush1.msra.mxu0 0.0
    %6560 = vmatprep.subr.mxu0 0.0
    %6561 = vmatpush1.msra.mxu0 0.0
    %6562 = vmatprep.subr.mxu0 0.0
    %6563 = vmatpush1.msra.mxu0 0.0
    %6564 = vmatprep.subr.mxu0 0.0
    %6565 = vmatpush1.msra.mxu0 0.0
    %6566 = vmatprep.subr.mxu0 0.0
    %6567 = vmatpush1.msra.mxu0 0.0
    %6568 = vmatprep.subr.mxu0 0.0
    %6569 = vmatpush1.msra.mxu0 0.0
    %6570 = vmatprep.subr.mxu0 0.0
    %6571 = vmatpush1.msra.mxu0 0.0
    %6572 = vmatprep.subr.mxu0 0.0
    %6573 = vmatpush1.msra.mxu0 0.0
    %6574 = vmatprep.subr.mxu0 0.0
    %6575 = vmatpush1.msra.mxu0 0.0
    %6576 = vmatprep.subr.mxu0 0.0
    %6577 = vmatpush1.msra.mxu0 0.0
    %6578 = vmatprep.subr.mxu0 0.0
    %6579 = vmatpush1.msra.mxu0 0.0
    %6580 = vmatprep.subr.mxu0 0.0
    %6581 = vmatpush1.msra.mxu0 0.0
    %6582 = vmatprep.subr.mxu0 0.0
    %6583 = vmatpush1.msra.mxu0 0.0
    %6584 = vmatprep.mubr.f32.mxu0 0.0
    %6585 = vmatmul.mubr.f32.gmra.mrb[0].mxu0 %v6473
    %v6586 = vpop.f32.mrb[0].mxu0
    %v6587 = vadd.f32 %v6470, %v6586
    %v6588 = vpop.f32.mrb[0].mxu0
    %6589 = vmatprep.mubr.f32.mxu0 0.0
    %6590 = vmatmul.mubr.f32.gmra.mrb[0].mxu0 %v6476
    %v6591 = vpop.f32.mrb[0].mxu0
    %v6592 = vadd.f32 %v6470, %v6591
    %v6593 = vpop.f32.mrb[0].mxu0
    %6594 = vmatprep.mubr.f32.mxu0 0.0
    %6595 = vmatmul.mubr.f32.gmra.mrb[0].mxu0 %v6479
    %v6596 = vpop.f32.mrb[0].mxu0
    %v6597 = vadd.f32 %v6470, %v6596
    %v6598 = vpop.f32.mrb[0].mxu0
    %6599 = vmatprep.mubr.f32.mxu0 0.0
    %6600 = vmatmul.mubr.f32.gmra.mrb[0].mxu0 %v6482
    %v6601 = vpop.f32.mrb[0].mxu0
    %v6602 = vadd.f32 %v6470, %v6601
    %v6603 = vpop.f32.mrb[0].mxu0
    %6604 = vmatprep.mubr.f32.mxu0 0.0
    %6605 = vmatmul.mubr.f32.gmra.mrb[0].mxu0 %v6485
    %v6606 = vpop.f32.mrb[0].mxu0
    %v6607 = vadd.f32 %v6470, %v6606
    %v6608 = vpop.f32.mrb[0].mxu0
    %6609 = vmatprep.mubr.f32.mxu0 0.0
    %6610 = vmatmul.mubr.f32.gmra.mrb[0].mxu0 %v6488
    %v6611 = vpop.f32.mrb[0].mxu0
    %v6612 = vadd.f32 %v6470, %v6611
    %v6613 = vpop.f32.mrb[0].mxu0
    %6614 = vmatprep.mubr.f32.mxu0 0.0
    %6615 = vmatmul.mubr.f32.gmra.mrb[0].mxu0 %v6491
    %v6616 = vpop.f32.mrb[0].mxu0
    %v6617 = vadd.f32 %v6470, %v6616
    %v6618 = vpop.f32.mrb[0].mxu0
    %6619 = vmatprep.mubr.f32.mxu0 0.0
    %6620 = vmatmul.mubr.f32.gmra.mrb[0].mxu0 %v6494
    %v6621 = vpop.f32.mrb[0].mxu0
    %v6622 = vadd.f32 %v6470, %v6621
    %v6623 = vpop.f32.mrb[0].mxu0
    %6624 = vmatprep.mubr.f32.mxu0 0.0
    %6625 = vmatmul.mubr.f32.gmra.mrb[0].mxu0 %v6497
    %v6626 = vpop.f32.mrb[0].mxu0
    %v6627 = vadd.f32 %v6470, %v6626
    %v6628 = vpop.f32.mrb[0].mxu0
    %6629 = vmatprep.mubr.f32.mxu0 0.0
    %6630 = vmatmul.mubr.f32.gmra.mrb[0].mxu0 %v6500
    %v6631 = vpop.f32.mrb[0].mxu0
    %v6632 = vadd.f32 %v6470, %v6631
    %v6633 = vpop.f32.mrb[0].mxu0
    %6634 = vmatprep.mubr.f32.mxu0 0.0
    %6635 = vmatmul.mubr.f32.gmra.mrb[0].mxu0 %v6503
    %v6636 = vpop.f32.mrb[0].mxu0
    %v6637 = vadd.f32 %v6470, %v6636
    %v6638 = vpop.f32.mrb[0].mxu0
    %6639 = vmatprep.mubr.f32.mxu0 0.0
    %6640 = vmatmul.mubr.f32.gmra.mrb[0].mxu0 %v6506
    %v6641 = vpop.f32.mrb[0].mxu0
    %v6642 = vadd.f32 %v6470, %v6641
    %v6643 = vpop.f32.mrb[0].mxu0
    %6644 = vmatprep.mubr.f32.mxu0 0.0
    %6645 = vmatmul.mubr.f32.gmra.mrb[0].mxu0 %v6509
    %v6646 = vpop.f32.mrb[0].mxu0
    %v6647 = vadd.f32 %v6470, %v6646
    %v6648 = vpop.f32.mrb[0].mxu0
    %6649 = vmatprep.mubr.f32.mxu0 0.0
    %6650 = vmatmul.mubr.f32.gmra.mrb[0].mxu0 %v6512
    %v6651 = vpop.f32.mrb[0].mxu0
    %v6652 = vadd.f32 %v6470, %v6651
    %v6653 = vpop.f32.mrb[0].mxu0
    %6654 = vmatprep.mubr.f32.mxu0 0.0
    %6655 = vmatmul.mubr.f32.gmra.mrb[0].mxu0 %v6515
    %v6656 = vpop.f32.mrb[0].mxu0
    %v6657 = vadd.f32 %v6470, %v6656
    %v6658 = vpop.f32.mrb[0].mxu0
    %6659 = vmatprep.mubr.f32.mxu0 0.0
    %6660 = vmatmul.mubr.f32.gmra.mrb[0].mxu0 %v6518
    %v6661 = vpop.f32.mrb[0].mxu0
    %v6662 = vadd.f32 %v6470, %v6661
    %v6663 = vpop.f32.mrb[0].mxu0
    %6664 = vdwg.mxu0
    %v6665 = vmax.f32 %v6587, 0.0
    %v6666 = vmax.f32 %v6592, 0.0
    %v6667 = vmax.f32 %v6597, 0.0
    %v6668 = vmax.f32 %v6602, 0.0
    %v6669 = vmax.f32 %v6607, 0.0
    %v6670 = vmax.f32 %v6612, 0.0
    %v6671 = vmax.f32 %v6617, 0.0
    %v6672 = vmax.f32 %v6622, 0.0
    %v6673 = vmax.f32 %v6627, 0.0
    %v6674 = vmax.f32 %v6632, 0.0
    %v6675 = vmax.f32 %v6637, 0.0
    %v6676 = vmax.f32 %v6642, 0.0
    %v6677 = vmax.f32 %v6647, 0.0
    %v6678 = vmax.f32 %v6652, 0.0
    %v6679 = vmax.f32 %v6657, 0.0
    %v6680 = vmax.f32 %v6662, 0.0
    %v6681 = vld [vmem:[%s6] sm:$0xff]
    %v6682 = vld [vmem:[%s6 + $0x8] sm:$0xff]
    %v6683 = vld [vmem:[%s6 + $0x10] sm:$0xff]
    %v6684 = vld [vmem:[%s6 + $0x18] sm:$0xff]
    %v6685 = vld [vmem:[%s7] sm:$0x1]
    %v6687 = vlaneseq
    %v6688 = vshrl.u32 %v6687, 7
    %v6689 = vsub.s32 0, %v6688
    %v6690 = vrot.slane %v6685, %v6689
    %v6693 = vsel %vm1800, %v6665, 0
    %v6696 = vsel %vm1800, %v6666, 0
    %v6699 = vsel %vm1800, %v6667, 0
    %v6702 = vsel %vm1800, %v6668, 0
    %v6705 = vsel %vm1800, %v6669, 0
    %v6708 = vsel %vm1800, %v6670, 0
    %v6711 = vsel %vm1800, %v6671, 0
    %v6714 = vsel %vm1800, %v6672, 0
    %v6717 = vsel %vm1800, %v6673, 0
    %v6720 = vsel %vm1800, %v6674, 0
    %v6723 = vsel %vm1800, %v6675, 0
    %v6726 = vsel %vm1800, %v6676, 0
    %v6729 = vsel %vm1800, %v6677, 0
    %v6732 = vsel %vm1800, %v6678, 0
    %v6735 = vsel %vm1800, %v6679, 0
    %v6738 = vsel %vm1800, %v6680, 0
    %6740 = vmatprep.subr.mxu0 0.0
    %6741 = vmatpush1.msra.mxu0 %v6681
    %6742 = vmatprep.subr.mxu0 0.0
    %6743 = vmatpush1.msra.mxu0 %v6682
    %6744 = vmatprep.subr.mxu0 0.0
    %6745 = vmatpush1.msra.mxu0 %v6683
    %6746 = vmatprep.subr.mxu0 0.0
    %6747 = vmatpush1.msra.mxu0 %v6684
    %6748 = vmatprep.subr.mxu0 0.0
    %6749 = vmatpush1.msra.mxu0 0.0
    %6750 = vmatprep.subr.mxu0 0.0
    %6751 = vmatpush1.msra.mxu0 0.0
    %6752 = vmatprep.subr.mxu0 0.0
    %6753 = vmatpush1.msra.mxu0 0.0
    %6754 = vmatprep.subr.mxu0 0.0
    %6755 = vmatpush1.msra.mxu0 0.0
    %6756 = vmatprep.subr.mxu0 0.0
    %6757 = vmatpush1.msra.mxu0 0.0
    %6758 = vmatprep.subr.mxu0 0.0
    %6759 = vmatpush1.msra.mxu0 0.0
    %6760 = vmatprep.subr.mxu0 0.0
    %6761 = vmatpush1.msra.mxu0 0.0
    %6762 = vmatprep.subr.mxu0 0.0
    %6763 = vmatpush1.msra.mxu0 0.0
    %6764 = vmatprep.subr.mxu0 0.0
    %6765 = vmatpush1.msra.mxu0 0.0
    %6766 = vmatprep.subr.mxu0 0.0
    %6767 = vmatpush1.msra.mxu0 0.0
    %6768 = vmatprep.subr.mxu0 0.0
    %6769 = vmatpush1.msra.mxu0 0.0
    %6770 = vmatprep.subr.mxu0 0.0
    %6771 = vmatpush1.msra.mxu0 0.0
    %6772 = vmatprep.subr.mxu0 0.0
    %6773 = vmatpush1.msra.mxu0 0.0
    %6774 = vmatprep.subr.mxu0 0.0
    %6775 = vmatpush1.msra.mxu0 0.0
    %6776 = vmatprep.subr.mxu0 0.0
    %6777 = vmatpush1.msra.mxu0 0.0
    %6778 = vmatprep.subr.mxu0 0.0
    %6779 = vmatpush1.msra.mxu0 0.0
    %6780 = vmatprep.subr.mxu0 0.0
    %6781 = vmatpush1.msra.mxu0 0.0
    %6782 = vmatprep.subr.mxu0 0.0
    %6783 = vmatpush1.msra.mxu0 0.0
    %6784 = vmatprep.subr.mxu0 0.0
    %6785 = vmatpush1.msra.mxu0 0.0
    %6786 = vmatprep.subr.mxu0 0.0
    %6787 = vmatpush1.msra.mxu0 0.0
    %6788 = vmatprep.subr.mxu0 0.0
    %6789 = vmatpush1.msra.mxu0 0.0
    %6790 = vmatprep.subr.mxu0 0.0
    %6791 = vmatpush1.msra.mxu0 0.0
    %6792 = vmatprep.subr.mxu0 0.0
    %6793 = vmatpush1.msra.mxu0 0.0
    %6794 = vmatprep.subr.mxu0 0.0
    %6795 = vmatpush1.msra.mxu0 0.0
    %6796 = vmatprep.subr.mxu0 0.0
    %6797 = vmatpush1.msra.mxu0 0.0
    %6798 = vmatprep.subr.mxu0 0.0
    %6799 = vmatpush1.msra.mxu0 0.0
    %6800 = vmatprep.subr.mxu0 0.0
    %6801 = vmatpush1.msra.mxu0 0.0
    %6802 = vmatprep.subr.mxu0 0.0
    %6803 = vmatpush1.msra.mxu0 0.0
    %6804 = vmatprep.mubr.f32.mxu0 0.0
    %6805 = vmatmul.mubr.f32.gmra.mrb[0].mxu0 %v6693
    %v6806 = vpop.f32.mrb[0].mxu0
    %v6807 = vadd.f32 %v6690, %v6806
    %v6808 = vpop.f32.mrb[0].mxu0
    %6809 = vmatprep.mubr.f32.mxu0 0.0
    %6810 = vmatmul.mubr.f32.gmra.mrb[0].mxu0 %v6696
    %v6811 = vpop.f32.mrb[0].mxu0
    %v6812 = vadd.f32 %v6690, %v6811
    %v6813 = vpop.f32.mrb[0].mxu0
    %6814 = vmatprep.mubr.f32.mxu0 0.0
    %6815 = vmatmul.mubr.f32.gmra.mrb[0].mxu0 %v6699
    %v6816 = vpop.f32.mrb[0].mxu0
    %v6817 = vadd.f32 %v6690, %v6816
    %v6818 = vpop.f32.mrb[0].mxu0
    %6819 = vmatprep.mubr.f32.mxu0 0.0
    %6820 = vmatmul.mubr.f32.gmra.mrb[0].mxu0 %v6702
    %v6821 = vpop.f32.mrb[0].mxu0
    %v6822 = vadd.f32 %v6690, %v6821
    %v6823 = vpop.f32.mrb[0].mxu0
    %6824 = vmatprep.mubr.f32.mxu0 0.0
    %6825 = vmatmul.mubr.f32.gmra.mrb[0].mxu0 %v6705
    %v6826 = vpop.f32.mrb[0].mxu0
    %v6827 = vadd.f32 %v6690, %v6826
    %v6828 = vpop.f32.mrb[0].mxu0
    %6829 = vmatprep.mubr.f32.mxu0 0.0
    %6830 = vmatmul.mubr.f32.gmra.mrb[0].mxu0 %v6708
    %v6831 = vpop.f32.mrb[0].mxu0
    %v6832 = vadd.f32 %v6690, %v6831
    %v6833 = vpop.f32.mrb[0].mxu0
    %6834 = vmatprep.mubr.f32.mxu0 0.0
    %6835 = vmatmul.mubr.f32.gmra.mrb[0].mxu0 %v6711
    %v6836 = vpop.f32.mrb[0].mxu0
    %v6837 = vadd.f32 %v6690, %v6836
    %v6838 = vpop.f32.mrb[0].mxu0
    %6839 = vmatprep.mubr.f32.mxu0 0.0
    %6840 = vmatmul.mubr.f32.gmra.mrb[0].mxu0 %v6714
    %v6841 = vpop.f32.mrb[0].mxu0
    %v6842 = vadd.f32 %v6690, %v6841
    %v6843 = vpop.f32.mrb[0].mxu0
    %6844 = vmatprep.mubr.f32.mxu0 0.0
    %6845 = vmatmul.mubr.f32.gmra.mrb[0].mxu0 %v6717
    %v6846 = vpop.f32.mrb[0].mxu0
    %v6847 = vadd.f32 %v6690, %v6846
    %v6848 = vpop.f32.mrb[0].mxu0
    %6849 = vmatprep.mubr.f32.mxu0 0.0
    %6850 = vmatmul.mubr.f32.gmra.mrb[0].mxu0 %v6720
    %v6851 = vpop.f32.mrb[0].mxu0
    %v6852 = vadd.f32 %v6690, %v6851
    %v6853 = vpop.f32.mrb[0].mxu0
    %6854 = vmatprep.mubr.f32.mxu0 0.0
    %6855 = vmatmul.mubr.f32.gmra.mrb[0].mxu0 %v6723
    %v6856 = vpop.f32.mrb[0].mxu0
    %v6857 = vadd.f32 %v6690, %v6856
    %v6858 = vpop.f32.mrb[0].mxu0
    %6859 = vmatprep.mubr.f32.mxu0 0.0
    %6860 = vmatmul.mubr.f32.gmra.mrb[0].mxu0 %v6726
    %v6861 = vpop.f32.mrb[0].mxu0
    %v6862 = vadd.f32 %v6690, %v6861
    %v6863 = vpop.f32.mrb[0].mxu0
    %6864 = vmatprep.mubr.f32.mxu0 0.0
    %6865 = vmatmul.mubr.f32.gmra.mrb[0].mxu0 %v6729
    %v6866 = vpop.f32.mrb[0].mxu0
    %v6867 = vadd.f32 %v6690, %v6866
    %v6868 = vpop.f32.mrb[0].mxu0
    %6869 = vmatprep.mubr.f32.mxu0 0.0
    %6870 = vmatmul.mubr.f32.gmra.mrb[0].mxu0 %v6732
    %v6871 = vpop.f32.mrb[0].mxu0
    %v6872 = vadd.f32 %v6690, %v6871
    %v6873 = vpop.f32.mrb[0].mxu0
    %6874 = vmatprep.mubr.f32.mxu0 0.0
    %6875 = vmatmul.mubr.f32.gmra.mrb[0].mxu0 %v6735
    %v6876 = vpop.f32.mrb[0].mxu0
    %v6877 = vadd.f32 %v6690, %v6876
    %v6878 = vpop.f32.mrb[0].mxu0
    %6879 = vmatprep.mubr.f32.mxu0 0.0
    %6880 = vmatmul.mubr.f32.gmra.mrb[0].mxu0 %v6738
    %v6881 = vpop.f32.mrb[0].mxu0
    %v6882 = vadd.f32 %v6690, %v6881
    %v6883 = vpop.f32.mrb[0].mxu0
    %6884 = vdwg.mxu0
    %v6885 = vld [vmem:[%s8] sm:$0xff]
    %v6886 = vld [vmem:[%s8 + $0x8] sm:$0xff]
    %v6887 = vld [vmem:[%s9] sm:$0x1]
    %v6889 = vlaneseq
    %v6890 = vshrl.u32 %v6889, 7
    %v6891 = vsub.s32 0, %v6890
    %v6892 = vrot.slane %v6887, %v6891
    %vm6894 = vcmask 130048
    %v6896 = vsel %vm6894, %v6807, 0
    %v6899 = vsel %vm6894, %v6812, 0
    %v6902 = vsel %vm6894, %v6817, 0
    %v6905 = vsel %vm6894, %v6822, 0
    %v6908 = vsel %vm6894, %v6827, 0
    %v6911 = vsel %vm6894, %v6832, 0
    %v6914 = vsel %vm6894, %v6837, 0
    %v6917 = vsel %vm6894, %v6842, 0
    %v6920 = vsel %vm6894, %v6847, 0
    %v6923 = vsel %vm6894, %v6852, 0
    %v6926 = vsel %vm6894, %v6857, 0
    %v6929 = vsel %vm6894, %v6862, 0
    %v6932 = vsel %vm6894, %v6867, 0
    %v6935 = vsel %vm6894, %v6872, 0
    %v6938 = vsel %vm6894, %v6877, 0
    %v6941 = vsel %vm6894, %v6882, 0
    %6943 = vmatprep.subr.mxu0 0.0
    %6944 = vmatpush1.msra.mxu0 %v6885
    %6945 = vmatprep.subr.mxu0 0.0
    %6946 = vmatpush1.msra.mxu0 %v6886
    %6947 = vmatprep.subr.mxu0 0.0
    %6948 = vmatpush1.msra.mxu0 0.0
    %6949 = vmatprep.subr.mxu0 0.0
    %6950 = vmatpush1.msra.mxu0 0.0
    %6951 = vmatprep.subr.mxu0 0.0
    %6952 = vmatpush1.msra.mxu0 0.0
    %6953 = vmatprep.subr.mxu0 0.0
    %6954 = vmatpush1.msra.mxu0 0.0
    %6955 = vmatprep.subr.mxu0 0.0
    %6956 = vmatpush1.msra.mxu0 0.0
    %6957 = vmatprep.subr.mxu0 0.0
    %6958 = vmatpush1.msra.mxu0 0.0
    %6959 = vmatprep.subr.mxu0 0.0
    %6960 = vmatpush1.msra.mxu0 0.0
    %6961 = vmatprep.subr.mxu0 0.0
    %6962 = vmatpush1.msra.mxu0 0.0
    %6963 = vmatprep.subr.mxu0 0.0
    %6964 = vmatpush1.msra.mxu0 0.0
    %6965 = vmatprep.subr.mxu0 0.0
    %6966 = vmatpush1.msra.mxu0 0.0
    %6967 = vmatprep.subr.mxu0 0.0
    %6968 = vmatpush1.msra.mxu0 0.0
    %6969 = vmatprep.subr.mxu0 0.0
    %6970 = vmatpush1.msra.mxu0 0.0
    %6971 = vmatprep.subr.mxu0 0.0
    %6972 = vmatpush1.msra.mxu0 0.0
    %6973 = vmatprep.subr.mxu0 0.0
    %6974 = vmatpush1.msra.mxu0 0.0
    %6975 = vmatprep.subr.mxu0 0.0
    %6976 = vmatpush1.msra.mxu0 0.0
    %6977 = vmatprep.subr.mxu0 0.0
    %6978 = vmatpush1.msra.mxu0 0.0
    %6979 = vmatprep.subr.mxu0 0.0
    %6980 = vmatpush1.msra.mxu0 0.0
    %6981 = vmatprep.subr.mxu0 0.0
    %6982 = vmatpush1.msra.mxu0 0.0
    %6983 = vmatprep.subr.mxu0 0.0
    %6984 = vmatpush1.msra.mxu0 0.0
    %6985 = vmatprep.subr.mxu0 0.0
    %6986 = vmatpush1.msra.mxu0 0.0
    %6987 = vmatprep.subr.mxu0 0.0
    %6988 = vmatpush1.msra.mxu0 0.0
    %6989 = vmatprep.subr.mxu0 0.0
    %6990 = vmatpush1.msra.mxu0 0.0
    %6991 = vmatprep.subr.mxu0 0.0
    %6992 = vmatpush1.msra.mxu0 0.0
    %6993 = vmatprep.subr.mxu0 0.0
    %6994 = vmatpush1.msra.mxu0 0.0
    %6995 = vmatprep.subr.mxu0 0.0
    %6996 = vmatpush1.msra.mxu0 0.0
    %6997 = vmatprep.subr.mxu0 0.0
    %6998 = vmatpush1.msra.mxu0 0.0
    %6999 = vmatprep.subr.mxu0 0.0
    %7000 = vmatpush1.msra.mxu0 0.0
    %7001 = vmatprep.subr.mxu0 0.0
    %7002 = vmatpush1.msra.mxu0 0.0
    %7003 = vmatprep.subr.mxu0 0.0
    %7004 = vmatpush1.msra.mxu0 0.0
    %7005 = vmatprep.subr.mxu0 0.0
    %7006 = vmatpush1.msra.mxu0 0.0
    %7007 = vmatprep.mubr.f32.mxu0 0.0
    %7008 = vmatmul.mubr.f32.gmra.mrb[0].mxu0 %v6896
    %v7009 = vpop.f32.mrb[0].mxu0
    %v7010 = vadd.f32 %v6892, %v7009
    %v7011 = vpop.f32.mrb[0].mxu0
    %7012 = vmatprep.mubr.f32.mxu0 0.0
    %7013 = vmatmul.mubr.f32.gmra.mrb[0].mxu0 %v6899
    %v7014 = vpop.f32.mrb[0].mxu0
    %v7015 = vadd.f32 %v6892, %v7014
    %v7016 = vpop.f32.mrb[0].mxu0
    %7017 = vmatprep.mubr.f32.mxu0 0.0
    %7018 = vmatmul.mubr.f32.gmra.mrb[0].mxu0 %v6902
    %v7019 = vpop.f32.mrb[0].mxu0
    %v7020 = vadd.f32 %v6892, %v7019
    %v7021 = vpop.f32.mrb[0].mxu0
    %7022 = vmatprep.mubr.f32.mxu0 0.0
    %7023 = vmatmul.mubr.f32.gmra.mrb[0].mxu0 %v6905
    %v7024 = vpop.f32.mrb[0].mxu0
    %v7025 = vadd.f32 %v6892, %v7024
    %v7026 = vpop.f32.mrb[0].mxu0
    %7027 = vmatprep.mubr.f32.mxu0 0.0
    %7028 = vmatmul.mubr.f32.gmra.mrb[0].mxu0 %v6908
    %v7029 = vpop.f32.mrb[0].mxu0
    %v7030 = vadd.f32 %v6892, %v7029
    %v7031 = vpop.f32.mrb[0].mxu0
    %7032 = vmatprep.mubr.f32.mxu0 0.0
    %7033 = vmatmul.mubr.f32.gmra.mrb[0].mxu0 %v6911
    %v7034 = vpop.f32.mrb[0].mxu0
    %v7035 = vadd.f32 %v6892, %v7034
    %v7036 = vpop.f32.mrb[0].mxu0
    %7037 = vmatprep.mubr.f32.mxu0 0.0
    %7038 = vmatmul.mubr.f32.gmra.mrb[0].mxu0 %v6914
    %v7039 = vpop.f32.mrb[0].mxu0
    %v7040 = vadd.f32 %v6892, %v7039
    %v7041 = vpop.f32.mrb[0].mxu0
    %7042 = vmatprep.mubr.f32.mxu0 0.0
    %7043 = vmatmul.mubr.f32.gmra.mrb[0].mxu0 %v6917
    %v7044 = vpop.f32.mrb[0].mxu0
    %v7045 = vadd.f32 %v6892, %v7044
    %v7046 = vpop.f32.mrb[0].mxu0
    %7047 = vmatprep.mubr.f32.mxu0 0.0
    %7048 = vmatmul.mubr.f32.gmra.mrb[0].mxu0 %v6920
    %v7049 = vpop.f32.mrb[0].mxu0
    %v7050 = vadd.f32 %v6892, %v7049
    %v7051 = vpop.f32.mrb[0].mxu0
    %7052 = vmatprep.mubr.f32.mxu0 0.0
    %7053 = vmatmul.mubr.f32.gmra.mrb[0].mxu0 %v6923
    %v7054 = vpop.f32.mrb[0].mxu0
    %v7055 = vadd.f32 %v6892, %v7054
    %v7056 = vpop.f32.mrb[0].mxu0
    %7057 = vmatprep.mubr.f32.mxu0 0.0
    %7058 = vmatmul.mubr.f32.gmra.mrb[0].mxu0 %v6926
    %v7059 = vpop.f32.mrb[0].mxu0
    %v7060 = vadd.f32 %v6892, %v7059
    %v7061 = vpop.f32.mrb[0].mxu0
    %7062 = vmatprep.mubr.f32.mxu0 0.0
    %7063 = vmatmul.mubr.f32.gmra.mrb[0].mxu0 %v6929
    %v7064 = vpop.f32.mrb[0].mxu0
    %v7065 = vadd.f32 %v6892, %v7064
    %v7066 = vpop.f32.mrb[0].mxu0
    %7067 = vmatprep.mubr.f32.mxu0 0.0
    %7068 = vmatmul.mubr.f32.gmra.mrb[0].mxu0 %v6932
    %v7069 = vpop.f32.mrb[0].mxu0
    %v7070 = vadd.f32 %v6892, %v7069
    %v7071 = vpop.f32.mrb[0].mxu0
    %7072 = vmatprep.mubr.f32.mxu0 0.0
    %7073 = vmatmul.mubr.f32.gmra.mrb[0].mxu0 %v6935
    %v7074 = vpop.f32.mrb[0].mxu0
    %v7075 = vadd.f32 %v6892, %v7074
    %v7076 = vpop.f32.mrb[0].mxu0
    %7077 = vmatprep.mubr.f32.mxu0 0.0
    %7078 = vmatmul.mubr.f32.gmra.mrb[0].mxu0 %v6938
    %v7079 = vpop.f32.mrb[0].mxu0
    %v7080 = vadd.f32 %v6892, %v7079
    %v7081 = vpop.f32.mrb[0].mxu0
    %7082 = vmatprep.mubr.f32.mxu0 0.0
    %7083 = vmatmul.mubr.f32.gmra.mrb[0].mxu0 %v6941
    %v7084 = vpop.f32.mrb[0].mxu0
    %v7085 = vadd.f32 %v6892, %v7084
    %v7086 = vpop.f32.mrb[0].mxu0
    %7087 = vdwg.mxu0
    %v7088 = vmax.f32 %v7010, 0.0
    %v7089 = vmax.f32 %v7015, 0.0
    %v7090 = vmax.f32 %v7020, 0.0
    %v7091 = vmax.f32 %v7025, 0.0
    %v7092 = vmax.f32 %v7030, 0.0
    %v7093 = vmax.f32 %v7035, 0.0
    %v7094 = vmax.f32 %v7040, 0.0
    %v7095 = vmax.f32 %v7045, 0.0
    %v7096 = vmax.f32 %v7050, 0.0
    %v7097 = vmax.f32 %v7055, 0.0
    %v7098 = vmax.f32 %v7060, 0.0
    %v7099 = vmax.f32 %v7065, 0.0
    %v7100 = vmax.f32 %v7070, 0.0
    %v7101 = vmax.f32 %v7075, 0.0
    %v7102 = vmax.f32 %v7080, 0.0
    %v7103 = vmax.f32 %v7085, 0.0
    %v7104 = vld [vmem:[%s11] sm:$0xff]
    %v7105 = vld [vmem:[%s11 + $0x8] sm:$0xff]
    %v7106 = vld [vmem:[%s11 + $0x10] sm:$0xff]
    %v7107 = vld [vmem:[%s11 + $0x18] sm:$0xff]
    %v7108 = vld [vmem:[%s12] sm:$0x1]
    %v7110 = vlaneseq
    %v7111 = vshrl.u32 %v7110, 7
    %v7112 = vsub.s32 0, %v7111
    %v7113 = vrot.slane %v7108, %v7112
    %v7116 = vsel %vm1800, %v7088, 0
    %v7119 = vsel %vm1800, %v7089, 0
    %v7122 = vsel %vm1800, %v7090, 0
    %v7125 = vsel %vm1800, %v7091, 0
    %v7128 = vsel %vm1800, %v7092, 0
    %v7131 = vsel %vm1800, %v7093, 0
    %v7134 = vsel %vm1800, %v7094, 0
    %v7137 = vsel %vm1800, %v7095, 0
    %v7140 = vsel %vm1800, %v7096, 0
    %v7143 = vsel %vm1800, %v7097, 0
    %v7146 = vsel %vm1800, %v7098, 0
    %v7149 = vsel %vm1800, %v7099, 0
    %v7152 = vsel %vm1800, %v7100, 0
    %v7155 = vsel %vm1800, %v7101, 0
    %v7158 = vsel %vm1800, %v7102, 0
    %v7161 = vsel %vm1800, %v7103, 0
    %7163 = vmatprep.subr.mxu0 0.0
    %7164 = vmatpush1.msra.mxu0 %v7104
    %7165 = vmatprep.subr.mxu0 0.0
    %7166 = vmatpush1.msra.mxu0 %v7105
    %7167 = vmatprep.subr.mxu0 0.0
    %7168 = vmatpush1.msra.mxu0 %v7106
    %7169 = vmatprep.subr.mxu0 0.0
    %7170 = vmatpush1.msra.mxu0 %v7107
    %7171 = vmatprep.subr.mxu0 0.0
    %7172 = vmatpush1.msra.mxu0 0.0
    %7173 = vmatprep.subr.mxu0 0.0
    %7174 = vmatpush1.msra.mxu0 0.0
    %7175 = vmatprep.subr.mxu0 0.0
    %7176 = vmatpush1.msra.mxu0 0.0
    %7177 = vmatprep.subr.mxu0 0.0
    %7178 = vmatpush1.msra.mxu0 0.0
    %7179 = vmatprep.subr.mxu0 0.0
    %7180 = vmatpush1.msra.mxu0 0.0
    %7181 = vmatprep.subr.mxu0 0.0
    %7182 = vmatpush1.msra.mxu0 0.0
    %7183 = vmatprep.subr.mxu0 0.0
    %7184 = vmatpush1.msra.mxu0 0.0
    %7185 = vmatprep.subr.mxu0 0.0
    %7186 = vmatpush1.msra.mxu0 0.0
    %7187 = vmatprep.subr.mxu0 0.0
    %7188 = vmatpush1.msra.mxu0 0.0
    %7189 = vmatprep.subr.mxu0 0.0
    %7190 = vmatpush1.msra.mxu0 0.0
    %7191 = vmatprep.subr.mxu0 0.0
    %7192 = vmatpush1.msra.mxu0 0.0
    %7193 = vmatprep.subr.mxu0 0.0
    %7194 = vmatpush1.msra.mxu0 0.0
    %7195 = vmatprep.subr.mxu0 0.0
    %7196 = vmatpush1.msra.mxu0 0.0
    %7197 = vmatprep.subr.mxu0 0.0
    %7198 = vmatpush1.msra.mxu0 0.0
    %7199 = vmatprep.subr.mxu0 0.0
    %7200 = vmatpush1.msra.mxu0 0.0
    %7201 = vmatprep.subr.mxu0 0.0
    %7202 = vmatpush1.msra.mxu0 0.0
    %7203 = vmatprep.subr.mxu0 0.0
    %7204 = vmatpush1.msra.mxu0 0.0
    %7205 = vmatprep.subr.mxu0 0.0
    %7206 = vmatpush1.msra.mxu0 0.0
    %7207 = vmatprep.subr.mxu0 0.0
    %7208 = vmatpush1.msra.mxu0 0.0
    %7209 = vmatprep.subr.mxu0 0.0
    %7210 = vmatpush1.msra.mxu0 0.0
    %7211 = vmatprep.subr.mxu0 0.0
    %7212 = vmatpush1.msra.mxu0 0.0
    %7213 = vmatprep.subr.mxu0 0.0
    %7214 = vmatpush1.msra.mxu0 0.0
    %7215 = vmatprep.subr.mxu0 0.0
    %7216 = vmatpush1.msra.mxu0 0.0
    %7217 = vmatprep.subr.mxu0 0.0
    %7218 = vmatpush1.msra.mxu0 0.0
    %7219 = vmatprep.subr.mxu0 0.0
    %7220 = vmatpush1.msra.mxu0 0.0
    %7221 = vmatprep.subr.mxu0 0.0
    %7222 = vmatpush1.msra.mxu0 0.0
    %7223 = vmatprep.subr.mxu0 0.0
    %7224 = vmatpush1.msra.mxu0 0.0
    %7225 = vmatprep.subr.mxu0 0.0
    %7226 = vmatpush1.msra.mxu0 0.0
    %7227 = vmatprep.mubr.f32.mxu0 0.0
    %7228 = vmatmul.mubr.f32.gmra.mrb[0].mxu0 %v7116
    %v7229 = vpop.f32.mrb[0].mxu0
    %v7230 = vadd.f32 %v7113, %v7229
    %v7231 = vpop.f32.mrb[0].mxu0
    %7232 = vmatprep.mubr.f32.mxu0 0.0
    %7233 = vmatmul.mubr.f32.gmra.mrb[0].mxu0 %v7119
    %v7234 = vpop.f32.mrb[0].mxu0
    %v7235 = vadd.f32 %v7113, %v7234
    %v7236 = vpop.f32.mrb[0].mxu0
    %7237 = vmatprep.mubr.f32.mxu0 0.0
    %7238 = vmatmul.mubr.f32.gmra.mrb[0].mxu0 %v7122
    %v7239 = vpop.f32.mrb[0].mxu0
    %v7240 = vadd.f32 %v7113, %v7239
    %v7241 = vpop.f32.mrb[0].mxu0
    %7242 = vmatprep.mubr.f32.mxu0 0.0
    %7243 = vmatmul.mubr.f32.gmra.mrb[0].mxu0 %v7125
    %v7244 = vpop.f32.mrb[0].mxu0
    %v7245 = vadd.f32 %v7113, %v7244
    %v7246 = vpop.f32.mrb[0].mxu0
    %7247 = vmatprep.mubr.f32.mxu0 0.0
    %7248 = vmatmul.mubr.f32.gmra.mrb[0].mxu0 %v7128
    %v7249 = vpop.f32.mrb[0].mxu0
    %v7250 = vadd.f32 %v7113, %v7249
    %v7251 = vpop.f32.mrb[0].mxu0
    %7252 = vmatprep.mubr.f32.mxu0 0.0
    %7253 = vmatmul.mubr.f32.gmra.mrb[0].mxu0 %v7131
    %v7254 = vpop.f32.mrb[0].mxu0
    %v7255 = vadd.f32 %v7113, %v7254
    %v7256 = vpop.f32.mrb[0].mxu0
    %7257 = vmatprep.mubr.f32.mxu0 0.0
    %7258 = vmatmul.mubr.f32.gmra.mrb[0].mxu0 %v7134
    %v7259 = vpop.f32.mrb[0].mxu0
    %v7260 = vadd.f32 %v7113, %v7259
    %v7261 = vpop.f32.mrb[0].mxu0
    %7262 = vmatprep.mubr.f32.mxu0 0.0
    %7263 = vmatmul.mubr.f32.gmra.mrb[0].mxu0 %v7137
    %v7264 = vpop.f32.mrb[0].mxu0
    %v7265 = vadd.f32 %v7113, %v7264
    %v7266 = vpop.f32.mrb[0].mxu0
    %7267 = vmatprep.mubr.f32.mxu0 0.0
    %7268 = vmatmul.mubr.f32.gmra.mrb[0].mxu0 %v7140
    %v7269 = vpop.f32.mrb[0].mxu0
    %v7270 = vadd.f32 %v7113, %v7269
    %v7271 = vpop.f32.mrb[0].mxu0
    %7272 = vmatprep.mubr.f32.mxu0 0.0
    %7273 = vmatmul.mubr.f32.gmra.mrb[0].mxu0 %v7143
    %v7274 = vpop.f32.mrb[0].mxu0
    %v7275 = vadd.f32 %v7113, %v7274
    %v7276 = vpop.f32.mrb[0].mxu0
    %7277 = vmatprep.mubr.f32.mxu0 0.0
    %7278 = vmatmul.mubr.f32.gmra.mrb[0].mxu0 %v7146
    %v7279 = vpop.f32.mrb[0].mxu0
    %v7280 = vadd.f32 %v7113, %v7279
    %v7281 = vpop.f32.mrb[0].mxu0
    %7282 = vmatprep.mubr.f32.mxu0 0.0
    %7283 = vmatmul.mubr.f32.gmra.mrb[0].mxu0 %v7149
    %v7284 = vpop.f32.mrb[0].mxu0
    %v7285 = vadd.f32 %v7113, %v7284
    %v7286 = vpop.f32.mrb[0].mxu0
    %7287 = vmatprep.mubr.f32.mxu0 0.0
    %7288 = vmatmul.mubr.f32.gmra.mrb[0].mxu0 %v7152
    %v7289 = vpop.f32.mrb[0].mxu0
    %v7290 = vadd.f32 %v7113, %v7289
    %v7291 = vpop.f32.mrb[0].mxu0
    %7292 = vmatprep.mubr.f32.mxu0 0.0
    %7293 = vmatmul.mubr.f32.gmra.mrb[0].mxu0 %v7155
    %v7294 = vpop.f32.mrb[0].mxu0
    %v7295 = vadd.f32 %v7113, %v7294
    %v7296 = vpop.f32.mrb[0].mxu0
    %7297 = vmatprep.mubr.f32.mxu0 0.0
    %7298 = vmatmul.mubr.f32.gmra.mrb[0].mxu0 %v7158
    %v7299 = vpop.f32.mrb[0].mxu0
    %v7300 = vadd.f32 %v7113, %v7299
    %v7301 = vpop.f32.mrb[0].mxu0
    %7302 = vmatprep.mubr.f32.mxu0 0.0
    %7303 = vmatmul.mubr.f32.gmra.mrb[0].mxu0 %v7161
    %v7304 = vpop.f32.mrb[0].mxu0
    %v7305 = vadd.f32 %v7113, %v7304
    %v7306 = vpop.f32.mrb[0].mxu0
    %7307 = vdwg.mxu0
    %v7308 = vld [vmem:[%s10] sm:$0xff]
    %v7309 = vld [vmem:[%s1] sm:$0xff]
    %v7310 = vld [vmem:[%s1 + $0x8] sm:$0xff]
    %v7311 = vld [vmem:[%s1 + $0x10] sm:$0xff]
    %v7312 = vld [vmem:[%s1 + $0x18] sm:$0xff]
    %v7313 = vld [vmem:[%s1 + $0x20] sm:$0xff]
    %v7314 = vld [vmem:[%s1 + $0x28] sm:$0xff]
    %v7315 = vld [vmem:[%s1 + $0x30] sm:$0xff]
    %v7316 = vld [vmem:[%s1 + $0x38] sm:$0xff]
    %v7317 = vld [vmem:[%s1 + $0x40] sm:$0xff]
    %v7318 = vld [vmem:[%s1 + $0x48] sm:$0xff]
    %v7319 = vld [vmem:[%s1 + $0x50] sm:$0xff]
    %v7320 = vld [vmem:[%s1 + $0x58] sm:$0xff]
    %v7321 = vld [vmem:[%s1 + $0x60] sm:$0xff]
    %v7322 = vld [vmem:[%s1 + $0x68] sm:$0xff]
    %v7323 = vld [vmem:[%s1 + $0x70] sm:$0xff]
    %v7324 = vld [vmem:[%s1 + $0x78] sm:$0xff]
    %vm7325 = vcmask 64512
    %v7327 = vsel %vm7325, %v7309, 0
    %v7330 = vsel %vm7325, %v7310, 0
    %v7333 = vsel %vm7325, %v7311, 0
    %v7336 = vsel %vm7325, %v7312, 0
    %v7339 = vsel %vm7325, %v7313, 0
    %v7342 = vsel %vm7325, %v7314, 0
    %v7345 = vsel %vm7325, %v7315, 0
    %v7348 = vsel %vm7325, %v7316, 0
    %v7351 = vsel %vm7325, %v7317, 0
    %v7354 = vsel %vm7325, %v7318, 0
    %v7357 = vsel %vm7325, %v7319, 0
    %v7360 = vsel %vm7325, %v7320, 0
    %v7363 = vsel %vm7325, %v7321, 0
    %v7366 = vsel %vm7325, %v7322, 0
    %v7369 = vsel %vm7325, %v7323, 0
    %v7372 = vsel %vm7325, %v7324, 0
    %7374 = vmatprep.subr.mxu0 0.0
    %7375 = vmatpush1.msra.mxu0 %v7308
    %7376 = vmatprep.subr.mxu0 0.0
    %7377 = vmatpush1.msra.mxu0 0.0
    %7378 = vmatprep.subr.mxu0 0.0
    %7379 = vmatpush1.msra.mxu0 0.0
    %7380 = vmatprep.subr.mxu0 0.0
    %7381 = vmatpush1.msra.mxu0 0.0
    %7382 = vmatprep.subr.mxu0 0.0
    %7383 = vmatpush1.msra.mxu0 0.0
    %7384 = vmatprep.subr.mxu0 0.0
    %7385 = vmatpush1.msra.mxu0 0.0
    %7386 = vmatprep.subr.mxu0 0.0
    %7387 = vmatpush1.msra.mxu0 0.0
    %7388 = vmatprep.subr.mxu0 0.0
    %7389 = vmatpush1.msra.mxu0 0.0
    %7390 = vmatprep.subr.mxu0 0.0
    %7391 = vmatpush1.msra.mxu0 0.0
    %7392 = vmatprep.subr.mxu0 0.0
    %7393 = vmatpush1.msra.mxu0 0.0
    %7394 = vmatprep.subr.mxu0 0.0
    %7395 = vmatpush1.msra.mxu0 0.0
    %7396 = vmatprep.subr.mxu0 0.0
    %7397 = vmatpush1.msra.mxu0 0.0
    %7398 = vmatprep.subr.mxu0 0.0
    %7399 = vmatpush1.msra.mxu0 0.0
    %7400 = vmatprep.subr.mxu0 0.0
    %7401 = vmatpush1.msra.mxu0 0.0
    %7402 = vmatprep.subr.mxu0 0.0
    %7403 = vmatpush1.msra.mxu0 0.0
    %7404 = vmatprep.subr.mxu0 0.0
    %7405 = vmatpush1.msra.mxu0 0.0
    %7406 = vmatprep.subr.mxu0 0.0
    %7407 = vmatpush1.msra.mxu0 0.0
    %7408 = vmatprep.subr.mxu0 0.0
    %7409 = vmatpush1.msra.mxu0 0.0
    %7410 = vmatprep.subr.mxu0 0.0
    %7411 = vmatpush1.msra.mxu0 0.0
    %7412 = vmatprep.subr.mxu0 0.0
    %7413 = vmatpush1.msra.mxu0 0.0
    %7414 = vmatprep.subr.mxu0 0.0
    %7415 = vmatpush1.msra.mxu0 0.0
    %7416 = vmatprep.subr.mxu0 0.0
    %7417 = vmatpush1.msra.mxu0 0.0
    %7418 = vmatprep.subr.mxu0 0.0
    %7419 = vmatpush1.msra.mxu0 0.0
    %7420 = vmatprep.subr.mxu0 0.0
    %7421 = vmatpush1.msra.mxu0 0.0
    %7422 = vmatprep.subr.mxu0 0.0
    %7423 = vmatpush1.msra.mxu0 0.0
    %7424 = vmatprep.subr.mxu0 0.0
    %7425 = vmatpush1.msra.mxu0 0.0
    %7426 = vmatprep.subr.mxu0 0.0
    %7427 = vmatpush1.msra.mxu0 0.0
    %7428 = vmatprep.subr.mxu0 0.0
    %7429 = vmatpush1.msra.mxu0 0.0
    %7430 = vmatprep.subr.mxu0 0.0
    %7431 = vmatpush1.msra.mxu0 0.0
    %7432 = vmatprep.subr.mxu0 0.0
    %7433 = vmatpush1.msra.mxu0 0.0
    %7434 = vmatprep.subr.mxu0 0.0
    %7435 = vmatpush1.msra.mxu0 0.0
    %7436 = vmatprep.subr.mxu0 0.0
    %7437 = vmatpush1.msra.mxu0 0.0
    %7438 = vmatprep.mubr.f32.mxu0 0.0
    %7439 = vmatmul.mubr.f32.gmra.mrb[0].mxu0 %v7327
    %v7440 = vpop.f32.mrb[0].mxu0
    %v7441 = vadd.f32 %v7230, %v7440
    %v7442 = vpop.f32.mrb[0].mxu0
    %7443 = vmatprep.mubr.f32.mxu0 0.0
    %7444 = vmatmul.mubr.f32.gmra.mrb[0].mxu0 %v7330
    %v7445 = vpop.f32.mrb[0].mxu0
    %v7446 = vadd.f32 %v7235, %v7445
    %v7447 = vpop.f32.mrb[0].mxu0
    %7448 = vmatprep.mubr.f32.mxu0 0.0
    %7449 = vmatmul.mubr.f32.gmra.mrb[0].mxu0 %v7333
    %v7450 = vpop.f32.mrb[0].mxu0
    %v7451 = vadd.f32 %v7240, %v7450
    %v7452 = vpop.f32.mrb[0].mxu0
    %7453 = vmatprep.mubr.f32.mxu0 0.0
    %7454 = vmatmul.mubr.f32.gmra.mrb[0].mxu0 %v7336
    %v7455 = vpop.f32.mrb[0].mxu0
    %v7456 = vadd.f32 %v7245, %v7455
    %v7457 = vpop.f32.mrb[0].mxu0
    %7458 = vmatprep.mubr.f32.mxu0 0.0
    %7459 = vmatmul.mubr.f32.gmra.mrb[0].mxu0 %v7339
    %v7460 = vpop.f32.mrb[0].mxu0
    %v7461 = vadd.f32 %v7250, %v7460
    %v7462 = vpop.f32.mrb[0].mxu0
    %7463 = vmatprep.mubr.f32.mxu0 0.0
    %7464 = vmatmul.mubr.f32.gmra.mrb[0].mxu0 %v7342
    %v7465 = vpop.f32.mrb[0].mxu0
    %v7466 = vadd.f32 %v7255, %v7465
    %v7467 = vpop.f32.mrb[0].mxu0
    %7468 = vmatprep.mubr.f32.mxu0 0.0
    %7469 = vmatmul.mubr.f32.gmra.mrb[0].mxu0 %v7345
    %v7470 = vpop.f32.mrb[0].mxu0
    %v7471 = vadd.f32 %v7260, %v7470
    %v7472 = vpop.f32.mrb[0].mxu0
    %7473 = vmatprep.mubr.f32.mxu0 0.0
    %7474 = vmatmul.mubr.f32.gmra.mrb[0].mxu0 %v7348
    %v7475 = vpop.f32.mrb[0].mxu0
    %v7476 = vadd.f32 %v7265, %v7475
    %v7477 = vpop.f32.mrb[0].mxu0
    %7478 = vmatprep.mubr.f32.mxu0 0.0
    %7479 = vmatmul.mubr.f32.gmra.mrb[0].mxu0 %v7351
    %v7480 = vpop.f32.mrb[0].mxu0
    %v7481 = vadd.f32 %v7270, %v7480
    %v7482 = vpop.f32.mrb[0].mxu0
    %7483 = vmatprep.mubr.f32.mxu0 0.0
    %7484 = vmatmul.mubr.f32.gmra.mrb[0].mxu0 %v7354
    %v7485 = vpop.f32.mrb[0].mxu0
    %v7486 = vadd.f32 %v7275, %v7485
    %v7487 = vpop.f32.mrb[0].mxu0
    %7488 = vmatprep.mubr.f32.mxu0 0.0
    %7489 = vmatmul.mubr.f32.gmra.mrb[0].mxu0 %v7357
    %v7490 = vpop.f32.mrb[0].mxu0
    %v7491 = vadd.f32 %v7280, %v7490
    %v7492 = vpop.f32.mrb[0].mxu0
    %7493 = vmatprep.mubr.f32.mxu0 0.0
    %7494 = vmatmul.mubr.f32.gmra.mrb[0].mxu0 %v7360
    %v7495 = vpop.f32.mrb[0].mxu0
    %v7496 = vadd.f32 %v7285, %v7495
    %v7497 = vpop.f32.mrb[0].mxu0
    %7498 = vmatprep.mubr.f32.mxu0 0.0
    %7499 = vmatmul.mubr.f32.gmra.mrb[0].mxu0 %v7363
    %v7500 = vpop.f32.mrb[0].mxu0
    %v7501 = vadd.f32 %v7290, %v7500
    %v7502 = vpop.f32.mrb[0].mxu0
    %7503 = vmatprep.mubr.f32.mxu0 0.0
    %7504 = vmatmul.mubr.f32.gmra.mrb[0].mxu0 %v7366
    %v7505 = vpop.f32.mrb[0].mxu0
    %v7506 = vadd.f32 %v7295, %v7505
    %v7507 = vpop.f32.mrb[0].mxu0
    %7508 = vmatprep.mubr.f32.mxu0 0.0
    %7509 = vmatmul.mubr.f32.gmra.mrb[0].mxu0 %v7369
    %v7510 = vpop.f32.mrb[0].mxu0
    %v7511 = vadd.f32 %v7300, %v7510
    %v7512 = vpop.f32.mrb[0].mxu0
    %7513 = vmatprep.mubr.f32.mxu0 0.0
    %7514 = vmatmul.mubr.f32.gmra.mrb[0].mxu0 %v7372
    %v7515 = vpop.f32.mrb[0].mxu0
    %v7516 = vadd.f32 %v7305, %v7515
    %v7517 = vpop.f32.mrb[0].mxu0
    %7518 = vdwg.mxu0
    %v7519 = vtanh.pop %v7441
    %v7520 = vtanh.pop %v7446
    %v7521 = vtanh.pop %v7451
    %v7522 = vtanh.pop %v7456
    %v7523 = vtanh.pop %v7461
    %v7524 = vtanh.pop %v7466
    %v7525 = vtanh.pop %v7471
    %v7526 = vtanh.pop %v7476
    %v7527 = vtanh.pop %v7481
    %v7528 = vtanh.pop %v7486
    %v7529 = vtanh.pop %v7491
    %v7530 = vtanh.pop %v7496
    %v7531 = vtanh.pop %v7501
    %v7532 = vtanh.pop %v7506
    %v7533 = vtanh.pop %v7511
    %v7534 = vtanh.pop %v7516
    %v7535 = vsub.f32 %v7309, %v7441
    %v7536 = vsub.f32 %v7310, %v7446
    %v7537 = vsub.f32 %v7311, %v7451
    %v7538 = vsub.f32 %v7312, %v7456
    %v7539 = vsub.f32 %v7313, %v7461
    %v7540 = vsub.f32 %v7314, %v7466
    %v7541 = vsub.f32 %v7315, %v7471
    %v7542 = vsub.f32 %v7316, %v7476
    %v7543 = vsub.f32 %v7317, %v7481
    %v7544 = vsub.f32 %v7318, %v7486
    %v7545 = vsub.f32 %v7319, %v7491
    %v7546 = vsub.f32 %v7320, %v7496
    %v7547 = vsub.f32 %v7321, %v7501
    %v7548 = vsub.f32 %v7322, %v7506
    %v7549 = vsub.f32 %v7323, %v7511
    %v7550 = vsub.f32 %v7324, %v7516
    %v7551 = vsub.f32 0.0, %v7519
    %v7552 = vsub.f32 0.0, %v7520
    %v7553 = vsub.f32 0.0, %v7521
    %v7554 = vsub.f32 0.0, %v7522
    %v7555 = vsub.f32 0.0, %v7523
    %v7556 = vsub.f32 0.0, %v7524
    %v7557 = vsub.f32 0.0, %v7525
    %v7558 = vsub.f32 0.0, %v7526
    %v7559 = vsub.f32 0.0, %v7527
    %v7560 = vsub.f32 0.0, %v7528
    %v7561 = vsub.f32 0.0, %v7529
    %v7562 = vsub.f32 0.0, %v7530
    %v7563 = vsub.f32 0.0, %v7531
    %v7564 = vsub.f32 0.0, %v7532
    %v7565 = vsub.f32 0.0, %v7533
    %v7566 = vsub.f32 0.0, %v7534
    %v7567 = vmul.f32 %v7551, 1.442695
    %v7568 = vpow.pop %v7567
    %v7569 = vmul.f32 %v7552, 1.442695
    %v7570 = vpow.pop %v7569
    %v7571 = vmul.f32 %v7553, 1.442695
    %v7572 = vpow.pop %v7571
    %v7573 = vmul.f32 %v7554, 1.442695
    %v7574 = vpow.pop %v7573
    %v7575 = vmul.f32 %v7555, 1.442695
    %v7576 = vpow.pop %v7575
    %v7577 = vmul.f32 %v7556, 1.442695
    %v7578 = vpow.pop %v7577
    %v7579 = vmul.f32 %v7557, 1.442695
    %v7580 = vpow.pop %v7579
    %v7581 = vmul.f32 %v7558, 1.442695
    %v7582 = vpow.pop %v7581
    %v7583 = vmul.f32 %v7559, 1.442695
    %v7584 = vpow.pop %v7583
    %v7585 = vmul.f32 %v7560, 1.442695
    %v7586 = vpow.pop %v7585
    %v7587 = vmul.f32 %v7561, 1.442695
    %v7588 = vpow.pop %v7587
    %v7589 = vmul.f32 %v7562, 1.442695
    %v7590 = vpow.pop %v7589
    %v7591 = vmul.f32 %v7563, 1.442695
    %v7592 = vpow.pop %v7591
    %v7593 = vmul.f32 %v7564, 1.442695
    %v7594 = vpow.pop %v7593
    %v7595 = vmul.f32 %v7565, 1.442695
    %v7596 = vpow.pop %v7595
    %v7597 = vmul.f32 %v7566, 1.442695
    %v7598 = vpow.pop %v7597
    %7615 = vrot.lane.b32.xlu0 %v7568, 120
    %v7616 = vpop.permute.xlu0 %7615
    %7617 = vrot.lane.b32.xlu0 %v7570, 120
    %v7618 = vpop.permute.xlu0 %7617
    %7619 = vrot.lane.b32.xlu0 %v7572, 120
    %v7620 = vpop.permute.xlu0 %7619
    %7621 = vrot.lane.b32.xlu0 %v7574, 120
    %v7622 = vpop.permute.xlu0 %7621
    %7623 = vrot.lane.b32.xlu0 %v7576, 120
    %v7624 = vpop.permute.xlu0 %7623
    %7625 = vrot.lane.b32.xlu0 %v7578, 120
    %v7626 = vpop.permute.xlu0 %7625
    %7627 = vrot.lane.b32.xlu0 %v7580, 120
    %v7628 = vpop.permute.xlu0 %7627
    %7629 = vrot.lane.b32.xlu0 %v7582, 120
    %v7630 = vpop.permute.xlu0 %7629
    %7631 = vrot.lane.b32.xlu0 %v7584, 120
    %v7632 = vpop.permute.xlu0 %7631
    %7633 = vrot.lane.b32.xlu0 %v7586, 120
    %v7634 = vpop.permute.xlu0 %7633
    %7635 = vrot.lane.b32.xlu0 %v7588, 120
    %v7636 = vpop.permute.xlu0 %7635
    %7637 = vrot.lane.b32.xlu0 %v7590, 120
    %v7638 = vpop.permute.xlu0 %7637
    %7639 = vrot.lane.b32.xlu0 %v7592, 120
    %v7640 = vpop.permute.xlu0 %7639
    %7641 = vrot.lane.b32.xlu0 %v7594, 120
    %v7642 = vpop.permute.xlu0 %7641
    %7643 = vrot.lane.b32.xlu0 %v7596, 120
    %v7644 = vpop.permute.xlu0 %7643
    %7645 = vrot.lane.b32.xlu0 %v7598, 120
    %v7646 = vpop.permute.xlu0 %7645
    %v7663 = vmul.f32 %v7535, %v7616
    %v7664 = vmul.f32 %v7536, %v7618
    %v7665 = vmul.f32 %v7537, %v7620
    %v7666 = vmul.f32 %v7538, %v7622
    %v7667 = vmul.f32 %v7539, %v7624
    %v7668 = vmul.f32 %v7540, %v7626
    %v7669 = vmul.f32 %v7541, %v7628
    %v7670 = vmul.f32 %v7542, %v7630
    %v7671 = vmul.f32 %v7543, %v7632
    %v7672 = vmul.f32 %v7544, %v7634
    %v7673 = vmul.f32 %v7545, %v7636
    %v7674 = vmul.f32 %v7546, %v7638
    %v7675 = vmul.f32 %v7547, %v7640
    %v7676 = vmul.f32 %v7548, %v7642
    %v7677 = vmul.f32 %v7549, %v7644
    %v7678 = vmul.f32 %v7550, %v7646
    %7695 = vrot.lane.b32.xlu0 %v7519, 120
    %v7696 = vpop.permute.xlu0 %7695
    %7697 = vrot.lane.b32.xlu0 %v7520, 120
    %v7698 = vpop.permute.xlu0 %7697
    %7699 = vrot.lane.b32.xlu0 %v7521, 120
    %v7700 = vpop.permute.xlu0 %7699
    %7701 = vrot.lane.b32.xlu0 %v7522, 120
    %v7702 = vpop.permute.xlu0 %7701
    %7703 = vrot.lane.b32.xlu0 %v7523, 120
    %v7704 = vpop.permute.xlu0 %7703
    %7705 = vrot.lane.b32.xlu0 %v7524, 120
    %v7706 = vpop.permute.xlu0 %7705
    %7707 = vrot.lane.b32.xlu0 %v7525, 120
    %v7708 = vpop.permute.xlu0 %7707
    %7709 = vrot.lane.b32.xlu0 %v7526, 120
    %v7710 = vpop.permute.xlu0 %7709
    %7711 = vrot.lane.b32.xlu0 %v7527, 120
    %v7712 = vpop.permute.xlu0 %7711
    %7713 = vrot.lane.b32.xlu0 %v7528, 120
    %v7714 = vpop.permute.xlu0 %7713
    %7715 = vrot.lane.b32.xlu0 %v7529, 120
    %v7716 = vpop.permute.xlu0 %7715
    %7717 = vrot.lane.b32.xlu0 %v7530, 120
    %v7718 = vpop.permute.xlu0 %7717
    %7719 = vrot.lane.b32.xlu0 %v7531, 120
    %v7720 = vpop.permute.xlu0 %7719
    %7721 = vrot.lane.b32.xlu0 %v7532, 120
    %v7722 = vpop.permute.xlu0 %7721
    %7723 = vrot.lane.b32.xlu0 %v7533, 120
    %v7724 = vpop.permute.xlu0 %7723
    %7725 = vrot.lane.b32.xlu0 %v7534, 120
    %v7726 = vpop.permute.xlu0 %7725
    %v7743 = vsel %vm7325, %v7696, 0.0
    %7744 = vadd.xlane.f32.xlu0 %v7743
    %v7745 = vpop.xlane.xlu0 %7744
    %v7746 = vsel %vm7325, %v7698, 0.0
    %7747 = vadd.xlane.f32.xlu0 %v7746
    %v7748 = vpop.xlane.xlu0 %7747
    %v7749 = vsel %vm7325, %v7700, 0.0
    %7750 = vadd.xlane.f32.xlu0 %v7749
    %v7751 = vpop.xlane.xlu0 %7750
    %v7752 = vsel %vm7325, %v7702, 0.0
    %7753 = vadd.xlane.f32.xlu0 %v7752
    %v7754 = vpop.xlane.xlu0 %7753
    %v7755 = vsel %vm7325, %v7704, 0.0
    %7756 = vadd.xlane.f32.xlu0 %v7755
    %v7757 = vpop.xlane.xlu0 %7756
    %v7758 = vsel %vm7325, %v7706, 0.0
    %7759 = vadd.xlane.f32.xlu0 %v7758
    %v7760 = vpop.xlane.xlu0 %7759
    %v7761 = vsel %vm7325, %v7708, 0.0
    %7762 = vadd.xlane.f32.xlu0 %v7761
    %v7763 = vpop.xlane.xlu0 %7762
    %v7764 = vsel %vm7325, %v7710, 0.0
    %7765 = vadd.xlane.f32.xlu0 %v7764
    %v7766 = vpop.xlane.xlu0 %7765
    %v7767 = vsel %vm7325, %v7712, 0.0
    %7768 = vadd.xlane.f32.xlu0 %v7767
    %v7769 = vpop.xlane.xlu0 %7768
    %v7770 = vsel %vm7325, %v7714, 0.0
    %7771 = vadd.xlane.f32.xlu0 %v7770
    %v7772 = vpop.xlane.xlu0 %7771
    %v7773 = vsel %vm7325, %v7716, 0.0
    %7774 = vadd.xlane.f32.xlu0 %v7773
    %v7775 = vpop.xlane.xlu0 %7774
    %v7776 = vsel %vm7325, %v7718, 0.0
    %7777 = vadd.xlane.f32.xlu0 %v7776
    %v7778 = vpop.xlane.xlu0 %7777
    %v7779 = vsel %vm7325, %v7720, 0.0
    %7780 = vadd.xlane.f32.xlu0 %v7779
    %v7781 = vpop.xlane.xlu0 %7780
    %v7782 = vsel %vm7325, %v7722, 0.0
    %7783 = vadd.xlane.f32.xlu0 %v7782
    %v7784 = vpop.xlane.xlu0 %7783
    %v7785 = vsel %vm7325, %v7724, 0.0
    %7786 = vadd.xlane.f32.xlu0 %v7785
    %v7787 = vpop.xlane.xlu0 %7786
    %v7788 = vsel %vm7325, %v7726, 0.0
    %7789 = vadd.xlane.f32.xlu0 %v7788
    %v7790 = vpop.xlane.xlu0 %7789
    %v7791 = vsub.f32 0.0, %v7745
    %v7792 = vsub.f32 0.0, %v7748
    %v7793 = vsub.f32 0.0, %v7751
    %v7794 = vsub.f32 0.0, %v7754
    %v7795 = vsub.f32 0.0, %v7757
    %v7796 = vsub.f32 0.0, %v7760
    %v7797 = vsub.f32 0.0, %v7763
    %v7798 = vsub.f32 0.0, %v7766
    %v7799 = vsub.f32 0.0, %v7769
    %v7800 = vsub.f32 0.0, %v7772
    %v7801 = vsub.f32 0.0, %v7775
    %v7802 = vsub.f32 0.0, %v7778
    %v7803 = vsub.f32 0.0, %v7781
    %v7804 = vsub.f32 0.0, %v7784
    %v7805 = vsub.f32 0.0, %v7787
    %v7806 = vsub.f32 0.0, %v7790
    %7808 = vrot.lane.b32.xlu0 %v7308, 112
    %v7809 = vpop.permute.xlu0 %7808
    %7827 = vrot.lane.b32.xlu0 %v7230, 112
    %v7828 = vpop.permute.xlu0 %7827
    %7829 = vrot.lane.b32.xlu0 %v7235, 112
    %v7830 = vpop.permute.xlu0 %7829
    %7831 = vrot.lane.b32.xlu0 %v7240, 112
    %v7832 = vpop.permute.xlu0 %7831
    %7833 = vrot.lane.b32.xlu0 %v7245, 112
    %v7834 = vpop.permute.xlu0 %7833
    %7835 = vrot.lane.b32.xlu0 %v7250, 112
    %v7836 = vpop.permute.xlu0 %7835
    %7837 = vrot.lane.b32.xlu0 %v7255, 112
    %v7838 = vpop.permute.xlu0 %7837
    %7839 = vrot.lane.b32.xlu0 %v7260, 112
    %v7840 = vpop.permute.xlu0 %7839
    %7841 = vrot.lane.b32.xlu0 %v7265, 112
    %v7842 = vpop.permute.xlu0 %7841
    %7843 = vrot.lane.b32.xlu0 %v7270, 112
    %v7844 = vpop.permute.xlu0 %7843
    %7845 = vrot.lane.b32.xlu0 %v7275, 112
    %v7846 = vpop.permute.xlu0 %7845
    %7847 = vrot.lane.b32.xlu0 %v7280, 112
    %v7848 = vpop.permute.xlu0 %7847
    %7849 = vrot.lane.b32.xlu0 %v7285, 112
    %v7850 = vpop.permute.xlu0 %7849
    %7851 = vrot.lane.b32.xlu0 %v7290, 112
    %v7852 = vpop.permute.xlu0 %7851
    %7853 = vrot.lane.b32.xlu0 %v7295, 112
    %v7854 = vpop.permute.xlu0 %7853
    %7855 = vrot.lane.b32.xlu0 %v7300, 112
    %v7856 = vpop.permute.xlu0 %7855
    %7857 = vrot.lane.b32.xlu0 %v7305, 112
    %v7858 = vpop.permute.xlu0 %7857
    %v7876 = vsel %vm7325, %v7663, 0
    %v7879 = vsel %vm7325, %v7664, 0
    %v7882 = vsel %vm7325, %v7665, 0
    %v7885 = vsel %vm7325, %v7666, 0
    %v7888 = vsel %vm7325, %v7667, 0
    %v7891 = vsel %vm7325, %v7668, 0
    %v7894 = vsel %vm7325, %v7669, 0
    %v7897 = vsel %vm7325, %v7670, 0
    %v7900 = vsel %vm7325, %v7671, 0
    %v7903 = vsel %vm7325, %v7672, 0
    %v7906 = vsel %vm7325, %v7673, 0
    %v7909 = vsel %vm7325, %v7674, 0
    %v7912 = vsel %vm7325, %v7675, 0
    %v7915 = vsel %vm7325, %v7676, 0
    %v7918 = vsel %vm7325, %v7677, 0
    %v7921 = vsel %vm7325, %v7678, 0
    %7923 = vmatprep.subr.mxu0 0.0
    %7924 = vmatpush1.msra.mxu0 %v7809
    %7925 = vmatprep.subr.mxu0 0.0
    %7926 = vmatpush1.msra.mxu0 0.0
    %7927 = vmatprep.subr.mxu0 0.0
    %7928 = vmatpush1.msra.mxu0 0.0
    %7929 = vmatprep.subr.mxu0 0.0
    %7930 = vmatpush1.msra.mxu0 0.0
    %7931 = vmatprep.subr.mxu0 0.0
    %7932 = vmatpush1.msra.mxu0 0.0
    %7933 = vmatprep.subr.mxu0 0.0
    %7934 = vmatpush1.msra.mxu0 0.0
    %7935 = vmatprep.subr.mxu0 0.0
    %7936 = vmatpush1.msra.mxu0 0.0
    %7937 = vmatprep.subr.mxu0 0.0
    %7938 = vmatpush1.msra.mxu0 0.0
    %7939 = vmatprep.subr.mxu0 0.0
    %7940 = vmatpush1.msra.mxu0 0.0
    %7941 = vmatprep.subr.mxu0 0.0
    %7942 = vmatpush1.msra.mxu0 0.0
    %7943 = vmatprep.subr.mxu0 0.0
    %7944 = vmatpush1.msra.mxu0 0.0
    %7945 = vmatprep.subr.mxu0 0.0
    %7946 = vmatpush1.msra.mxu0 0.0
    %7947 = vmatprep.subr.mxu0 0.0
    %7948 = vmatpush1.msra.mxu0 0.0
    %7949 = vmatprep.subr.mxu0 0.0
    %7950 = vmatpush1.msra.mxu0 0.0
    %7951 = vmatprep.subr.mxu0 0.0
    %7952 = vmatpush1.msra.mxu0 0.0
    %7953 = vmatprep.subr.mxu0 0.0
    %7954 = vmatpush1.msra.mxu0 0.0
    %7955 = vmatprep.subr.mxu0 0.0
    %7956 = vmatpush1.msra.mxu0 0.0
    %7957 = vmatprep.subr.mxu0 0.0
    %7958 = vmatpush1.msra.mxu0 0.0
    %7959 = vmatprep.subr.mxu0 0.0
    %7960 = vmatpush1.msra.mxu0 0.0
    %7961 = vmatprep.subr.mxu0 0.0
    %7962 = vmatpush1.msra.mxu0 0.0
    %7963 = vmatprep.subr.mxu0 0.0
    %7964 = vmatpush1.msra.mxu0 0.0
    %7965 = vmatprep.subr.mxu0 0.0
    %7966 = vmatpush1.msra.mxu0 0.0
    %7967 = vmatprep.subr.mxu0 0.0
    %7968 = vmatpush1.msra.mxu0 0.0
    %7969 = vmatprep.subr.mxu0 0.0
    %7970 = vmatpush1.msra.mxu0 0.0
    %7971 = vmatprep.subr.mxu0 0.0
    %7972 = vmatpush1.msra.mxu0 0.0
    %7973 = vmatprep.subr.mxu0 0.0
    %7974 = vmatpush1.msra.mxu0 0.0
    %7975 = vmatprep.subr.mxu0 0.0
    %7976 = vmatpush1.msra.mxu0 0.0
    %7977 = vmatprep.subr.mxu0 0.0
    %7978 = vmatpush1.msra.mxu0 0.0
    %7979 = vmatprep.subr.mxu0 0.0
    %7980 = vmatpush1.msra.mxu0 0.0
    %7981 = vmatprep.subr.mxu0 0.0
    %7982 = vmatpush1.msra.mxu0 0.0
    %7983 = vmatprep.subr.mxu0 0.0
    %7984 = vmatpush1.msra.mxu0 0.0
    %7985 = vmatprep.subr.mxu0 0.0
    %7986 = vmatpush1.msra.mxu0 0.0
    %7987 = vmatprep.mubr.f32.mxu0 0.0
    %7988 = vmatmul.mubr.f32.gmra.mrb[0].mxu0 %v7876
    %v7989 = vpop.f32.mrb[0].mxu0
    %v7990 = vadd.f32 %v7828, %v7989
    %v7991 = vpop.f32.mrb[0].mxu0
    %7992 = vmatprep.mubr.f32.mxu0 0.0
    %7993 = vmatmul.mubr.f32.gmra.mrb[0].mxu0 %v7879
    %v7994 = vpop.f32.mrb[0].mxu0
    %v7995 = vadd.f32 %v7830, %v7994
    %v7996 = vpop.f32.mrb[0].mxu0
    %7997 = vmatprep.mubr.f32.mxu0 0.0
    %7998 = vmatmul.mubr.f32.gmra.mrb[0].mxu0 %v7882
    %v7999 = vpop.f32.mrb[0].mxu0
    %v8000 = vadd.f32 %v7832, %v7999
    %v8001 = vpop.f32.mrb[0].mxu0
    %8002 = vmatprep.mubr.f32.mxu0 0.0
    %8003 = vmatmul.mubr.f32.gmra.mrb[0].mxu0 %v7885
    %v8004 = vpop.f32.mrb[0].mxu0
    %v8005 = vadd.f32 %v7834, %v8004
    %v8006 = vpop.f32.mrb[0].mxu0
    %8007 = vmatprep.mubr.f32.mxu0 0.0
    %8008 = vmatmul.mubr.f32.gmra.mrb[0].mxu0 %v7888
    %v8009 = vpop.f32.mrb[0].mxu0
    %v8010 = vadd.f32 %v7836, %v8009
    %v8011 = vpop.f32.mrb[0].mxu0
    %8012 = vmatprep.mubr.f32.mxu0 0.0
    %8013 = vmatmul.mubr.f32.gmra.mrb[0].mxu0 %v7891
    %v8014 = vpop.f32.mrb[0].mxu0
    %v8015 = vadd.f32 %v7838, %v8014
    %v8016 = vpop.f32.mrb[0].mxu0
    %8017 = vmatprep.mubr.f32.mxu0 0.0
    %8018 = vmatmul.mubr.f32.gmra.mrb[0].mxu0 %v7894
    %v8019 = vpop.f32.mrb[0].mxu0
    %v8020 = vadd.f32 %v7840, %v8019
    %v8021 = vpop.f32.mrb[0].mxu0
    %8022 = vmatprep.mubr.f32.mxu0 0.0
    %8023 = vmatmul.mubr.f32.gmra.mrb[0].mxu0 %v7897
    %v8024 = vpop.f32.mrb[0].mxu0
    %v8025 = vadd.f32 %v7842, %v8024
    %v8026 = vpop.f32.mrb[0].mxu0
    %8027 = vmatprep.mubr.f32.mxu0 0.0
    %8028 = vmatmul.mubr.f32.gmra.mrb[0].mxu0 %v7900
    %v8029 = vpop.f32.mrb[0].mxu0
    %v8030 = vadd.f32 %v7844, %v8029
    %v8031 = vpop.f32.mrb[0].mxu0
    %8032 = vmatprep.mubr.f32.mxu0 0.0
    %8033 = vmatmul.mubr.f32.gmra.mrb[0].mxu0 %v7903
    %v8034 = vpop.f32.mrb[0].mxu0
    %v8035 = vadd.f32 %v7846, %v8034
    %v8036 = vpop.f32.mrb[0].mxu0
    %8037 = vmatprep.mubr.f32.mxu0 0.0
    %8038 = vmatmul.mubr.f32.gmra.mrb[0].mxu0 %v7906
    %v8039 = vpop.f32.mrb[0].mxu0
    %v8040 = vadd.f32 %v7848, %v8039
    %v8041 = vpop.f32.mrb[0].mxu0
    %8042 = vmatprep.mubr.f32.mxu0 0.0
    %8043 = vmatmul.mubr.f32.gmra.mrb[0].mxu0 %v7909
    %v8044 = vpop.f32.mrb[0].mxu0
    %v8045 = vadd.f32 %v7850, %v8044
    %v8046 = vpop.f32.mrb[0].mxu0
    %8047 = vmatprep.mubr.f32.mxu0 0.0
    %8048 = vmatmul.mubr.f32.gmra.mrb[0].mxu0 %v7912
    %v8049 = vpop.f32.mrb[0].mxu0
    %v8050 = vadd.f32 %v7852, %v8049
    %v8051 = vpop.f32.mrb[0].mxu0
    %8052 = vmatprep.mubr.f32.mxu0 0.0
    %8053 = vmatmul.mubr.f32.gmra.mrb[0].mxu0 %v7915
    %v8054 = vpop.f32.mrb[0].mxu0
    %v8055 = vadd.f32 %v7854, %v8054
    %v8056 = vpop.f32.mrb[0].mxu0
    %8057 = vmatprep.mubr.f32.mxu0 0.0
    %8058 = vmatmul.mubr.f32.gmra.mrb[0].mxu0 %v7918
    %v8059 = vpop.f32.mrb[0].mxu0
    %v8060 = vadd.f32 %v7856, %v8059
    %v8061 = vpop.f32.mrb[0].mxu0
    %8062 = vmatprep.mubr.f32.mxu0 0.0
    %8063 = vmatmul.mubr.f32.gmra.mrb[0].mxu0 %v7921
    %v8064 = vpop.f32.mrb[0].mxu0
    %v8065 = vadd.f32 %v7858, %v8064
    %v8066 = vpop.f32.mrb[0].mxu0
    %8067 = vdwg.mxu0
    %v8068 = vtanh.pop %v7990
    %v8069 = vtanh.pop %v7995
    %v8070 = vtanh.pop %v8000
    %v8071 = vtanh.pop %v8005
    %v8072 = vtanh.pop %v8010
    %v8073 = vtanh.pop %v8015
    %v8074 = vtanh.pop %v8020
    %v8075 = vtanh.pop %v8025
    %v8076 = vtanh.pop %v8030
    %v8077 = vtanh.pop %v8035
    %v8078 = vtanh.pop %v8040
    %v8079 = vtanh.pop %v8045
    %v8080 = vtanh.pop %v8050
    %v8081 = vtanh.pop %v8055
    %v8082 = vtanh.pop %v8060
    %v8083 = vtanh.pop %v8065
    %v8084 = vsub.f32 %v7663, %v7990
    %v8085 = vsub.f32 %v7664, %v7995
    %v8086 = vsub.f32 %v7665, %v8000
    %v8087 = vsub.f32 %v7666, %v8005
    %v8088 = vsub.f32 %v7667, %v8010
    %v8089 = vsub.f32 %v7668, %v8015
    %v8090 = vsub.f32 %v7669, %v8020
    %v8091 = vsub.f32 %v7670, %v8025
    %v8092 = vsub.f32 %v7671, %v8030
    %v8093 = vsub.f32 %v7672, %v8035
    %v8094 = vsub.f32 %v7673, %v8040
    %v8095 = vsub.f32 %v7674, %v8045
    %v8096 = vsub.f32 %v7675, %v8050
    %v8097 = vsub.f32 %v7676, %v8055
    %v8098 = vsub.f32 %v7677, %v8060
    %v8099 = vsub.f32 %v7678, %v8065
    %v8100 = vsub.f32 0.0, %v8068
    %v8101 = vsub.f32 0.0, %v8069
    %v8102 = vsub.f32 0.0, %v8070
    %v8103 = vsub.f32 0.0, %v8071
    %v8104 = vsub.f32 0.0, %v8072
    %v8105 = vsub.f32 0.0, %v8073
    %v8106 = vsub.f32 0.0, %v8074
    %v8107 = vsub.f32 0.0, %v8075
    %v8108 = vsub.f32 0.0, %v8076
    %v8109 = vsub.f32 0.0, %v8077
    %v8110 = vsub.f32 0.0, %v8078
    %v8111 = vsub.f32 0.0, %v8079
    %v8112 = vsub.f32 0.0, %v8080
    %v8113 = vsub.f32 0.0, %v8081
    %v8114 = vsub.f32 0.0, %v8082
    %v8115 = vsub.f32 0.0, %v8083
    %v8116 = vmul.f32 %v8100, 1.442695
    %v8117 = vpow.pop %v8116
    %v8118 = vmul.f32 %v8101, 1.442695
    %v8119 = vpow.pop %v8118
    %v8120 = vmul.f32 %v8102, 1.442695
    %v8121 = vpow.pop %v8120
    %v8122 = vmul.f32 %v8103, 1.442695
    %v8123 = vpow.pop %v8122
    %v8124 = vmul.f32 %v8104, 1.442695
    %v8125 = vpow.pop %v8124
    %v8126 = vmul.f32 %v8105, 1.442695
    %v8127 = vpow.pop %v8126
    %v8128 = vmul.f32 %v8106, 1.442695
    %v8129 = vpow.pop %v8128
    %v8130 = vmul.f32 %v8107, 1.442695
    %v8131 = vpow.pop %v8130
    %v8132 = vmul.f32 %v8108, 1.442695
    %v8133 = vpow.pop %v8132
    %v8134 = vmul.f32 %v8109, 1.442695
    %v8135 = vpow.pop %v8134
    %v8136 = vmul.f32 %v8110, 1.442695
    %v8137 = vpow.pop %v8136
    %v8138 = vmul.f32 %v8111, 1.442695
    %v8139 = vpow.pop %v8138
    %v8140 = vmul.f32 %v8112, 1.442695
    %v8141 = vpow.pop %v8140
    %v8142 = vmul.f32 %v8113, 1.442695
    %v8143 = vpow.pop %v8142
    %v8144 = vmul.f32 %v8114, 1.442695
    %v8145 = vpow.pop %v8144
    %v8146 = vmul.f32 %v8115, 1.442695
    %v8147 = vpow.pop %v8146
    %8164 = vrot.lane.b32.xlu0 %v8117, 120
    %v8165 = vpop.permute.xlu0 %8164
    %8166 = vrot.lane.b32.xlu0 %v8119, 120
    %v8167 = vpop.permute.xlu0 %8166
    %8168 = vrot.lane.b32.xlu0 %v8121, 120
    %v8169 = vpop.permute.xlu0 %8168
    %8170 = vrot.lane.b32.xlu0 %v8123, 120
    %v8171 = vpop.permute.xlu0 %8170
    %8172 = vrot.lane.b32.xlu0 %v8125, 120
    %v8173 = vpop.permute.xlu0 %8172
    %8174 = vrot.lane.b32.xlu0 %v8127, 120
    %v8175 = vpop.permute.xlu0 %8174
    %8176 = vrot.lane.b32.xlu0 %v8129, 120
    %v8177 = vpop.permute.xlu0 %8176
    %8178 = vrot.lane.b32.xlu0 %v8131, 120
    %v8179 = vpop.permute.xlu0 %8178
    %8180 = vrot.lane.b32.xlu0 %v8133, 120
    %v8181 = vpop.permute.xlu0 %8180
    %8182 = vrot.lane.b32.xlu0 %v8135, 120
    %v8183 = vpop.permute.xlu0 %8182
    %8184 = vrot.lane.b32.xlu0 %v8137, 120
    %v8185 = vpop.permute.xlu0 %8184
    %8186 = vrot.lane.b32.xlu0 %v8139, 120
    %v8187 = vpop.permute.xlu0 %8186
    %8188 = vrot.lane.b32.xlu0 %v8141, 120
    %v8189 = vpop.permute.xlu0 %8188
    %8190 = vrot.lane.b32.xlu0 %v8143, 120
    %v8191 = vpop.permute.xlu0 %8190
    %8192 = vrot.lane.b32.xlu0 %v8145, 120
    %v8193 = vpop.permute.xlu0 %8192
    %8194 = vrot.lane.b32.xlu0 %v8147, 120
    %v8195 = vpop.permute.xlu0 %8194
    %v8212 = vmul.f32 %v8084, %v8165
    %v8213 = vmul.f32 %v8085, %v8167
    %v8214 = vmul.f32 %v8086, %v8169
    %v8215 = vmul.f32 %v8087, %v8171
    %v8216 = vmul.f32 %v8088, %v8173
    %v8217 = vmul.f32 %v8089, %v8175
    %v8218 = vmul.f32 %v8090, %v8177
    %v8219 = vmul.f32 %v8091, %v8179
    %v8220 = vmul.f32 %v8092, %v8181
    %v8221 = vmul.f32 %v8093, %v8183
    %v8222 = vmul.f32 %v8094, %v8185
    %v8223 = vmul.f32 %v8095, %v8187
    %v8224 = vmul.f32 %v8096, %v8189
    %v8225 = vmul.f32 %v8097, %v8191
    %v8226 = vmul.f32 %v8098, %v8193
    %v8227 = vmul.f32 %v8099, %v8195
    %8244 = vrot.lane.b32.xlu0 %v8068, 120
    %v8245 = vpop.permute.xlu0 %8244
    %8246 = vrot.lane.b32.xlu0 %v8069, 120
    %v8247 = vpop.permute.xlu0 %8246
    %8248 = vrot.lane.b32.xlu0 %v8070, 120
    %v8249 = vpop.permute.xlu0 %8248
    %8250 = vrot.lane.b32.xlu0 %v8071, 120
    %v8251 = vpop.permute.xlu0 %8250
    %8252 = vrot.lane.b32.xlu0 %v8072, 120
    %v8253 = vpop.permute.xlu0 %8252
    %8254 = vrot.lane.b32.xlu0 %v8073, 120
    %v8255 = vpop.permute.xlu0 %8254
    %8256 = vrot.lane.b32.xlu0 %v8074, 120
    %v8257 = vpop.permute.xlu0 %8256
    %8258 = vrot.lane.b32.xlu0 %v8075, 120
    %v8259 = vpop.permute.xlu0 %8258
    %8260 = vrot.lane.b32.xlu0 %v8076, 120
    %v8261 = vpop.permute.xlu0 %8260
    %8262 = vrot.lane.b32.xlu0 %v8077, 120
    %v8263 = vpop.permute.xlu0 %8262
    %8264 = vrot.lane.b32.xlu0 %v8078, 120
    %v8265 = vpop.permute.xlu0 %8264
    %8266 = vrot.lane.b32.xlu0 %v8079, 120
    %v8267 = vpop.permute.xlu0 %8266
    %8268 = vrot.lane.b32.xlu0 %v8080, 120
    %v8269 = vpop.permute.xlu0 %8268
    %8270 = vrot.lane.b32.xlu0 %v8081, 120
    %v8271 = vpop.permute.xlu0 %8270
    %8272 = vrot.lane.b32.xlu0 %v8082, 120
    %v8273 = vpop.permute.xlu0 %8272
    %8274 = vrot.lane.b32.xlu0 %v8083, 120
    %v8275 = vpop.permute.xlu0 %8274
    %v8292 = vsel %vm7325, %v8245, 0.0
    %8293 = vadd.xlane.f32.xlu0 %v8292
    %v8294 = vpop.xlane.xlu0 %8293
    %v8295 = vsel %vm7325, %v8247, 0.0
    %8296 = vadd.xlane.f32.xlu0 %v8295
    %v8297 = vpop.xlane.xlu0 %8296
    %v8298 = vsel %vm7325, %v8249, 0.0
    %8299 = vadd.xlane.f32.xlu0 %v8298
    %v8300 = vpop.xlane.xlu0 %8299
    %v8301 = vsel %vm7325, %v8251, 0.0
    %8302 = vadd.xlane.f32.xlu0 %v8301
    %v8303 = vpop.xlane.xlu0 %8302
    %v8304 = vsel %vm7325, %v8253, 0.0
    %8305 = vadd.xlane.f32.xlu0 %v8304
    %v8306 = vpop.xlane.xlu0 %8305
    %v8307 = vsel %vm7325, %v8255, 0.0
    %8308 = vadd.xlane.f32.xlu0 %v8307
    %v8309 = vpop.xlane.xlu0 %8308
    %v8310 = vsel %vm7325, %v8257, 0.0
    %8311 = vadd.xlane.f32.xlu0 %v8310
    %v8312 = vpop.xlane.xlu0 %8311
    %v8313 = vsel %vm7325, %v8259, 0.0
    %8314 = vadd.xlane.f32.xlu0 %v8313
    %v8315 = vpop.xlane.xlu0 %8314
    %v8316 = vsel %vm7325, %v8261, 0.0
    %8317 = vadd.xlane.f32.xlu0 %v8316
    %v8318 = vpop.xlane.xlu0 %8317
    %v8319 = vsel %vm7325, %v8263, 0.0
    %8320 = vadd.xlane.f32.xlu0 %v8319
    %v8321 = vpop.xlane.xlu0 %8320
    %v8322 = vsel %vm7325, %v8265, 0.0
    %8323 = vadd.xlane.f32.xlu0 %v8322
    %v8324 = vpop.xlane.xlu0 %8323
    %v8325 = vsel %vm7325, %v8267, 0.0
    %8326 = vadd.xlane.f32.xlu0 %v8325
    %v8327 = vpop.xlane.xlu0 %8326
    %v8328 = vsel %vm7325, %v8269, 0.0
    %8329 = vadd.xlane.f32.xlu0 %v8328
    %v8330 = vpop.xlane.xlu0 %8329
    %v8331 = vsel %vm7325, %v8271, 0.0
    %8332 = vadd.xlane.f32.xlu0 %v8331
    %v8333 = vpop.xlane.xlu0 %8332
    %v8334 = vsel %vm7325, %v8273, 0.0
    %8335 = vadd.xlane.f32.xlu0 %v8334
    %v8336 = vpop.xlane.xlu0 %8335
    %v8337 = vsel %vm7325, %v8275, 0.0
    %8338 = vadd.xlane.f32.xlu0 %v8337
    %v8339 = vpop.xlane.xlu0 %8338
    %v8340 = vsub.f32 %v7791, %v8294
    %v8341 = vsub.f32 %v7792, %v8297
    %v8342 = vsub.f32 %v7793, %v8300
    %v8343 = vsub.f32 %v7794, %v8303
    %v8344 = vsub.f32 %v7795, %v8306
    %v8345 = vsub.f32 %v7796, %v8309
    %v8346 = vsub.f32 %v7797, %v8312
    %v8347 = vsub.f32 %v7798, %v8315
    %v8348 = vsub.f32 %v7799, %v8318
    %v8349 = vsub.f32 %v7800, %v8321
    %v8350 = vsub.f32 %v7801, %v8324
    %v8351 = vsub.f32 %v7802, %v8327
    %v8352 = vsub.f32 %v7803, %v8330
    %v8353 = vsub.f32 %v7804, %v8333
    %v8354 = vsub.f32 %v7805, %v8336
    %v8355 = vsub.f32 %v7806, %v8339
    %8356 = vrot.lane.b32.xlu0 %v7308, 96
    %v8357 = vpop.permute.xlu0 %8356
    %8359 = vrot.lane.b32.xlu0 %v7230, 96
    %v8360 = vpop.permute.xlu0 %8359
    %8361 = vrot.lane.b32.xlu0 %v7235, 96
    %v8362 = vpop.permute.xlu0 %8361
    %8363 = vrot.lane.b32.xlu0 %v7240, 96
    %v8364 = vpop.permute.xlu0 %8363
    %8365 = vrot.lane.b32.xlu0 %v7245, 96
    %v8366 = vpop.permute.xlu0 %8365
    %8367 = vrot.lane.b32.xlu0 %v7250, 96
    %v8368 = vpop.permute.xlu0 %8367
    %8369 = vrot.lane.b32.xlu0 %v7255, 96
    %v8370 = vpop.permute.xlu0 %8369
    %8371 = vrot.lane.b32.xlu0 %v7260, 96
    %v8372 = vpop.permute.xlu0 %8371
    %8373 = vrot.lane.b32.xlu0 %v7265, 96
    %v8374 = vpop.permute.xlu0 %8373
    %8375 = vrot.lane.b32.xlu0 %v7270, 96
    %v8376 = vpop.permute.xlu0 %8375
    %8377 = vrot.lane.b32.xlu0 %v7275, 96
    %v8378 = vpop.permute.xlu0 %8377
    %8379 = vrot.lane.b32.xlu0 %v7280, 96
    %v8380 = vpop.permute.xlu0 %8379
    %8381 = vrot.lane.b32.xlu0 %v7285, 96
    %v8382 = vpop.permute.xlu0 %8381
    %8383 = vrot.lane.b32.xlu0 %v7290, 96
    %v8384 = vpop.permute.xlu0 %8383
    %8385 = vrot.lane.b32.xlu0 %v7295, 96
    %v8386 = vpop.permute.xlu0 %8385
    %8387 = vrot.lane.b32.xlu0 %v7300, 96
    %v8388 = vpop.permute.xlu0 %8387
    %8389 = vrot.lane.b32.xlu0 %v7305, 96
    %v8390 = vpop.permute.xlu0 %8389
    %v8408 = vsel %vm7325, %v8212, 0
    %v8411 = vsel %vm7325, %v8213, 0
    %v8414 = vsel %vm7325, %v8214, 0
    %v8417 = vsel %vm7325, %v8215, 0
    %v8420 = vsel %vm7325, %v8216, 0
    %v8423 = vsel %vm7325, %v8217, 0
    %v8426 = vsel %vm7325, %v8218, 0
    %v8429 = vsel %vm7325, %v8219, 0
    %v8432 = vsel %vm7325, %v8220, 0
    %v8435 = vsel %vm7325, %v8221, 0
    %v8438 = vsel %vm7325, %v8222, 0
    %v8441 = vsel %vm7325, %v8223, 0
    %v8444 = vsel %vm7325, %v8224, 0
    %v8447 = vsel %vm7325, %v8225, 0
    %v8450 = vsel %vm7325, %v8226, 0
    %v8453 = vsel %vm7325, %v8227, 0
    %8455 = vmatprep.subr.mxu0 0.0
    %8456 = vmatpush1.msra.mxu0 %v8357
    %8457 = vmatprep.subr.mxu0 0.0
    %8458 = vmatpush1.msra.mxu0 0.0
    %8459 = vmatprep.subr.mxu0 0.0
    %8460 = vmatpush1.msra.mxu0 0.0
    %8461 = vmatprep.subr.mxu0 0.0
    %8462 = vmatpush1.msra.mxu0 0.0
    %8463 = vmatprep.subr.mxu0 0.0
    %8464 = vmatpush1.msra.mxu0 0.0
    %8465 = vmatprep.subr.mxu0 0.0
    %8466 = vmatpush1.msra.mxu0 0.0
    %8467 = vmatprep.subr.mxu0 0.0
    %8468 = vmatpush1.msra.mxu0 0.0
    %8469 = vmatprep.subr.mxu0 0.0
    %8470 = vmatpush1.msra.mxu0 0.0
    %8471 = vmatprep.subr.mxu0 0.0
    %8472 = vmatpush1.msra.mxu0 0.0
    %8473 = vmatprep.subr.mxu0 0.0
    %8474 = vmatpush1.msra.mxu0 0.0
    %8475 = vmatprep.subr.mxu0 0.0
    %8476 = vmatpush1.msra.mxu0 0.0
    %8477 = vmatprep.subr.mxu0 0.0
    %8478 = vmatpush1.msra.mxu0 0.0
    %8479 = vmatprep.subr.mxu0 0.0
    %8480 = vmatpush1.msra.mxu0 0.0
    %8481 = vmatprep.subr.mxu0 0.0
    %8482 = vmatpush1.msra.mxu0 0.0
    %8483 = vmatprep.subr.mxu0 0.0
    %8484 = vmatpush1.msra.mxu0 0.0
    %8485 = vmatprep.subr.mxu0 0.0
    %8486 = vmatpush1.msra.mxu0 0.0
    %8487 = vmatprep.subr.mxu0 0.0
    %8488 = vmatpush1.msra.mxu0 0.0
    %8489 = vmatprep.subr.mxu0 0.0
    %8490 = vmatpush1.msra.mxu0 0.0
    %8491 = vmatprep.subr.mxu0 0.0
    %8492 = vmatpush1.msra.mxu0 0.0
    %8493 = vmatprep.subr.mxu0 0.0
    %8494 = vmatpush1.msra.mxu0 0.0
    %8495 = vmatprep.subr.mxu0 0.0
    %8496 = vmatpush1.msra.mxu0 0.0
    %8497 = vmatprep.subr.mxu0 0.0
    %8498 = vmatpush1.msra.mxu0 0.0
    %8499 = vmatprep.subr.mxu0 0.0
    %8500 = vmatpush1.msra.mxu0 0.0
    %8501 = vmatprep.subr.mxu0 0.0
    %8502 = vmatpush1.msra.mxu0 0.0
    %8503 = vmatprep.subr.mxu0 0.0
    %8504 = vmatpush1.msra.mxu0 0.0
    %8505 = vmatprep.subr.mxu0 0.0
    %8506 = vmatpush1.msra.mxu0 0.0
    %8507 = vmatprep.subr.mxu0 0.0
    %8508 = vmatpush1.msra.mxu0 0.0
    %8509 = vmatprep.subr.mxu0 0.0
    %8510 = vmatpush1.msra.mxu0 0.0
    %8511 = vmatprep.subr.mxu0 0.0
    %8512 = vmatpush1.msra.mxu0 0.0
    %8513 = vmatprep.subr.mxu0 0.0
    %8514 = vmatpush1.msra.mxu0 0.0
    %8515 = vmatprep.subr.mxu0 0.0
    %8516 = vmatpush1.msra.mxu0 0.0
    %8517 = vmatprep.subr.mxu0 0.0
    %8518 = vmatpush1.msra.mxu0 0.0
    %8519 = vmatprep.mubr.f32.mxu0 0.0
    %8520 = vmatmul.mubr.f32.gmra.mrb[0].mxu0 %v8408
    %v8521 = vpop.f32.mrb[0].mxu0
    %v8522 = vadd.f32 %v8360, %v8521
    %v8523 = vpop.f32.mrb[0].mxu0
    %8524 = vmatprep.mubr.f32.mxu0 0.0
    %8525 = vmatmul.mubr.f32.gmra.mrb[0].mxu0 %v8411
    %v8526 = vpop.f32.mrb[0].mxu0
    %v8527 = vadd.f32 %v8362, %v8526
    %v8528 = vpop.f32.mrb[0].mxu0
    %8529 = vmatprep.mubr.f32.mxu0 0.0
    %8530 = vmatmul.mubr.f32.gmra.mrb[0].mxu0 %v8414
    %v8531 = vpop.f32.mrb[0].mxu0
    %v8532 = vadd.f32 %v8364, %v8531
    %v8533 = vpop.f32.mrb[0].mxu0
    %8534 = vmatprep.mubr.f32.mxu0 0.0
    %8535 = vmatmul.mubr.f32.gmra.mrb[0].mxu0 %v8417
    %v8536 = vpop.f32.mrb[0].mxu0
    %v8537 = vadd.f32 %v8366, %v8536
    %v8538 = vpop.f32.mrb[0].mxu0
    %8539 = vmatprep.mubr.f32.mxu0 0.0
    %8540 = vmatmul.mubr.f32.gmra.mrb[0].mxu0 %v8420
    %v8541 = vpop.f32.mrb[0].mxu0
    %v8542 = vadd.f32 %v8368, %v8541
    %v8543 = vpop.f32.mrb[0].mxu0
    %8544 = vmatprep.mubr.f32.mxu0 0.0
    %8545 = vmatmul.mubr.f32.gmra.mrb[0].mxu0 %v8423
    %v8546 = vpop.f32.mrb[0].mxu0
    %v8547 = vadd.f32 %v8370, %v8546
    %v8548 = vpop.f32.mrb[0].mxu0
    %8549 = vmatprep.mubr.f32.mxu0 0.0
    %8550 = vmatmul.mubr.f32.gmra.mrb[0].mxu0 %v8426
    %v8551 = vpop.f32.mrb[0].mxu0
    %v8552 = vadd.f32 %v8372, %v8551
    %v8553 = vpop.f32.mrb[0].mxu0
    %8554 = vmatprep.mubr.f32.mxu0 0.0
    %8555 = vmatmul.mubr.f32.gmra.mrb[0].mxu0 %v8429
    %v8556 = vpop.f32.mrb[0].mxu0
    %v8557 = vadd.f32 %v8374, %v8556
    %v8558 = vpop.f32.mrb[0].mxu0
    %8559 = vmatprep.mubr.f32.mxu0 0.0
    %8560 = vmatmul.mubr.f32.gmra.mrb[0].mxu0 %v8432
    %v8561 = vpop.f32.mrb[0].mxu0
    %v8562 = vadd.f32 %v8376, %v8561
    %v8563 = vpop.f32.mrb[0].mxu0
    %8564 = vmatprep.mubr.f32.mxu0 0.0
    %8565 = vmatmul.mubr.f32.gmra.mrb[0].mxu0 %v8435
    %v8566 = vpop.f32.mrb[0].mxu0
    %v8567 = vadd.f32 %v8378, %v8566
    %v8568 = vpop.f32.mrb[0].mxu0
    %8569 = vmatprep.mubr.f32.mxu0 0.0
    %8570 = vmatmul.mubr.f32.gmra.mrb[0].mxu0 %v8438
    %v8571 = vpop.f32.mrb[0].mxu0
    %v8572 = vadd.f32 %v8380, %v8571
    %v8573 = vpop.f32.mrb[0].mxu0
    %8574 = vmatprep.mubr.f32.mxu0 0.0
    %8575 = vmatmul.mubr.f32.gmra.mrb[0].mxu0 %v8441
    %v8576 = vpop.f32.mrb[0].mxu0
    %v8577 = vadd.f32 %v8382, %v8576
    %v8578 = vpop.f32.mrb[0].mxu0
    %8579 = vmatprep.mubr.f32.mxu0 0.0
    %8580 = vmatmul.mubr.f32.gmra.mrb[0].mxu0 %v8444
    %v8581 = vpop.f32.mrb[0].mxu0
    %v8582 = vadd.f32 %v8384, %v8581
    %v8583 = vpop.f32.mrb[0].mxu0
    %8584 = vmatprep.mubr.f32.mxu0 0.0
    %8585 = vmatmul.mubr.f32.gmra.mrb[0].mxu0 %v8447
    %v8586 = vpop.f32.mrb[0].mxu0
    %v8587 = vadd.f32 %v8386, %v8586
    %v8588 = vpop.f32.mrb[0].mxu0
    %8589 = vmatprep.mubr.f32.mxu0 0.0
    %8590 = vmatmul.mubr.f32.gmra.mrb[0].mxu0 %v8450
    %v8591 = vpop.f32.mrb[0].mxu0
    %v8592 = vadd.f32 %v8388, %v8591
    %v8593 = vpop.f32.mrb[0].mxu0
    %8594 = vmatprep.mubr.f32.mxu0 0.0
    %8595 = vmatmul.mubr.f32.gmra.mrb[0].mxu0 %v8453
    %v8596 = vpop.f32.mrb[0].mxu0
    %v8597 = vadd.f32 %v8390, %v8596
    %v8598 = vpop.f32.mrb[0].mxu0
    %8599 = vdwg.mxu0
    %v8600 = vtanh.pop %v8522
    %v8601 = vtanh.pop %v8527
    %v8602 = vtanh.pop %v8532
    %v8603 = vtanh.pop %v8537
    %v8604 = vtanh.pop %v8542
    %v8605 = vtanh.pop %v8547
    %v8606 = vtanh.pop %v8552
    %v8607 = vtanh.pop %v8557
    %v8608 = vtanh.pop %v8562
    %v8609 = vtanh.pop %v8567
    %v8610 = vtanh.pop %v8572
    %v8611 = vtanh.pop %v8577
    %v8612 = vtanh.pop %v8582
    %v8613 = vtanh.pop %v8587
    %v8614 = vtanh.pop %v8592
    %v8615 = vtanh.pop %v8597
    %v8616 = vsub.f32 %v8212, %v8522
    %v8617 = vsub.f32 %v8213, %v8527
    %v8618 = vsub.f32 %v8214, %v8532
    %v8619 = vsub.f32 %v8215, %v8537
    %v8620 = vsub.f32 %v8216, %v8542
    %v8621 = vsub.f32 %v8217, %v8547
    %v8622 = vsub.f32 %v8218, %v8552
    %v8623 = vsub.f32 %v8219, %v8557
    %v8624 = vsub.f32 %v8220, %v8562
    %v8625 = vsub.f32 %v8221, %v8567
    %v8626 = vsub.f32 %v8222, %v8572
    %v8627 = vsub.f32 %v8223, %v8577
    %v8628 = vsub.f32 %v8224, %v8582
    %v8629 = vsub.f32 %v8225, %v8587
    %v8630 = vsub.f32 %v8226, %v8592
    %v8631 = vsub.f32 %v8227, %v8597
    %v8632 = vsub.f32 0.0, %v8600
    %v8633 = vsub.f32 0.0, %v8601
    %v8634 = vsub.f32 0.0, %v8602
    %v8635 = vsub.f32 0.0, %v8603
    %v8636 = vsub.f32 0.0, %v8604
    %v8637 = vsub.f32 0.0, %v8605
    %v8638 = vsub.f32 0.0, %v8606
    %v8639 = vsub.f32 0.0, %v8607
    %v8640 = vsub.f32 0.0, %v8608
    %v8641 = vsub.f32 0.0, %v8609
    %v8642 = vsub.f32 0.0, %v8610
    %v8643 = vsub.f32 0.0, %v8611
    %v8644 = vsub.f32 0.0, %v8612
    %v8645 = vsub.f32 0.0, %v8613
    %v8646 = vsub.f32 0.0, %v8614
    %v8647 = vsub.f32 0.0, %v8615
    %v8648 = vmul.f32 %v8632, 1.442695
    %v8649 = vpow.pop %v8648
    %v8650 = vmul.f32 %v8633, 1.442695
    %v8651 = vpow.pop %v8650
    %v8652 = vmul.f32 %v8634, 1.442695
    %v8653 = vpow.pop %v8652
    %v8654 = vmul.f32 %v8635, 1.442695
    %v8655 = vpow.pop %v8654
    %v8656 = vmul.f32 %v8636, 1.442695
    %v8657 = vpow.pop %v8656
    %v8658 = vmul.f32 %v8637, 1.442695
    %v8659 = vpow.pop %v8658
    %v8660 = vmul.f32 %v8638, 1.442695
    %v8661 = vpow.pop %v8660
    %v8662 = vmul.f32 %v8639, 1.442695
    %v8663 = vpow.pop %v8662
    %v8664 = vmul.f32 %v8640, 1.442695
    %v8665 = vpow.pop %v8664
    %v8666 = vmul.f32 %v8641, 1.442695
    %v8667 = vpow.pop %v8666
    %v8668 = vmul.f32 %v8642, 1.442695
    %v8669 = vpow.pop %v8668
    %v8670 = vmul.f32 %v8643, 1.442695
    %v8671 = vpow.pop %v8670
    %v8672 = vmul.f32 %v8644, 1.442695
    %v8673 = vpow.pop %v8672
    %v8674 = vmul.f32 %v8645, 1.442695
    %v8675 = vpow.pop %v8674
    %v8676 = vmul.f32 %v8646, 1.442695
    %v8677 = vpow.pop %v8676
    %v8678 = vmul.f32 %v8647, 1.442695
    %v8679 = vpow.pop %v8678
    %8696 = vrot.lane.b32.xlu0 %v8649, 120
    %v8697 = vpop.permute.xlu0 %8696
    %8698 = vrot.lane.b32.xlu0 %v8651, 120
    %v8699 = vpop.permute.xlu0 %8698
    %8700 = vrot.lane.b32.xlu0 %v8653, 120
    %v8701 = vpop.permute.xlu0 %8700
    %8702 = vrot.lane.b32.xlu0 %v8655, 120
    %v8703 = vpop.permute.xlu0 %8702
    %8704 = vrot.lane.b32.xlu0 %v8657, 120
    %v8705 = vpop.permute.xlu0 %8704
    %8706 = vrot.lane.b32.xlu0 %v8659, 120
    %v8707 = vpop.permute.xlu0 %8706
    %8708 = vrot.lane.b32.xlu0 %v8661, 120
    %v8709 = vpop.permute.xlu0 %8708
    %8710 = vrot.lane.b32.xlu0 %v8663, 120
    %v8711 = vpop.permute.xlu0 %8710
    %8712 = vrot.lane.b32.xlu0 %v8665, 120
    %v8713 = vpop.permute.xlu0 %8712
    %8714 = vrot.lane.b32.xlu0 %v8667, 120
    %v8715 = vpop.permute.xlu0 %8714
    %8716 = vrot.lane.b32.xlu0 %v8669, 120
    %v8717 = vpop.permute.xlu0 %8716
    %8718 = vrot.lane.b32.xlu0 %v8671, 120
    %v8719 = vpop.permute.xlu0 %8718
    %8720 = vrot.lane.b32.xlu0 %v8673, 120
    %v8721 = vpop.permute.xlu0 %8720
    %8722 = vrot.lane.b32.xlu0 %v8675, 120
    %v8723 = vpop.permute.xlu0 %8722
    %8724 = vrot.lane.b32.xlu0 %v8677, 120
    %v8725 = vpop.permute.xlu0 %8724
    %8726 = vrot.lane.b32.xlu0 %v8679, 120
    %v8727 = vpop.permute.xlu0 %8726
    %v8744 = vmul.f32 %v8616, %v8697
    %v8745 = vmul.f32 %v8617, %v8699
    %v8746 = vmul.f32 %v8618, %v8701
    %v8747 = vmul.f32 %v8619, %v8703
    %v8748 = vmul.f32 %v8620, %v8705
    %v8749 = vmul.f32 %v8621, %v8707
    %v8750 = vmul.f32 %v8622, %v8709
    %v8751 = vmul.f32 %v8623, %v8711
    %v8752 = vmul.f32 %v8624, %v8713
    %v8753 = vmul.f32 %v8625, %v8715
    %v8754 = vmul.f32 %v8626, %v8717
    %v8755 = vmul.f32 %v8627, %v8719
    %v8756 = vmul.f32 %v8628, %v8721
    %v8757 = vmul.f32 %v8629, %v8723
    %v8758 = vmul.f32 %v8630, %v8725
    %v8759 = vmul.f32 %v8631, %v8727
    %8776 = vrot.lane.b32.xlu0 %v8600, 120
    %v8777 = vpop.permute.xlu0 %8776
    %8778 = vrot.lane.b32.xlu0 %v8601, 120
    %v8779 = vpop.permute.xlu0 %8778
    %8780 = vrot.lane.b32.xlu0 %v8602, 120
    %v8781 = vpop.permute.xlu0 %8780
    %8782 = vrot.lane.b32.xlu0 %v8603, 120
    %v8783 = vpop.permute.xlu0 %8782
    %8784 = vrot.lane.b32.xlu0 %v8604, 120
    %v8785 = vpop.permute.xlu0 %8784
    %8786 = vrot.lane.b32.xlu0 %v8605, 120
    %v8787 = vpop.permute.xlu0 %8786
    %8788 = vrot.lane.b32.xlu0 %v8606, 120
    %v8789 = vpop.permute.xlu0 %8788
    %8790 = vrot.lane.b32.xlu0 %v8607, 120
    %v8791 = vpop.permute.xlu0 %8790
    %8792 = vrot.lane.b32.xlu0 %v8608, 120
    %v8793 = vpop.permute.xlu0 %8792
    %8794 = vrot.lane.b32.xlu0 %v8609, 120
    %v8795 = vpop.permute.xlu0 %8794
    %8796 = vrot.lane.b32.xlu0 %v8610, 120
    %v8797 = vpop.permute.xlu0 %8796
    %8798 = vrot.lane.b32.xlu0 %v8611, 120
    %v8799 = vpop.permute.xlu0 %8798
    %8800 = vrot.lane.b32.xlu0 %v8612, 120
    %v8801 = vpop.permute.xlu0 %8800
    %8802 = vrot.lane.b32.xlu0 %v8613, 120
    %v8803 = vpop.permute.xlu0 %8802
    %8804 = vrot.lane.b32.xlu0 %v8614, 120
    %v8805 = vpop.permute.xlu0 %8804
    %8806 = vrot.lane.b32.xlu0 %v8615, 120
    %v8807 = vpop.permute.xlu0 %8806
    %v8824 = vsel %vm7325, %v8777, 0.0
    %8825 = vadd.xlane.f32.xlu0 %v8824
    %v8826 = vpop.xlane.xlu0 %8825
    %v8827 = vsel %vm7325, %v8779, 0.0
    %8828 = vadd.xlane.f32.xlu0 %v8827
    %v8829 = vpop.xlane.xlu0 %8828
    %v8830 = vsel %vm7325, %v8781, 0.0
    %8831 = vadd.xlane.f32.xlu0 %v8830
    %v8832 = vpop.xlane.xlu0 %8831
    %v8833 = vsel %vm7325, %v8783, 0.0
    %8834 = vadd.xlane.f32.xlu0 %v8833
    %v8835 = vpop.xlane.xlu0 %8834
    %v8836 = vsel %vm7325, %v8785, 0.0
    %8837 = vadd.xlane.f32.xlu0 %v8836
    %v8838 = vpop.xlane.xlu0 %8837
    %v8839 = vsel %vm7325, %v8787, 0.0
    %8840 = vadd.xlane.f32.xlu0 %v8839
    %v8841 = vpop.xlane.xlu0 %8840
    %v8842 = vsel %vm7325, %v8789, 0.0
    %8843 = vadd.xlane.f32.xlu0 %v8842
    %v8844 = vpop.xlane.xlu0 %8843
    %v8845 = vsel %vm7325, %v8791, 0.0
    %8846 = vadd.xlane.f32.xlu0 %v8845
    %v8847 = vpop.xlane.xlu0 %8846
    %v8848 = vsel %vm7325, %v8793, 0.0
    %8849 = vadd.xlane.f32.xlu0 %v8848
    %v8850 = vpop.xlane.xlu0 %8849
    %v8851 = vsel %vm7325, %v8795, 0.0
    %8852 = vadd.xlane.f32.xlu0 %v8851
    %v8853 = vpop.xlane.xlu0 %8852
    %v8854 = vsel %vm7325, %v8797, 0.0
    %8855 = vadd.xlane.f32.xlu0 %v8854
    %v8856 = vpop.xlane.xlu0 %8855
    %v8857 = vsel %vm7325, %v8799, 0.0
    %8858 = vadd.xlane.f32.xlu0 %v8857
    %v8859 = vpop.xlane.xlu0 %8858
    %v8860 = vsel %vm7325, %v8801, 0.0
    %8861 = vadd.xlane.f32.xlu0 %v8860
    %v8862 = vpop.xlane.xlu0 %8861
    %v8863 = vsel %vm7325, %v8803, 0.0
    %8864 = vadd.xlane.f32.xlu0 %v8863
    %v8865 = vpop.xlane.xlu0 %8864
    %v8866 = vsel %vm7325, %v8805, 0.0
    %8867 = vadd.xlane.f32.xlu0 %v8866
    %v8868 = vpop.xlane.xlu0 %8867
    %v8869 = vsel %vm7325, %v8807, 0.0
    %8870 = vadd.xlane.f32.xlu0 %v8869
    %v8871 = vpop.xlane.xlu0 %8870
    %v8872 = vsub.f32 %v8340, %v8826
    %v8873 = vsub.f32 %v8341, %v8829
    %v8874 = vsub.f32 %v8342, %v8832
    %v8875 = vsub.f32 %v8343, %v8835
    %v8876 = vsub.f32 %v8344, %v8838
    %v8877 = vsub.f32 %v8345, %v8841
    %v8878 = vsub.f32 %v8346, %v8844
    %v8879 = vsub.f32 %v8347, %v8847
    %v8880 = vsub.f32 %v8348, %v8850
    %v8881 = vsub.f32 %v8349, %v8853
    %v8882 = vsub.f32 %v8350, %v8856
    %v8883 = vsub.f32 %v8351, %v8859
    %v8884 = vsub.f32 %v8352, %v8862
    %v8885 = vsub.f32 %v8353, %v8865
    %v8886 = vsub.f32 %v8354, %v8868
    %v8887 = vsub.f32 %v8355, %v8871
    %v8888 = vmul.f32 %v8744, %v8744
    %v8889 = vmul.f32 %v8745, %v8745
    %v8890 = vmul.f32 %v8746, %v8746
    %v8891 = vmul.f32 %v8747, %v8747
    %v8892 = vmul.f32 %v8748, %v8748
    %v8893 = vmul.f32 %v8749, %v8749
    %v8894 = vmul.f32 %v8750, %v8750
    %v8895 = vmul.f32 %v8751, %v8751
    %v8896 = vmul.f32 %v8752, %v8752
    %v8897 = vmul.f32 %v8753, %v8753
    %v8898 = vmul.f32 %v8754, %v8754
    %v8899 = vmul.f32 %v8755, %v8755
    %v8900 = vmul.f32 %v8756, %v8756
    %v8901 = vmul.f32 %v8757, %v8757
    %v8902 = vmul.f32 %v8758, %v8758
    %v8903 = vmul.f32 %v8759, %v8759
    %v8904 = vsel %vm7325, %v8888, 0.0
    %8905 = vadd.xlane.f32.xlu0 %v8904
    %v8906 = vpop.xlane.xlu0 %8905
    %v8907 = vsel %vm7325, %v8889, 0.0
    %8908 = vadd.xlane.f32.xlu0 %v8907
    %v8909 = vpop.xlane.xlu0 %8908
    %v8910 = vsel %vm7325, %v8890, 0.0
    %8911 = vadd.xlane.f32.xlu0 %v8910
    %v8912 = vpop.xlane.xlu0 %8911
    %v8913 = vsel %vm7325, %v8891, 0.0
    %8914 = vadd.xlane.f32.xlu0 %v8913
    %v8915 = vpop.xlane.xlu0 %8914
    %v8916 = vsel %vm7325, %v8892, 0.0
    %8917 = vadd.xlane.f32.xlu0 %v8916
    %v8918 = vpop.xlane.xlu0 %8917
    %v8919 = vsel %vm7325, %v8893, 0.0
    %8920 = vadd.xlane.f32.xlu0 %v8919
    %v8921 = vpop.xlane.xlu0 %8920
    %v8922 = vsel %vm7325, %v8894, 0.0
    %8923 = vadd.xlane.f32.xlu0 %v8922
    %v8924 = vpop.xlane.xlu0 %8923
    %v8925 = vsel %vm7325, %v8895, 0.0
    %8926 = vadd.xlane.f32.xlu0 %v8925
    %v8927 = vpop.xlane.xlu0 %8926
    %v8928 = vsel %vm7325, %v8896, 0.0
    %8929 = vadd.xlane.f32.xlu0 %v8928
    %v8930 = vpop.xlane.xlu0 %8929
    %v8931 = vsel %vm7325, %v8897, 0.0
    %8932 = vadd.xlane.f32.xlu0 %v8931
    %v8933 = vpop.xlane.xlu0 %8932
    %v8934 = vsel %vm7325, %v8898, 0.0
    %8935 = vadd.xlane.f32.xlu0 %v8934
    %v8936 = vpop.xlane.xlu0 %8935
    %v8937 = vsel %vm7325, %v8899, 0.0
    %8938 = vadd.xlane.f32.xlu0 %v8937
    %v8939 = vpop.xlane.xlu0 %8938
    %v8940 = vsel %vm7325, %v8900, 0.0
    %8941 = vadd.xlane.f32.xlu0 %v8940
    %v8942 = vpop.xlane.xlu0 %8941
    %v8943 = vsel %vm7325, %v8901, 0.0
    %8944 = vadd.xlane.f32.xlu0 %v8943
    %v8945 = vpop.xlane.xlu0 %8944
    %v8946 = vsel %vm7325, %v8902, 0.0
    %8947 = vadd.xlane.f32.xlu0 %v8946
    %v8948 = vpop.xlane.xlu0 %8947
    %v8949 = vsel %vm7325, %v8903, 0.0
    %8950 = vadd.xlane.f32.xlu0 %v8949
    %v8951 = vpop.xlane.xlu0 %8950
    %v8952 = vmul.f32 %v8906, -0.5
    %v8953 = vmul.f32 %v8909, -0.5
    %v8954 = vmul.f32 %v8912, -0.5
    %v8955 = vmul.f32 %v8915, -0.5
    %v8956 = vmul.f32 %v8918, -0.5
    %v8957 = vmul.f32 %v8921, -0.5
    %v8958 = vmul.f32 %v8924, -0.5
    %v8959 = vmul.f32 %v8927, -0.5
    %v8960 = vmul.f32 %v8930, -0.5
    %v8961 = vmul.f32 %v8933, -0.5
    %v8962 = vmul.f32 %v8936, -0.5
    %v8963 = vmul.f32 %v8939, -0.5
    %v8964 = vmul.f32 %v8942, -0.5
    %v8965 = vmul.f32 %v8945, -0.5
    %v8966 = vmul.f32 %v8948, -0.5
    %v8967 = vmul.f32 %v8951, -0.5
    %v8968 = vsub.f32 %v8952, 7.351508
    %v8969 = vsub.f32 %v8953, 7.351508
    %v8970 = vsub.f32 %v8954, 7.351508
    %v8971 = vsub.f32 %v8955, 7.351508
    %v8972 = vsub.f32 %v8956, 7.351508
    %v8973 = vsub.f32 %v8957, 7.351508
    %v8974 = vsub.f32 %v8958, 7.351508
    %v8975 = vsub.f32 %v8959, 7.351508
    %v8976 = vsub.f32 %v8960, 7.351508
    %v8977 = vsub.f32 %v8961, 7.351508
    %v8978 = vsub.f32 %v8962, 7.351508
    %v8979 = vsub.f32 %v8963, 7.351508
    %v8980 = vsub.f32 %v8964, 7.351508
    %v8981 = vsub.f32 %v8965, 7.351508
    %v8982 = vsub.f32 %v8966, 7.351508
    %v8983 = vsub.f32 %v8967, 7.351508
    %v8984 = vadd.f32 %v8968, %v8872
    %v8985 = vadd.f32 %v8969, %v8873
    %v8986 = vadd.f32 %v8970, %v8874
    %v8987 = vadd.f32 %v8971, %v8875
    %v8988 = vadd.f32 %v8972, %v8876
    %v8989 = vadd.f32 %v8973, %v8877
    %v8990 = vadd.f32 %v8974, %v8878
    %v8991 = vadd.f32 %v8975, %v8879
    %v8992 = vadd.f32 %v8976, %v8880
    %v8993 = vadd.f32 %v8977, %v8881
    %v8994 = vadd.f32 %v8978, %v8882
    %v8995 = vadd.f32 %v8979, %v8883
    %v8996 = vadd.f32 %v8980, %v8884
    %v8997 = vadd.f32 %v8981, %v8885
    %v8998 = vadd.f32 %v8982, %v8886
    %v8999 = vadd.f32 %v8983, %v8887
    %9000 = vxpose.xlu0.b32.start [1/16] %v8984, 128
    %9001 = vxpose.xlu0.b32.cont [2/16] %v8985, 128
    %9002 = vxpose.xlu0.b32.cont [3/16] %v8986, 128
    %9003 = vxpose.xlu0.b32.cont [4/16] %v8987, 128
    %9004 = vxpose.xlu0.b32.cont [5/16] %v8988, 128
    %9005 = vxpose.xlu0.b32.cont [6/16] %v8989, 128
    %9006 = vxpose.xlu0.b32.cont [7/16] %v8990, 128
    %9007 = vxpose.xlu0.b32.cont [8/16] %v8991, 128
    %9008 = vxpose.xlu0.b32.cont [9/16] %v8992, 128
    %9009 = vxpose.xlu0.b32.cont [10/16] %v8993, 128
    %9010 = vxpose.xlu0.b32.cont [11/16] %v8994, 128
    %9011 = vxpose.xlu0.b32.cont [12/16] %v8995, 128
    %9012 = vxpose.xlu0.b32.cont [13/16] %v8996, 128
    %9013 = vxpose.xlu0.b32.cont [14/16] %v8997, 128
    %9014 = vxpose.xlu0.b32.cont [15/16] %v8998, 128
    %9015 = vxpose.xlu0.b32.end [16/16] %v8999, 128
    %v9016 = vpop.trf.xlu0
    %v9017 = vpop.trf.xlu0
    %v9018 = vpop.trf.xlu0
    %v9019 = vpop.trf.xlu0
    %v9020 = vpop.trf.xlu0
    %v9021 = vpop.trf.xlu0
    %v9022 = vpop.trf.xlu0
    %v9023 = vpop.trf.xlu0
    %v9024 = vpop.trf.xlu0
    %v9025 = vpop.trf.xlu0
    %v9026 = vpop.trf.xlu0
    %v9027 = vpop.trf.xlu0
    %v9028 = vpop.trf.xlu0
    %v9029 = vpop.trf.xlu0
    %v9030 = vpop.trf.xlu0
    %v9031 = vpop.trf.xlu0
    %9032 = vst [vmem:[#allocation2] sm:$0x1] %v9016
    // Predicated region
    $region54: #{tpu_custom_call.1} parent=1 // pred_check
      _
    $region55: #{tpu_custom_call.1} parent=1 // pred_check_branch
      %9034 = sbr.rel (0) target = $region57
    $region56: #{tpu_custom_call.1} parent=1 // pred_region
      %s9036 = ssub.s32 16, 16
      %9037 = vsyncadd [#allocation3], %s9036
      %s9039 = sshll.u32 [#allocation2], 4
      %s9040 = int_to_ptr.vmem [resolvable:$true] %s9039
      %9042 = dma.vmem_to_hbm [thread:$0]  %s9040, 16, %s13, [#allocation3]
    $region57: #{tpu_custom_call.1} parent=1 // pred_fallthru
      _
    // Predicated region
    $region58: #{tpu_custom_call.1} parent=1 // pred_check
      _
    $region59: #{tpu_custom_call.1} parent=1 // pred_check_branch
      %9044 = sbr.rel (0) target = $region61
    $region60: #{tpu_custom_call.1} parent=1 // pred_region
      %9045 = dma.done [#allocation3], 16
    $region61: #{tpu_custom_call.1} parent=1 // pred_fallthru
      _
    %9046 = vsyncpa [#allocation3], 1

</llo_original>
